<compile_context>
chip_gen: v7x
topology: tpu7x:2x2x1
jax: 0.10.0
libtpu: 0.0.40
codegen_flags: <defaults>
</compile_context>

<pallas_src>
import math
from functools import partial

import jax
import jax.numpy as jnp
from jax.experimental import pallas as pl
from jax.experimental.pallas import tpu as pltpu

LN_EPS = 1e-5  # nn.LayerNorm default


def _layernorm_f32(x, w, b, eps=LN_EPS):
    mu = jnp.mean(x, axis=-1, keepdims=True)
    var = jnp.mean((x - mu) ** 2, axis=-1, keepdims=True)
    return (x - mu) * jax.lax.rsqrt(var + eps) * w + b


def _mm(a_f32, w_bf16, b_f32=None):
    """x @ W with bf16 MXU operands, f32 accumulation, optional f32 bias."""
    out = jnp.dot(a_f32.astype(jnp.bfloat16), w_bf16,
                  preferred_element_type=jnp.float32)
    if b_f32 is not None:
        out = out + b_f32
    return out


# --------------------------- Fused forward kernel ----------------------------
def fused_transformer_kernel(
        x_ref, emb_w_ref, emb_b_ref,
        wqkv_ref, bqkv_ref, wo_ref, bo_ref,
        ln1w_ref, ln1b_ref, w1_ref, b1_ref, w2_ref, b2_ref,
        ln2w_ref, ln2b_ref,
        rec_w_ref, rec_b_ref,
        o_ref,
        *, n_heads, head_dim, n_layers, batch, seq):
    D = n_heads * head_dim
    scale = 1.0 / math.sqrt(head_dim)

    # ---- Embedding: (B*S, Din) @ (Din, D) ----
    h = _mm(x_ref[...], emb_w_ref[...], emb_b_ref[...])           # (R, D) f32

    for l in range(n_layers):                                     # static unroll
        # ---- packed QKV projection ----
        qkv = _mm(h, wqkv_ref[l], bqkv_ref[l])                    # (R, 3D) f32
        q = qkv[:, :D] * scale
        k = qkv[:, D:2 * D]
        v = qkv[:, 2 * D:]

        wo_l = wo_ref[l]                                          # (D, D) bf16
        bo_l = bo_ref[l]                                          # (1, D) f32

        # ---- multi-head self-attention; heads folded into the O-projection ----
        att_blocks = []
        for b in range(batch):                                    # B=2, static
            r0 = b * seq
            acc = jnp.zeros((seq, D), jnp.float32)
            for hh in range(n_heads):                             # static
                c0 = hh * head_dim
                qh = q[r0:r0 + seq, c0:c0 + head_dim]             # (S, hd) f32
                kh = k[r0:r0 + seq, c0:c0 + head_dim]
                vh = v[r0:r0 + seq, c0:c0 + head_dim]
                s = jnp.dot(qh, kh.T, preferred_element_type=jnp.float32)
                s = s - jnp.max(s, axis=-1, keepdims=True)
                p = jnp.exp(s)
                p = p * pl.reciprocal(jnp.sum(p, axis=-1, keepdims=True),
                                      approx=True)
                oh = jnp.dot(p, vh, preferred_element_type=jnp.float32)
                # accumulate head output straight into the O-projection
                acc = acc + jnp.dot(oh.astype(jnp.bfloat16),
                                    wo_l[c0:c0 + head_dim, :],
                                    preferred_element_type=jnp.float32)
            att_blocks.append(acc + bo_l)
        # sublane-aligned (8-row) blocks: cheap axis-0 concat, no lane shuffles
        attn = jnp.concatenate(att_blocks, axis=0)                # (R, D) f32

        # ---- residual + LayerNorm 1 (f32) ----
        y = _layernorm_f32(h + attn, ln1w_ref[l], ln1b_ref[l])

        # ---- feed-forward (ReLU) ----
        h1 = jnp.maximum(_mm(y, w1_ref[l], b1_ref[l]), 0.0)       # (R, F)
        ff = _mm(h1, w2_ref[l], b2_ref[l])                        # (R, D)

        # ---- residual + LayerNorm 2 (f32) ----
        h = _layernorm_f32(y + ff, ln2w_ref[l], ln2b_ref[l])

    # ---- reconstruction head ----
    o_ref[...] = _mm(h, rec_w_ref[...], rec_b_ref[...])


# --------------------------- Python wrapper -----------------------------------
def pretraining_transformer_forward(params, x, n_heads):
    B, S, Din = x.shape
    Dm = params["emb_w"].shape[1]
    L = params["wqkv"].shape[0]
    R = B * S
    head_dim = Dm // n_heads

    bf16 = lambda a: a.astype(jnp.bfloat16)   # cast matmul weights once (XLA side)

    kern = partial(fused_transformer_kernel,
                   n_heads=n_heads, head_dim=head_dim,
                   n_layers=L, batch=B, seq=S)

    out2d = pl.pallas_call(
        kern,
        out_shape=jax.ShapeDtypeStruct((R, Din), jnp.float32),
        # Actual resident footprint is ~2 MiB; 32 MiB leaves ample headroom and
        # stays within v7x's 64 MiB VMEM (and all chips' physical limits).
        compiler_params=pltpu.CompilerParams(vmem_limit_bytes=32 * 1024 * 1024),
    )(
        x.reshape(R, Din),
        bf16(params["emb_w"]), params["emb_b"],
        bf16(params["wqkv"]), params["bqkv"],
        bf16(params["wo"]), params["bo"],
        params["ln1w"], params["ln1b"],
        bf16(params["w1"]), params["b1"],
        bf16(params["w2"]), params["b2"],
        params["ln2w"], params["ln2b"],
        bf16(params["rec_w"]), params["rec_b"],
    )
    return out2d.reshape(B, S, Din)


# --------------------------- Parameter init -----------------------------------
# Weights are stored pre-transposed as (in_features, out_features); per-layer
# tensors are stacked along a leading layer axis so a single fused kernel can
# statically index them.
def init_params(key, input_dim, model_dim, n_heads, num_layers, ffn_dim):
    def lin(k, din, dout):
        kw, kb = jax.random.split(k)
        lim = 1.0 / math.sqrt(din)
        w = jax.random.uniform(kw, (din, dout), jnp.float32, -lim, lim)
        b = jax.random.uniform(kb, (1, dout), jnp.float32, -lim, lim)
        return w, b

    keys = jax.random.split(key, num_layers + 2)
    emb_w, emb_b = lin(keys[0], input_dim, model_dim)
    rec_w, rec_b = lin(keys[1], model_dim, input_dim)

    wqkv, bqkv, wo, bo, w1, b1, w2, b2 = ([] for _ in range(8))
    for l in range(num_layers):
        lk = jax.random.split(keys[2 + l], 4)
        a, ab = lin(lk[0], model_dim, 3 * model_dim); wqkv.append(a); bqkv.append(ab)
        a, ab = lin(lk[1], model_dim, model_dim);     wo.append(a);   bo.append(ab)
        a, ab = lin(lk[2], model_dim, ffn_dim);       w1.append(a);   b1.append(ab)
        a, ab = lin(lk[3], ffn_dim, model_dim);       w2.append(a);   b2.append(ab)

    stk = lambda xs: jnp.stack(xs, axis=0)
    ones = jnp.ones((num_layers, 1, model_dim), jnp.float32)
    zeros = jnp.zeros((num_layers, 1, model_dim), jnp.float32)
    return dict(
        emb_w=emb_w, emb_b=emb_b, rec_w=rec_w, rec_b=rec_b,
        wqkv=stk(wqkv), bqkv=stk(bqkv), wo=stk(wo), bo=stk(bo),
        ln1w=ones, ln1b=zeros,
        w1=stk(w1), b1=stk(b1), w2=stk(w2), b2=stk(b2),
        ln2w=ones, ln2b=zeros,
    )


# --------------------------- Pure-JAX f32 reference ---------------------------
def _ref_forward(params, x, n_heads):
    hp = jax.lax.Precision.HIGHEST
    lin = lambda a, w, b: jnp.dot(a, w, precision=hp) + b   # weights pre-transposed
    h = lin(x, params["emb_w"], params["emb_b"])
    B, S, D = h.shape
    hd = D // n_heads
    L = params["wqkv"].shape[0]
    for l in range(L):
        qkv = lin(h, params["wqkv"][l], params["bqkv"][l])
        q, k, v = jnp.split(qkv, 3, axis=-1)
        q = q.reshape(B, S, n_heads, hd).transpose(0, 2, 1, 3)
        k = k.reshape(B, S, n_heads, hd).transpose(0, 2, 1, 3)
        v = v.reshape(B, S, n_heads, hd).transpose(0, 2, 1, 3)
        s = jnp.einsum("bhqd,bhkd->bhqk", q, k, precision=hp) / math.sqrt(hd)
        a = jax.nn.softmax(s, axis=-1)
        o = jnp.einsum("bhqk,bhkd->bhqd", a, v, precision=hp)
        o = o.transpose(0, 2, 1, 3).reshape(B, S, D)
        o = lin(o, params["wo"][l], params["bo"][l])
        h = _layernorm_f32(h + o, params["ln1w"][l], params["ln1b"][l])
        f = jnp.maximum(lin(h, params["w1"][l], params["b1"][l]), 0.0)
        f = lin(f, params["w2"][l], params["b2"][l])
        h = _layernorm_f32(h + f, params["ln2w"][l], params["ln2b"][l])
    return lin(h, params["rec_w"], params["rec_b"])


if __name__ == "__main__":
    # Small shapes consistent with the module's forward.
    input_dim, model_dim, n_heads, num_layers = 12, 32, 4, 2
    sequence_length, batch = 8, 2
    ffn_dim = 2048  # nn.TransformerEncoderLayer default dim_feedforward
    # TODO(synk): dropout>0 (training mode) is not implemented; module default is 0.0.

    key = jax.random.PRNGKey(0)
    pkey, xkey = jax.random.split(key)
    params = init_params(pkey, input_dim, model_dim, n_heads, num_layers, ffn_dim)
    x = jax.random.normal(xkey, (batch, sequence_length, input_dim), jnp.float32)

    fwd = jax.jit(lambda p, xx: pretraining_transformer_forward(p, xx, n_heads))
    out = jax.block_until_ready(fwd(params, x))
    assert out.shape == (batch, sequence_length, input_dim)

    ref = _ref_forward(params, x, n_heads)
    err = float(jnp.max(jnp.abs(out - ref)))
    # bf16 matmul operands (f32 accumulation) -> bf16-appropriate tolerance.
    assert jnp.allclose(out, ref, atol=5e-2, rtol=5e-2), f"max abs err {err}"

    print("KERNEL_OK")
</pallas_src>

<mosaic_0001>
module attributes {stable_mosaic.version = 11 : i64} {
  func.func @fused_transformer_kernel(%arg0: memref<16x12xf32, #tpu.memory_space<vmem>>, %arg1: memref<12x32xbf16, #tpu.memory_space<vmem>>, %arg2: memref<1x32xf32, #tpu.memory_space<vmem>>, %arg3: memref<2x32x96xbf16, #tpu.memory_space<vmem>>, %arg4: memref<2x1x96xf32, #tpu.memory_space<vmem>>, %arg5: memref<2x32x32xbf16, #tpu.memory_space<vmem>>, %arg6: memref<2x1x32xf32, #tpu.memory_space<vmem>>, %arg7: memref<2x1x32xf32, #tpu.memory_space<vmem>>, %arg8: memref<2x1x32xf32, #tpu.memory_space<vmem>>, %arg9: memref<2x32x2048xbf16, #tpu.memory_space<vmem>>, %arg10: memref<2x1x2048xf32, #tpu.memory_space<vmem>>, %arg11: memref<2x2048x32xbf16, #tpu.memory_space<vmem>>, %arg12: memref<2x1x32xf32, #tpu.memory_space<vmem>>, %arg13: memref<2x1x32xf32, #tpu.memory_space<vmem>>, %arg14: memref<2x1x32xf32, #tpu.memory_space<vmem>>, %arg15: memref<32x12xbf16, #tpu.memory_space<vmem>>, %arg16: memref<1x12xf32, #tpu.memory_space<vmem>>, %arg17: memref<16x12xf32, #tpu.memory_space<vmem>>) attributes {dimension_semantics = [], scalar_prefetch = 0 : i64, scratch_operands = 0 : i64, tpu.core_type = #tpu.core_type<tc>} {
    %c0 = arith.constant 0 : index
    %c0_0 = arith.constant 0 : index
    %0 = vector.load %arg0[%c0, %c0_0] : memref<16x12xf32, #tpu.memory_space<vmem>>, vector<16x12xf32>
    %c0_1 = arith.constant 0 : index
    %c0_2 = arith.constant 0 : index
    %1 = vector.load %arg1[%c0_1, %c0_2] : memref<12x32xbf16, #tpu.memory_space<vmem>>, vector<12x32xbf16>
    %c0_3 = arith.constant 0 : index
    %c0_4 = arith.constant 0 : index
    %2 = vector.load %arg2[%c0_3, %c0_4] : memref<1x32xf32, #tpu.memory_space<vmem>>, vector<1x32xf32>
    %3 = arith.truncf %0 : vector<16x12xf32> to vector<16x12xbf16>
    %cst = arith.constant dense<0.000000e+00> : vector<16x32xf32>
    %4 = tpu.matmul %3, %1, %cst {dimension_numbers = #tpu.dot_dimension_numbers<[1], [0], [0], [1], [0, 0, 1, 1], [], []>} : vector<16x12xbf16>, vector<12x32xbf16>, vector<16x32xf32> -> vector<16x32xf32>
    %5 = vector.broadcast %2 : vector<1x32xf32> to vector<16x32xf32>
    %6 = arith.addf %4, %5 : vector<16x32xf32>
    %c0_5 = arith.constant 0 : index
    %c0_6 = arith.constant 0 : index
    %c0_7 = arith.constant 0 : index
    %7 = vector.load %arg3[%c0_5, %c0_6, %c0_7] : memref<2x32x96xbf16, #tpu.memory_space<vmem>>, vector<1x32x96xbf16>
    %8 = vector.shape_cast %7 : vector<1x32x96xbf16> to vector<32x96xbf16>
    %c0_8 = arith.constant 0 : index
    %c0_9 = arith.constant 0 : index
    %c0_10 = arith.constant 0 : index
    %9 = vector.load %arg4[%c0_8, %c0_9, %c0_10] : memref<2x1x96xf32, #tpu.memory_space<vmem>>, vector<1x1x96xf32>
    %10 = vector.shape_cast %9 : vector<1x1x96xf32> to vector<1x96xf32>
    %11 = arith.truncf %6 : vector<16x32xf32> to vector<16x32xbf16>
    %cst_11 = arith.constant dense<0.000000e+00> : vector<16x96xf32>
    %12 = tpu.matmul %11, %8, %cst_11 {dimension_numbers = #tpu.dot_dimension_numbers<[1], [0], [0], [1], [0, 0, 1, 1], [], []>} : vector<16x32xbf16>, vector<32x96xbf16>, vector<16x96xf32> -> vector<16x96xf32>
    %13 = vector.broadcast %10 : vector<1x96xf32> to vector<16x96xf32>
    %14 = arith.addf %12, %13 : vector<16x96xf32>
    %15 = vector.extract_strided_slice %14 {offsets = [0, 0], sizes = [16, 32], strides = [1, 1]} : vector<16x96xf32> to vector<16x32xf32>
    %cst_12 = arith.constant 0.353553385 : f32
    %16 = vector.broadcast %cst_12 : f32 to vector<16x32xf32>
    %17 = arith.mulf %15, %16 : vector<16x32xf32>
    %18 = vector.extract_strided_slice %14 {offsets = [0, 32], sizes = [16, 32], strides = [1, 1]} : vector<16x96xf32> to vector<16x32xf32>
    %19 = vector.extract_strided_slice %14 {offsets = [0, 64], sizes = [16, 32], strides = [1, 1]} : vector<16x96xf32> to vector<16x32xf32>
    %c0_13 = arith.constant 0 : index
    %c0_14 = arith.constant 0 : index
    %c0_15 = arith.constant 0 : index
    %20 = vector.load %arg5[%c0_13, %c0_14, %c0_15] : memref<2x32x32xbf16, #tpu.memory_space<vmem>>, vector<1x32x32xbf16>
    %21 = vector.shape_cast %20 : vector<1x32x32xbf16> to vector<32x32xbf16>
    %c0_16 = arith.constant 0 : index
    %c0_17 = arith.constant 0 : index
    %c0_18 = arith.constant 0 : index
    %22 = vector.load %arg6[%c0_16, %c0_17, %c0_18] : memref<2x1x32xf32, #tpu.memory_space<vmem>>, vector<1x1x32xf32>
    %23 = vector.shape_cast %22 : vector<1x1x32xf32> to vector<1x32xf32>
    %cst_19 = arith.constant 0.000000e+00 : f32
    %24 = vector.broadcast %cst_19 : f32 to vector<8x32xf32>
    %25 = vector.extract_strided_slice %17 {offsets = [0, 0], sizes = [8, 8], strides = [1, 1]} : vector<16x32xf32> to vector<8x8xf32>
    %26 = vector.extract_strided_slice %18 {offsets = [0, 0], sizes = [8, 8], strides = [1, 1]} : vector<16x32xf32> to vector<8x8xf32>
    %27 = vector.extract_strided_slice %19 {offsets = [0, 0], sizes = [8, 8], strides = [1, 1]} : vector<16x32xf32> to vector<8x8xf32>
    %28 = tpu.transpose %26, [1, 0] : vector<8x8xf32> -> vector<8x8xf32>
    %cst_20 = arith.constant dense<0.000000e+00> : vector<8x8xf32>
    %29 = tpu.matmul %25, %28, %cst_20 {dimension_numbers = #tpu.dot_dimension_numbers<[1], [0], [0], [1], [0, 0, 1, 1], [], []>} : vector<8x8xf32>, vector<8x8xf32>, vector<8x8xf32> -> vector<8x8xf32>
    %cst_21 = arith.constant dense<0xFF800000> : vector<8xf32>
    %30 = vector.multi_reduction <maximumf>, %29, %cst_21 [1] : vector<8x8xf32> to vector<8xf32>
    %31 = vector.shape_cast %30 : vector<8xf32> to vector<8x1xf32>
    %32 = vector.broadcast %31 : vector<8x1xf32> to vector<8x8xf32>
    %33 = arith.subf %29, %32 : vector<8x8xf32>
    %34 = math.exp %33 : vector<8x8xf32>
    %cst_22 = arith.constant dense<0.000000e+00> : vector<8xf32>
    %35 = vector.multi_reduction <add>, %34, %cst_22 [1] : vector<8x8xf32> to vector<8xf32>
    %36 = vector.shape_cast %35 : vector<8xf32> to vector<8x1xf32>
    %37 = tpu.reciprocal %36 {approx = true} : vector<8x1xf32> -> vector<8x1xf32>
    %38 = vector.broadcast %37 : vector<8x1xf32> to vector<8x8xf32>
    %39 = arith.mulf %34, %38 : vector<8x8xf32>
    %cst_23 = arith.constant dense<0.000000e+00> : vector<8x8xf32>
    %40 = tpu.matmul %39, %27, %cst_23 {dimension_numbers = #tpu.dot_dimension_numbers<[1], [0], [0], [1], [0, 0, 1, 1], [], []>} : vector<8x8xf32>, vector<8x8xf32>, vector<8x8xf32> -> vector<8x8xf32>
    %41 = arith.truncf %40 : vector<8x8xf32> to vector<8x8xbf16>
    %42 = vector.extract_strided_slice %21 {offsets = [0, 0], sizes = [8, 32], strides = [1, 1]} : vector<32x32xbf16> to vector<8x32xbf16>
    %cst_24 = arith.constant dense<0.000000e+00> : vector<8x32xf32>
    %43 = tpu.matmul %41, %42, %cst_24 {dimension_numbers = #tpu.dot_dimension_numbers<[1], [0], [0], [1], [0, 0, 1, 1], [], []>} : vector<8x8xbf16>, vector<8x32xbf16>, vector<8x32xf32> -> vector<8x32xf32>
    %44 = arith.addf %24, %43 : vector<8x32xf32>
    %45 = vector.extract_strided_slice %17 {offsets = [0, 8], sizes = [8, 8], strides = [1, 1]} : vector<16x32xf32> to vector<8x8xf32>
    %46 = vector.extract_strided_slice %18 {offsets = [0, 8], sizes = [8, 8], strides = [1, 1]} : vector<16x32xf32> to vector<8x8xf32>
    %47 = vector.extract_strided_slice %19 {offsets = [0, 8], sizes = [8, 8], strides = [1, 1]} : vector<16x32xf32> to vector<8x8xf32>
    %48 = tpu.transpose %46, [1, 0] : vector<8x8xf32> -> vector<8x8xf32>
    %cst_25 = arith.constant dense<0.000000e+00> : vector<8x8xf32>
    %49 = tpu.matmul %45, %48, %cst_25 {dimension_numbers = #tpu.dot_dimension_numbers<[1], [0], [0], [1], [0, 0, 1, 1], [], []>} : vector<8x8xf32>, vector<8x8xf32>, vector<8x8xf32> -> vector<8x8xf32>
    %cst_26 = arith.constant dense<0xFF800000> : vector<8xf32>
    %50 = vector.multi_reduction <maximumf>, %49, %cst_26 [1] : vector<8x8xf32> to vector<8xf32>
    %51 = vector.shape_cast %50 : vector<8xf32> to vector<8x1xf32>
    %52 = vector.broadcast %51 : vector<8x1xf32> to vector<8x8xf32>
    %53 = arith.subf %49, %52 : vector<8x8xf32>
    %54 = math.exp %53 : vector<8x8xf32>
    %cst_27 = arith.constant dense<0.000000e+00> : vector<8xf32>
    %55 = vector.multi_reduction <add>, %54, %cst_27 [1] : vector<8x8xf32> to vector<8xf32>
    %56 = vector.shape_cast %55 : vector<8xf32> to vector<8x1xf32>
    %57 = tpu.reciprocal %56 {approx = true} : vector<8x1xf32> -> vector<8x1xf32>
    %58 = vector.broadcast %57 : vector<8x1xf32> to vector<8x8xf32>
    %59 = arith.mulf %54, %58 : vector<8x8xf32>
    %cst_28 = arith.constant dense<0.000000e+00> : vector<8x8xf32>
    %60 = tpu.matmul %59, %47, %cst_28 {dimension_numbers = #tpu.dot_dimension_numbers<[1], [0], [0], [1], [0, 0, 1, 1], [], []>} : vector<8x8xf32>, vector<8x8xf32>, vector<8x8xf32> -> vector<8x8xf32>
    %61 = arith.truncf %60 : vector<8x8xf32> to vector<8x8xbf16>
    %62 = vector.extract_strided_slice %21 {offsets = [8, 0], sizes = [8, 32], strides = [1, 1]} : vector<32x32xbf16> to vector<8x32xbf16>
    %cst_29 = arith.constant dense<0.000000e+00> : vector<8x32xf32>
    %63 = tpu.matmul %61, %62, %cst_29 {dimension_numbers = #tpu.dot_dimension_numbers<[1], [0], [0], [1], [0, 0, 1, 1], [], []>} : vector<8x8xbf16>, vector<8x32xbf16>, vector<8x32xf32> -> vector<8x32xf32>
    %64 = arith.addf %44, %63 : vector<8x32xf32>
    %65 = vector.extract_strided_slice %17 {offsets = [0, 16], sizes = [8, 8], strides = [1, 1]} : vector<16x32xf32> to vector<8x8xf32>
    %66 = vector.extract_strided_slice %18 {offsets = [0, 16], sizes = [8, 8], strides = [1, 1]} : vector<16x32xf32> to vector<8x8xf32>
    %67 = vector.extract_strided_slice %19 {offsets = [0, 16], sizes = [8, 8], strides = [1, 1]} : vector<16x32xf32> to vector<8x8xf32>
    %68 = tpu.transpose %66, [1, 0] : vector<8x8xf32> -> vector<8x8xf32>
    %cst_30 = arith.constant dense<0.000000e+00> : vector<8x8xf32>
    %69 = tpu.matmul %65, %68, %cst_30 {dimension_numbers = #tpu.dot_dimension_numbers<[1], [0], [0], [1], [0, 0, 1, 1], [], []>} : vector<8x8xf32>, vector<8x8xf32>, vector<8x8xf32> -> vector<8x8xf32>
    %cst_31 = arith.constant dense<0xFF800000> : vector<8xf32>
    %70 = vector.multi_reduction <maximumf>, %69, %cst_31 [1] : vector<8x8xf32> to vector<8xf32>
    %71 = vector.shape_cast %70 : vector<8xf32> to vector<8x1xf32>
    %72 = vector.broadcast %71 : vector<8x1xf32> to vector<8x8xf32>
    %73 = arith.subf %69, %72 : vector<8x8xf32>
    %74 = math.exp %73 : vector<8x8xf32>
    %cst_32 = arith.constant dense<0.000000e+00> : vector<8xf32>
    %75 = vector.multi_reduction <add>, %74, %cst_32 [1] : vector<8x8xf32> to vector<8xf32>
    %76 = vector.shape_cast %75 : vector<8xf32> to vector<8x1xf32>
    %77 = tpu.reciprocal %76 {approx = true} : vector<8x1xf32> -> vector<8x1xf32>
    %78 = vector.broadcast %77 : vector<8x1xf32> to vector<8x8xf32>
    %79 = arith.mulf %74, %78 : vector<8x8xf32>
    %cst_33 = arith.constant dense<0.000000e+00> : vector<8x8xf32>
    %80 = tpu.matmul %79, %67, %cst_33 {dimension_numbers = #tpu.dot_dimension_numbers<[1], [0], [0], [1], [0, 0, 1, 1], [], []>} : vector<8x8xf32>, vector<8x8xf32>, vector<8x8xf32> -> vector<8x8xf32>
    %81 = arith.truncf %80 : vector<8x8xf32> to vector<8x8xbf16>
    %82 = vector.extract_strided_slice %21 {offsets = [16, 0], sizes = [8, 32], strides = [1, 1]} : vector<32x32xbf16> to vector<8x32xbf16>
    %cst_34 = arith.constant dense<0.000000e+00> : vector<8x32xf32>
    %83 = tpu.matmul %81, %82, %cst_34 {dimension_numbers = #tpu.dot_dimension_numbers<[1], [0], [0], [1], [0, 0, 1, 1], [], []>} : vector<8x8xbf16>, vector<8x32xbf16>, vector<8x32xf32> -> vector<8x32xf32>
    %84 = arith.addf %64, %83 : vector<8x32xf32>
    %85 = vector.extract_strided_slice %17 {offsets = [0, 24], sizes = [8, 8], strides = [1, 1]} : vector<16x32xf32> to vector<8x8xf32>
    %86 = vector.extract_strided_slice %18 {offsets = [0, 24], sizes = [8, 8], strides = [1, 1]} : vector<16x32xf32> to vector<8x8xf32>
    %87 = vector.extract_strided_slice %19 {offsets = [0, 24], sizes = [8, 8], strides = [1, 1]} : vector<16x32xf32> to vector<8x8xf32>
    %88 = tpu.transpose %86, [1, 0] : vector<8x8xf32> -> vector<8x8xf32>
    %cst_35 = arith.constant dense<0.000000e+00> : vector<8x8xf32>
    %89 = tpu.matmul %85, %88, %cst_35 {dimension_numbers = #tpu.dot_dimension_numbers<[1], [0], [0], [1], [0, 0, 1, 1], [], []>} : vector<8x8xf32>, vector<8x8xf32>, vector<8x8xf32> -> vector<8x8xf32>
    %cst_36 = arith.constant dense<0xFF800000> : vector<8xf32>
    %90 = vector.multi_reduction <maximumf>, %89, %cst_36 [1] : vector<8x8xf32> to vector<8xf32>
    %91 = vector.shape_cast %90 : vector<8xf32> to vector<8x1xf32>
    %92 = vector.broadcast %91 : vector<8x1xf32> to vector<8x8xf32>
    %93 = arith.subf %89, %92 : vector<8x8xf32>
    %94 = math.exp %93 : vector<8x8xf32>
    %cst_37 = arith.constant dense<0.000000e+00> : vector<8xf32>
    %95 = vector.multi_reduction <add>, %94, %cst_37 [1] : vector<8x8xf32> to vector<8xf32>
    %96 = vector.shape_cast %95 : vector<8xf32> to vector<8x1xf32>
    %97 = tpu.reciprocal %96 {approx = true} : vector<8x1xf32> -> vector<8x1xf32>
    %98 = vector.broadcast %97 : vector<8x1xf32> to vector<8x8xf32>
    %99 = arith.mulf %94, %98 : vector<8x8xf32>
    %cst_38 = arith.constant dense<0.000000e+00> : vector<8x8xf32>
    %100 = tpu.matmul %99, %87, %cst_38 {dimension_numbers = #tpu.dot_dimension_numbers<[1], [0], [0], [1], [0, 0, 1, 1], [], []>} : vector<8x8xf32>, vector<8x8xf32>, vector<8x8xf32> -> vector<8x8xf32>
    %101 = arith.truncf %100 : vector<8x8xf32> to vector<8x8xbf16>
    %102 = vector.extract_strided_slice %21 {offsets = [24, 0], sizes = [8, 32], strides = [1, 1]} : vector<32x32xbf16> to vector<8x32xbf16>
    %cst_39 = arith.constant dense<0.000000e+00> : vector<8x32xf32>
    %103 = tpu.matmul %101, %102, %cst_39 {dimension_numbers = #tpu.dot_dimension_numbers<[1], [0], [0], [1], [0, 0, 1, 1], [], []>} : vector<8x8xbf16>, vector<8x32xbf16>, vector<8x32xf32> -> vector<8x32xf32>
    %104 = arith.addf %84, %103 : vector<8x32xf32>
    %105 = vector.broadcast %23 : vector<1x32xf32> to vector<8x32xf32>
    %106 = arith.addf %104, %105 : vector<8x32xf32>
    %cst_40 = arith.constant 0.000000e+00 : f32
    %107 = vector.broadcast %cst_40 : f32 to vector<8x32xf32>
    %108 = vector.extract_strided_slice %17 {offsets = [8, 0], sizes = [8, 8], strides = [1, 1]} : vector<16x32xf32> to vector<8x8xf32>
    %109 = vector.extract_strided_slice %18 {offsets = [8, 0], sizes = [8, 8], strides = [1, 1]} : vector<16x32xf32> to vector<8x8xf32>
    %110 = vector.extract_strided_slice %19 {offsets = [8, 0], sizes = [8, 8], strides = [1, 1]} : vector<16x32xf32> to vector<8x8xf32>
    %111 = tpu.transpose %109, [1, 0] : vector<8x8xf32> -> vector<8x8xf32>
    %cst_41 = arith.constant dense<0.000000e+00> : vector<8x8xf32>
    %112 = tpu.matmul %108, %111, %cst_41 {dimension_numbers = #tpu.dot_dimension_numbers<[1], [0], [0], [1], [0, 0, 1, 1], [], []>} : vector<8x8xf32>, vector<8x8xf32>, vector<8x8xf32> -> vector<8x8xf32>
    %cst_42 = arith.constant dense<0xFF800000> : vector<8xf32>
    %113 = vector.multi_reduction <maximumf>, %112, %cst_42 [1] : vector<8x8xf32> to vector<8xf32>
    %114 = vector.shape_cast %113 : vector<8xf32> to vector<8x1xf32>
    %115 = vector.broadcast %114 : vector<8x1xf32> to vector<8x8xf32>
    %116 = arith.subf %112, %115 : vector<8x8xf32>
    %117 = math.exp %116 : vector<8x8xf32>
    %cst_43 = arith.constant dense<0.000000e+00> : vector<8xf32>
    %118 = vector.multi_reduction <add>, %117, %cst_43 [1] : vector<8x8xf32> to vector<8xf32>
    %119 = vector.shape_cast %118 : vector<8xf32> to vector<8x1xf32>
    %120 = tpu.reciprocal %119 {approx = true} : vector<8x1xf32> -> vector<8x1xf32>
    %121 = vector.broadcast %120 : vector<8x1xf32> to vector<8x8xf32>
    %122 = arith.mulf %117, %121 : vector<8x8xf32>
    %cst_44 = arith.constant dense<0.000000e+00> : vector<8x8xf32>
    %123 = tpu.matmul %122, %110, %cst_44 {dimension_numbers = #tpu.dot_dimension_numbers<[1], [0], [0], [1], [0, 0, 1, 1], [], []>} : vector<8x8xf32>, vector<8x8xf32>, vector<8x8xf32> -> vector<8x8xf32>
    %124 = arith.truncf %123 : vector<8x8xf32> to vector<8x8xbf16>
    %125 = vector.extract_strided_slice %21 {offsets = [0, 0], sizes = [8, 32], strides = [1, 1]} : vector<32x32xbf16> to vector<8x32xbf16>
    %cst_45 = arith.constant dense<0.000000e+00> : vector<8x32xf32>
    %126 = tpu.matmul %124, %125, %cst_45 {dimension_numbers = #tpu.dot_dimension_numbers<[1], [0], [0], [1], [0, 0, 1, 1], [], []>} : vector<8x8xbf16>, vector<8x32xbf16>, vector<8x32xf32> -> vector<8x32xf32>
    %127 = arith.addf %107, %126 : vector<8x32xf32>
    %128 = vector.extract_strided_slice %17 {offsets = [8, 8], sizes = [8, 8], strides = [1, 1]} : vector<16x32xf32> to vector<8x8xf32>
    %129 = vector.extract_strided_slice %18 {offsets = [8, 8], sizes = [8, 8], strides = [1, 1]} : vector<16x32xf32> to vector<8x8xf32>
    %130 = vector.extract_strided_slice %19 {offsets = [8, 8], sizes = [8, 8], strides = [1, 1]} : vector<16x32xf32> to vector<8x8xf32>
    %131 = tpu.transpose %129, [1, 0] : vector<8x8xf32> -> vector<8x8xf32>
    %cst_46 = arith.constant dense<0.000000e+00> : vector<8x8xf32>
    %132 = tpu.matmul %128, %131, %cst_46 {dimension_numbers = #tpu.dot_dimension_numbers<[1], [0], [0], [1], [0, 0, 1, 1], [], []>} : vector<8x8xf32>, vector<8x8xf32>, vector<8x8xf32> -> vector<8x8xf32>
    %cst_47 = arith.constant dense<0xFF800000> : vector<8xf32>
    %133 = vector.multi_reduction <maximumf>, %132, %cst_47 [1] : vector<8x8xf32> to vector<8xf32>
    %134 = vector.shape_cast %133 : vector<8xf32> to vector<8x1xf32>
    %135 = vector.broadcast %134 : vector<8x1xf32> to vector<8x8xf32>
    %136 = arith.subf %132, %135 : vector<8x8xf32>
    %137 = math.exp %136 : vector<8x8xf32>
    %cst_48 = arith.constant dense<0.000000e+00> : vector<8xf32>
    %138 = vector.multi_reduction <add>, %137, %cst_48 [1] : vector<8x8xf32> to vector<8xf32>
    %139 = vector.shape_cast %138 : vector<8xf32> to vector<8x1xf32>
    %140 = tpu.reciprocal %139 {approx = true} : vector<8x1xf32> -> vector<8x1xf32>
    %141 = vector.broadcast %140 : vector<8x1xf32> to vector<8x8xf32>
    %142 = arith.mulf %137, %141 : vector<8x8xf32>
    %cst_49 = arith.constant dense<0.000000e+00> : vector<8x8xf32>
    %143 = tpu.matmul %142, %130, %cst_49 {dimension_numbers = #tpu.dot_dimension_numbers<[1], [0], [0], [1], [0, 0, 1, 1], [], []>} : vector<8x8xf32>, vector<8x8xf32>, vector<8x8xf32> -> vector<8x8xf32>
    %144 = arith.truncf %143 : vector<8x8xf32> to vector<8x8xbf16>
    %145 = vector.extract_strided_slice %21 {offsets = [8, 0], sizes = [8, 32], strides = [1, 1]} : vector<32x32xbf16> to vector<8x32xbf16>
    %cst_50 = arith.constant dense<0.000000e+00> : vector<8x32xf32>
    %146 = tpu.matmul %144, %145, %cst_50 {dimension_numbers = #tpu.dot_dimension_numbers<[1], [0], [0], [1], [0, 0, 1, 1], [], []>} : vector<8x8xbf16>, vector<8x32xbf16>, vector<8x32xf32> -> vector<8x32xf32>
    %147 = arith.addf %127, %146 : vector<8x32xf32>
    %148 = vector.extract_strided_slice %17 {offsets = [8, 16], sizes = [8, 8], strides = [1, 1]} : vector<16x32xf32> to vector<8x8xf32>
    %149 = vector.extract_strided_slice %18 {offsets = [8, 16], sizes = [8, 8], strides = [1, 1]} : vector<16x32xf32> to vector<8x8xf32>
    %150 = vector.extract_strided_slice %19 {offsets = [8, 16], sizes = [8, 8], strides = [1, 1]} : vector<16x32xf32> to vector<8x8xf32>
    %151 = tpu.transpose %149, [1, 0] : vector<8x8xf32> -> vector<8x8xf32>
    %cst_51 = arith.constant dense<0.000000e+00> : vector<8x8xf32>
    %152 = tpu.matmul %148, %151, %cst_51 {dimension_numbers = #tpu.dot_dimension_numbers<[1], [0], [0], [1], [0, 0, 1, 1], [], []>} : vector<8x8xf32>, vector<8x8xf32>, vector<8x8xf32> -> vector<8x8xf32>
    %cst_52 = arith.constant dense<0xFF800000> : vector<8xf32>
    %153 = vector.multi_reduction <maximumf>, %152, %cst_52 [1] : vector<8x8xf32> to vector<8xf32>
    %154 = vector.shape_cast %153 : vector<8xf32> to vector<8x1xf32>
    %155 = vector.broadcast %154 : vector<8x1xf32> to vector<8x8xf32>
    %156 = arith.subf %152, %155 : vector<8x8xf32>
    %157 = math.exp %156 : vector<8x8xf32>
    %cst_53 = arith.constant dense<0.000000e+00> : vector<8xf32>
    %158 = vector.multi_reduction <add>, %157, %cst_53 [1] : vector<8x8xf32> to vector<8xf32>
    %159 = vector.shape_cast %158 : vector<8xf32> to vector<8x1xf32>
    %160 = tpu.reciprocal %159 {approx = true} : vector<8x1xf32> -> vector<8x1xf32>
    %161 = vector.broadcast %160 : vector<8x1xf32> to vector<8x8xf32>
    %162 = arith.mulf %157, %161 : vector<8x8xf32>
    %cst_54 = arith.constant dense<0.000000e+00> : vector<8x8xf32>
    %163 = tpu.matmul %162, %150, %cst_54 {dimension_numbers = #tpu.dot_dimension_numbers<[1], [0], [0], [1], [0, 0, 1, 1], [], []>} : vector<8x8xf32>, vector<8x8xf32>, vector<8x8xf32> -> vector<8x8xf32>
    %164 = arith.truncf %163 : vector<8x8xf32> to vector<8x8xbf16>
    %165 = vector.extract_strided_slice %21 {offsets = [16, 0], sizes = [8, 32], strides = [1, 1]} : vector<32x32xbf16> to vector<8x32xbf16>
    %cst_55 = arith.constant dense<0.000000e+00> : vector<8x32xf32>
    %166 = tpu.matmul %164, %165, %cst_55 {dimension_numbers = #tpu.dot_dimension_numbers<[1], [0], [0], [1], [0, 0, 1, 1], [], []>} : vector<8x8xbf16>, vector<8x32xbf16>, vector<8x32xf32> -> vector<8x32xf32>
    %167 = arith.addf %147, %166 : vector<8x32xf32>
    %168 = vector.extract_strided_slice %17 {offsets = [8, 24], sizes = [8, 8], strides = [1, 1]} : vector<16x32xf32> to vector<8x8xf32>
    %169 = vector.extract_strided_slice %18 {offsets = [8, 24], sizes = [8, 8], strides = [1, 1]} : vector<16x32xf32> to vector<8x8xf32>
    %170 = vector.extract_strided_slice %19 {offsets = [8, 24], sizes = [8, 8], strides = [1, 1]} : vector<16x32xf32> to vector<8x8xf32>
    %171 = tpu.transpose %169, [1, 0] : vector<8x8xf32> -> vector<8x8xf32>
    %cst_56 = arith.constant dense<0.000000e+00> : vector<8x8xf32>
    %172 = tpu.matmul %168, %171, %cst_56 {dimension_numbers = #tpu.dot_dimension_numbers<[1], [0], [0], [1], [0, 0, 1, 1], [], []>} : vector<8x8xf32>, vector<8x8xf32>, vector<8x8xf32> -> vector<8x8xf32>
    %cst_57 = arith.constant dense<0xFF800000> : vector<8xf32>
    %173 = vector.multi_reduction <maximumf>, %172, %cst_57 [1] : vector<8x8xf32> to vector<8xf32>
    %174 = vector.shape_cast %173 : vector<8xf32> to vector<8x1xf32>
    %175 = vector.broadcast %174 : vector<8x1xf32> to vector<8x8xf32>
    %176 = arith.subf %172, %175 : vector<8x8xf32>
    %177 = math.exp %176 : vector<8x8xf32>
    %cst_58 = arith.constant dense<0.000000e+00> : vector<8xf32>
    %178 = vector.multi_reduction <add>, %177, %cst_58 [1] : vector<8x8xf32> to vector<8xf32>
    %179 = vector.shape_cast %178 : vector<8xf32> to vector<8x1xf32>
    %180 = tpu.reciprocal %179 {approx = true} : vector<8x1xf32> -> vector<8x1xf32>
    %181 = vector.broadcast %180 : vector<8x1xf32> to vector<8x8xf32>
    %182 = arith.mulf %177, %181 : vector<8x8xf32>
    %cst_59 = arith.constant dense<0.000000e+00> : vector<8x8xf32>
    %183 = tpu.matmul %182, %170, %cst_59 {dimension_numbers = #tpu.dot_dimension_numbers<[1], [0], [0], [1], [0, 0, 1, 1], [], []>} : vector<8x8xf32>, vector<8x8xf32>, vector<8x8xf32> -> vector<8x8xf32>
    %184 = arith.truncf %183 : vector<8x8xf32> to vector<8x8xbf16>
    %185 = vector.extract_strided_slice %21 {offsets = [24, 0], sizes = [8, 32], strides = [1, 1]} : vector<32x32xbf16> to vector<8x32xbf16>
    %cst_60 = arith.constant dense<0.000000e+00> : vector<8x32xf32>
    %186 = tpu.matmul %184, %185, %cst_60 {dimension_numbers = #tpu.dot_dimension_numbers<[1], [0], [0], [1], [0, 0, 1, 1], [], []>} : vector<8x8xbf16>, vector<8x32xbf16>, vector<8x32xf32> -> vector<8x32xf32>
    %187 = arith.addf %167, %186 : vector<8x32xf32>
    %188 = vector.broadcast %23 : vector<1x32xf32> to vector<8x32xf32>
    %189 = arith.addf %187, %188 : vector<8x32xf32>
    %190 = tpu.concatenate %106, %189 in 0 : vector<8x32xf32>, vector<8x32xf32> -> vector<16x32xf32>
    %191 = arith.addf %6, %190 : vector<16x32xf32>
    %c0_61 = arith.constant 0 : index
    %c0_62 = arith.constant 0 : index
    %c0_63 = arith.constant 0 : index
    %192 = vector.load %arg7[%c0_61, %c0_62, %c0_63] : memref<2x1x32xf32, #tpu.memory_space<vmem>>, vector<1x1x32xf32>
    %193 = vector.shape_cast %192 : vector<1x1x32xf32> to vector<1x32xf32>
    %c0_64 = arith.constant 0 : index
    %c0_65 = arith.constant 0 : index
    %c0_66 = arith.constant 0 : index
    %194 = vector.load %arg8[%c0_64, %c0_65, %c0_66] : memref<2x1x32xf32, #tpu.memory_space<vmem>>, vector<1x1x32xf32>
    %195 = vector.shape_cast %194 : vector<1x1x32xf32> to vector<1x32xf32>
    %cst_67 = arith.constant dense<0.000000e+00> : vector<16xf32>
    %196 = vector.multi_reduction <add>, %191, %cst_67 [1] : vector<16x32xf32> to vector<16xf32>
    %197 = vector.shape_cast %196 : vector<16xf32> to vector<16x1xf32>
    %cst_68 = arith.constant 3.200000e+01 : f32
    %198 = vector.broadcast %cst_68 : f32 to vector<16x1xf32>
    %199 = arith.divf %197, %198 : vector<16x1xf32>
    %200 = vector.broadcast %199 : vector<16x1xf32> to vector<16x32xf32>
    %201 = arith.subf %191, %200 : vector<16x32xf32>
    %202 = arith.mulf %201, %201 : vector<16x32xf32>
    %cst_69 = arith.constant dense<0.000000e+00> : vector<16xf32>
    %203 = vector.multi_reduction <add>, %202, %cst_69 [1] : vector<16x32xf32> to vector<16xf32>
    %204 = vector.shape_cast %203 : vector<16xf32> to vector<16x1xf32>
    %cst_70 = arith.constant 3.200000e+01 : f32
    %205 = vector.broadcast %cst_70 : f32 to vector<16x1xf32>
    %206 = arith.divf %204, %205 : vector<16x1xf32>
    %207 = vector.broadcast %199 : vector<16x1xf32> to vector<16x32xf32>
    %208 = arith.subf %191, %207 : vector<16x32xf32>
    %cst_71 = arith.constant 9.99999974E-6 : f32
    %209 = vector.broadcast %cst_71 : f32 to vector<16x1xf32>
    %210 = arith.addf %206, %209 : vector<16x1xf32>
    %211 = math.rsqrt %210 : vector<16x1xf32>
    %212 = vector.broadcast %211 : vector<16x1xf32> to vector<16x32xf32>
    %213 = arith.mulf %208, %212 : vector<16x32xf32>
    %214 = vector.broadcast %193 : vector<1x32xf32> to vector<16x32xf32>
    %215 = arith.mulf %213, %214 : vector<16x32xf32>
    %216 = vector.broadcast %195 : vector<1x32xf32> to vector<16x32xf32>
    %217 = arith.addf %215, %216 : vector<16x32xf32>
    %c0_72 = arith.constant 0 : index
    %c0_73 = arith.constant 0 : index
    %c0_74 = arith.constant 0 : index
    %218 = vector.load %arg9[%c0_72, %c0_73, %c0_74] : memref<2x32x2048xbf16, #tpu.memory_space<vmem>>, vector<1x32x2048xbf16>
    %219 = vector.shape_cast %218 : vector<1x32x2048xbf16> to vector<32x2048xbf16>
    %c0_75 = arith.constant 0 : index
    %c0_76 = arith.constant 0 : index
    %c0_77 = arith.constant 0 : index
    %220 = vector.load %arg10[%c0_75, %c0_76, %c0_77] : memref<2x1x2048xf32, #tpu.memory_space<vmem>>, vector<1x1x2048xf32>
    %221 = vector.shape_cast %220 : vector<1x1x2048xf32> to vector<1x2048xf32>
    %222 = arith.truncf %217 : vector<16x32xf32> to vector<16x32xbf16>
    %cst_78 = arith.constant dense<0.000000e+00> : vector<16x2048xf32>
    %223 = tpu.matmul %222, %219, %cst_78 {dimension_numbers = #tpu.dot_dimension_numbers<[1], [0], [0], [1], [0, 0, 1, 1], [], []>} : vector<16x32xbf16>, vector<32x2048xbf16>, vector<16x2048xf32> -> vector<16x2048xf32>
    %224 = vector.broadcast %221 : vector<1x2048xf32> to vector<16x2048xf32>
    %225 = arith.addf %223, %224 : vector<16x2048xf32>
    %cst_79 = arith.constant 0.000000e+00 : f32
    %226 = vector.broadcast %cst_79 : f32 to vector<16x2048xf32>
    %227 = arith.maximumf %225, %226 : vector<16x2048xf32>
    %c0_80 = arith.constant 0 : index
    %c0_81 = arith.constant 0 : index
    %c0_82 = arith.constant 0 : index
    %228 = vector.load %arg11[%c0_80, %c0_81, %c0_82] : memref<2x2048x32xbf16, #tpu.memory_space<vmem>>, vector<1x2048x32xbf16>
    %229 = vector.shape_cast %228 : vector<1x2048x32xbf16> to vector<2048x32xbf16>
    %c0_83 = arith.constant 0 : index
    %c0_84 = arith.constant 0 : index
    %c0_85 = arith.constant 0 : index
    %230 = vector.load %arg12[%c0_83, %c0_84, %c0_85] : memref<2x1x32xf32, #tpu.memory_space<vmem>>, vector<1x1x32xf32>
    %231 = vector.shape_cast %230 : vector<1x1x32xf32> to vector<1x32xf32>
    %232 = arith.truncf %227 : vector<16x2048xf32> to vector<16x2048xbf16>
    %cst_86 = arith.constant dense<0.000000e+00> : vector<16x32xf32>
    %233 = tpu.matmul %232, %229, %cst_86 {dimension_numbers = #tpu.dot_dimension_numbers<[1], [0], [0], [1], [0, 0, 1, 1], [], []>} : vector<16x2048xbf16>, vector<2048x32xbf16>, vector<16x32xf32> -> vector<16x32xf32>
    %234 = vector.broadcast %231 : vector<1x32xf32> to vector<16x32xf32>
    %235 = arith.addf %233, %234 : vector<16x32xf32>
    %236 = arith.addf %217, %235 : vector<16x32xf32>
    %c0_87 = arith.constant 0 : index
    %c0_88 = arith.constant 0 : index
    %c0_89 = arith.constant 0 : index
    %237 = vector.load %arg13[%c0_87, %c0_88, %c0_89] : memref<2x1x32xf32, #tpu.memory_space<vmem>>, vector<1x1x32xf32>
    %238 = vector.shape_cast %237 : vector<1x1x32xf32> to vector<1x32xf32>
    %c0_90 = arith.constant 0 : index
    %c0_91 = arith.constant 0 : index
    %c0_92 = arith.constant 0 : index
    %239 = vector.load %arg14[%c0_90, %c0_91, %c0_92] : memref<2x1x32xf32, #tpu.memory_space<vmem>>, vector<1x1x32xf32>
    %240 = vector.shape_cast %239 : vector<1x1x32xf32> to vector<1x32xf32>
    %cst_93 = arith.constant dense<0.000000e+00> : vector<16xf32>
    %241 = vector.multi_reduction <add>, %236, %cst_93 [1] : vector<16x32xf32> to vector<16xf32>
    %242 = vector.shape_cast %241 : vector<16xf32> to vector<16x1xf32>
    %cst_94 = arith.constant 3.200000e+01 : f32
    %243 = vector.broadcast %cst_94 : f32 to vector<16x1xf32>
    %244 = arith.divf %242, %243 : vector<16x1xf32>
    %245 = vector.broadcast %244 : vector<16x1xf32> to vector<16x32xf32>
    %246 = arith.subf %236, %245 : vector<16x32xf32>
    %247 = arith.mulf %246, %246 : vector<16x32xf32>
    %cst_95 = arith.constant dense<0.000000e+00> : vector<16xf32>
    %248 = vector.multi_reduction <add>, %247, %cst_95 [1] : vector<16x32xf32> to vector<16xf32>
    %249 = vector.shape_cast %248 : vector<16xf32> to vector<16x1xf32>
    %cst_96 = arith.constant 3.200000e+01 : f32
    %250 = vector.broadcast %cst_96 : f32 to vector<16x1xf32>
    %251 = arith.divf %249, %250 : vector<16x1xf32>
    %252 = vector.broadcast %244 : vector<16x1xf32> to vector<16x32xf32>
    %253 = arith.subf %236, %252 : vector<16x32xf32>
    %cst_97 = arith.constant 9.99999974E-6 : f32
    %254 = vector.broadcast %cst_97 : f32 to vector<16x1xf32>
    %255 = arith.addf %251, %254 : vector<16x1xf32>
    %256 = math.rsqrt %255 : vector<16x1xf32>
    %257 = vector.broadcast %256 : vector<16x1xf32> to vector<16x32xf32>
    %258 = arith.mulf %253, %257 : vector<16x32xf32>
    %259 = vector.broadcast %238 : vector<1x32xf32> to vector<16x32xf32>
    %260 = arith.mulf %258, %259 : vector<16x32xf32>
    %261 = vector.broadcast %240 : vector<1x32xf32> to vector<16x32xf32>
    %262 = arith.addf %260, %261 : vector<16x32xf32>
    %c1 = arith.constant 1 : index
    %c0_98 = arith.constant 0 : index
    %c0_99 = arith.constant 0 : index
    %263 = vector.load %arg3[%c1, %c0_98, %c0_99] : memref<2x32x96xbf16, #tpu.memory_space<vmem>>, vector<1x32x96xbf16>
    %264 = vector.shape_cast %263 : vector<1x32x96xbf16> to vector<32x96xbf16>
    %c1_100 = arith.constant 1 : index
    %c0_101 = arith.constant 0 : index
    %c0_102 = arith.constant 0 : index
    %265 = vector.load %arg4[%c1_100, %c0_101, %c0_102] : memref<2x1x96xf32, #tpu.memory_space<vmem>>, vector<1x1x96xf32>
    %266 = vector.shape_cast %265 : vector<1x1x96xf32> to vector<1x96xf32>
    %267 = arith.truncf %262 : vector<16x32xf32> to vector<16x32xbf16>
    %cst_103 = arith.constant dense<0.000000e+00> : vector<16x96xf32>
    %268 = tpu.matmul %267, %264, %cst_103 {dimension_numbers = #tpu.dot_dimension_numbers<[1], [0], [0], [1], [0, 0, 1, 1], [], []>} : vector<16x32xbf16>, vector<32x96xbf16>, vector<16x96xf32> -> vector<16x96xf32>
    %269 = vector.broadcast %266 : vector<1x96xf32> to vector<16x96xf32>
    %270 = arith.addf %268, %269 : vector<16x96xf32>
    %271 = vector.extract_strided_slice %270 {offsets = [0, 0], sizes = [16, 32], strides = [1, 1]} : vector<16x96xf32> to vector<16x32xf32>
    %cst_104 = arith.constant 0.353553385 : f32
    %272 = vector.broadcast %cst_104 : f32 to vector<16x32xf32>
    %273 = arith.mulf %271, %272 : vector<16x32xf32>
    %274 = vector.extract_strided_slice %270 {offsets = [0, 32], sizes = [16, 32], strides = [1, 1]} : vector<16x96xf32> to vector<16x32xf32>
    %275 = vector.extract_strided_slice %270 {offsets = [0, 64], sizes = [16, 32], strides = [1, 1]} : vector<16x96xf32> to vector<16x32xf32>
    %c1_105 = arith.constant 1 : index
    %c0_106 = arith.constant 0 : index
    %c0_107 = arith.constant 0 : index
    %276 = vector.load %arg5[%c1_105, %c0_106, %c0_107] : memref<2x32x32xbf16, #tpu.memory_space<vmem>>, vector<1x32x32xbf16>
    %277 = vector.shape_cast %276 : vector<1x32x32xbf16> to vector<32x32xbf16>
    %c1_108 = arith.constant 1 : index
    %c0_109 = arith.constant 0 : index
    %c0_110 = arith.constant 0 : index
    %278 = vector.load %arg6[%c1_108, %c0_109, %c0_110] : memref<2x1x32xf32, #tpu.memory_space<vmem>>, vector<1x1x32xf32>
    %279 = vector.shape_cast %278 : vector<1x1x32xf32> to vector<1x32xf32>
    %cst_111 = arith.constant 0.000000e+00 : f32
    %280 = vector.broadcast %cst_111 : f32 to vector<8x32xf32>
    %281 = vector.extract_strided_slice %273 {offsets = [0, 0], sizes = [8, 8], strides = [1, 1]} : vector<16x32xf32> to vector<8x8xf32>
    %282 = vector.extract_strided_slice %274 {offsets = [0, 0], sizes = [8, 8], strides = [1, 1]} : vector<16x32xf32> to vector<8x8xf32>
    %283 = vector.extract_strided_slice %275 {offsets = [0, 0], sizes = [8, 8], strides = [1, 1]} : vector<16x32xf32> to vector<8x8xf32>
    %284 = tpu.transpose %282, [1, 0] : vector<8x8xf32> -> vector<8x8xf32>
    %cst_112 = arith.constant dense<0.000000e+00> : vector<8x8xf32>
    %285 = tpu.matmul %281, %284, %cst_112 {dimension_numbers = #tpu.dot_dimension_numbers<[1], [0], [0], [1], [0, 0, 1, 1], [], []>} : vector<8x8xf32>, vector<8x8xf32>, vector<8x8xf32> -> vector<8x8xf32>
    %cst_113 = arith.constant dense<0xFF800000> : vector<8xf32>
    %286 = vector.multi_reduction <maximumf>, %285, %cst_113 [1] : vector<8x8xf32> to vector<8xf32>
    %287 = vector.shape_cast %286 : vector<8xf32> to vector<8x1xf32>
    %288 = vector.broadcast %287 : vector<8x1xf32> to vector<8x8xf32>
    %289 = arith.subf %285, %288 : vector<8x8xf32>
    %290 = math.exp %289 : vector<8x8xf32>
    %cst_114 = arith.constant dense<0.000000e+00> : vector<8xf32>
    %291 = vector.multi_reduction <add>, %290, %cst_114 [1] : vector<8x8xf32> to vector<8xf32>
    %292 = vector.shape_cast %291 : vector<8xf32> to vector<8x1xf32>
    %293 = tpu.reciprocal %292 {approx = true} : vector<8x1xf32> -> vector<8x1xf32>
    %294 = vector.broadcast %293 : vector<8x1xf32> to vector<8x8xf32>
    %295 = arith.mulf %290, %294 : vector<8x8xf32>
    %cst_115 = arith.constant dense<0.000000e+00> : vector<8x8xf32>
    %296 = tpu.matmul %295, %283, %cst_115 {dimension_numbers = #tpu.dot_dimension_numbers<[1], [0], [0], [1], [0, 0, 1, 1], [], []>} : vector<8x8xf32>, vector<8x8xf32>, vector<8x8xf32> -> vector<8x8xf32>
    %297 = arith.truncf %296 : vector<8x8xf32> to vector<8x8xbf16>
    %298 = vector.extract_strided_slice %277 {offsets = [0, 0], sizes = [8, 32], strides = [1, 1]} : vector<32x32xbf16> to vector<8x32xbf16>
    %cst_116 = arith.constant dense<0.000000e+00> : vector<8x32xf32>
    %299 = tpu.matmul %297, %298, %cst_116 {dimension_numbers = #tpu.dot_dimension_numbers<[1], [0], [0], [1], [0, 0, 1, 1], [], []>} : vector<8x8xbf16>, vector<8x32xbf16>, vector<8x32xf32> -> vector<8x32xf32>
    %300 = arith.addf %280, %299 : vector<8x32xf32>
    %301 = vector.extract_strided_slice %273 {offsets = [0, 8], sizes = [8, 8], strides = [1, 1]} : vector<16x32xf32> to vector<8x8xf32>
    %302 = vector.extract_strided_slice %274 {offsets = [0, 8], sizes = [8, 8], strides = [1, 1]} : vector<16x32xf32> to vector<8x8xf32>
    %303 = vector.extract_strided_slice %275 {offsets = [0, 8], sizes = [8, 8], strides = [1, 1]} : vector<16x32xf32> to vector<8x8xf32>
    %304 = tpu.transpose %302, [1, 0] : vector<8x8xf32> -> vector<8x8xf32>
    %cst_117 = arith.constant dense<0.000000e+00> : vector<8x8xf32>
    %305 = tpu.matmul %301, %304, %cst_117 {dimension_numbers = #tpu.dot_dimension_numbers<[1], [0], [0], [1], [0, 0, 1, 1], [], []>} : vector<8x8xf32>, vector<8x8xf32>, vector<8x8xf32> -> vector<8x8xf32>
    %cst_118 = arith.constant dense<0xFF800000> : vector<8xf32>
    %306 = vector.multi_reduction <maximumf>, %305, %cst_118 [1] : vector<8x8xf32> to vector<8xf32>
    %307 = vector.shape_cast %306 : vector<8xf32> to vector<8x1xf32>
    %308 = vector.broadcast %307 : vector<8x1xf32> to vector<8x8xf32>
    %309 = arith.subf %305, %308 : vector<8x8xf32>
    %310 = math.exp %309 : vector<8x8xf32>
    %cst_119 = arith.constant dense<0.000000e+00> : vector<8xf32>
    %311 = vector.multi_reduction <add>, %310, %cst_119 [1] : vector<8x8xf32> to vector<8xf32>
    %312 = vector.shape_cast %311 : vector<8xf32> to vector<8x1xf32>
    %313 = tpu.reciprocal %312 {approx = true} : vector<8x1xf32> -> vector<8x1xf32>
    %314 = vector.broadcast %313 : vector<8x1xf32> to vector<8x8xf32>
    %315 = arith.mulf %310, %314 : vector<8x8xf32>
    %cst_120 = arith.constant dense<0.000000e+00> : vector<8x8xf32>
    %316 = tpu.matmul %315, %303, %cst_120 {dimension_numbers = #tpu.dot_dimension_numbers<[1], [0], [0], [1], [0, 0, 1, 1], [], []>} : vector<8x8xf32>, vector<8x8xf32>, vector<8x8xf32> -> vector<8x8xf32>
    %317 = arith.truncf %316 : vector<8x8xf32> to vector<8x8xbf16>
    %318 = vector.extract_strided_slice %277 {offsets = [8, 0], sizes = [8, 32], strides = [1, 1]} : vector<32x32xbf16> to vector<8x32xbf16>
    %cst_121 = arith.constant dense<0.000000e+00> : vector<8x32xf32>
    %319 = tpu.matmul %317, %318, %cst_121 {dimension_numbers = #tpu.dot_dimension_numbers<[1], [0], [0], [1], [0, 0, 1, 1], [], []>} : vector<8x8xbf16>, vector<8x32xbf16>, vector<8x32xf32> -> vector<8x32xf32>
    %320 = arith.addf %300, %319 : vector<8x32xf32>
    %321 = vector.extract_strided_slice %273 {offsets = [0, 16], sizes = [8, 8], strides = [1, 1]} : vector<16x32xf32> to vector<8x8xf32>
    %322 = vector.extract_strided_slice %274 {offsets = [0, 16], sizes = [8, 8], strides = [1, 1]} : vector<16x32xf32> to vector<8x8xf32>
    %323 = vector.extract_strided_slice %275 {offsets = [0, 16], sizes = [8, 8], strides = [1, 1]} : vector<16x32xf32> to vector<8x8xf32>
    %324 = tpu.transpose %322, [1, 0] : vector<8x8xf32> -> vector<8x8xf32>
    %cst_122 = arith.constant dense<0.000000e+00> : vector<8x8xf32>
    %325 = tpu.matmul %321, %324, %cst_122 {dimension_numbers = #tpu.dot_dimension_numbers<[1], [0], [0], [1], [0, 0, 1, 1], [], []>} : vector<8x8xf32>, vector<8x8xf32>, vector<8x8xf32> -> vector<8x8xf32>
    %cst_123 = arith.constant dense<0xFF800000> : vector<8xf32>
    %326 = vector.multi_reduction <maximumf>, %325, %cst_123 [1] : vector<8x8xf32> to vector<8xf32>
    %327 = vector.shape_cast %326 : vector<8xf32> to vector<8x1xf32>
    %328 = vector.broadcast %327 : vector<8x1xf32> to vector<8x8xf32>
    %329 = arith.subf %325, %328 : vector<8x8xf32>
    %330 = math.exp %329 : vector<8x8xf32>
    %cst_124 = arith.constant dense<0.000000e+00> : vector<8xf32>
    %331 = vector.multi_reduction <add>, %330, %cst_124 [1] : vector<8x8xf32> to vector<8xf32>
    %332 = vector.shape_cast %331 : vector<8xf32> to vector<8x1xf32>
    %333 = tpu.reciprocal %332 {approx = true} : vector<8x1xf32> -> vector<8x1xf32>
    %334 = vector.broadcast %333 : vector<8x1xf32> to vector<8x8xf32>
    %335 = arith.mulf %330, %334 : vector<8x8xf32>
    %cst_125 = arith.constant dense<0.000000e+00> : vector<8x8xf32>
    %336 = tpu.matmul %335, %323, %cst_125 {dimension_numbers = #tpu.dot_dimension_numbers<[1], [0], [0], [1], [0, 0, 1, 1], [], []>} : vector<8x8xf32>, vector<8x8xf32>, vector<8x8xf32> -> vector<8x8xf32>
    %337 = arith.truncf %336 : vector<8x8xf32> to vector<8x8xbf16>
    %338 = vector.extract_strided_slice %277 {offsets = [16, 0], sizes = [8, 32], strides = [1, 1]} : vector<32x32xbf16> to vector<8x32xbf16>
    %cst_126 = arith.constant dense<0.000000e+00> : vector<8x32xf32>
    %339 = tpu.matmul %337, %338, %cst_126 {dimension_numbers = #tpu.dot_dimension_numbers<[1], [0], [0], [1], [0, 0, 1, 1], [], []>} : vector<8x8xbf16>, vector<8x32xbf16>, vector<8x32xf32> -> vector<8x32xf32>
    %340 = arith.addf %320, %339 : vector<8x32xf32>
    %341 = vector.extract_strided_slice %273 {offsets = [0, 24], sizes = [8, 8], strides = [1, 1]} : vector<16x32xf32> to vector<8x8xf32>
    %342 = vector.extract_strided_slice %274 {offsets = [0, 24], sizes = [8, 8], strides = [1, 1]} : vector<16x32xf32> to vector<8x8xf32>
    %343 = vector.extract_strided_slice %275 {offsets = [0, 24], sizes = [8, 8], strides = [1, 1]} : vector<16x32xf32> to vector<8x8xf32>
    %344 = tpu.transpose %342, [1, 0] : vector<8x8xf32> -> vector<8x8xf32>
    %cst_127 = arith.constant dense<0.000000e+00> : vector<8x8xf32>
    %345 = tpu.matmul %341, %344, %cst_127 {dimension_numbers = #tpu.dot_dimension_numbers<[1], [0], [0], [1], [0, 0, 1, 1], [], []>} : vector<8x8xf32>, vector<8x8xf32>, vector<8x8xf32> -> vector<8x8xf32>
    %cst_128 = arith.constant dense<0xFF800000> : vector<8xf32>
    %346 = vector.multi_reduction <maximumf>, %345, %cst_128 [1] : vector<8x8xf32> to vector<8xf32>
    %347 = vector.shape_cast %346 : vector<8xf32> to vector<8x1xf32>
    %348 = vector.broadcast %347 : vector<8x1xf32> to vector<8x8xf32>
    %349 = arith.subf %345, %348 : vector<8x8xf32>
    %350 = math.exp %349 : vector<8x8xf32>
    %cst_129 = arith.constant dense<0.000000e+00> : vector<8xf32>
    %351 = vector.multi_reduction <add>, %350, %cst_129 [1] : vector<8x8xf32> to vector<8xf32>
    %352 = vector.shape_cast %351 : vector<8xf32> to vector<8x1xf32>
    %353 = tpu.reciprocal %352 {approx = true} : vector<8x1xf32> -> vector<8x1xf32>
    %354 = vector.broadcast %353 : vector<8x1xf32> to vector<8x8xf32>
    %355 = arith.mulf %350, %354 : vector<8x8xf32>
    %cst_130 = arith.constant dense<0.000000e+00> : vector<8x8xf32>
    %356 = tpu.matmul %355, %343, %cst_130 {dimension_numbers = #tpu.dot_dimension_numbers<[1], [0], [0], [1], [0, 0, 1, 1], [], []>} : vector<8x8xf32>, vector<8x8xf32>, vector<8x8xf32> -> vector<8x8xf32>
    %357 = arith.truncf %356 : vector<8x8xf32> to vector<8x8xbf16>
    %358 = vector.extract_strided_slice %277 {offsets = [24, 0], sizes = [8, 32], strides = [1, 1]} : vector<32x32xbf16> to vector<8x32xbf16>
    %cst_131 = arith.constant dense<0.000000e+00> : vector<8x32xf32>
    %359 = tpu.matmul %357, %358, %cst_131 {dimension_numbers = #tpu.dot_dimension_numbers<[1], [0], [0], [1], [0, 0, 1, 1], [], []>} : vector<8x8xbf16>, vector<8x32xbf16>, vector<8x32xf32> -> vector<8x32xf32>
    %360 = arith.addf %340, %359 : vector<8x32xf32>
    %361 = vector.broadcast %279 : vector<1x32xf32> to vector<8x32xf32>
    %362 = arith.addf %360, %361 : vector<8x32xf32>
    %cst_132 = arith.constant 0.000000e+00 : f32
    %363 = vector.broadcast %cst_132 : f32 to vector<8x32xf32>
    %364 = vector.extract_strided_slice %273 {offsets = [8, 0], sizes = [8, 8], strides = [1, 1]} : vector<16x32xf32> to vector<8x8xf32>
    %365 = vector.extract_strided_slice %274 {offsets = [8, 0], sizes = [8, 8], strides = [1, 1]} : vector<16x32xf32> to vector<8x8xf32>
    %366 = vector.extract_strided_slice %275 {offsets = [8, 0], sizes = [8, 8], strides = [1, 1]} : vector<16x32xf32> to vector<8x8xf32>
    %367 = tpu.transpose %365, [1, 0] : vector<8x8xf32> -> vector<8x8xf32>
    %cst_133 = arith.constant dense<0.000000e+00> : vector<8x8xf32>
    %368 = tpu.matmul %364, %367, %cst_133 {dimension_numbers = #tpu.dot_dimension_numbers<[1], [0], [0], [1], [0, 0, 1, 1], [], []>} : vector<8x8xf32>, vector<8x8xf32>, vector<8x8xf32> -> vector<8x8xf32>
    %cst_134 = arith.constant dense<0xFF800000> : vector<8xf32>
    %369 = vector.multi_reduction <maximumf>, %368, %cst_134 [1] : vector<8x8xf32> to vector<8xf32>
    %370 = vector.shape_cast %369 : vector<8xf32> to vector<8x1xf32>
    %371 = vector.broadcast %370 : vector<8x1xf32> to vector<8x8xf32>
    %372 = arith.subf %368, %371 : vector<8x8xf32>
    %373 = math.exp %372 : vector<8x8xf32>
    %cst_135 = arith.constant dense<0.000000e+00> : vector<8xf32>
    %374 = vector.multi_reduction <add>, %373, %cst_135 [1] : vector<8x8xf32> to vector<8xf32>
    %375 = vector.shape_cast %374 : vector<8xf32> to vector<8x1xf32>
    %376 = tpu.reciprocal %375 {approx = true} : vector<8x1xf32> -> vector<8x1xf32>
    %377 = vector.broadcast %376 : vector<8x1xf32> to vector<8x8xf32>
    %378 = arith.mulf %373, %377 : vector<8x8xf32>
    %cst_136 = arith.constant dense<0.000000e+00> : vector<8x8xf32>
    %379 = tpu.matmul %378, %366, %cst_136 {dimension_numbers = #tpu.dot_dimension_numbers<[1], [0], [0], [1], [0, 0, 1, 1], [], []>} : vector<8x8xf32>, vector<8x8xf32>, vector<8x8xf32> -> vector<8x8xf32>
    %380 = arith.truncf %379 : vector<8x8xf32> to vector<8x8xbf16>
    %381 = vector.extract_strided_slice %277 {offsets = [0, 0], sizes = [8, 32], strides = [1, 1]} : vector<32x32xbf16> to vector<8x32xbf16>
    %cst_137 = arith.constant dense<0.000000e+00> : vector<8x32xf32>
    %382 = tpu.matmul %380, %381, %cst_137 {dimension_numbers = #tpu.dot_dimension_numbers<[1], [0], [0], [1], [0, 0, 1, 1], [], []>} : vector<8x8xbf16>, vector<8x32xbf16>, vector<8x32xf32> -> vector<8x32xf32>
    %383 = arith.addf %363, %382 : vector<8x32xf32>
    %384 = vector.extract_strided_slice %273 {offsets = [8, 8], sizes = [8, 8], strides = [1, 1]} : vector<16x32xf32> to vector<8x8xf32>
    %385 = vector.extract_strided_slice %274 {offsets = [8, 8], sizes = [8, 8], strides = [1, 1]} : vector<16x32xf32> to vector<8x8xf32>
    %386 = vector.extract_strided_slice %275 {offsets = [8, 8], sizes = [8, 8], strides = [1, 1]} : vector<16x32xf32> to vector<8x8xf32>
    %387 = tpu.transpose %385, [1, 0] : vector<8x8xf32> -> vector<8x8xf32>
    %cst_138 = arith.constant dense<0.000000e+00> : vector<8x8xf32>
    %388 = tpu.matmul %384, %387, %cst_138 {dimension_numbers = #tpu.dot_dimension_numbers<[1], [0], [0], [1], [0, 0, 1, 1], [], []>} : vector<8x8xf32>, vector<8x8xf32>, vector<8x8xf32> -> vector<8x8xf32>
    %cst_139 = arith.constant dense<0xFF800000> : vector<8xf32>
    %389 = vector.multi_reduction <maximumf>, %388, %cst_139 [1] : vector<8x8xf32> to vector<8xf32>
    %390 = vector.shape_cast %389 : vector<8xf32> to vector<8x1xf32>
    %391 = vector.broadcast %390 : vector<8x1xf32> to vector<8x8xf32>
    %392 = arith.subf %388, %391 : vector<8x8xf32>
    %393 = math.exp %392 : vector<8x8xf32>
    %cst_140 = arith.constant dense<0.000000e+00> : vector<8xf32>
    %394 = vector.multi_reduction <add>, %393, %cst_140 [1] : vector<8x8xf32> to vector<8xf32>
    %395 = vector.shape_cast %394 : vector<8xf32> to vector<8x1xf32>
    %396 = tpu.reciprocal %395 {approx = true} : vector<8x1xf32> -> vector<8x1xf32>
    %397 = vector.broadcast %396 : vector<8x1xf32> to vector<8x8xf32>
    %398 = arith.mulf %393, %397 : vector<8x8xf32>
    %cst_141 = arith.constant dense<0.000000e+00> : vector<8x8xf32>
    %399 = tpu.matmul %398, %386, %cst_141 {dimension_numbers = #tpu.dot_dimension_numbers<[1], [0], [0], [1], [0, 0, 1, 1], [], []>} : vector<8x8xf32>, vector<8x8xf32>, vector<8x8xf32> -> vector<8x8xf32>
    %400 = arith.truncf %399 : vector<8x8xf32> to vector<8x8xbf16>
    %401 = vector.extract_strided_slice %277 {offsets = [8, 0], sizes = [8, 32], strides = [1, 1]} : vector<32x32xbf16> to vector<8x32xbf16>
    %cst_142 = arith.constant dense<0.000000e+00> : vector<8x32xf32>
    %402 = tpu.matmul %400, %401, %cst_142 {dimension_numbers = #tpu.dot_dimension_numbers<[1], [0], [0], [1], [0, 0, 1, 1], [], []>} : vector<8x8xbf16>, vector<8x32xbf16>, vector<8x32xf32> -> vector<8x32xf32>
    %403 = arith.addf %383, %402 : vector<8x32xf32>
    %404 = vector.extract_strided_slice %273 {offsets = [8, 16], sizes = [8, 8], strides = [1, 1]} : vector<16x32xf32> to vector<8x8xf32>
    %405 = vector.extract_strided_slice %274 {offsets = [8, 16], sizes = [8, 8], strides = [1, 1]} : vector<16x32xf32> to vector<8x8xf32>
    %406 = vector.extract_strided_slice %275 {offsets = [8, 16], sizes = [8, 8], strides = [1, 1]} : vector<16x32xf32> to vector<8x8xf32>
    %407 = tpu.transpose %405, [1, 0] : vector<8x8xf32> -> vector<8x8xf32>
    %cst_143 = arith.constant dense<0.000000e+00> : vector<8x8xf32>
    %408 = tpu.matmul %404, %407, %cst_143 {dimension_numbers = #tpu.dot_dimension_numbers<[1], [0], [0], [1], [0, 0, 1, 1], [], []>} : vector<8x8xf32>, vector<8x8xf32>, vector<8x8xf32> -> vector<8x8xf32>
    %cst_144 = arith.constant dense<0xFF800000> : vector<8xf32>
    %409 = vector.multi_reduction <maximumf>, %408, %cst_144 [1] : vector<8x8xf32> to vector<8xf32>
    %410 = vector.shape_cast %409 : vector<8xf32> to vector<8x1xf32>
    %411 = vector.broadcast %410 : vector<8x1xf32> to vector<8x8xf32>
    %412 = arith.subf %408, %411 : vector<8x8xf32>
    %413 = math.exp %412 : vector<8x8xf32>
    %cst_145 = arith.constant dense<0.000000e+00> : vector<8xf32>
    %414 = vector.multi_reduction <add>, %413, %cst_145 [1] : vector<8x8xf32> to vector<8xf32>
    %415 = vector.shape_cast %414 : vector<8xf32> to vector<8x1xf32>
    %416 = tpu.reciprocal %415 {approx = true} : vector<8x1xf32> -> vector<8x1xf32>
    %417 = vector.broadcast %416 : vector<8x1xf32> to vector<8x8xf32>
    %418 = arith.mulf %413, %417 : vector<8x8xf32>
    %cst_146 = arith.constant dense<0.000000e+00> : vector<8x8xf32>
    %419 = tpu.matmul %418, %406, %cst_146 {dimension_numbers = #tpu.dot_dimension_numbers<[1], [0], [0], [1], [0, 0, 1, 1], [], []>} : vector<8x8xf32>, vector<8x8xf32>, vector<8x8xf32> -> vector<8x8xf32>
    %420 = arith.truncf %419 : vector<8x8xf32> to vector<8x8xbf16>
    %421 = vector.extract_strided_slice %277 {offsets = [16, 0], sizes = [8, 32], strides = [1, 1]} : vector<32x32xbf16> to vector<8x32xbf16>
    %cst_147 = arith.constant dense<0.000000e+00> : vector<8x32xf32>
    %422 = tpu.matmul %420, %421, %cst_147 {dimension_numbers = #tpu.dot_dimension_numbers<[1], [0], [0], [1], [0, 0, 1, 1], [], []>} : vector<8x8xbf16>, vector<8x32xbf16>, vector<8x32xf32> -> vector<8x32xf32>
    %423 = arith.addf %403, %422 : vector<8x32xf32>
    %424 = vector.extract_strided_slice %273 {offsets = [8, 24], sizes = [8, 8], strides = [1, 1]} : vector<16x32xf32> to vector<8x8xf32>
    %425 = vector.extract_strided_slice %274 {offsets = [8, 24], sizes = [8, 8], strides = [1, 1]} : vector<16x32xf32> to vector<8x8xf32>
    %426 = vector.extract_strided_slice %275 {offsets = [8, 24], sizes = [8, 8], strides = [1, 1]} : vector<16x32xf32> to vector<8x8xf32>
    %427 = tpu.transpose %425, [1, 0] : vector<8x8xf32> -> vector<8x8xf32>
    %cst_148 = arith.constant dense<0.000000e+00> : vector<8x8xf32>
    %428 = tpu.matmul %424, %427, %cst_148 {dimension_numbers = #tpu.dot_dimension_numbers<[1], [0], [0], [1], [0, 0, 1, 1], [], []>} : vector<8x8xf32>, vector<8x8xf32>, vector<8x8xf32> -> vector<8x8xf32>
    %cst_149 = arith.constant dense<0xFF800000> : vector<8xf32>
    %429 = vector.multi_reduction <maximumf>, %428, %cst_149 [1] : vector<8x8xf32> to vector<8xf32>
    %430 = vector.shape_cast %429 : vector<8xf32> to vector<8x1xf32>
    %431 = vector.broadcast %430 : vector<8x1xf32> to vector<8x8xf32>
    %432 = arith.subf %428, %431 : vector<8x8xf32>
    %433 = math.exp %432 : vector<8x8xf32>
    %cst_150 = arith.constant dense<0.000000e+00> : vector<8xf32>
    %434 = vector.multi_reduction <add>, %433, %cst_150 [1] : vector<8x8xf32> to vector<8xf32>
    %435 = vector.shape_cast %434 : vector<8xf32> to vector<8x1xf32>
    %436 = tpu.reciprocal %435 {approx = true} : vector<8x1xf32> -> vector<8x1xf32>
    %437 = vector.broadcast %436 : vector<8x1xf32> to vector<8x8xf32>
    %438 = arith.mulf %433, %437 : vector<8x8xf32>
    %cst_151 = arith.constant dense<0.000000e+00> : vector<8x8xf32>
    %439 = tpu.matmul %438, %426, %cst_151 {dimension_numbers = #tpu.dot_dimension_numbers<[1], [0], [0], [1], [0, 0, 1, 1], [], []>} : vector<8x8xf32>, vector<8x8xf32>, vector<8x8xf32> -> vector<8x8xf32>
    %440 = arith.truncf %439 : vector<8x8xf32> to vector<8x8xbf16>
    %441 = vector.extract_strided_slice %277 {offsets = [24, 0], sizes = [8, 32], strides = [1, 1]} : vector<32x32xbf16> to vector<8x32xbf16>
    %cst_152 = arith.constant dense<0.000000e+00> : vector<8x32xf32>
    %442 = tpu.matmul %440, %441, %cst_152 {dimension_numbers = #tpu.dot_dimension_numbers<[1], [0], [0], [1], [0, 0, 1, 1], [], []>} : vector<8x8xbf16>, vector<8x32xbf16>, vector<8x32xf32> -> vector<8x32xf32>
    %443 = arith.addf %423, %442 : vector<8x32xf32>
    %444 = vector.broadcast %279 : vector<1x32xf32> to vector<8x32xf32>
    %445 = arith.addf %443, %444 : vector<8x32xf32>
    %446 = tpu.concatenate %362, %445 in 0 : vector<8x32xf32>, vector<8x32xf32> -> vector<16x32xf32>
    %447 = arith.addf %262, %446 : vector<16x32xf32>
    %c1_153 = arith.constant 1 : index
    %c0_154 = arith.constant 0 : index
    %c0_155 = arith.constant 0 : index
    %448 = vector.load %arg7[%c1_153, %c0_154, %c0_155] : memref<2x1x32xf32, #tpu.memory_space<vmem>>, vector<1x1x32xf32>
    %449 = vector.shape_cast %448 : vector<1x1x32xf32> to vector<1x32xf32>
    %c1_156 = arith.constant 1 : index
    %c0_157 = arith.constant 0 : index
    %c0_158 = arith.constant 0 : index
    %450 = vector.load %arg8[%c1_156, %c0_157, %c0_158] : memref<2x1x32xf32, #tpu.memory_space<vmem>>, vector<1x1x32xf32>
    %451 = vector.shape_cast %450 : vector<1x1x32xf32> to vector<1x32xf32>
    %cst_159 = arith.constant dense<0.000000e+00> : vector<16xf32>
    %452 = vector.multi_reduction <add>, %447, %cst_159 [1] : vector<16x32xf32> to vector<16xf32>
    %453 = vector.shape_cast %452 : vector<16xf32> to vector<16x1xf32>
    %cst_160 = arith.constant 3.200000e+01 : f32
    %454 = vector.broadcast %cst_160 : f32 to vector<16x1xf32>
    %455 = arith.divf %453, %454 : vector<16x1xf32>
    %456 = vector.broadcast %455 : vector<16x1xf32> to vector<16x32xf32>
    %457 = arith.subf %447, %456 : vector<16x32xf32>
    %458 = arith.mulf %457, %457 : vector<16x32xf32>
    %cst_161 = arith.constant dense<0.000000e+00> : vector<16xf32>
    %459 = vector.multi_reduction <add>, %458, %cst_161 [1] : vector<16x32xf32> to vector<16xf32>
    %460 = vector.shape_cast %459 : vector<16xf32> to vector<16x1xf32>
    %cst_162 = arith.constant 3.200000e+01 : f32
    %461 = vector.broadcast %cst_162 : f32 to vector<16x1xf32>
    %462 = arith.divf %460, %461 : vector<16x1xf32>
    %463 = vector.broadcast %455 : vector<16x1xf32> to vector<16x32xf32>
    %464 = arith.subf %447, %463 : vector<16x32xf32>
    %cst_163 = arith.constant 9.99999974E-6 : f32
    %465 = vector.broadcast %cst_163 : f32 to vector<16x1xf32>
    %466 = arith.addf %462, %465 : vector<16x1xf32>
    %467 = math.rsqrt %466 : vector<16x1xf32>
    %468 = vector.broadcast %467 : vector<16x1xf32> to vector<16x32xf32>
    %469 = arith.mulf %464, %468 : vector<16x32xf32>
    %470 = vector.broadcast %449 : vector<1x32xf32> to vector<16x32xf32>
    %471 = arith.mulf %469, %470 : vector<16x32xf32>
    %472 = vector.broadcast %451 : vector<1x32xf32> to vector<16x32xf32>
    %473 = arith.addf %471, %472 : vector<16x32xf32>
    %c1_164 = arith.constant 1 : index
    %c0_165 = arith.constant 0 : index
    %c0_166 = arith.constant 0 : index
    %474 = vector.load %arg9[%c1_164, %c0_165, %c0_166] : memref<2x32x2048xbf16, #tpu.memory_space<vmem>>, vector<1x32x2048xbf16>
    %475 = vector.shape_cast %474 : vector<1x32x2048xbf16> to vector<32x2048xbf16>
    %c1_167 = arith.constant 1 : index
    %c0_168 = arith.constant 0 : index
    %c0_169 = arith.constant 0 : index
    %476 = vector.load %arg10[%c1_167, %c0_168, %c0_169] : memref<2x1x2048xf32, #tpu.memory_space<vmem>>, vector<1x1x2048xf32>
    %477 = vector.shape_cast %476 : vector<1x1x2048xf32> to vector<1x2048xf32>
    %478 = arith.truncf %473 : vector<16x32xf32> to vector<16x32xbf16>
    %cst_170 = arith.constant dense<0.000000e+00> : vector<16x2048xf32>
    %479 = tpu.matmul %478, %475, %cst_170 {dimension_numbers = #tpu.dot_dimension_numbers<[1], [0], [0], [1], [0, 0, 1, 1], [], []>} : vector<16x32xbf16>, vector<32x2048xbf16>, vector<16x2048xf32> -> vector<16x2048xf32>
    %480 = vector.broadcast %477 : vector<1x2048xf32> to vector<16x2048xf32>
    %481 = arith.addf %479, %480 : vector<16x2048xf32>
    %cst_171 = arith.constant 0.000000e+00 : f32
    %482 = vector.broadcast %cst_171 : f32 to vector<16x2048xf32>
    %483 = arith.maximumf %481, %482 : vector<16x2048xf32>
    %c1_172 = arith.constant 1 : index
    %c0_173 = arith.constant 0 : index
    %c0_174 = arith.constant 0 : index
    %484 = vector.load %arg11[%c1_172, %c0_173, %c0_174] : memref<2x2048x32xbf16, #tpu.memory_space<vmem>>, vector<1x2048x32xbf16>
    %485 = vector.shape_cast %484 : vector<1x2048x32xbf16> to vector<2048x32xbf16>
    %c1_175 = arith.constant 1 : index
    %c0_176 = arith.constant 0 : index
    %c0_177 = arith.constant 0 : index
    %486 = vector.load %arg12[%c1_175, %c0_176, %c0_177] : memref<2x1x32xf32, #tpu.memory_space<vmem>>, vector<1x1x32xf32>
    %487 = vector.shape_cast %486 : vector<1x1x32xf32> to vector<1x32xf32>
    %488 = arith.truncf %483 : vector<16x2048xf32> to vector<16x2048xbf16>
    %cst_178 = arith.constant dense<0.000000e+00> : vector<16x32xf32>
    %489 = tpu.matmul %488, %485, %cst_178 {dimension_numbers = #tpu.dot_dimension_numbers<[1], [0], [0], [1], [0, 0, 1, 1], [], []>} : vector<16x2048xbf16>, vector<2048x32xbf16>, vector<16x32xf32> -> vector<16x32xf32>
    %490 = vector.broadcast %487 : vector<1x32xf32> to vector<16x32xf32>
    %491 = arith.addf %489, %490 : vector<16x32xf32>
    %492 = arith.addf %473, %491 : vector<16x32xf32>
    %c1_179 = arith.constant 1 : index
    %c0_180 = arith.constant 0 : index
    %c0_181 = arith.constant 0 : index
    %493 = vector.load %arg13[%c1_179, %c0_180, %c0_181] : memref<2x1x32xf32, #tpu.memory_space<vmem>>, vector<1x1x32xf32>
    %494 = vector.shape_cast %493 : vector<1x1x32xf32> to vector<1x32xf32>
    %c1_182 = arith.constant 1 : index
    %c0_183 = arith.constant 0 : index
    %c0_184 = arith.constant 0 : index
    %495 = vector.load %arg14[%c1_182, %c0_183, %c0_184] : memref<2x1x32xf32, #tpu.memory_space<vmem>>, vector<1x1x32xf32>
    %496 = vector.shape_cast %495 : vector<1x1x32xf32> to vector<1x32xf32>
    %cst_185 = arith.constant dense<0.000000e+00> : vector<16xf32>
    %497 = vector.multi_reduction <add>, %492, %cst_185 [1] : vector<16x32xf32> to vector<16xf32>
    %498 = vector.shape_cast %497 : vector<16xf32> to vector<16x1xf32>
    %cst_186 = arith.constant 3.200000e+01 : f32
    %499 = vector.broadcast %cst_186 : f32 to vector<16x1xf32>
    %500 = arith.divf %498, %499 : vector<16x1xf32>
    %501 = vector.broadcast %500 : vector<16x1xf32> to vector<16x32xf32>
    %502 = arith.subf %492, %501 : vector<16x32xf32>
    %503 = arith.mulf %502, %502 : vector<16x32xf32>
    %cst_187 = arith.constant dense<0.000000e+00> : vector<16xf32>
    %504 = vector.multi_reduction <add>, %503, %cst_187 [1] : vector<16x32xf32> to vector<16xf32>
    %505 = vector.shape_cast %504 : vector<16xf32> to vector<16x1xf32>
    %cst_188 = arith.constant 3.200000e+01 : f32
    %506 = vector.broadcast %cst_188 : f32 to vector<16x1xf32>
    %507 = arith.divf %505, %506 : vector<16x1xf32>
    %508 = vector.broadcast %500 : vector<16x1xf32> to vector<16x32xf32>
    %509 = arith.subf %492, %508 : vector<16x32xf32>
    %cst_189 = arith.constant 9.99999974E-6 : f32
    %510 = vector.broadcast %cst_189 : f32 to vector<16x1xf32>
    %511 = arith.addf %507, %510 : vector<16x1xf32>
    %512 = math.rsqrt %511 : vector<16x1xf32>
    %513 = vector.broadcast %512 : vector<16x1xf32> to vector<16x32xf32>
    %514 = arith.mulf %509, %513 : vector<16x32xf32>
    %515 = vector.broadcast %494 : vector<1x32xf32> to vector<16x32xf32>
    %516 = arith.mulf %514, %515 : vector<16x32xf32>
    %517 = vector.broadcast %496 : vector<1x32xf32> to vector<16x32xf32>
    %518 = arith.addf %516, %517 : vector<16x32xf32>
    %c0_190 = arith.constant 0 : index
    %c0_191 = arith.constant 0 : index
    %519 = vector.load %arg15[%c0_190, %c0_191] : memref<32x12xbf16, #tpu.memory_space<vmem>>, vector<32x12xbf16>
    %c0_192 = arith.constant 0 : index
    %c0_193 = arith.constant 0 : index
    %520 = vector.load %arg16[%c0_192, %c0_193] : memref<1x12xf32, #tpu.memory_space<vmem>>, vector<1x12xf32>
    %521 = arith.truncf %518 : vector<16x32xf32> to vector<16x32xbf16>
    %cst_194 = arith.constant dense<0.000000e+00> : vector<16x12xf32>
    %522 = tpu.matmul %521, %519, %cst_194 {dimension_numbers = #tpu.dot_dimension_numbers<[1], [0], [0], [1], [0, 0, 1, 1], [], []>} : vector<16x32xbf16>, vector<32x12xbf16>, vector<16x12xf32> -> vector<16x12xf32>
    %523 = vector.broadcast %520 : vector<1x12xf32> to vector<16x12xf32>
    %524 = arith.addf %522, %523 : vector<16x12xf32>
    %c0_195 = arith.constant 0 : index
    %c0_196 = arith.constant 0 : index
    %525 = vector.load %arg17[%c0_195, %c0_196] : memref<16x12xf32, #tpu.memory_space<vmem>>, vector<16x12xf32>
    tpu.vector_store %arg17[%c0_195, %c0_196], %524 {strides = array<i32>} : memref<16x12xf32, #tpu.memory_space<vmem>>, vector<16x12xf32>,
    return
  }
}

</mosaic_0001>

<llo_original>
// kernel: _lambda_.1
$region0: #{_lambda_.1}
  #allocation0 [shape = 'u32[]', space=smem, size = 0x4, offset = 0x4, fixed_abs, tag = 'smem constant byte address 0x4 - core index']
  #allocation1 [shape = 'u32[144,128]{1,0:T(1,128)}', space=vmem, size = 0x12000, scoped, tag = 'internal scratch']
  %s0 = inlined_call_operand.vmem [shape: f32[16,12], index: 0, kind: input, shape index: {}]
  %s1 = inlined_call_operand.vmem [shape: bf16[12,32], index: 1, kind: input, shape index: {}]
  %s2 = inlined_call_operand.vmem [shape: f32[1,32], index: 2, kind: input, shape index: {}]
  %s3 = inlined_call_operand.vmem [shape: bf16[2,32,96], index: 3, kind: input, shape index: {}]
  %s4 = inlined_call_operand.vmem [shape: f32[2,1,96], index: 4, kind: input, shape index: {}]
  %s5 = inlined_call_operand.vmem [shape: bf16[2,32,32], index: 5, kind: input, shape index: {}]
  %s6 = inlined_call_operand.vmem [shape: f32[2,1,32], index: 6, kind: input, shape index: {}]
  %s7 = inlined_call_operand.vmem [shape: f32[2,1,32], index: 7, kind: input, shape index: {}]
  %s8 = inlined_call_operand.vmem [shape: f32[2,1,32], index: 8, kind: input, shape index: {}]
  %s9 = inlined_call_operand.vmem [shape: bf16[2,32,2048], index: 9, kind: input, shape index: {}]
  %s10 = inlined_call_operand.vmem [shape: f32[2,1,2048], index: 10, kind: input, shape index: {}]
  %s11 = inlined_call_operand.vmem [shape: bf16[2,2048,32], index: 11, kind: input, shape index: {}]
  %s12 = inlined_call_operand.vmem [shape: f32[2,1,32], index: 12, kind: input, shape index: {}]
  %s13 = inlined_call_operand.vmem [shape: f32[2,1,32], index: 13, kind: input, shape index: {}]
  %s14 = inlined_call_operand.vmem [shape: f32[2,1,32], index: 14, kind: input, shape index: {}]
  %s15 = inlined_call_operand.vmem [shape: bf16[32,12], index: 15, kind: input, shape index: {}]
  %s16 = inlined_call_operand.vmem [shape: f32[1,12], index: 16, kind: input, shape index: {}]
  %s17 = inlined_call_operand.hbm [shape: f32[16,12], index: 17, kind: output, shape index: {}]
  %s18 = sld [smem:[#allocation0]]
  $region78: #{_lambda_.1} parent=0
    _
  %s20 = ssub.s32 1, %s18
  %s21 = scalar_select 0, %s20, %s18
  $region1: #{_lambda_.1} parent=0
    #allocation2 [shape = 'u8[8192]{0}', space=vmem, size = 0x2000, scoped, tag = 'output window, operand 0, single buffered']
    #allocation3 [shape = 's32[1]{0}', space=sflag, size = 0x4, scoped, tag = 'scoped memory for _lambda_.1']
    %22 = vsyncpa [#allocation3], 0
    // Predicated region
    $region2: #{_lambda_.1} parent=1 // pred_check
      _
    $region3: #{_lambda_.1} parent=1 // pred_check_branch
      %24 = sbr.rel (0) target = $region5
    $region4: #{_lambda_.1} parent=1 // pred_region
      _
    $region5: #{_lambda_.1} parent=1 // pred_fallthru
      _
    // Predicated region
    $region6: #{_lambda_.1} parent=1 // pred_check
      _
    $region7: #{_lambda_.1} parent=1 // pred_check_branch
      %26 = sbr.rel (0) target = $region9
    $region8: #{_lambda_.1} parent=1 // pred_region
      _
    $region9: #{_lambda_.1} parent=1 // pred_fallthru
      _
    // Predicated region
    $region10: #{_lambda_.1} parent=1 // pred_check
      _
    $region11: #{_lambda_.1} parent=1 // pred_check_branch
      %28 = sbr.rel (0) target = $region13
    $region12: #{_lambda_.1} parent=1 // pred_region
      _
    $region13: #{_lambda_.1} parent=1 // pred_fallthru
      _
    // Predicated region
    $region14: #{_lambda_.1} parent=1 // pred_check
      _
    $region15: #{_lambda_.1} parent=1 // pred_check_branch
      %30 = sbr.rel (0) target = $region17
    $region16: #{_lambda_.1} parent=1 // pred_region
      _
    $region17: #{_lambda_.1} parent=1 // pred_fallthru
      _
    // Predicated region
    $region18: #{_lambda_.1} parent=1 // pred_check
      _
    $region19: #{_lambda_.1} parent=1 // pred_check_branch
      %32 = sbr.rel (0) target = $region21
    $region20: #{_lambda_.1} parent=1 // pred_region
      _
    $region21: #{_lambda_.1} parent=1 // pred_fallthru
      _
    // Predicated region
    $region22: #{_lambda_.1} parent=1 // pred_check
      _
    $region23: #{_lambda_.1} parent=1 // pred_check_branch
      %34 = sbr.rel (0) target = $region25
    $region24: #{_lambda_.1} parent=1 // pred_region
      _
    $region25: #{_lambda_.1} parent=1 // pred_fallthru
      _
    // Predicated region
    $region26: #{_lambda_.1} parent=1 // pred_check
      _
    $region27: #{_lambda_.1} parent=1 // pred_check_branch
      %36 = sbr.rel (0) target = $region29
    $region28: #{_lambda_.1} parent=1 // pred_region
      _
    $region29: #{_lambda_.1} parent=1 // pred_fallthru
      _
    // Predicated region
    $region30: #{_lambda_.1} parent=1 // pred_check
      _
    $region31: #{_lambda_.1} parent=1 // pred_check_branch
      %38 = sbr.rel (0) target = $region33
    $region32: #{_lambda_.1} parent=1 // pred_region
      _
    $region33: #{_lambda_.1} parent=1 // pred_fallthru
      _
    // Predicated region
    $region34: #{_lambda_.1} parent=1 // pred_check
      _
    $region35: #{_lambda_.1} parent=1 // pred_check_branch
      %40 = sbr.rel (0) target = $region37
    $region36: #{_lambda_.1} parent=1 // pred_region
      _
    $region37: #{_lambda_.1} parent=1 // pred_fallthru
      _
    // Predicated region
    $region38: #{_lambda_.1} parent=1 // pred_check
      _
    $region39: #{_lambda_.1} parent=1 // pred_check_branch
      %42 = sbr.rel (0) target = $region41
    $region40: #{_lambda_.1} parent=1 // pred_region
      _
    $region41: #{_lambda_.1} parent=1 // pred_fallthru
      _
    // Predicated region
    $region42: #{_lambda_.1} parent=1 // pred_check
      _
    $region43: #{_lambda_.1} parent=1 // pred_check_branch
      %44 = sbr.rel (0) target = $region45
    $region44: #{_lambda_.1} parent=1 // pred_region
      _
    $region45: #{_lambda_.1} parent=1 // pred_fallthru
      _
    // Predicated region
    $region46: #{_lambda_.1} parent=1 // pred_check
      _
    $region47: #{_lambda_.1} parent=1 // pred_check_branch
      %46 = sbr.rel (0) target = $region49
    $region48: #{_lambda_.1} parent=1 // pred_region
      _
    $region49: #{_lambda_.1} parent=1 // pred_fallthru
      _
    // Predicated region
    $region50: #{_lambda_.1} parent=1 // pred_check
      _
    $region51: #{_lambda_.1} parent=1 // pred_check_branch
      %48 = sbr.rel (0) target = $region53
    $region52: #{_lambda_.1} parent=1 // pred_region
      _
    $region53: #{_lambda_.1} parent=1 // pred_fallthru
      _
    // Predicated region
    $region54: #{_lambda_.1} parent=1 // pred_check
      _
    $region55: #{_lambda_.1} parent=1 // pred_check_branch
      %50 = sbr.rel (0) target = $region57
    $region56: #{_lambda_.1} parent=1 // pred_region
      _
    $region57: #{_lambda_.1} parent=1 // pred_fallthru
      _
    // Predicated region
    $region58: #{_lambda_.1} parent=1 // pred_check
      _
    $region59: #{_lambda_.1} parent=1 // pred_check_branch
      %52 = sbr.rel (0) target = $region61
    $region60: #{_lambda_.1} parent=1 // pred_region
      _
    $region61: #{_lambda_.1} parent=1 // pred_fallthru
      _
    // Predicated region
    $region62: #{_lambda_.1} parent=1 // pred_check
      _
    $region63: #{_lambda_.1} parent=1 // pred_check_branch
      %54 = sbr.rel (0) target = $region65
    $region64: #{_lambda_.1} parent=1 // pred_region
      _
    $region65: #{_lambda_.1} parent=1 // pred_fallthru
      _
    // Predicated region
    $region66: #{_lambda_.1} parent=1 // pred_check
      _
    $region67: #{_lambda_.1} parent=1 // pred_check_branch
      %56 = sbr.rel (0) target = $region69
    $region68: #{_lambda_.1} parent=1 // pred_region
      _
    $region69: #{_lambda_.1} parent=1 // pred_fallthru
      _
    %v58 = vld [vmem:[%s0] sm:$0xff]
    %v59 = vld [vmem:[%s0 + $0x8] sm:$0xff]
    %v60 = vld [vmem:[%s1] sm:$0xf]
    %v61 = vld [vmem:[%s1 + $0x4] sm:$0x3]
    %v62 = vld [vmem:[%s2] sm:$0x1]
    %v63 = vpack.c.bf16 %v59, %v58
    %v65 = vlaneseq
    %v66 = vshrl.u32 %v65, 7
    %v67 = vsub.s32 0, %v66
    %v68 = vrot.slane %v62, %v67
    %v72 = vunpack.c.l.b16 %v60
    %v73 = vunpack.c.l.b16 %v61
    %v74 = vpack.c.b16 %v73, %v72
    %vm75 = vcmask 97280
    %v77 = vsel %vm75, %v63, 0
    %vm79 = vcmask 1045504
    %v81 = vsel %vm79, %v74, 0
    %83 = vmatprep.subr.bf16.mxu0 0
    %84 = vmatpush1.bf16.msra.mxu0 %v81
    %85 = vmatprep.subr.bf16.mxu0 0
    %86 = vmatpush1.bf16.msra.mxu0 0
    %87 = vmatprep.subr.bf16.mxu0 0
    %88 = vmatpush1.bf16.msra.mxu0 0
    %89 = vmatprep.subr.bf16.mxu0 0
    %90 = vmatpush1.bf16.msra.mxu0 0
    %91 = vmatprep.subr.bf16.mxu0 0
    %92 = vmatpush1.bf16.msra.mxu0 0
    %93 = vmatprep.subr.bf16.mxu0 0
    %94 = vmatpush1.bf16.msra.mxu0 0
    %95 = vmatprep.subr.bf16.mxu0 0
    %96 = vmatpush1.bf16.msra.mxu0 0
    %97 = vmatprep.subr.bf16.mxu0 0
    %98 = vmatpush1.bf16.msra.mxu0 0
    %99 = vmatprep.subr.bf16.mxu0 0
    %100 = vmatpush1.bf16.msra.mxu0 0
    %101 = vmatprep.subr.bf16.mxu0 0
    %102 = vmatpush1.bf16.msra.mxu0 0
    %103 = vmatprep.subr.bf16.mxu0 0
    %104 = vmatpush1.bf16.msra.mxu0 0
    %105 = vmatprep.subr.bf16.mxu0 0
    %106 = vmatpush1.bf16.msra.mxu0 0
    %107 = vmatprep.subr.bf16.mxu0 0
    %108 = vmatpush1.bf16.msra.mxu0 0
    %109 = vmatprep.subr.bf16.mxu0 0
    %110 = vmatpush1.bf16.msra.mxu0 0
    %111 = vmatprep.subr.bf16.mxu0 0
    %112 = vmatpush1.bf16.msra.mxu0 0
    %113 = vmatprep.subr.bf16.mxu0 0
    %114 = vmatpush1.bf16.msra.mxu0 0
    %115 = vmatprep.mubr.bf16.mxu0 0
    %116 = vmatmul.mubr.bf16.gmra.mrb[0].mxu0 %v77
    %v117 = vpop.f32.mrb[0].mxu0
    %v118 = vadd.f32 %v68, %v117
    %v119 = vpop.f32.mrb[0].mxu0
    %v120 = vpop.f32.mrb[0].mxu0
    %v121 = vadd.f32 %v68, %v120
    %v122 = vpop.f32.mrb[0].mxu0
    %123 = vdwg.mxu0
    %v124 = vld [vmem:[%s3] sm:$0xf]
    %v125 = vld [vmem:[%s3 + $0x4] sm:$0xf]
    %v126 = vld [vmem:[%s3 + $0x8] sm:$0xf]
    %v127 = vld [vmem:[%s3 + $0xc] sm:$0xf]
    %v128 = vld [vmem:[%s4] sm:$0x1]
    %v129 = vpack.c.bf16 %v121, %v118
    %v131 = vlaneseq
    %v132 = vshrl.u32 %v131, 7
    %v133 = vsub.s32 0, %v132
    %v134 = vrot.slane %v128, %v133
    %v140 = vunpack.c.l.b16 %v124
    %v141 = vunpack.c.l.b16 %v125
    %v142 = vunpack.c.l.b16 %v126
    %v143 = vunpack.c.l.b16 %v127
    %v144 = vpack.c.b16 %v141, %v140
    %v145 = vpack.c.b16 %v143, %v142
    %vm148 = vcmask 261120
    %v150 = vsel %vm148, %v129, 0
    %152 = vmatprep.subr.bf16.mxu0 0
    %153 = vmatpush1.bf16.msra.mxu0 %v144
    %154 = vmatprep.subr.bf16.mxu0 0
    %155 = vmatpush1.bf16.msra.mxu0 %v145
    %156 = vmatprep.subr.bf16.mxu0 0
    %157 = vmatpush1.bf16.msra.mxu0 0
    %158 = vmatprep.subr.bf16.mxu0 0
    %159 = vmatpush1.bf16.msra.mxu0 0
    %160 = vmatprep.subr.bf16.mxu0 0
    %161 = vmatpush1.bf16.msra.mxu0 0
    %162 = vmatprep.subr.bf16.mxu0 0
    %163 = vmatpush1.bf16.msra.mxu0 0
    %164 = vmatprep.subr.bf16.mxu0 0
    %165 = vmatpush1.bf16.msra.mxu0 0
    %166 = vmatprep.subr.bf16.mxu0 0
    %167 = vmatpush1.bf16.msra.mxu0 0
    %168 = vmatprep.subr.bf16.mxu0 0
    %169 = vmatpush1.bf16.msra.mxu0 0
    %170 = vmatprep.subr.bf16.mxu0 0
    %171 = vmatpush1.bf16.msra.mxu0 0
    %172 = vmatprep.subr.bf16.mxu0 0
    %173 = vmatpush1.bf16.msra.mxu0 0
    %174 = vmatprep.subr.bf16.mxu0 0
    %175 = vmatpush1.bf16.msra.mxu0 0
    %176 = vmatprep.subr.bf16.mxu0 0
    %177 = vmatpush1.bf16.msra.mxu0 0
    %178 = vmatprep.subr.bf16.mxu0 0
    %179 = vmatpush1.bf16.msra.mxu0 0
    %180 = vmatprep.subr.bf16.mxu0 0
    %181 = vmatpush1.bf16.msra.mxu0 0
    %182 = vmatprep.subr.bf16.mxu0 0
    %183 = vmatpush1.bf16.msra.mxu0 0
    %184 = vmatprep.mubr.bf16.mxu0 0
    %185 = vmatmul.mubr.bf16.gmra.mrb[0].mxu0 %v150
    %v186 = vpop.f32.mrb[0].mxu0
    %v187 = vadd.f32 %v134, %v186
    %v188 = vpop.f32.mrb[0].mxu0
    %v189 = vpop.f32.mrb[0].mxu0
    %v190 = vadd.f32 %v134, %v189
    %v191 = vpop.f32.mrb[0].mxu0
    %192 = vdwg.mxu0
    %v193 = vmul.f32 %v187, 0.35355338
    %v194 = vmul.f32 %v190, 0.35355338
    %v195 = vld [vmem:[%s5] sm:$0xf]
    %v196 = vld [vmem:[%s5 + $0x4] sm:$0xf]
    %v197 = vld [vmem:[%s5 + $0x8] sm:$0xf]
    %v198 = vld [vmem:[%s5 + $0xc] sm:$0xf]
    %v199 = vld [vmem:[%s6] sm:$0x1]
    %201 = vrot.lane.b32.xlu0 %v187, 96
    %v202 = vpop.permute.xlu0 %201
    %vm203 = vcmask 64512
    %v205 = vsel %vm203, %v193, 0
    %v207 = vsel %vm203, %v202, 0
    %209 = vmatprep.subr.mxu0 0.0
    %210 = vmatpush1.xpose.msra.mxu0 %v207
    %211 = vmatprep.subr.mxu0 0.0
    %212 = vmatpush1.xpose.msra.mxu0 0.0
    %213 = vmatprep.subr.mxu0 0.0
    %214 = vmatpush1.xpose.msra.mxu0 0.0
    %215 = vmatprep.subr.mxu0 0.0
    %216 = vmatpush1.xpose.msra.mxu0 0.0
    %217 = vmatprep.subr.mxu0 0.0
    %218 = vmatpush1.xpose.msra.mxu0 0.0
    %219 = vmatprep.subr.mxu0 0.0
    %220 = vmatpush1.xpose.msra.mxu0 0.0
    %221 = vmatprep.subr.mxu0 0.0
    %222 = vmatpush1.xpose.msra.mxu0 0.0
    %223 = vmatprep.subr.mxu0 0.0
    %224 = vmatpush1.xpose.msra.mxu0 0.0
    %225 = vmatprep.subr.mxu0 0.0
    %226 = vmatpush1.xpose.msra.mxu0 0.0
    %227 = vmatprep.subr.mxu0 0.0
    %228 = vmatpush1.xpose.msra.mxu0 0.0
    %229 = vmatprep.subr.mxu0 0.0
    %230 = vmatpush1.xpose.msra.mxu0 0.0
    %231 = vmatprep.subr.mxu0 0.0
    %232 = vmatpush1.xpose.msra.mxu0 0.0
    %233 = vmatprep.subr.mxu0 0.0
    %234 = vmatpush1.xpose.msra.mxu0 0.0
    %235 = vmatprep.subr.mxu0 0.0
    %236 = vmatpush1.xpose.msra.mxu0 0.0
    %237 = vmatprep.subr.mxu0 0.0
    %238 = vmatpush1.xpose.msra.mxu0 0.0
    %239 = vmatprep.subr.mxu0 0.0
    %240 = vmatpush1.xpose.msra.mxu0 0.0
    %241 = vmatprep.subr.mxu0 0.0
    %242 = vmatpush1.xpose.msra.mxu0 0.0
    %243 = vmatprep.subr.mxu0 0.0
    %244 = vmatpush1.xpose.msra.mxu0 0.0
    %245 = vmatprep.subr.mxu0 0.0
    %246 = vmatpush1.xpose.msra.mxu0 0.0
    %247 = vmatprep.subr.mxu0 0.0
    %248 = vmatpush1.xpose.msra.mxu0 0.0
    %249 = vmatprep.subr.mxu0 0.0
    %250 = vmatpush1.xpose.msra.mxu0 0.0
    %251 = vmatprep.subr.mxu0 0.0
    %252 = vmatpush1.xpose.msra.mxu0 0.0
    %253 = vmatprep.subr.mxu0 0.0
    %254 = vmatpush1.xpose.msra.mxu0 0.0
    %255 = vmatprep.subr.mxu0 0.0
    %256 = vmatpush1.xpose.msra.mxu0 0.0
    %257 = vmatprep.subr.mxu0 0.0
    %258 = vmatpush1.xpose.msra.mxu0 0.0
    %259 = vmatprep.subr.mxu0 0.0
    %260 = vmatpush1.xpose.msra.mxu0 0.0
    %261 = vmatprep.subr.mxu0 0.0
    %262 = vmatpush1.xpose.msra.mxu0 0.0
    %263 = vmatprep.subr.mxu0 0.0
    %264 = vmatpush1.xpose.msra.mxu0 0.0
    %265 = vmatprep.subr.mxu0 0.0
    %266 = vmatpush1.xpose.msra.mxu0 0.0
    %267 = vmatprep.subr.mxu0 0.0
    %268 = vmatpush1.xpose.msra.mxu0 0.0
    %269 = vmatprep.subr.mxu0 0.0
    %270 = vmatpush1.xpose.msra.mxu0 0.0
    %271 = vmatprep.subr.mxu0 0.0
    %272 = vmatpush1.xpose.msra.mxu0 0.0
    %273 = vmatprep.mubr.f32.mxu0 0.0
    %274 = vmatmul.mubr.f32.gmra.mrb[0].mxu0 %v205
    %v275 = vpop.f32.mrb[0].mxu0
    %v276 = vadd.f32 0.0, %v275
    %v277 = vpop.f32.mrb[0].mxu0
    %278 = vdwg.mxu0
    %v279 = vsel %vm203, %v276, -inf
    %280 = vmax.xlane.f32.xlu0 %v279
    %v281 = vpop.xlane.xlu0 %280
    %v282 = vsub.f32 %v276, %v281
    %v283 = vmul.f32 %v282, 1.442695
    %v284 = vpow.pop %v283
    %v285 = vsel %vm203, %v284, 0.0
    %286 = vadd.xlane.f32.xlu0 %v285
    %v287 = vpop.xlane.xlu0 %286
    %v288 = vrcp.pop %v287
    %v289 = vmul.f32 %v284, %v288
    %290 = vrot.lane.b32.xlu0 %v187, 64
    %v291 = vpop.permute.xlu0 %290
    %v294 = vsel %vm203, %v289, 0
    %296 = vmatprep.subr.mxu0 0.0
    %297 = vmatpush1.msra.mxu0 %v291
    %298 = vmatprep.subr.mxu0 0.0
    %299 = vmatpush1.msra.mxu0 0.0
    %300 = vmatprep.subr.mxu0 0.0
    %301 = vmatpush1.msra.mxu0 0.0
    %302 = vmatprep.subr.mxu0 0.0
    %303 = vmatpush1.msra.mxu0 0.0
    %304 = vmatprep.subr.mxu0 0.0
    %305 = vmatpush1.msra.mxu0 0.0
    %306 = vmatprep.subr.mxu0 0.0
    %307 = vmatpush1.msra.mxu0 0.0
    %308 = vmatprep.subr.mxu0 0.0
    %309 = vmatpush1.msra.mxu0 0.0
    %310 = vmatprep.subr.mxu0 0.0
    %311 = vmatpush1.msra.mxu0 0.0
    %312 = vmatprep.subr.mxu0 0.0
    %313 = vmatpush1.msra.mxu0 0.0
    %314 = vmatprep.subr.mxu0 0.0
    %315 = vmatpush1.msra.mxu0 0.0
    %316 = vmatprep.subr.mxu0 0.0
    %317 = vmatpush1.msra.mxu0 0.0
    %318 = vmatprep.subr.mxu0 0.0
    %319 = vmatpush1.msra.mxu0 0.0
    %320 = vmatprep.subr.mxu0 0.0
    %321 = vmatpush1.msra.mxu0 0.0
    %322 = vmatprep.subr.mxu0 0.0
    %323 = vmatpush1.msra.mxu0 0.0
    %324 = vmatprep.subr.mxu0 0.0
    %325 = vmatpush1.msra.mxu0 0.0
    %326 = vmatprep.subr.mxu0 0.0
    %327 = vmatpush1.msra.mxu0 0.0
    %328 = vmatprep.subr.mxu0 0.0
    %329 = vmatpush1.msra.mxu0 0.0
    %330 = vmatprep.subr.mxu0 0.0
    %331 = vmatpush1.msra.mxu0 0.0
    %332 = vmatprep.subr.mxu0 0.0
    %333 = vmatpush1.msra.mxu0 0.0
    %334 = vmatprep.subr.mxu0 0.0
    %335 = vmatpush1.msra.mxu0 0.0
    %336 = vmatprep.subr.mxu0 0.0
    %337 = vmatpush1.msra.mxu0 0.0
    %338 = vmatprep.subr.mxu0 0.0
    %339 = vmatpush1.msra.mxu0 0.0
    %340 = vmatprep.subr.mxu0 0.0
    %341 = vmatpush1.msra.mxu0 0.0
    %342 = vmatprep.subr.mxu0 0.0
    %343 = vmatpush1.msra.mxu0 0.0
    %344 = vmatprep.subr.mxu0 0.0
    %345 = vmatpush1.msra.mxu0 0.0
    %346 = vmatprep.subr.mxu0 0.0
    %347 = vmatpush1.msra.mxu0 0.0
    %348 = vmatprep.subr.mxu0 0.0
    %349 = vmatpush1.msra.mxu0 0.0
    %350 = vmatprep.subr.mxu0 0.0
    %351 = vmatpush1.msra.mxu0 0.0
    %352 = vmatprep.subr.mxu0 0.0
    %353 = vmatpush1.msra.mxu0 0.0
    %354 = vmatprep.subr.mxu0 0.0
    %355 = vmatpush1.msra.mxu0 0.0
    %356 = vmatprep.subr.mxu0 0.0
    %357 = vmatpush1.msra.mxu0 0.0
    %358 = vmatprep.subr.mxu0 0.0
    %359 = vmatpush1.msra.mxu0 0.0
    %360 = vmatprep.mubr.f32.mxu0 0.0
    %361 = vmatmul.mubr.f32.gmra.mrb[0].mxu0 %v294
    %v362 = vpop.f32.mrb[0].mxu0
    %v363 = vadd.f32 0.0, %v362
    %v364 = vpop.f32.mrb[0].mxu0
    %365 = vdwg.mxu0
    %v366 = vpack.c.bf16 %v363, %v363
    %367 = vrot.lane.b32.xlu0 %v193, 120
    %v368 = vpop.permute.xlu0 %367
    %369 = vrot.lane.b32.xlu0 %v187, 88
    %v370 = vpop.permute.xlu0 %369
    %v371 = vsel %vm203, %v368, 0
    %v373 = vsel %vm203, %v370, 0
    %375 = vmatprep.subr.mxu0 0.0
    %376 = vmatpush1.xpose.msra.mxu0 %v373
    %377 = vmatprep.subr.mxu0 0.0
    %378 = vmatpush1.xpose.msra.mxu0 0.0
    %379 = vmatprep.subr.mxu0 0.0
    %380 = vmatpush1.xpose.msra.mxu0 0.0
    %381 = vmatprep.subr.mxu0 0.0
    %382 = vmatpush1.xpose.msra.mxu0 0.0
    %383 = vmatprep.subr.mxu0 0.0
    %384 = vmatpush1.xpose.msra.mxu0 0.0
    %385 = vmatprep.subr.mxu0 0.0
    %386 = vmatpush1.xpose.msra.mxu0 0.0
    %387 = vmatprep.subr.mxu0 0.0
    %388 = vmatpush1.xpose.msra.mxu0 0.0
    %389 = vmatprep.subr.mxu0 0.0
    %390 = vmatpush1.xpose.msra.mxu0 0.0
    %391 = vmatprep.subr.mxu0 0.0
    %392 = vmatpush1.xpose.msra.mxu0 0.0
    %393 = vmatprep.subr.mxu0 0.0
    %394 = vmatpush1.xpose.msra.mxu0 0.0
    %395 = vmatprep.subr.mxu0 0.0
    %396 = vmatpush1.xpose.msra.mxu0 0.0
    %397 = vmatprep.subr.mxu0 0.0
    %398 = vmatpush1.xpose.msra.mxu0 0.0
    %399 = vmatprep.subr.mxu0 0.0
    %400 = vmatpush1.xpose.msra.mxu0 0.0
    %401 = vmatprep.subr.mxu0 0.0
    %402 = vmatpush1.xpose.msra.mxu0 0.0
    %403 = vmatprep.subr.mxu0 0.0
    %404 = vmatpush1.xpose.msra.mxu0 0.0
    %405 = vmatprep.subr.mxu0 0.0
    %406 = vmatpush1.xpose.msra.mxu0 0.0
    %407 = vmatprep.subr.mxu0 0.0
    %408 = vmatpush1.xpose.msra.mxu0 0.0
    %409 = vmatprep.subr.mxu0 0.0
    %410 = vmatpush1.xpose.msra.mxu0 0.0
    %411 = vmatprep.subr.mxu0 0.0
    %412 = vmatpush1.xpose.msra.mxu0 0.0
    %413 = vmatprep.subr.mxu0 0.0
    %414 = vmatpush1.xpose.msra.mxu0 0.0
    %415 = vmatprep.subr.mxu0 0.0
    %416 = vmatpush1.xpose.msra.mxu0 0.0
    %417 = vmatprep.subr.mxu0 0.0
    %418 = vmatpush1.xpose.msra.mxu0 0.0
    %419 = vmatprep.subr.mxu0 0.0
    %420 = vmatpush1.xpose.msra.mxu0 0.0
    %421 = vmatprep.subr.mxu0 0.0
    %422 = vmatpush1.xpose.msra.mxu0 0.0
    %423 = vmatprep.subr.mxu0 0.0
    %424 = vmatpush1.xpose.msra.mxu0 0.0
    %425 = vmatprep.subr.mxu0 0.0
    %426 = vmatpush1.xpose.msra.mxu0 0.0
    %427 = vmatprep.subr.mxu0 0.0
    %428 = vmatpush1.xpose.msra.mxu0 0.0
    %429 = vmatprep.subr.mxu0 0.0
    %430 = vmatpush1.xpose.msra.mxu0 0.0
    %431 = vmatprep.subr.mxu0 0.0
    %432 = vmatpush1.xpose.msra.mxu0 0.0
    %433 = vmatprep.subr.mxu0 0.0
    %434 = vmatpush1.xpose.msra.mxu0 0.0
    %435 = vmatprep.subr.mxu0 0.0
    %436 = vmatpush1.xpose.msra.mxu0 0.0
    %437 = vmatprep.subr.mxu0 0.0
    %438 = vmatpush1.xpose.msra.mxu0 0.0
    %439 = vmatprep.mubr.f32.mxu0 0.0
    %440 = vmatmul.mubr.f32.gmra.mrb[0].mxu0 %v371
    %v441 = vpop.f32.mrb[0].mxu0
    %v442 = vadd.f32 0.0, %v441
    %v443 = vpop.f32.mrb[0].mxu0
    %444 = vdwg.mxu0
    %v445 = vsel %vm203, %v442, -inf
    %446 = vmax.xlane.f32.xlu0 %v445
    %v447 = vpop.xlane.xlu0 %446
    %v448 = vsub.f32 %v442, %v447
    %v449 = vmul.f32 %v448, 1.442695
    %v450 = vpow.pop %v449
    %v451 = vsel %vm203, %v450, 0.0
    %452 = vadd.xlane.f32.xlu0 %v451
    %v453 = vpop.xlane.xlu0 %452
    %v454 = vrcp.pop %v453
    %v455 = vmul.f32 %v450, %v454
    %456 = vrot.lane.b32.xlu0 %v187, 56
    %v457 = vpop.permute.xlu0 %456
    %v460 = vsel %vm203, %v455, 0
    %462 = vmatprep.subr.mxu0 0.0
    %463 = vmatpush1.msra.mxu0 %v457
    %464 = vmatprep.subr.mxu0 0.0
    %465 = vmatpush1.msra.mxu0 0.0
    %466 = vmatprep.subr.mxu0 0.0
    %467 = vmatpush1.msra.mxu0 0.0
    %468 = vmatprep.subr.mxu0 0.0
    %469 = vmatpush1.msra.mxu0 0.0
    %470 = vmatprep.subr.mxu0 0.0
    %471 = vmatpush1.msra.mxu0 0.0
    %472 = vmatprep.subr.mxu0 0.0
    %473 = vmatpush1.msra.mxu0 0.0
    %474 = vmatprep.subr.mxu0 0.0
    %475 = vmatpush1.msra.mxu0 0.0
    %476 = vmatprep.subr.mxu0 0.0
    %477 = vmatpush1.msra.mxu0 0.0
    %478 = vmatprep.subr.mxu0 0.0
    %479 = vmatpush1.msra.mxu0 0.0
    %480 = vmatprep.subr.mxu0 0.0
    %481 = vmatpush1.msra.mxu0 0.0
    %482 = vmatprep.subr.mxu0 0.0
    %483 = vmatpush1.msra.mxu0 0.0
    %484 = vmatprep.subr.mxu0 0.0
    %485 = vmatpush1.msra.mxu0 0.0
    %486 = vmatprep.subr.mxu0 0.0
    %487 = vmatpush1.msra.mxu0 0.0
    %488 = vmatprep.subr.mxu0 0.0
    %489 = vmatpush1.msra.mxu0 0.0
    %490 = vmatprep.subr.mxu0 0.0
    %491 = vmatpush1.msra.mxu0 0.0
    %492 = vmatprep.subr.mxu0 0.0
    %493 = vmatpush1.msra.mxu0 0.0
    %494 = vmatprep.subr.mxu0 0.0
    %495 = vmatpush1.msra.mxu0 0.0
    %496 = vmatprep.subr.mxu0 0.0
    %497 = vmatpush1.msra.mxu0 0.0
    %498 = vmatprep.subr.mxu0 0.0
    %499 = vmatpush1.msra.mxu0 0.0
    %500 = vmatprep.subr.mxu0 0.0
    %501 = vmatpush1.msra.mxu0 0.0
    %502 = vmatprep.subr.mxu0 0.0
    %503 = vmatpush1.msra.mxu0 0.0
    %504 = vmatprep.subr.mxu0 0.0
    %505 = vmatpush1.msra.mxu0 0.0
    %506 = vmatprep.subr.mxu0 0.0
    %507 = vmatpush1.msra.mxu0 0.0
    %508 = vmatprep.subr.mxu0 0.0
    %509 = vmatpush1.msra.mxu0 0.0
    %510 = vmatprep.subr.mxu0 0.0
    %511 = vmatpush1.msra.mxu0 0.0
    %512 = vmatprep.subr.mxu0 0.0
    %513 = vmatpush1.msra.mxu0 0.0
    %514 = vmatprep.subr.mxu0 0.0
    %515 = vmatpush1.msra.mxu0 0.0
    %516 = vmatprep.subr.mxu0 0.0
    %517 = vmatpush1.msra.mxu0 0.0
    %518 = vmatprep.subr.mxu0 0.0
    %519 = vmatpush1.msra.mxu0 0.0
    %520 = vmatprep.subr.mxu0 0.0
    %521 = vmatpush1.msra.mxu0 0.0
    %522 = vmatprep.subr.mxu0 0.0
    %523 = vmatpush1.msra.mxu0 0.0
    %524 = vmatprep.subr.mxu0 0.0
    %525 = vmatpush1.msra.mxu0 0.0
    %526 = vmatprep.mubr.f32.mxu0 0.0
    %527 = vmatmul.mubr.f32.gmra.mrb[0].mxu0 %v460
    %v528 = vpop.f32.mrb[0].mxu0
    %v529 = vadd.f32 0.0, %v528
    %v530 = vpop.f32.mrb[0].mxu0
    %531 = vdwg.mxu0
    %v532 = vpack.c.bf16 %v529, %v529
    %v534 = vsel %vm203, %v532, 0
    %vm536 = vcmask 1043456
    %v538 = vsel %vm536, %v196, 0
    %540 = vmatprep.subr.bf16.mxu0 0
    %541 = vmatpush1.bf16.msra.mxu0 %v538
    %542 = vmatprep.subr.bf16.mxu0 0
    %543 = vmatpush1.bf16.msra.mxu0 0
    %544 = vmatprep.subr.bf16.mxu0 0
    %545 = vmatpush1.bf16.msra.mxu0 0
    %546 = vmatprep.subr.bf16.mxu0 0
    %547 = vmatpush1.bf16.msra.mxu0 0
    %548 = vmatprep.subr.bf16.mxu0 0
    %549 = vmatpush1.bf16.msra.mxu0 0
    %550 = vmatprep.subr.bf16.mxu0 0
    %551 = vmatpush1.bf16.msra.mxu0 0
    %552 = vmatprep.subr.bf16.mxu0 0
    %553 = vmatpush1.bf16.msra.mxu0 0
    %554 = vmatprep.subr.bf16.mxu0 0
    %555 = vmatpush1.bf16.msra.mxu0 0
    %556 = vmatprep.subr.bf16.mxu0 0
    %557 = vmatpush1.bf16.msra.mxu0 0
    %558 = vmatprep.subr.bf16.mxu0 0
    %559 = vmatpush1.bf16.msra.mxu0 0
    %560 = vmatprep.subr.bf16.mxu0 0
    %561 = vmatpush1.bf16.msra.mxu0 0
    %562 = vmatprep.subr.bf16.mxu0 0
    %563 = vmatpush1.bf16.msra.mxu0 0
    %564 = vmatprep.subr.bf16.mxu0 0
    %565 = vmatpush1.bf16.msra.mxu0 0
    %566 = vmatprep.subr.bf16.mxu0 0
    %567 = vmatpush1.bf16.msra.mxu0 0
    %568 = vmatprep.subr.bf16.mxu0 0
    %569 = vmatpush1.bf16.msra.mxu0 0
    %570 = vmatprep.subr.bf16.mxu0 0
    %571 = vmatpush1.bf16.msra.mxu0 0
    %572 = vmatprep.mubr.bf16.mxu0 0
    %573 = vmatmul.mubr.bf16.gmra.mrb[0].mxu0 %v534
    %v574 = vpop.f32.mrb[0].mxu0
    %v575 = vadd.f32 0.0, %v574
    %v576 = vpop.f32.mrb[0].mxu0
    %v577 = vpop.f32.mrb[0].mxu0
    %v578 = vpop.f32.mrb[0].mxu0
    %579 = vdwg.mxu0
    %v581 = vsel %vm203, %v366, 0
    %v584 = vsel %vm536, %v195, 0
    %586 = vmatprep.subr.bf16.mxu0 0
    %587 = vmatpush1.bf16.msra.mxu0 %v584
    %588 = vmatprep.subr.bf16.mxu0 0
    %589 = vmatpush1.bf16.msra.mxu0 0
    %590 = vmatprep.subr.bf16.mxu0 0
    %591 = vmatpush1.bf16.msra.mxu0 0
    %592 = vmatprep.subr.bf16.mxu0 0
    %593 = vmatpush1.bf16.msra.mxu0 0
    %594 = vmatprep.subr.bf16.mxu0 0
    %595 = vmatpush1.bf16.msra.mxu0 0
    %596 = vmatprep.subr.bf16.mxu0 0
    %597 = vmatpush1.bf16.msra.mxu0 0
    %598 = vmatprep.subr.bf16.mxu0 0
    %599 = vmatpush1.bf16.msra.mxu0 0
    %600 = vmatprep.subr.bf16.mxu0 0
    %601 = vmatpush1.bf16.msra.mxu0 0
    %602 = vmatprep.subr.bf16.mxu0 0
    %603 = vmatpush1.bf16.msra.mxu0 0
    %604 = vmatprep.subr.bf16.mxu0 0
    %605 = vmatpush1.bf16.msra.mxu0 0
    %606 = vmatprep.subr.bf16.mxu0 0
    %607 = vmatpush1.bf16.msra.mxu0 0
    %608 = vmatprep.subr.bf16.mxu0 0
    %609 = vmatpush1.bf16.msra.mxu0 0
    %610 = vmatprep.subr.bf16.mxu0 0
    %611 = vmatpush1.bf16.msra.mxu0 0
    %612 = vmatprep.subr.bf16.mxu0 0
    %613 = vmatpush1.bf16.msra.mxu0 0
    %614 = vmatprep.subr.bf16.mxu0 0
    %615 = vmatpush1.bf16.msra.mxu0 0
    %616 = vmatprep.subr.bf16.mxu0 0
    %617 = vmatpush1.bf16.msra.mxu0 0
    %618 = vmatprep.mubr.bf16.mxu0 0
    %619 = vmatmul.mubr.bf16.gmra.mrb[0].mxu0 %v581
    %v620 = vpop.f32.mrb[0].mxu0
    %v621 = vadd.f32 %v575, %v620
    %v622 = vpop.f32.mrb[0].mxu0
    %v623 = vpop.f32.mrb[0].mxu0
    %v624 = vpop.f32.mrb[0].mxu0
    %625 = vdwg.mxu0
    %626 = vrot.lane.b32.xlu0 %v193, 112
    %v627 = vpop.permute.xlu0 %626
    %628 = vrot.lane.b32.xlu0 %v187, 80
    %v629 = vpop.permute.xlu0 %628
    %v630 = vsel %vm203, %v627, 0
    %v632 = vsel %vm203, %v629, 0
    %634 = vmatprep.subr.mxu0 0.0
    %635 = vmatpush1.xpose.msra.mxu0 %v632
    %636 = vmatprep.subr.mxu0 0.0
    %637 = vmatpush1.xpose.msra.mxu0 0.0
    %638 = vmatprep.subr.mxu0 0.0
    %639 = vmatpush1.xpose.msra.mxu0 0.0
    %640 = vmatprep.subr.mxu0 0.0
    %641 = vmatpush1.xpose.msra.mxu0 0.0
    %642 = vmatprep.subr.mxu0 0.0
    %643 = vmatpush1.xpose.msra.mxu0 0.0
    %644 = vmatprep.subr.mxu0 0.0
    %645 = vmatpush1.xpose.msra.mxu0 0.0
    %646 = vmatprep.subr.mxu0 0.0
    %647 = vmatpush1.xpose.msra.mxu0 0.0
    %648 = vmatprep.subr.mxu0 0.0
    %649 = vmatpush1.xpose.msra.mxu0 0.0
    %650 = vmatprep.subr.mxu0 0.0
    %651 = vmatpush1.xpose.msra.mxu0 0.0
    %652 = vmatprep.subr.mxu0 0.0
    %653 = vmatpush1.xpose.msra.mxu0 0.0
    %654 = vmatprep.subr.mxu0 0.0
    %655 = vmatpush1.xpose.msra.mxu0 0.0
    %656 = vmatprep.subr.mxu0 0.0
    %657 = vmatpush1.xpose.msra.mxu0 0.0
    %658 = vmatprep.subr.mxu0 0.0
    %659 = vmatpush1.xpose.msra.mxu0 0.0
    %660 = vmatprep.subr.mxu0 0.0
    %661 = vmatpush1.xpose.msra.mxu0 0.0
    %662 = vmatprep.subr.mxu0 0.0
    %663 = vmatpush1.xpose.msra.mxu0 0.0
    %664 = vmatprep.subr.mxu0 0.0
    %665 = vmatpush1.xpose.msra.mxu0 0.0
    %666 = vmatprep.subr.mxu0 0.0
    %667 = vmatpush1.xpose.msra.mxu0 0.0
    %668 = vmatprep.subr.mxu0 0.0
    %669 = vmatpush1.xpose.msra.mxu0 0.0
    %670 = vmatprep.subr.mxu0 0.0
    %671 = vmatpush1.xpose.msra.mxu0 0.0
    %672 = vmatprep.subr.mxu0 0.0
    %673 = vmatpush1.xpose.msra.mxu0 0.0
    %674 = vmatprep.subr.mxu0 0.0
    %675 = vmatpush1.xpose.msra.mxu0 0.0
    %676 = vmatprep.subr.mxu0 0.0
    %677 = vmatpush1.xpose.msra.mxu0 0.0
    %678 = vmatprep.subr.mxu0 0.0
    %679 = vmatpush1.xpose.msra.mxu0 0.0
    %680 = vmatprep.subr.mxu0 0.0
    %681 = vmatpush1.xpose.msra.mxu0 0.0
    %682 = vmatprep.subr.mxu0 0.0
    %683 = vmatpush1.xpose.msra.mxu0 0.0
    %684 = vmatprep.subr.mxu0 0.0
    %685 = vmatpush1.xpose.msra.mxu0 0.0
    %686 = vmatprep.subr.mxu0 0.0
    %687 = vmatpush1.xpose.msra.mxu0 0.0
    %688 = vmatprep.subr.mxu0 0.0
    %689 = vmatpush1.xpose.msra.mxu0 0.0
    %690 = vmatprep.subr.mxu0 0.0
    %691 = vmatpush1.xpose.msra.mxu0 0.0
    %692 = vmatprep.subr.mxu0 0.0
    %693 = vmatpush1.xpose.msra.mxu0 0.0
    %694 = vmatprep.subr.mxu0 0.0
    %695 = vmatpush1.xpose.msra.mxu0 0.0
    %696 = vmatprep.subr.mxu0 0.0
    %697 = vmatpush1.xpose.msra.mxu0 0.0
    %698 = vmatprep.mubr.f32.mxu0 0.0
    %699 = vmatmul.mubr.f32.gmra.mrb[0].mxu0 %v630
    %v700 = vpop.f32.mrb[0].mxu0
    %v701 = vadd.f32 0.0, %v700
    %v702 = vpop.f32.mrb[0].mxu0
    %703 = vdwg.mxu0
    %v704 = vsel %vm203, %v701, -inf
    %705 = vmax.xlane.f32.xlu0 %v704
    %v706 = vpop.xlane.xlu0 %705
    %v707 = vsub.f32 %v701, %v706
    %v708 = vmul.f32 %v707, 1.442695
    %v709 = vpow.pop %v708
    %v710 = vsel %vm203, %v709, 0.0
    %711 = vadd.xlane.f32.xlu0 %v710
    %v712 = vpop.xlane.xlu0 %711
    %v713 = vrcp.pop %v712
    %v714 = vmul.f32 %v709, %v713
    %715 = vrot.lane.b32.xlu0 %v187, 48
    %v716 = vpop.permute.xlu0 %715
    %v719 = vsel %vm203, %v714, 0
    %721 = vmatprep.subr.mxu0 0.0
    %722 = vmatpush1.msra.mxu0 %v716
    %723 = vmatprep.subr.mxu0 0.0
    %724 = vmatpush1.msra.mxu0 0.0
    %725 = vmatprep.subr.mxu0 0.0
    %726 = vmatpush1.msra.mxu0 0.0
    %727 = vmatprep.subr.mxu0 0.0
    %728 = vmatpush1.msra.mxu0 0.0
    %729 = vmatprep.subr.mxu0 0.0
    %730 = vmatpush1.msra.mxu0 0.0
    %731 = vmatprep.subr.mxu0 0.0
    %732 = vmatpush1.msra.mxu0 0.0
    %733 = vmatprep.subr.mxu0 0.0
    %734 = vmatpush1.msra.mxu0 0.0
    %735 = vmatprep.subr.mxu0 0.0
    %736 = vmatpush1.msra.mxu0 0.0
    %737 = vmatprep.subr.mxu0 0.0
    %738 = vmatpush1.msra.mxu0 0.0
    %739 = vmatprep.subr.mxu0 0.0
    %740 = vmatpush1.msra.mxu0 0.0
    %741 = vmatprep.subr.mxu0 0.0
    %742 = vmatpush1.msra.mxu0 0.0
    %743 = vmatprep.subr.mxu0 0.0
    %744 = vmatpush1.msra.mxu0 0.0
    %745 = vmatprep.subr.mxu0 0.0
    %746 = vmatpush1.msra.mxu0 0.0
    %747 = vmatprep.subr.mxu0 0.0
    %748 = vmatpush1.msra.mxu0 0.0
    %749 = vmatprep.subr.mxu0 0.0
    %750 = vmatpush1.msra.mxu0 0.0
    %751 = vmatprep.subr.mxu0 0.0
    %752 = vmatpush1.msra.mxu0 0.0
    %753 = vmatprep.subr.mxu0 0.0
    %754 = vmatpush1.msra.mxu0 0.0
    %755 = vmatprep.subr.mxu0 0.0
    %756 = vmatpush1.msra.mxu0 0.0
    %757 = vmatprep.subr.mxu0 0.0
    %758 = vmatpush1.msra.mxu0 0.0
    %759 = vmatprep.subr.mxu0 0.0
    %760 = vmatpush1.msra.mxu0 0.0
    %761 = vmatprep.subr.mxu0 0.0
    %762 = vmatpush1.msra.mxu0 0.0
    %763 = vmatprep.subr.mxu0 0.0
    %764 = vmatpush1.msra.mxu0 0.0
    %765 = vmatprep.subr.mxu0 0.0
    %766 = vmatpush1.msra.mxu0 0.0
    %767 = vmatprep.subr.mxu0 0.0
    %768 = vmatpush1.msra.mxu0 0.0
    %769 = vmatprep.subr.mxu0 0.0
    %770 = vmatpush1.msra.mxu0 0.0
    %771 = vmatprep.subr.mxu0 0.0
    %772 = vmatpush1.msra.mxu0 0.0
    %773 = vmatprep.subr.mxu0 0.0
    %774 = vmatpush1.msra.mxu0 0.0
    %775 = vmatprep.subr.mxu0 0.0
    %776 = vmatpush1.msra.mxu0 0.0
    %777 = vmatprep.subr.mxu0 0.0
    %778 = vmatpush1.msra.mxu0 0.0
    %779 = vmatprep.subr.mxu0 0.0
    %780 = vmatpush1.msra.mxu0 0.0
    %781 = vmatprep.subr.mxu0 0.0
    %782 = vmatpush1.msra.mxu0 0.0
    %783 = vmatprep.subr.mxu0 0.0
    %784 = vmatpush1.msra.mxu0 0.0
    %785 = vmatprep.mubr.f32.mxu0 0.0
    %786 = vmatmul.mubr.f32.gmra.mrb[0].mxu0 %v719
    %v787 = vpop.f32.mrb[0].mxu0
    %v788 = vadd.f32 0.0, %v787
    %v789 = vpop.f32.mrb[0].mxu0
    %790 = vdwg.mxu0
    %v791 = vpack.c.bf16 %v788, %v788
    %v793 = vsel %vm203, %v791, 0
    %v796 = vsel %vm536, %v197, 0
    %798 = vmatprep.subr.bf16.mxu0 0
    %799 = vmatpush1.bf16.msra.mxu0 %v796
    %800 = vmatprep.subr.bf16.mxu0 0
    %801 = vmatpush1.bf16.msra.mxu0 0
    %802 = vmatprep.subr.bf16.mxu0 0
    %803 = vmatpush1.bf16.msra.mxu0 0
    %804 = vmatprep.subr.bf16.mxu0 0
    %805 = vmatpush1.bf16.msra.mxu0 0
    %806 = vmatprep.subr.bf16.mxu0 0
    %807 = vmatpush1.bf16.msra.mxu0 0
    %808 = vmatprep.subr.bf16.mxu0 0
    %809 = vmatpush1.bf16.msra.mxu0 0
    %810 = vmatprep.subr.bf16.mxu0 0
    %811 = vmatpush1.bf16.msra.mxu0 0
    %812 = vmatprep.subr.bf16.mxu0 0
    %813 = vmatpush1.bf16.msra.mxu0 0
    %814 = vmatprep.subr.bf16.mxu0 0
    %815 = vmatpush1.bf16.msra.mxu0 0
    %816 = vmatprep.subr.bf16.mxu0 0
    %817 = vmatpush1.bf16.msra.mxu0 0
    %818 = vmatprep.subr.bf16.mxu0 0
    %819 = vmatpush1.bf16.msra.mxu0 0
    %820 = vmatprep.subr.bf16.mxu0 0
    %821 = vmatpush1.bf16.msra.mxu0 0
    %822 = vmatprep.subr.bf16.mxu0 0
    %823 = vmatpush1.bf16.msra.mxu0 0
    %824 = vmatprep.subr.bf16.mxu0 0
    %825 = vmatpush1.bf16.msra.mxu0 0
    %826 = vmatprep.subr.bf16.mxu0 0
    %827 = vmatpush1.bf16.msra.mxu0 0
    %828 = vmatprep.subr.bf16.mxu0 0
    %829 = vmatpush1.bf16.msra.mxu0 0
    %830 = vmatprep.mubr.bf16.mxu0 0
    %831 = vmatmul.mubr.bf16.gmra.mrb[0].mxu0 %v793
    %v832 = vpop.f32.mrb[0].mxu0
    %v833 = vadd.f32 0.0, %v832
    %v834 = vpop.f32.mrb[0].mxu0
    %v835 = vpop.f32.mrb[0].mxu0
    %v836 = vpop.f32.mrb[0].mxu0
    %837 = vdwg.mxu0
    %v838 = vadd.f32 %v621, %v833
    %839 = vrot.lane.b32.xlu0 %v193, 104
    %v840 = vpop.permute.xlu0 %839
    %841 = vrot.lane.b32.xlu0 %v187, 72
    %v842 = vpop.permute.xlu0 %841
    %v843 = vsel %vm203, %v840, 0
    %v845 = vsel %vm203, %v842, 0
    %847 = vmatprep.subr.mxu0 0.0
    %848 = vmatpush1.xpose.msra.mxu0 %v845
    %849 = vmatprep.subr.mxu0 0.0
    %850 = vmatpush1.xpose.msra.mxu0 0.0
    %851 = vmatprep.subr.mxu0 0.0
    %852 = vmatpush1.xpose.msra.mxu0 0.0
    %853 = vmatprep.subr.mxu0 0.0
    %854 = vmatpush1.xpose.msra.mxu0 0.0
    %855 = vmatprep.subr.mxu0 0.0
    %856 = vmatpush1.xpose.msra.mxu0 0.0
    %857 = vmatprep.subr.mxu0 0.0
    %858 = vmatpush1.xpose.msra.mxu0 0.0
    %859 = vmatprep.subr.mxu0 0.0
    %860 = vmatpush1.xpose.msra.mxu0 0.0
    %861 = vmatprep.subr.mxu0 0.0
    %862 = vmatpush1.xpose.msra.mxu0 0.0
    %863 = vmatprep.subr.mxu0 0.0
    %864 = vmatpush1.xpose.msra.mxu0 0.0
    %865 = vmatprep.subr.mxu0 0.0
    %866 = vmatpush1.xpose.msra.mxu0 0.0
    %867 = vmatprep.subr.mxu0 0.0
    %868 = vmatpush1.xpose.msra.mxu0 0.0
    %869 = vmatprep.subr.mxu0 0.0
    %870 = vmatpush1.xpose.msra.mxu0 0.0
    %871 = vmatprep.subr.mxu0 0.0
    %872 = vmatpush1.xpose.msra.mxu0 0.0
    %873 = vmatprep.subr.mxu0 0.0
    %874 = vmatpush1.xpose.msra.mxu0 0.0
    %875 = vmatprep.subr.mxu0 0.0
    %876 = vmatpush1.xpose.msra.mxu0 0.0
    %877 = vmatprep.subr.mxu0 0.0
    %878 = vmatpush1.xpose.msra.mxu0 0.0
    %879 = vmatprep.subr.mxu0 0.0
    %880 = vmatpush1.xpose.msra.mxu0 0.0
    %881 = vmatprep.subr.mxu0 0.0
    %882 = vmatpush1.xpose.msra.mxu0 0.0
    %883 = vmatprep.subr.mxu0 0.0
    %884 = vmatpush1.xpose.msra.mxu0 0.0
    %885 = vmatprep.subr.mxu0 0.0
    %886 = vmatpush1.xpose.msra.mxu0 0.0
    %887 = vmatprep.subr.mxu0 0.0
    %888 = vmatpush1.xpose.msra.mxu0 0.0
    %889 = vmatprep.subr.mxu0 0.0
    %890 = vmatpush1.xpose.msra.mxu0 0.0
    %891 = vmatprep.subr.mxu0 0.0
    %892 = vmatpush1.xpose.msra.mxu0 0.0
    %893 = vmatprep.subr.mxu0 0.0
    %894 = vmatpush1.xpose.msra.mxu0 0.0
    %895 = vmatprep.subr.mxu0 0.0
    %896 = vmatpush1.xpose.msra.mxu0 0.0
    %897 = vmatprep.subr.mxu0 0.0
    %898 = vmatpush1.xpose.msra.mxu0 0.0
    %899 = vmatprep.subr.mxu0 0.0
    %900 = vmatpush1.xpose.msra.mxu0 0.0
    %901 = vmatprep.subr.mxu0 0.0
    %902 = vmatpush1.xpose.msra.mxu0 0.0
    %903 = vmatprep.subr.mxu0 0.0
    %904 = vmatpush1.xpose.msra.mxu0 0.0
    %905 = vmatprep.subr.mxu0 0.0
    %906 = vmatpush1.xpose.msra.mxu0 0.0
    %907 = vmatprep.subr.mxu0 0.0
    %908 = vmatpush1.xpose.msra.mxu0 0.0
    %909 = vmatprep.subr.mxu0 0.0
    %910 = vmatpush1.xpose.msra.mxu0 0.0
    %911 = vmatprep.mubr.f32.mxu0 0.0
    %912 = vmatmul.mubr.f32.gmra.mrb[0].mxu0 %v843
    %v913 = vpop.f32.mrb[0].mxu0
    %v914 = vadd.f32 0.0, %v913
    %v915 = vpop.f32.mrb[0].mxu0
    %916 = vdwg.mxu0
    %v917 = vsel %vm203, %v914, -inf
    %918 = vmax.xlane.f32.xlu0 %v917
    %v919 = vpop.xlane.xlu0 %918
    %v920 = vsub.f32 %v914, %v919
    %v921 = vmul.f32 %v920, 1.442695
    %v922 = vpow.pop %v921
    %v923 = vsel %vm203, %v922, 0.0
    %924 = vadd.xlane.f32.xlu0 %v923
    %v925 = vpop.xlane.xlu0 %924
    %v926 = vrcp.pop %v925
    %v927 = vmul.f32 %v922, %v926
    %928 = vrot.lane.b32.xlu0 %v187, 40
    %v929 = vpop.permute.xlu0 %928
    %v932 = vsel %vm203, %v927, 0
    %934 = vmatprep.subr.mxu0 0.0
    %935 = vmatpush1.msra.mxu0 %v929
    %936 = vmatprep.subr.mxu0 0.0
    %937 = vmatpush1.msra.mxu0 0.0
    %938 = vmatprep.subr.mxu0 0.0
    %939 = vmatpush1.msra.mxu0 0.0
    %940 = vmatprep.subr.mxu0 0.0
    %941 = vmatpush1.msra.mxu0 0.0
    %942 = vmatprep.subr.mxu0 0.0
    %943 = vmatpush1.msra.mxu0 0.0
    %944 = vmatprep.subr.mxu0 0.0
    %945 = vmatpush1.msra.mxu0 0.0
    %946 = vmatprep.subr.mxu0 0.0
    %947 = vmatpush1.msra.mxu0 0.0
    %948 = vmatprep.subr.mxu0 0.0
    %949 = vmatpush1.msra.mxu0 0.0
    %950 = vmatprep.subr.mxu0 0.0
    %951 = vmatpush1.msra.mxu0 0.0
    %952 = vmatprep.subr.mxu0 0.0
    %953 = vmatpush1.msra.mxu0 0.0
    %954 = vmatprep.subr.mxu0 0.0
    %955 = vmatpush1.msra.mxu0 0.0
    %956 = vmatprep.subr.mxu0 0.0
    %957 = vmatpush1.msra.mxu0 0.0
    %958 = vmatprep.subr.mxu0 0.0
    %959 = vmatpush1.msra.mxu0 0.0
    %960 = vmatprep.subr.mxu0 0.0
    %961 = vmatpush1.msra.mxu0 0.0
    %962 = vmatprep.subr.mxu0 0.0
    %963 = vmatpush1.msra.mxu0 0.0
    %964 = vmatprep.subr.mxu0 0.0
    %965 = vmatpush1.msra.mxu0 0.0
    %966 = vmatprep.subr.mxu0 0.0
    %967 = vmatpush1.msra.mxu0 0.0
    %968 = vmatprep.subr.mxu0 0.0
    %969 = vmatpush1.msra.mxu0 0.0
    %970 = vmatprep.subr.mxu0 0.0
    %971 = vmatpush1.msra.mxu0 0.0
    %972 = vmatprep.subr.mxu0 0.0
    %973 = vmatpush1.msra.mxu0 0.0
    %974 = vmatprep.subr.mxu0 0.0
    %975 = vmatpush1.msra.mxu0 0.0
    %976 = vmatprep.subr.mxu0 0.0
    %977 = vmatpush1.msra.mxu0 0.0
    %978 = vmatprep.subr.mxu0 0.0
    %979 = vmatpush1.msra.mxu0 0.0
    %980 = vmatprep.subr.mxu0 0.0
    %981 = vmatpush1.msra.mxu0 0.0
    %982 = vmatprep.subr.mxu0 0.0
    %983 = vmatpush1.msra.mxu0 0.0
    %984 = vmatprep.subr.mxu0 0.0
    %985 = vmatpush1.msra.mxu0 0.0
    %986 = vmatprep.subr.mxu0 0.0
    %987 = vmatpush1.msra.mxu0 0.0
    %988 = vmatprep.subr.mxu0 0.0
    %989 = vmatpush1.msra.mxu0 0.0
    %990 = vmatprep.subr.mxu0 0.0
    %991 = vmatpush1.msra.mxu0 0.0
    %992 = vmatprep.subr.mxu0 0.0
    %993 = vmatpush1.msra.mxu0 0.0
    %994 = vmatprep.subr.mxu0 0.0
    %995 = vmatpush1.msra.mxu0 0.0
    %996 = vmatprep.subr.mxu0 0.0
    %997 = vmatpush1.msra.mxu0 0.0
    %998 = vmatprep.mubr.f32.mxu0 0.0
    %999 = vmatmul.mubr.f32.gmra.mrb[0].mxu0 %v932
    %v1000 = vpop.f32.mrb[0].mxu0
    %v1001 = vadd.f32 0.0, %v1000
    %v1002 = vpop.f32.mrb[0].mxu0
    %1003 = vdwg.mxu0
    %v1004 = vpack.c.bf16 %v1001, %v1001
    %v1006 = vsel %vm203, %v1004, 0
    %v1009 = vsel %vm536, %v198, 0
    %1011 = vmatprep.subr.bf16.mxu0 0
    %1012 = vmatpush1.bf16.msra.mxu0 %v1009
    %1013 = vmatprep.subr.bf16.mxu0 0
    %1014 = vmatpush1.bf16.msra.mxu0 0
    %1015 = vmatprep.subr.bf16.mxu0 0
    %1016 = vmatpush1.bf16.msra.mxu0 0
    %1017 = vmatprep.subr.bf16.mxu0 0
    %1018 = vmatpush1.bf16.msra.mxu0 0
    %1019 = vmatprep.subr.bf16.mxu0 0
    %1020 = vmatpush1.bf16.msra.mxu0 0
    %1021 = vmatprep.subr.bf16.mxu0 0
    %1022 = vmatpush1.bf16.msra.mxu0 0
    %1023 = vmatprep.subr.bf16.mxu0 0
    %1024 = vmatpush1.bf16.msra.mxu0 0
    %1025 = vmatprep.subr.bf16.mxu0 0
    %1026 = vmatpush1.bf16.msra.mxu0 0
    %1027 = vmatprep.subr.bf16.mxu0 0
    %1028 = vmatpush1.bf16.msra.mxu0 0
    %1029 = vmatprep.subr.bf16.mxu0 0
    %1030 = vmatpush1.bf16.msra.mxu0 0
    %1031 = vmatprep.subr.bf16.mxu0 0
    %1032 = vmatpush1.bf16.msra.mxu0 0
    %1033 = vmatprep.subr.bf16.mxu0 0
    %1034 = vmatpush1.bf16.msra.mxu0 0
    %1035 = vmatprep.subr.bf16.mxu0 0
    %1036 = vmatpush1.bf16.msra.mxu0 0
    %1037 = vmatprep.subr.bf16.mxu0 0
    %1038 = vmatpush1.bf16.msra.mxu0 0
    %1039 = vmatprep.subr.bf16.mxu0 0
    %1040 = vmatpush1.bf16.msra.mxu0 0
    %1041 = vmatprep.subr.bf16.mxu0 0
    %1042 = vmatpush1.bf16.msra.mxu0 0
    %1043 = vmatprep.mubr.bf16.mxu0 0
    %1044 = vmatmul.mubr.bf16.gmra.mrb[0].mxu0 %v1006
    %v1045 = vpop.f32.mrb[0].mxu0
    %v1046 = vadd.f32 0.0, %v1045
    %v1047 = vpop.f32.mrb[0].mxu0
    %v1048 = vpop.f32.mrb[0].mxu0
    %v1049 = vpop.f32.mrb[0].mxu0
    %1050 = vdwg.mxu0
    %v1051 = vadd.f32 %v838, %v1046
    %v1053 = vlaneseq
    %v1054 = vshrl.u32 %v1053, 7
    %v1055 = vsub.s32 0, %v1054
    %v1056 = vrot.slane %v199, %v1055
    %v1058 = vadd.f32 %v1051, %v1056
    %1060 = vrot.lane.b32.xlu0 %v190, 96
    %v1061 = vpop.permute.xlu0 %1060
    %v1063 = vsel %vm203, %v194, 0
    %v1065 = vsel %vm203, %v1061, 0
    %1067 = vmatprep.subr.mxu0 0.0
    %1068 = vmatpush1.xpose.msra.mxu0 %v1065
    %1069 = vmatprep.subr.mxu0 0.0
    %1070 = vmatpush1.xpose.msra.mxu0 0.0
    %1071 = vmatprep.subr.mxu0 0.0
    %1072 = vmatpush1.xpose.msra.mxu0 0.0
    %1073 = vmatprep.subr.mxu0 0.0
    %1074 = vmatpush1.xpose.msra.mxu0 0.0
    %1075 = vmatprep.subr.mxu0 0.0
    %1076 = vmatpush1.xpose.msra.mxu0 0.0
    %1077 = vmatprep.subr.mxu0 0.0
    %1078 = vmatpush1.xpose.msra.mxu0 0.0
    %1079 = vmatprep.subr.mxu0 0.0
    %1080 = vmatpush1.xpose.msra.mxu0 0.0
    %1081 = vmatprep.subr.mxu0 0.0
    %1082 = vmatpush1.xpose.msra.mxu0 0.0
    %1083 = vmatprep.subr.mxu0 0.0
    %1084 = vmatpush1.xpose.msra.mxu0 0.0
    %1085 = vmatprep.subr.mxu0 0.0
    %1086 = vmatpush1.xpose.msra.mxu0 0.0
    %1087 = vmatprep.subr.mxu0 0.0
    %1088 = vmatpush1.xpose.msra.mxu0 0.0
    %1089 = vmatprep.subr.mxu0 0.0
    %1090 = vmatpush1.xpose.msra.mxu0 0.0
    %1091 = vmatprep.subr.mxu0 0.0
    %1092 = vmatpush1.xpose.msra.mxu0 0.0
    %1093 = vmatprep.subr.mxu0 0.0
    %1094 = vmatpush1.xpose.msra.mxu0 0.0
    %1095 = vmatprep.subr.mxu0 0.0
    %1096 = vmatpush1.xpose.msra.mxu0 0.0
    %1097 = vmatprep.subr.mxu0 0.0
    %1098 = vmatpush1.xpose.msra.mxu0 0.0
    %1099 = vmatprep.subr.mxu0 0.0
    %1100 = vmatpush1.xpose.msra.mxu0 0.0
    %1101 = vmatprep.subr.mxu0 0.0
    %1102 = vmatpush1.xpose.msra.mxu0 0.0
    %1103 = vmatprep.subr.mxu0 0.0
    %1104 = vmatpush1.xpose.msra.mxu0 0.0
    %1105 = vmatprep.subr.mxu0 0.0
    %1106 = vmatpush1.xpose.msra.mxu0 0.0
    %1107 = vmatprep.subr.mxu0 0.0
    %1108 = vmatpush1.xpose.msra.mxu0 0.0
    %1109 = vmatprep.subr.mxu0 0.0
    %1110 = vmatpush1.xpose.msra.mxu0 0.0
    %1111 = vmatprep.subr.mxu0 0.0
    %1112 = vmatpush1.xpose.msra.mxu0 0.0
    %1113 = vmatprep.subr.mxu0 0.0
    %1114 = vmatpush1.xpose.msra.mxu0 0.0
    %1115 = vmatprep.subr.mxu0 0.0
    %1116 = vmatpush1.xpose.msra.mxu0 0.0
    %1117 = vmatprep.subr.mxu0 0.0
    %1118 = vmatpush1.xpose.msra.mxu0 0.0
    %1119 = vmatprep.subr.mxu0 0.0
    %1120 = vmatpush1.xpose.msra.mxu0 0.0
    %1121 = vmatprep.subr.mxu0 0.0
    %1122 = vmatpush1.xpose.msra.mxu0 0.0
    %1123 = vmatprep.subr.mxu0 0.0
    %1124 = vmatpush1.xpose.msra.mxu0 0.0
    %1125 = vmatprep.subr.mxu0 0.0
    %1126 = vmatpush1.xpose.msra.mxu0 0.0
    %1127 = vmatprep.subr.mxu0 0.0
    %1128 = vmatpush1.xpose.msra.mxu0 0.0
    %1129 = vmatprep.subr.mxu0 0.0
    %1130 = vmatpush1.xpose.msra.mxu0 0.0
    %1131 = vmatprep.mubr.f32.mxu0 0.0
    %1132 = vmatmul.mubr.f32.gmra.mrb[0].mxu0 %v1063
    %v1133 = vpop.f32.mrb[0].mxu0
    %v1134 = vadd.f32 0.0, %v1133
    %v1135 = vpop.f32.mrb[0].mxu0
    %1136 = vdwg.mxu0
    %v1137 = vsel %vm203, %v1134, -inf
    %1138 = vmax.xlane.f32.xlu0 %v1137
    %v1139 = vpop.xlane.xlu0 %1138
    %v1140 = vsub.f32 %v1134, %v1139
    %v1141 = vmul.f32 %v1140, 1.442695
    %v1142 = vpow.pop %v1141
    %v1143 = vsel %vm203, %v1142, 0.0
    %1144 = vadd.xlane.f32.xlu0 %v1143
    %v1145 = vpop.xlane.xlu0 %1144
    %v1146 = vrcp.pop %v1145
    %v1147 = vmul.f32 %v1142, %v1146
    %1148 = vrot.lane.b32.xlu0 %v190, 64
    %v1149 = vpop.permute.xlu0 %1148
    %v1152 = vsel %vm203, %v1147, 0
    %1154 = vmatprep.subr.mxu0 0.0
    %1155 = vmatpush1.msra.mxu0 %v1149
    %1156 = vmatprep.subr.mxu0 0.0
    %1157 = vmatpush1.msra.mxu0 0.0
    %1158 = vmatprep.subr.mxu0 0.0
    %1159 = vmatpush1.msra.mxu0 0.0
    %1160 = vmatprep.subr.mxu0 0.0
    %1161 = vmatpush1.msra.mxu0 0.0
    %1162 = vmatprep.subr.mxu0 0.0
    %1163 = vmatpush1.msra.mxu0 0.0
    %1164 = vmatprep.subr.mxu0 0.0
    %1165 = vmatpush1.msra.mxu0 0.0
    %1166 = vmatprep.subr.mxu0 0.0
    %1167 = vmatpush1.msra.mxu0 0.0
    %1168 = vmatprep.subr.mxu0 0.0
    %1169 = vmatpush1.msra.mxu0 0.0
    %1170 = vmatprep.subr.mxu0 0.0
    %1171 = vmatpush1.msra.mxu0 0.0
    %1172 = vmatprep.subr.mxu0 0.0
    %1173 = vmatpush1.msra.mxu0 0.0
    %1174 = vmatprep.subr.mxu0 0.0
    %1175 = vmatpush1.msra.mxu0 0.0
    %1176 = vmatprep.subr.mxu0 0.0
    %1177 = vmatpush1.msra.mxu0 0.0
    %1178 = vmatprep.subr.mxu0 0.0
    %1179 = vmatpush1.msra.mxu0 0.0
    %1180 = vmatprep.subr.mxu0 0.0
    %1181 = vmatpush1.msra.mxu0 0.0
    %1182 = vmatprep.subr.mxu0 0.0
    %1183 = vmatpush1.msra.mxu0 0.0
    %1184 = vmatprep.subr.mxu0 0.0
    %1185 = vmatpush1.msra.mxu0 0.0
    %1186 = vmatprep.subr.mxu0 0.0
    %1187 = vmatpush1.msra.mxu0 0.0
    %1188 = vmatprep.subr.mxu0 0.0
    %1189 = vmatpush1.msra.mxu0 0.0
    %1190 = vmatprep.subr.mxu0 0.0
    %1191 = vmatpush1.msra.mxu0 0.0
    %1192 = vmatprep.subr.mxu0 0.0
    %1193 = vmatpush1.msra.mxu0 0.0
    %1194 = vmatprep.subr.mxu0 0.0
    %1195 = vmatpush1.msra.mxu0 0.0
    %1196 = vmatprep.subr.mxu0 0.0
    %1197 = vmatpush1.msra.mxu0 0.0
    %1198 = vmatprep.subr.mxu0 0.0
    %1199 = vmatpush1.msra.mxu0 0.0
    %1200 = vmatprep.subr.mxu0 0.0
    %1201 = vmatpush1.msra.mxu0 0.0
    %1202 = vmatprep.subr.mxu0 0.0
    %1203 = vmatpush1.msra.mxu0 0.0
    %1204 = vmatprep.subr.mxu0 0.0
    %1205 = vmatpush1.msra.mxu0 0.0
    %1206 = vmatprep.subr.mxu0 0.0
    %1207 = vmatpush1.msra.mxu0 0.0
    %1208 = vmatprep.subr.mxu0 0.0
    %1209 = vmatpush1.msra.mxu0 0.0
    %1210 = vmatprep.subr.mxu0 0.0
    %1211 = vmatpush1.msra.mxu0 0.0
    %1212 = vmatprep.subr.mxu0 0.0
    %1213 = vmatpush1.msra.mxu0 0.0
    %1214 = vmatprep.subr.mxu0 0.0
    %1215 = vmatpush1.msra.mxu0 0.0
    %1216 = vmatprep.subr.mxu0 0.0
    %1217 = vmatpush1.msra.mxu0 0.0
    %1218 = vmatprep.mubr.f32.mxu0 0.0
    %1219 = vmatmul.mubr.f32.gmra.mrb[0].mxu0 %v1152
    %v1220 = vpop.f32.mrb[0].mxu0
    %v1221 = vadd.f32 0.0, %v1220
    %v1222 = vpop.f32.mrb[0].mxu0
    %1223 = vdwg.mxu0
    %v1224 = vpack.c.bf16 %v1221, %v1221
    %1225 = vrot.lane.b32.xlu0 %v194, 120
    %v1226 = vpop.permute.xlu0 %1225
    %1227 = vrot.lane.b32.xlu0 %v190, 88
    %v1228 = vpop.permute.xlu0 %1227
    %v1229 = vsel %vm203, %v1226, 0
    %v1231 = vsel %vm203, %v1228, 0
    %1233 = vmatprep.subr.mxu0 0.0
    %1234 = vmatpush1.xpose.msra.mxu0 %v1231
    %1235 = vmatprep.subr.mxu0 0.0
    %1236 = vmatpush1.xpose.msra.mxu0 0.0
    %1237 = vmatprep.subr.mxu0 0.0
    %1238 = vmatpush1.xpose.msra.mxu0 0.0
    %1239 = vmatprep.subr.mxu0 0.0
    %1240 = vmatpush1.xpose.msra.mxu0 0.0
    %1241 = vmatprep.subr.mxu0 0.0
    %1242 = vmatpush1.xpose.msra.mxu0 0.0
    %1243 = vmatprep.subr.mxu0 0.0
    %1244 = vmatpush1.xpose.msra.mxu0 0.0
    %1245 = vmatprep.subr.mxu0 0.0
    %1246 = vmatpush1.xpose.msra.mxu0 0.0
    %1247 = vmatprep.subr.mxu0 0.0
    %1248 = vmatpush1.xpose.msra.mxu0 0.0
    %1249 = vmatprep.subr.mxu0 0.0
    %1250 = vmatpush1.xpose.msra.mxu0 0.0
    %1251 = vmatprep.subr.mxu0 0.0
    %1252 = vmatpush1.xpose.msra.mxu0 0.0
    %1253 = vmatprep.subr.mxu0 0.0
    %1254 = vmatpush1.xpose.msra.mxu0 0.0
    %1255 = vmatprep.subr.mxu0 0.0
    %1256 = vmatpush1.xpose.msra.mxu0 0.0
    %1257 = vmatprep.subr.mxu0 0.0
    %1258 = vmatpush1.xpose.msra.mxu0 0.0
    %1259 = vmatprep.subr.mxu0 0.0
    %1260 = vmatpush1.xpose.msra.mxu0 0.0
    %1261 = vmatprep.subr.mxu0 0.0
    %1262 = vmatpush1.xpose.msra.mxu0 0.0
    %1263 = vmatprep.subr.mxu0 0.0
    %1264 = vmatpush1.xpose.msra.mxu0 0.0
    %1265 = vmatprep.subr.mxu0 0.0
    %1266 = vmatpush1.xpose.msra.mxu0 0.0
    %1267 = vmatprep.subr.mxu0 0.0
    %1268 = vmatpush1.xpose.msra.mxu0 0.0
    %1269 = vmatprep.subr.mxu0 0.0
    %1270 = vmatpush1.xpose.msra.mxu0 0.0
    %1271 = vmatprep.subr.mxu0 0.0
    %1272 = vmatpush1.xpose.msra.mxu0 0.0
    %1273 = vmatprep.subr.mxu0 0.0
    %1274 = vmatpush1.xpose.msra.mxu0 0.0
    %1275 = vmatprep.subr.mxu0 0.0
    %1276 = vmatpush1.xpose.msra.mxu0 0.0
    %1277 = vmatprep.subr.mxu0 0.0
    %1278 = vmatpush1.xpose.msra.mxu0 0.0
    %1279 = vmatprep.subr.mxu0 0.0
    %1280 = vmatpush1.xpose.msra.mxu0 0.0
    %1281 = vmatprep.subr.mxu0 0.0
    %1282 = vmatpush1.xpose.msra.mxu0 0.0
    %1283 = vmatprep.subr.mxu0 0.0
    %1284 = vmatpush1.xpose.msra.mxu0 0.0
    %1285 = vmatprep.subr.mxu0 0.0
    %1286 = vmatpush1.xpose.msra.mxu0 0.0
    %1287 = vmatprep.subr.mxu0 0.0
    %1288 = vmatpush1.xpose.msra.mxu0 0.0
    %1289 = vmatprep.subr.mxu0 0.0
    %1290 = vmatpush1.xpose.msra.mxu0 0.0
    %1291 = vmatprep.subr.mxu0 0.0
    %1292 = vmatpush1.xpose.msra.mxu0 0.0
    %1293 = vmatprep.subr.mxu0 0.0
    %1294 = vmatpush1.xpose.msra.mxu0 0.0
    %1295 = vmatprep.subr.mxu0 0.0
    %1296 = vmatpush1.xpose.msra.mxu0 0.0
    %1297 = vmatprep.mubr.f32.mxu0 0.0
    %1298 = vmatmul.mubr.f32.gmra.mrb[0].mxu0 %v1229
    %v1299 = vpop.f32.mrb[0].mxu0
    %v1300 = vadd.f32 0.0, %v1299
    %v1301 = vpop.f32.mrb[0].mxu0
    %1302 = vdwg.mxu0
    %v1303 = vsel %vm203, %v1300, -inf
    %1304 = vmax.xlane.f32.xlu0 %v1303
    %v1305 = vpop.xlane.xlu0 %1304
    %v1306 = vsub.f32 %v1300, %v1305
    %v1307 = vmul.f32 %v1306, 1.442695
    %v1308 = vpow.pop %v1307
    %v1309 = vsel %vm203, %v1308, 0.0
    %1310 = vadd.xlane.f32.xlu0 %v1309
    %v1311 = vpop.xlane.xlu0 %1310
    %v1312 = vrcp.pop %v1311
    %v1313 = vmul.f32 %v1308, %v1312
    %1314 = vrot.lane.b32.xlu0 %v190, 56
    %v1315 = vpop.permute.xlu0 %1314
    %v1318 = vsel %vm203, %v1313, 0
    %1320 = vmatprep.subr.mxu0 0.0
    %1321 = vmatpush1.msra.mxu0 %v1315
    %1322 = vmatprep.subr.mxu0 0.0
    %1323 = vmatpush1.msra.mxu0 0.0
    %1324 = vmatprep.subr.mxu0 0.0
    %1325 = vmatpush1.msra.mxu0 0.0
    %1326 = vmatprep.subr.mxu0 0.0
    %1327 = vmatpush1.msra.mxu0 0.0
    %1328 = vmatprep.subr.mxu0 0.0
    %1329 = vmatpush1.msra.mxu0 0.0
    %1330 = vmatprep.subr.mxu0 0.0
    %1331 = vmatpush1.msra.mxu0 0.0
    %1332 = vmatprep.subr.mxu0 0.0
    %1333 = vmatpush1.msra.mxu0 0.0
    %1334 = vmatprep.subr.mxu0 0.0
    %1335 = vmatpush1.msra.mxu0 0.0
    %1336 = vmatprep.subr.mxu0 0.0
    %1337 = vmatpush1.msra.mxu0 0.0
    %1338 = vmatprep.subr.mxu0 0.0
    %1339 = vmatpush1.msra.mxu0 0.0
    %1340 = vmatprep.subr.mxu0 0.0
    %1341 = vmatpush1.msra.mxu0 0.0
    %1342 = vmatprep.subr.mxu0 0.0
    %1343 = vmatpush1.msra.mxu0 0.0
    %1344 = vmatprep.subr.mxu0 0.0
    %1345 = vmatpush1.msra.mxu0 0.0
    %1346 = vmatprep.subr.mxu0 0.0
    %1347 = vmatpush1.msra.mxu0 0.0
    %1348 = vmatprep.subr.mxu0 0.0
    %1349 = vmatpush1.msra.mxu0 0.0
    %1350 = vmatprep.subr.mxu0 0.0
    %1351 = vmatpush1.msra.mxu0 0.0
    %1352 = vmatprep.subr.mxu0 0.0
    %1353 = vmatpush1.msra.mxu0 0.0
    %1354 = vmatprep.subr.mxu0 0.0
    %1355 = vmatpush1.msra.mxu0 0.0
    %1356 = vmatprep.subr.mxu0 0.0
    %1357 = vmatpush1.msra.mxu0 0.0
    %1358 = vmatprep.subr.mxu0 0.0
    %1359 = vmatpush1.msra.mxu0 0.0
    %1360 = vmatprep.subr.mxu0 0.0
    %1361 = vmatpush1.msra.mxu0 0.0
    %1362 = vmatprep.subr.mxu0 0.0
    %1363 = vmatpush1.msra.mxu0 0.0
    %1364 = vmatprep.subr.mxu0 0.0
    %1365 = vmatpush1.msra.mxu0 0.0
    %1366 = vmatprep.subr.mxu0 0.0
    %1367 = vmatpush1.msra.mxu0 0.0
    %1368 = vmatprep.subr.mxu0 0.0
    %1369 = vmatpush1.msra.mxu0 0.0
    %1370 = vmatprep.subr.mxu0 0.0
    %1371 = vmatpush1.msra.mxu0 0.0
    %1372 = vmatprep.subr.mxu0 0.0
    %1373 = vmatpush1.msra.mxu0 0.0
    %1374 = vmatprep.subr.mxu0 0.0
    %1375 = vmatpush1.msra.mxu0 0.0
    %1376 = vmatprep.subr.mxu0 0.0
    %1377 = vmatpush1.msra.mxu0 0.0
    %1378 = vmatprep.subr.mxu0 0.0
    %1379 = vmatpush1.msra.mxu0 0.0
    %1380 = vmatprep.subr.mxu0 0.0
    %1381 = vmatpush1.msra.mxu0 0.0
    %1382 = vmatprep.subr.mxu0 0.0
    %1383 = vmatpush1.msra.mxu0 0.0
    %1384 = vmatprep.mubr.f32.mxu0 0.0
    %1385 = vmatmul.mubr.f32.gmra.mrb[0].mxu0 %v1318
    %v1386 = vpop.f32.mrb[0].mxu0
    %v1387 = vadd.f32 0.0, %v1386
    %v1388 = vpop.f32.mrb[0].mxu0
    %1389 = vdwg.mxu0
    %v1390 = vpack.c.bf16 %v1387, %v1387
    %v1392 = vsel %vm203, %v1390, 0
    %1394 = vmatprep.subr.bf16.mxu0 0
    %1395 = vmatpush1.bf16.msra.mxu0 %v538
    %1396 = vmatprep.subr.bf16.mxu0 0
    %1397 = vmatpush1.bf16.msra.mxu0 0
    %1398 = vmatprep.subr.bf16.mxu0 0
    %1399 = vmatpush1.bf16.msra.mxu0 0
    %1400 = vmatprep.subr.bf16.mxu0 0
    %1401 = vmatpush1.bf16.msra.mxu0 0
    %1402 = vmatprep.subr.bf16.mxu0 0
    %1403 = vmatpush1.bf16.msra.mxu0 0
    %1404 = vmatprep.subr.bf16.mxu0 0
    %1405 = vmatpush1.bf16.msra.mxu0 0
    %1406 = vmatprep.subr.bf16.mxu0 0
    %1407 = vmatpush1.bf16.msra.mxu0 0
    %1408 = vmatprep.subr.bf16.mxu0 0
    %1409 = vmatpush1.bf16.msra.mxu0 0
    %1410 = vmatprep.subr.bf16.mxu0 0
    %1411 = vmatpush1.bf16.msra.mxu0 0
    %1412 = vmatprep.subr.bf16.mxu0 0
    %1413 = vmatpush1.bf16.msra.mxu0 0
    %1414 = vmatprep.subr.bf16.mxu0 0
    %1415 = vmatpush1.bf16.msra.mxu0 0
    %1416 = vmatprep.subr.bf16.mxu0 0
    %1417 = vmatpush1.bf16.msra.mxu0 0
    %1418 = vmatprep.subr.bf16.mxu0 0
    %1419 = vmatpush1.bf16.msra.mxu0 0
    %1420 = vmatprep.subr.bf16.mxu0 0
    %1421 = vmatpush1.bf16.msra.mxu0 0
    %1422 = vmatprep.subr.bf16.mxu0 0
    %1423 = vmatpush1.bf16.msra.mxu0 0
    %1424 = vmatprep.subr.bf16.mxu0 0
    %1425 = vmatpush1.bf16.msra.mxu0 0
    %1426 = vmatprep.mubr.bf16.mxu0 0
    %1427 = vmatmul.mubr.bf16.gmra.mrb[0].mxu0 %v1392
    %v1428 = vpop.f32.mrb[0].mxu0
    %v1429 = vadd.f32 0.0, %v1428
    %v1430 = vpop.f32.mrb[0].mxu0
    %v1431 = vpop.f32.mrb[0].mxu0
    %v1432 = vpop.f32.mrb[0].mxu0
    %1433 = vdwg.mxu0
    %v1435 = vsel %vm203, %v1224, 0
    %1437 = vmatprep.subr.bf16.mxu0 0
    %1438 = vmatpush1.bf16.msra.mxu0 %v584
    %1439 = vmatprep.subr.bf16.mxu0 0
    %1440 = vmatpush1.bf16.msra.mxu0 0
    %1441 = vmatprep.subr.bf16.mxu0 0
    %1442 = vmatpush1.bf16.msra.mxu0 0
    %1443 = vmatprep.subr.bf16.mxu0 0
    %1444 = vmatpush1.bf16.msra.mxu0 0
    %1445 = vmatprep.subr.bf16.mxu0 0
    %1446 = vmatpush1.bf16.msra.mxu0 0
    %1447 = vmatprep.subr.bf16.mxu0 0
    %1448 = vmatpush1.bf16.msra.mxu0 0
    %1449 = vmatprep.subr.bf16.mxu0 0
    %1450 = vmatpush1.bf16.msra.mxu0 0
    %1451 = vmatprep.subr.bf16.mxu0 0
    %1452 = vmatpush1.bf16.msra.mxu0 0
    %1453 = vmatprep.subr.bf16.mxu0 0
    %1454 = vmatpush1.bf16.msra.mxu0 0
    %1455 = vmatprep.subr.bf16.mxu0 0
    %1456 = vmatpush1.bf16.msra.mxu0 0
    %1457 = vmatprep.subr.bf16.mxu0 0
    %1458 = vmatpush1.bf16.msra.mxu0 0
    %1459 = vmatprep.subr.bf16.mxu0 0
    %1460 = vmatpush1.bf16.msra.mxu0 0
    %1461 = vmatprep.subr.bf16.mxu0 0
    %1462 = vmatpush1.bf16.msra.mxu0 0
    %1463 = vmatprep.subr.bf16.mxu0 0
    %1464 = vmatpush1.bf16.msra.mxu0 0
    %1465 = vmatprep.subr.bf16.mxu0 0
    %1466 = vmatpush1.bf16.msra.mxu0 0
    %1467 = vmatprep.subr.bf16.mxu0 0
    %1468 = vmatpush1.bf16.msra.mxu0 0
    %1469 = vmatprep.mubr.bf16.mxu0 0
    %1470 = vmatmul.mubr.bf16.gmra.mrb[0].mxu0 %v1435
    %v1471 = vpop.f32.mrb[0].mxu0
    %v1472 = vadd.f32 %v1429, %v1471
    %v1473 = vpop.f32.mrb[0].mxu0
    %v1474 = vpop.f32.mrb[0].mxu0
    %v1475 = vpop.f32.mrb[0].mxu0
    %1476 = vdwg.mxu0
    %1477 = vrot.lane.b32.xlu0 %v194, 112
    %v1478 = vpop.permute.xlu0 %1477
    %1479 = vrot.lane.b32.xlu0 %v190, 80
    %v1480 = vpop.permute.xlu0 %1479
    %v1481 = vsel %vm203, %v1478, 0
    %v1483 = vsel %vm203, %v1480, 0
    %1485 = vmatprep.subr.mxu0 0.0
    %1486 = vmatpush1.xpose.msra.mxu0 %v1483
    %1487 = vmatprep.subr.mxu0 0.0
    %1488 = vmatpush1.xpose.msra.mxu0 0.0
    %1489 = vmatprep.subr.mxu0 0.0
    %1490 = vmatpush1.xpose.msra.mxu0 0.0
    %1491 = vmatprep.subr.mxu0 0.0
    %1492 = vmatpush1.xpose.msra.mxu0 0.0
    %1493 = vmatprep.subr.mxu0 0.0
    %1494 = vmatpush1.xpose.msra.mxu0 0.0
    %1495 = vmatprep.subr.mxu0 0.0
    %1496 = vmatpush1.xpose.msra.mxu0 0.0
    %1497 = vmatprep.subr.mxu0 0.0
    %1498 = vmatpush1.xpose.msra.mxu0 0.0
    %1499 = vmatprep.subr.mxu0 0.0
    %1500 = vmatpush1.xpose.msra.mxu0 0.0
    %1501 = vmatprep.subr.mxu0 0.0
    %1502 = vmatpush1.xpose.msra.mxu0 0.0
    %1503 = vmatprep.subr.mxu0 0.0
    %1504 = vmatpush1.xpose.msra.mxu0 0.0
    %1505 = vmatprep.subr.mxu0 0.0
    %1506 = vmatpush1.xpose.msra.mxu0 0.0
    %1507 = vmatprep.subr.mxu0 0.0
    %1508 = vmatpush1.xpose.msra.mxu0 0.0
    %1509 = vmatprep.subr.mxu0 0.0
    %1510 = vmatpush1.xpose.msra.mxu0 0.0
    %1511 = vmatprep.subr.mxu0 0.0
    %1512 = vmatpush1.xpose.msra.mxu0 0.0
    %1513 = vmatprep.subr.mxu0 0.0
    %1514 = vmatpush1.xpose.msra.mxu0 0.0
    %1515 = vmatprep.subr.mxu0 0.0
    %1516 = vmatpush1.xpose.msra.mxu0 0.0
    %1517 = vmatprep.subr.mxu0 0.0
    %1518 = vmatpush1.xpose.msra.mxu0 0.0
    %1519 = vmatprep.subr.mxu0 0.0
    %1520 = vmatpush1.xpose.msra.mxu0 0.0
    %1521 = vmatprep.subr.mxu0 0.0
    %1522 = vmatpush1.xpose.msra.mxu0 0.0
    %1523 = vmatprep.subr.mxu0 0.0
    %1524 = vmatpush1.xpose.msra.mxu0 0.0
    %1525 = vmatprep.subr.mxu0 0.0
    %1526 = vmatpush1.xpose.msra.mxu0 0.0
    %1527 = vmatprep.subr.mxu0 0.0
    %1528 = vmatpush1.xpose.msra.mxu0 0.0
    %1529 = vmatprep.subr.mxu0 0.0
    %1530 = vmatpush1.xpose.msra.mxu0 0.0
    %1531 = vmatprep.subr.mxu0 0.0
    %1532 = vmatpush1.xpose.msra.mxu0 0.0
    %1533 = vmatprep.subr.mxu0 0.0
    %1534 = vmatpush1.xpose.msra.mxu0 0.0
    %1535 = vmatprep.subr.mxu0 0.0
    %1536 = vmatpush1.xpose.msra.mxu0 0.0
    %1537 = vmatprep.subr.mxu0 0.0
    %1538 = vmatpush1.xpose.msra.mxu0 0.0
    %1539 = vmatprep.subr.mxu0 0.0
    %1540 = vmatpush1.xpose.msra.mxu0 0.0
    %1541 = vmatprep.subr.mxu0 0.0
    %1542 = vmatpush1.xpose.msra.mxu0 0.0
    %1543 = vmatprep.subr.mxu0 0.0
    %1544 = vmatpush1.xpose.msra.mxu0 0.0
    %1545 = vmatprep.subr.mxu0 0.0
    %1546 = vmatpush1.xpose.msra.mxu0 0.0
    %1547 = vmatprep.subr.mxu0 0.0
    %1548 = vmatpush1.xpose.msra.mxu0 0.0
    %1549 = vmatprep.mubr.f32.mxu0 0.0
    %1550 = vmatmul.mubr.f32.gmra.mrb[0].mxu0 %v1481
    %v1551 = vpop.f32.mrb[0].mxu0
    %v1552 = vadd.f32 0.0, %v1551
    %v1553 = vpop.f32.mrb[0].mxu0
    %1554 = vdwg.mxu0
    %v1555 = vsel %vm203, %v1552, -inf
    %1556 = vmax.xlane.f32.xlu0 %v1555
    %v1557 = vpop.xlane.xlu0 %1556
    %v1558 = vsub.f32 %v1552, %v1557
    %v1559 = vmul.f32 %v1558, 1.442695
    %v1560 = vpow.pop %v1559
    %v1561 = vsel %vm203, %v1560, 0.0
    %1562 = vadd.xlane.f32.xlu0 %v1561
    %v1563 = vpop.xlane.xlu0 %1562
    %v1564 = vrcp.pop %v1563
    %v1565 = vmul.f32 %v1560, %v1564
    %1566 = vrot.lane.b32.xlu0 %v190, 48
    %v1567 = vpop.permute.xlu0 %1566
    %v1570 = vsel %vm203, %v1565, 0
    %1572 = vmatprep.subr.mxu0 0.0
    %1573 = vmatpush1.msra.mxu0 %v1567
    %1574 = vmatprep.subr.mxu0 0.0
    %1575 = vmatpush1.msra.mxu0 0.0
    %1576 = vmatprep.subr.mxu0 0.0
    %1577 = vmatpush1.msra.mxu0 0.0
    %1578 = vmatprep.subr.mxu0 0.0
    %1579 = vmatpush1.msra.mxu0 0.0
    %1580 = vmatprep.subr.mxu0 0.0
    %1581 = vmatpush1.msra.mxu0 0.0
    %1582 = vmatprep.subr.mxu0 0.0
    %1583 = vmatpush1.msra.mxu0 0.0
    %1584 = vmatprep.subr.mxu0 0.0
    %1585 = vmatpush1.msra.mxu0 0.0
    %1586 = vmatprep.subr.mxu0 0.0
    %1587 = vmatpush1.msra.mxu0 0.0
    %1588 = vmatprep.subr.mxu0 0.0
    %1589 = vmatpush1.msra.mxu0 0.0
    %1590 = vmatprep.subr.mxu0 0.0
    %1591 = vmatpush1.msra.mxu0 0.0
    %1592 = vmatprep.subr.mxu0 0.0
    %1593 = vmatpush1.msra.mxu0 0.0
    %1594 = vmatprep.subr.mxu0 0.0
    %1595 = vmatpush1.msra.mxu0 0.0
    %1596 = vmatprep.subr.mxu0 0.0
    %1597 = vmatpush1.msra.mxu0 0.0
    %1598 = vmatprep.subr.mxu0 0.0
    %1599 = vmatpush1.msra.mxu0 0.0
    %1600 = vmatprep.subr.mxu0 0.0
    %1601 = vmatpush1.msra.mxu0 0.0
    %1602 = vmatprep.subr.mxu0 0.0
    %1603 = vmatpush1.msra.mxu0 0.0
    %1604 = vmatprep.subr.mxu0 0.0
    %1605 = vmatpush1.msra.mxu0 0.0
    %1606 = vmatprep.subr.mxu0 0.0
    %1607 = vmatpush1.msra.mxu0 0.0
    %1608 = vmatprep.subr.mxu0 0.0
    %1609 = vmatpush1.msra.mxu0 0.0
    %1610 = vmatprep.subr.mxu0 0.0
    %1611 = vmatpush1.msra.mxu0 0.0
    %1612 = vmatprep.subr.mxu0 0.0
    %1613 = vmatpush1.msra.mxu0 0.0
    %1614 = vmatprep.subr.mxu0 0.0
    %1615 = vmatpush1.msra.mxu0 0.0
    %1616 = vmatprep.subr.mxu0 0.0
    %1617 = vmatpush1.msra.mxu0 0.0
    %1618 = vmatprep.subr.mxu0 0.0
    %1619 = vmatpush1.msra.mxu0 0.0
    %1620 = vmatprep.subr.mxu0 0.0
    %1621 = vmatpush1.msra.mxu0 0.0
    %1622 = vmatprep.subr.mxu0 0.0
    %1623 = vmatpush1.msra.mxu0 0.0
    %1624 = vmatprep.subr.mxu0 0.0
    %1625 = vmatpush1.msra.mxu0 0.0
    %1626 = vmatprep.subr.mxu0 0.0
    %1627 = vmatpush1.msra.mxu0 0.0
    %1628 = vmatprep.subr.mxu0 0.0
    %1629 = vmatpush1.msra.mxu0 0.0
    %1630 = vmatprep.subr.mxu0 0.0
    %1631 = vmatpush1.msra.mxu0 0.0
    %1632 = vmatprep.subr.mxu0 0.0
    %1633 = vmatpush1.msra.mxu0 0.0
    %1634 = vmatprep.subr.mxu0 0.0
    %1635 = vmatpush1.msra.mxu0 0.0
    %1636 = vmatprep.mubr.f32.mxu0 0.0
    %1637 = vmatmul.mubr.f32.gmra.mrb[0].mxu0 %v1570
    %v1638 = vpop.f32.mrb[0].mxu0
    %v1639 = vadd.f32 0.0, %v1638
    %v1640 = vpop.f32.mrb[0].mxu0
    %1641 = vdwg.mxu0
    %v1642 = vpack.c.bf16 %v1639, %v1639
    %v1644 = vsel %vm203, %v1642, 0
    %1646 = vmatprep.subr.bf16.mxu0 0
    %1647 = vmatpush1.bf16.msra.mxu0 %v796
    %1648 = vmatprep.subr.bf16.mxu0 0
    %1649 = vmatpush1.bf16.msra.mxu0 0
    %1650 = vmatprep.subr.bf16.mxu0 0
    %1651 = vmatpush1.bf16.msra.mxu0 0
    %1652 = vmatprep.subr.bf16.mxu0 0
    %1653 = vmatpush1.bf16.msra.mxu0 0
    %1654 = vmatprep.subr.bf16.mxu0 0
    %1655 = vmatpush1.bf16.msra.mxu0 0
    %1656 = vmatprep.subr.bf16.mxu0 0
    %1657 = vmatpush1.bf16.msra.mxu0 0
    %1658 = vmatprep.subr.bf16.mxu0 0
    %1659 = vmatpush1.bf16.msra.mxu0 0
    %1660 = vmatprep.subr.bf16.mxu0 0
    %1661 = vmatpush1.bf16.msra.mxu0 0
    %1662 = vmatprep.subr.bf16.mxu0 0
    %1663 = vmatpush1.bf16.msra.mxu0 0
    %1664 = vmatprep.subr.bf16.mxu0 0
    %1665 = vmatpush1.bf16.msra.mxu0 0
    %1666 = vmatprep.subr.bf16.mxu0 0
    %1667 = vmatpush1.bf16.msra.mxu0 0
    %1668 = vmatprep.subr.bf16.mxu0 0
    %1669 = vmatpush1.bf16.msra.mxu0 0
    %1670 = vmatprep.subr.bf16.mxu0 0
    %1671 = vmatpush1.bf16.msra.mxu0 0
    %1672 = vmatprep.subr.bf16.mxu0 0
    %1673 = vmatpush1.bf16.msra.mxu0 0
    %1674 = vmatprep.subr.bf16.mxu0 0
    %1675 = vmatpush1.bf16.msra.mxu0 0
    %1676 = vmatprep.subr.bf16.mxu0 0
    %1677 = vmatpush1.bf16.msra.mxu0 0
    %1678 = vmatprep.mubr.bf16.mxu0 0
    %1679 = vmatmul.mubr.bf16.gmra.mrb[0].mxu0 %v1644
    %v1680 = vpop.f32.mrb[0].mxu0
    %v1681 = vadd.f32 0.0, %v1680
    %v1682 = vpop.f32.mrb[0].mxu0
    %v1683 = vpop.f32.mrb[0].mxu0
    %v1684 = vpop.f32.mrb[0].mxu0
    %1685 = vdwg.mxu0
    %v1686 = vadd.f32 %v1472, %v1681
    %1687 = vrot.lane.b32.xlu0 %v194, 104
    %v1688 = vpop.permute.xlu0 %1687
    %1689 = vrot.lane.b32.xlu0 %v190, 72
    %v1690 = vpop.permute.xlu0 %1689
    %v1691 = vsel %vm203, %v1688, 0
    %v1693 = vsel %vm203, %v1690, 0
    %1695 = vmatprep.subr.mxu0 0.0
    %1696 = vmatpush1.xpose.msra.mxu0 %v1693
    %1697 = vmatprep.subr.mxu0 0.0
    %1698 = vmatpush1.xpose.msra.mxu0 0.0
    %1699 = vmatprep.subr.mxu0 0.0
    %1700 = vmatpush1.xpose.msra.mxu0 0.0
    %1701 = vmatprep.subr.mxu0 0.0
    %1702 = vmatpush1.xpose.msra.mxu0 0.0
    %1703 = vmatprep.subr.mxu0 0.0
    %1704 = vmatpush1.xpose.msra.mxu0 0.0
    %1705 = vmatprep.subr.mxu0 0.0
    %1706 = vmatpush1.xpose.msra.mxu0 0.0
    %1707 = vmatprep.subr.mxu0 0.0
    %1708 = vmatpush1.xpose.msra.mxu0 0.0
    %1709 = vmatprep.subr.mxu0 0.0
    %1710 = vmatpush1.xpose.msra.mxu0 0.0
    %1711 = vmatprep.subr.mxu0 0.0
    %1712 = vmatpush1.xpose.msra.mxu0 0.0
    %1713 = vmatprep.subr.mxu0 0.0
    %1714 = vmatpush1.xpose.msra.mxu0 0.0
    %1715 = vmatprep.subr.mxu0 0.0
    %1716 = vmatpush1.xpose.msra.mxu0 0.0
    %1717 = vmatprep.subr.mxu0 0.0
    %1718 = vmatpush1.xpose.msra.mxu0 0.0
    %1719 = vmatprep.subr.mxu0 0.0
    %1720 = vmatpush1.xpose.msra.mxu0 0.0
    %1721 = vmatprep.subr.mxu0 0.0
    %1722 = vmatpush1.xpose.msra.mxu0 0.0
    %1723 = vmatprep.subr.mxu0 0.0
    %1724 = vmatpush1.xpose.msra.mxu0 0.0
    %1725 = vmatprep.subr.mxu0 0.0
    %1726 = vmatpush1.xpose.msra.mxu0 0.0
    %1727 = vmatprep.subr.mxu0 0.0
    %1728 = vmatpush1.xpose.msra.mxu0 0.0
    %1729 = vmatprep.subr.mxu0 0.0
    %1730 = vmatpush1.xpose.msra.mxu0 0.0
    %1731 = vmatprep.subr.mxu0 0.0
    %1732 = vmatpush1.xpose.msra.mxu0 0.0
    %1733 = vmatprep.subr.mxu0 0.0
    %1734 = vmatpush1.xpose.msra.mxu0 0.0
    %1735 = vmatprep.subr.mxu0 0.0
    %1736 = vmatpush1.xpose.msra.mxu0 0.0
    %1737 = vmatprep.subr.mxu0 0.0
    %1738 = vmatpush1.xpose.msra.mxu0 0.0
    %1739 = vmatprep.subr.mxu0 0.0
    %1740 = vmatpush1.xpose.msra.mxu0 0.0
    %1741 = vmatprep.subr.mxu0 0.0
    %1742 = vmatpush1.xpose.msra.mxu0 0.0
    %1743 = vmatprep.subr.mxu0 0.0
    %1744 = vmatpush1.xpose.msra.mxu0 0.0
    %1745 = vmatprep.subr.mxu0 0.0
    %1746 = vmatpush1.xpose.msra.mxu0 0.0
    %1747 = vmatprep.subr.mxu0 0.0
    %1748 = vmatpush1.xpose.msra.mxu0 0.0
    %1749 = vmatprep.subr.mxu0 0.0
    %1750 = vmatpush1.xpose.msra.mxu0 0.0
    %1751 = vmatprep.subr.mxu0 0.0
    %1752 = vmatpush1.xpose.msra.mxu0 0.0
    %1753 = vmatprep.subr.mxu0 0.0
    %1754 = vmatpush1.xpose.msra.mxu0 0.0
    %1755 = vmatprep.subr.mxu0 0.0
    %1756 = vmatpush1.xpose.msra.mxu0 0.0
    %1757 = vmatprep.subr.mxu0 0.0
    %1758 = vmatpush1.xpose.msra.mxu0 0.0
    %1759 = vmatprep.mubr.f32.mxu0 0.0
    %1760 = vmatmul.mubr.f32.gmra.mrb[0].mxu0 %v1691
    %v1761 = vpop.f32.mrb[0].mxu0
    %v1762 = vadd.f32 0.0, %v1761
    %v1763 = vpop.f32.mrb[0].mxu0
    %1764 = vdwg.mxu0
    %v1765 = vsel %vm203, %v1762, -inf
    %1766 = vmax.xlane.f32.xlu0 %v1765
    %v1767 = vpop.xlane.xlu0 %1766
    %v1768 = vsub.f32 %v1762, %v1767
    %v1769 = vmul.f32 %v1768, 1.442695
    %v1770 = vpow.pop %v1769
    %v1771 = vsel %vm203, %v1770, 0.0
    %1772 = vadd.xlane.f32.xlu0 %v1771
    %v1773 = vpop.xlane.xlu0 %1772
    %v1774 = vrcp.pop %v1773
    %v1775 = vmul.f32 %v1770, %v1774
    %1776 = vrot.lane.b32.xlu0 %v190, 40
    %v1777 = vpop.permute.xlu0 %1776
    %v1780 = vsel %vm203, %v1775, 0
    %1782 = vmatprep.subr.mxu0 0.0
    %1783 = vmatpush1.msra.mxu0 %v1777
    %1784 = vmatprep.subr.mxu0 0.0
    %1785 = vmatpush1.msra.mxu0 0.0
    %1786 = vmatprep.subr.mxu0 0.0
    %1787 = vmatpush1.msra.mxu0 0.0
    %1788 = vmatprep.subr.mxu0 0.0
    %1789 = vmatpush1.msra.mxu0 0.0
    %1790 = vmatprep.subr.mxu0 0.0
    %1791 = vmatpush1.msra.mxu0 0.0
    %1792 = vmatprep.subr.mxu0 0.0
    %1793 = vmatpush1.msra.mxu0 0.0
    %1794 = vmatprep.subr.mxu0 0.0
    %1795 = vmatpush1.msra.mxu0 0.0
    %1796 = vmatprep.subr.mxu0 0.0
    %1797 = vmatpush1.msra.mxu0 0.0
    %1798 = vmatprep.subr.mxu0 0.0
    %1799 = vmatpush1.msra.mxu0 0.0
    %1800 = vmatprep.subr.mxu0 0.0
    %1801 = vmatpush1.msra.mxu0 0.0
    %1802 = vmatprep.subr.mxu0 0.0
    %1803 = vmatpush1.msra.mxu0 0.0
    %1804 = vmatprep.subr.mxu0 0.0
    %1805 = vmatpush1.msra.mxu0 0.0
    %1806 = vmatprep.subr.mxu0 0.0
    %1807 = vmatpush1.msra.mxu0 0.0
    %1808 = vmatprep.subr.mxu0 0.0
    %1809 = vmatpush1.msra.mxu0 0.0
    %1810 = vmatprep.subr.mxu0 0.0
    %1811 = vmatpush1.msra.mxu0 0.0
    %1812 = vmatprep.subr.mxu0 0.0
    %1813 = vmatpush1.msra.mxu0 0.0
    %1814 = vmatprep.subr.mxu0 0.0
    %1815 = vmatpush1.msra.mxu0 0.0
    %1816 = vmatprep.subr.mxu0 0.0
    %1817 = vmatpush1.msra.mxu0 0.0
    %1818 = vmatprep.subr.mxu0 0.0
    %1819 = vmatpush1.msra.mxu0 0.0
    %1820 = vmatprep.subr.mxu0 0.0
    %1821 = vmatpush1.msra.mxu0 0.0
    %1822 = vmatprep.subr.mxu0 0.0
    %1823 = vmatpush1.msra.mxu0 0.0
    %1824 = vmatprep.subr.mxu0 0.0
    %1825 = vmatpush1.msra.mxu0 0.0
    %1826 = vmatprep.subr.mxu0 0.0
    %1827 = vmatpush1.msra.mxu0 0.0
    %1828 = vmatprep.subr.mxu0 0.0
    %1829 = vmatpush1.msra.mxu0 0.0
    %1830 = vmatprep.subr.mxu0 0.0
    %1831 = vmatpush1.msra.mxu0 0.0
    %1832 = vmatprep.subr.mxu0 0.0
    %1833 = vmatpush1.msra.mxu0 0.0
    %1834 = vmatprep.subr.mxu0 0.0
    %1835 = vmatpush1.msra.mxu0 0.0
    %1836 = vmatprep.subr.mxu0 0.0
    %1837 = vmatpush1.msra.mxu0 0.0
    %1838 = vmatprep.subr.mxu0 0.0
    %1839 = vmatpush1.msra.mxu0 0.0
    %1840 = vmatprep.subr.mxu0 0.0
    %1841 = vmatpush1.msra.mxu0 0.0
    %1842 = vmatprep.subr.mxu0 0.0
    %1843 = vmatpush1.msra.mxu0 0.0
    %1844 = vmatprep.subr.mxu0 0.0
    %1845 = vmatpush1.msra.mxu0 0.0
    %1846 = vmatprep.mubr.f32.mxu0 0.0
    %1847 = vmatmul.mubr.f32.gmra.mrb[0].mxu0 %v1780
    %v1848 = vpop.f32.mrb[0].mxu0
    %v1849 = vadd.f32 0.0, %v1848
    %v1850 = vpop.f32.mrb[0].mxu0
    %1851 = vdwg.mxu0
    %v1852 = vpack.c.bf16 %v1849, %v1849
    %v1854 = vsel %vm203, %v1852, 0
    %1856 = vmatprep.subr.bf16.mxu0 0
    %1857 = vmatpush1.bf16.msra.mxu0 %v1009
    %1858 = vmatprep.subr.bf16.mxu0 0
    %1859 = vmatpush1.bf16.msra.mxu0 0
    %1860 = vmatprep.subr.bf16.mxu0 0
    %1861 = vmatpush1.bf16.msra.mxu0 0
    %1862 = vmatprep.subr.bf16.mxu0 0
    %1863 = vmatpush1.bf16.msra.mxu0 0
    %1864 = vmatprep.subr.bf16.mxu0 0
    %1865 = vmatpush1.bf16.msra.mxu0 0
    %1866 = vmatprep.subr.bf16.mxu0 0
    %1867 = vmatpush1.bf16.msra.mxu0 0
    %1868 = vmatprep.subr.bf16.mxu0 0
    %1869 = vmatpush1.bf16.msra.mxu0 0
    %1870 = vmatprep.subr.bf16.mxu0 0
    %1871 = vmatpush1.bf16.msra.mxu0 0
    %1872 = vmatprep.subr.bf16.mxu0 0
    %1873 = vmatpush1.bf16.msra.mxu0 0
    %1874 = vmatprep.subr.bf16.mxu0 0
    %1875 = vmatpush1.bf16.msra.mxu0 0
    %1876 = vmatprep.subr.bf16.mxu0 0
    %1877 = vmatpush1.bf16.msra.mxu0 0
    %1878 = vmatprep.subr.bf16.mxu0 0
    %1879 = vmatpush1.bf16.msra.mxu0 0
    %1880 = vmatprep.subr.bf16.mxu0 0
    %1881 = vmatpush1.bf16.msra.mxu0 0
    %1882 = vmatprep.subr.bf16.mxu0 0
    %1883 = vmatpush1.bf16.msra.mxu0 0
    %1884 = vmatprep.subr.bf16.mxu0 0
    %1885 = vmatpush1.bf16.msra.mxu0 0
    %1886 = vmatprep.subr.bf16.mxu0 0
    %1887 = vmatpush1.bf16.msra.mxu0 0
    %1888 = vmatprep.mubr.bf16.mxu0 0
    %1889 = vmatmul.mubr.bf16.gmra.mrb[0].mxu0 %v1854
    %v1890 = vpop.f32.mrb[0].mxu0
    %v1891 = vadd.f32 0.0, %v1890
    %v1892 = vpop.f32.mrb[0].mxu0
    %v1893 = vpop.f32.mrb[0].mxu0
    %v1894 = vpop.f32.mrb[0].mxu0
    %1895 = vdwg.mxu0
    %v1896 = vadd.f32 %v1686, %v1891
    %v1897 = vadd.f32 %v1896, %v1056
    %v1898 = vadd.f32 %v118, %v1058
    %v1899 = vadd.f32 %v121, %v1897
    %v1900 = vld [vmem:[%s7] sm:$0x1]
    %v1901 = vld [vmem:[%s8] sm:$0x1]
    %v1902 = vsel %vm148, %v1898, 0.0
    %1903 = vadd.xlane.f32.xlu0 %v1902
    %v1904 = vpop.xlane.xlu0 %1903
    %v1905 = vsel %vm148, %v1899, 0.0
    %1906 = vadd.xlane.f32.xlu0 %v1905
    %v1907 = vpop.xlane.xlu0 %1906
    %v1908 = vrcp.pop 32.0
    %v1909 = vmul.f32 %v1904, %v1908
    %v1910 = vmul.f32 %v1907, %v1908
    %v1911 = vsub.f32 %v1898, %v1909
    %v1912 = vsub.f32 %v1899, %v1910
    %v1913 = vmul.f32 %v1911, %v1911
    %v1914 = vmul.f32 %v1912, %v1912
    %v1915 = vsel %vm148, %v1913, 0.0
    %1916 = vadd.xlane.f32.xlu0 %v1915
    %v1917 = vpop.xlane.xlu0 %1916
    %v1918 = vsel %vm148, %v1914, 0.0
    %1919 = vadd.xlane.f32.xlu0 %v1918
    %v1920 = vpop.xlane.xlu0 %1919
    %v1921 = vmul.f32 %v1917, %v1908
    %v1922 = vmul.f32 %v1920, %v1908
    %v1923 = vadd.f32 %v1921, 1e-05
    %v1924 = vadd.f32 %v1922, 1e-05
    %v1925 = vrsqrt.pop %v1923
    %v1926 = vrsqrt.pop %v1924
    %v1927 = vmul.f32 %v1911, %v1925
    %v1928 = vmul.f32 %v1912, %v1926
    %v1930 = vlaneseq
    %v1931 = vshrl.u32 %v1930, 7
    %v1932 = vsub.s32 0, %v1931
    %v1933 = vrot.slane %v1900, %v1932
    %v1935 = vmul.f32 %v1927, %v1933
    %v1936 = vmul.f32 %v1928, %v1933
    %v1938 = vlaneseq
    %v1939 = vshrl.u32 %v1938, 7
    %v1940 = vsub.s32 0, %v1939
    %v1941 = vrot.slane %v1901, %v1940
    %v1943 = vadd.f32 %v1935, %v1941
    %v1944 = vadd.f32 %v1936, %v1941
    %v1945 = vld [vmem:[%s9] sm:$0xff]
    %v1946 = vld [vmem:[%s9 + $0x8] sm:$0xff]
    %v1947 = vld [vmem:[%s9 + $0x10] sm:$0xff]
    %v1948 = vld [vmem:[%s9 + $0x18] sm:$0xff]
    %v1949 = vld [vmem:[%s9 + $0x20] sm:$0xff]
    %v1950 = vld [vmem:[%s9 + $0x28] sm:$0xff]
    %v1951 = vld [vmem:[%s9 + $0x30] sm:$0xff]
    %v1952 = vld [vmem:[%s9 + $0x38] sm:$0xff]
    %v1953 = vld [vmem:[%s9 + $0x40] sm:$0xff]
    %v1954 = vld [vmem:[%s9 + $0x48] sm:$0xff]
    %v1955 = vld [vmem:[%s9 + $0x50] sm:$0xff]
    %v1956 = vld [vmem:[%s9 + $0x58] sm:$0xff]
    %v1957 = vld [vmem:[%s9 + $0x60] sm:$0xff]
    %v1958 = vld [vmem:[%s9 + $0x68] sm:$0xff]
    %v1959 = vld [vmem:[%s9 + $0x70] sm:$0xff]
    %v1960 = vld [vmem:[%s9 + $0x78] sm:$0xff]
    %v1961 = vld [vmem:[%s9 + $0x80] sm:$0xff]
    %v1962 = vld [vmem:[%s9 + $0x88] sm:$0xff]
    %v1963 = vld [vmem:[%s9 + $0x90] sm:$0xff]
    %v1964 = vld [vmem:[%s9 + $0x98] sm:$0xff]
    %v1965 = vld [vmem:[%s9 + $0xa0] sm:$0xff]
    %v1966 = vld [vmem:[%s9 + $0xa8] sm:$0xff]
    %v1967 = vld [vmem:[%s9 + $0xb0] sm:$0xff]
    %v1968 = vld [vmem:[%s9 + $0xb8] sm:$0xff]
    %v1969 = vld [vmem:[%s9 + $0xc0] sm:$0xff]
    %v1970 = vld [vmem:[%s9 + $0xc8] sm:$0xff]
    %v1971 = vld [vmem:[%s9 + $0xd0] sm:$0xff]
    %v1972 = vld [vmem:[%s9 + $0xd8] sm:$0xff]
    %v1973 = vld [vmem:[%s9 + $0xe0] sm:$0xff]
    %v1974 = vld [vmem:[%s9 + $0xe8] sm:$0xff]
    %v1975 = vld [vmem:[%s9 + $0xf0] sm:$0xff]
    %v1976 = vld [vmem:[%s9 + $0xf8] sm:$0xff]
    %v1977 = vld [vmem:[%s10] sm:$0xff]
    %v1978 = vld [vmem:[%s10 + $0x8] sm:$0xff]
    %v1979 = vpack.c.bf16 %v1944, %v1943
    %v1982 = vlaneseq
    %v1983 = vshrl.u32 %v1982, 7
    %v1984 = vsub.s32 0, %v1983
    %v1985 = vrot.slane %v1977, %v1984
    %v1986 = vlaneseq
    %v1987 = vshrl.u32 %v1986, 7
    %v1988 = vsub.s32 1, %v1987
    %v1989 = vrot.slane %v1977, %v1988
    %v1990 = vlaneseq
    %v1991 = vshrl.u32 %v1990, 7
    %v1992 = vsub.s32 2, %v1991
    %v1993 = vrot.slane %v1977, %v1992
    %v1994 = vlaneseq
    %v1995 = vshrl.u32 %v1994, 7
    %v1996 = vsub.s32 3, %v1995
    %v1997 = vrot.slane %v1977, %v1996
    %v1998 = vlaneseq
    %v1999 = vshrl.u32 %v1998, 7
    %v2000 = vsub.s32 4, %v1999
    %v2001 = vrot.slane %v1977, %v2000
    %v2002 = vlaneseq
    %v2003 = vshrl.u32 %v2002, 7
    %v2004 = vsub.s32 5, %v2003
    %v2005 = vrot.slane %v1977, %v2004
    %v2006 = vlaneseq
    %v2007 = vshrl.u32 %v2006, 7
    %v2008 = vsub.s32 6, %v2007
    %v2009 = vrot.slane %v1977, %v2008
    %v2010 = vlaneseq
    %v2011 = vshrl.u32 %v2010, 7
    %v2012 = vsub.s32 7, %v2011
    %v2013 = vrot.slane %v1977, %v2012
    %v2014 = vlaneseq
    %v2015 = vshrl.u32 %v2014, 7
    %v2016 = vsub.s32 0, %v2015
    %v2017 = vrot.slane %v1978, %v2016
    %v2018 = vlaneseq
    %v2019 = vshrl.u32 %v2018, 7
    %v2020 = vsub.s32 1, %v2019
    %v2021 = vrot.slane %v1978, %v2020
    %v2022 = vlaneseq
    %v2023 = vshrl.u32 %v2022, 7
    %v2024 = vsub.s32 2, %v2023
    %v2025 = vrot.slane %v1978, %v2024
    %v2026 = vlaneseq
    %v2027 = vshrl.u32 %v2026, 7
    %v2028 = vsub.s32 3, %v2027
    %v2029 = vrot.slane %v1978, %v2028
    %v2030 = vlaneseq
    %v2031 = vshrl.u32 %v2030, 7
    %v2032 = vsub.s32 4, %v2031
    %v2033 = vrot.slane %v1978, %v2032
    %v2034 = vlaneseq
    %v2035 = vshrl.u32 %v2034, 7
    %v2036 = vsub.s32 5, %v2035
    %v2037 = vrot.slane %v1978, %v2036
    %v2038 = vlaneseq
    %v2039 = vshrl.u32 %v2038, 7
    %v2040 = vsub.s32 6, %v2039
    %v2041 = vrot.slane %v1978, %v2040
    %v2042 = vlaneseq
    %v2043 = vshrl.u32 %v2042, 7
    %v2044 = vsub.s32 7, %v2043
    %v2045 = vrot.slane %v1978, %v2044
    %v2094 = vunpack.c.l.b16 %v1945
    %v2095 = vunpack.c.h.b16 %v1945
    %v2096 = vunpack.c.l.b16 %v1946
    %v2097 = vunpack.c.h.b16 %v1946
    %v2098 = vunpack.c.l.b16 %v1947
    %v2099 = vunpack.c.h.b16 %v1947
    %v2100 = vunpack.c.l.b16 %v1948
    %v2101 = vunpack.c.h.b16 %v1948
    %v2102 = vunpack.c.l.b16 %v1949
    %v2103 = vunpack.c.h.b16 %v1949
    %v2104 = vunpack.c.l.b16 %v1950
    %v2105 = vunpack.c.h.b16 %v1950
    %v2106 = vunpack.c.l.b16 %v1951
    %v2107 = vunpack.c.h.b16 %v1951
    %v2108 = vunpack.c.l.b16 %v1952
    %v2109 = vunpack.c.h.b16 %v1952
    %v2110 = vunpack.c.l.b16 %v1953
    %v2111 = vunpack.c.h.b16 %v1953
    %v2112 = vunpack.c.l.b16 %v1954
    %v2113 = vunpack.c.h.b16 %v1954
    %v2114 = vunpack.c.l.b16 %v1955
    %v2115 = vunpack.c.h.b16 %v1955
    %v2116 = vunpack.c.l.b16 %v1956
    %v2117 = vunpack.c.h.b16 %v1956
    %v2118 = vunpack.c.l.b16 %v1957
    %v2119 = vunpack.c.h.b16 %v1957
    %v2120 = vunpack.c.l.b16 %v1958
    %v2121 = vunpack.c.h.b16 %v1958
    %v2122 = vunpack.c.l.b16 %v1959
    %v2123 = vunpack.c.h.b16 %v1959
    %v2124 = vunpack.c.l.b16 %v1960
    %v2125 = vunpack.c.h.b16 %v1960
    %v2126 = vunpack.c.l.b16 %v1961
    %v2127 = vunpack.c.h.b16 %v1961
    %v2128 = vunpack.c.l.b16 %v1962
    %v2129 = vunpack.c.h.b16 %v1962
    %v2130 = vunpack.c.l.b16 %v1963
    %v2131 = vunpack.c.h.b16 %v1963
    %v2132 = vunpack.c.l.b16 %v1964
    %v2133 = vunpack.c.h.b16 %v1964
    %v2134 = vunpack.c.l.b16 %v1965
    %v2135 = vunpack.c.h.b16 %v1965
    %v2136 = vunpack.c.l.b16 %v1966
    %v2137 = vunpack.c.h.b16 %v1966
    %v2138 = vunpack.c.l.b16 %v1967
    %v2139 = vunpack.c.h.b16 %v1967
    %v2140 = vunpack.c.l.b16 %v1968
    %v2141 = vunpack.c.h.b16 %v1968
    %v2142 = vunpack.c.l.b16 %v1969
    %v2143 = vunpack.c.h.b16 %v1969
    %v2144 = vunpack.c.l.b16 %v1970
    %v2145 = vunpack.c.h.b16 %v1970
    %v2146 = vunpack.c.l.b16 %v1971
    %v2147 = vunpack.c.h.b16 %v1971
    %v2148 = vunpack.c.l.b16 %v1972
    %v2149 = vunpack.c.h.b16 %v1972
    %v2150 = vunpack.c.l.b16 %v1973
    %v2151 = vunpack.c.h.b16 %v1973
    %v2152 = vunpack.c.l.b16 %v1974
    %v2153 = vunpack.c.h.b16 %v1974
    %v2154 = vunpack.c.l.b16 %v1975
    %v2155 = vunpack.c.h.b16 %v1975
    %v2156 = vunpack.c.l.b16 %v1976
    %v2157 = vunpack.c.h.b16 %v1976
    %v2158 = vpack.c.b16 %v2110, %v2094
    %v2159 = vpack.c.b16 %v2111, %v2095
    %v2160 = vpack.c.b16 %v2112, %v2096
    %v2161 = vpack.c.b16 %v2113, %v2097
    %v2162 = vpack.c.b16 %v2114, %v2098
    %v2163 = vpack.c.b16 %v2115, %v2099
    %v2164 = vpack.c.b16 %v2116, %v2100
    %v2165 = vpack.c.b16 %v2117, %v2101
    %v2166 = vpack.c.b16 %v2118, %v2102
    %v2167 = vpack.c.b16 %v2119, %v2103
    %v2168 = vpack.c.b16 %v2120, %v2104
    %v2169 = vpack.c.b16 %v2121, %v2105
    %v2170 = vpack.c.b16 %v2122, %v2106
    %v2171 = vpack.c.b16 %v2123, %v2107
    %v2172 = vpack.c.b16 %v2124, %v2108
    %v2173 = vpack.c.b16 %v2125, %v2109
    %v2174 = vpack.c.b16 %v2142, %v2126
    %v2175 = vpack.c.b16 %v2143, %v2127
    %v2176 = vpack.c.b16 %v2144, %v2128
    %v2177 = vpack.c.b16 %v2145, %v2129
    %v2178 = vpack.c.b16 %v2146, %v2130
    %v2179 = vpack.c.b16 %v2147, %v2131
    %v2180 = vpack.c.b16 %v2148, %v2132
    %v2181 = vpack.c.b16 %v2149, %v2133
    %v2182 = vpack.c.b16 %v2150, %v2134
    %v2183 = vpack.c.b16 %v2151, %v2135
    %v2184 = vpack.c.b16 %v2152, %v2136
    %v2185 = vpack.c.b16 %v2153, %v2137
    %v2186 = vpack.c.b16 %v2154, %v2138
    %v2187 = vpack.c.b16 %v2155, %v2139
    %v2188 = vpack.c.b16 %v2156, %v2140
    %v2189 = vpack.c.b16 %v2157, %v2141
    %v2223 = vsel %vm148, %v1979, 0
    %2225 = vmatprep.subr.bf16.mxu0 %v2159
    %2226 = vmatpush1.bf16.msra.mxu0 %v2158
    %2227 = vmatprep.subr.bf16.mxu0 %v2175
    %2228 = vmatpush1.bf16.msra.mxu0 %v2174
    %2229 = vmatprep.subr.bf16.mxu0 0
    %2230 = vmatpush1.bf16.msra.mxu0 0
    %2231 = vmatprep.subr.bf16.mxu0 0
    %2232 = vmatpush1.bf16.msra.mxu0 0
    %2233 = vmatprep.subr.bf16.mxu0 0
    %2234 = vmatpush1.bf16.msra.mxu0 0
    %2235 = vmatprep.subr.bf16.mxu0 0
    %2236 = vmatpush1.bf16.msra.mxu0 0
    %2237 = vmatprep.subr.bf16.mxu0 0
    %2238 = vmatpush1.bf16.msra.mxu0 0
    %2239 = vmatprep.subr.bf16.mxu0 0
    %2240 = vmatpush1.bf16.msra.mxu0 0
    %2241 = vmatprep.subr.bf16.mxu0 0
    %2242 = vmatpush1.bf16.msra.mxu0 0
    %2243 = vmatprep.subr.bf16.mxu0 0
    %2244 = vmatpush1.bf16.msra.mxu0 0
    %2245 = vmatprep.subr.bf16.mxu0 0
    %2246 = vmatpush1.bf16.msra.mxu0 0
    %2247 = vmatprep.subr.bf16.mxu0 0
    %2248 = vmatpush1.bf16.msra.mxu0 0
    %2249 = vmatprep.subr.bf16.mxu0 0
    %2250 = vmatpush1.bf16.msra.mxu0 0
    %2251 = vmatprep.subr.bf16.mxu0 0
    %2252 = vmatpush1.bf16.msra.mxu0 0
    %2253 = vmatprep.subr.bf16.mxu0 0
    %2254 = vmatpush1.bf16.msra.mxu0 0
    %2255 = vmatprep.subr.bf16.mxu0 0
    %2256 = vmatpush1.bf16.msra.mxu0 0
    %2257 = vmatprep.mubr.bf16.mxu0 0
    %2258 = vmatmul.mubr.bf16.gmra.mrb[0].mxu0 %v2223
    %v2259 = vpop.f32.mrb[0].mxu0
    %v2260 = vadd.f32 %v1985, %v2259
    %v2261 = vpop.f32.mrb[0].mxu0
    %v2262 = vadd.f32 %v1989, %v2261
    %v2263 = vpop.f32.mrb[0].mxu0
    %v2264 = vadd.f32 %v1985, %v2263
    %v2265 = vpop.f32.mrb[0].mxu0
    %v2266 = vadd.f32 %v1989, %v2265
    %2267 = vdwg.mxu0
    %2268 = vmatprep.subr.bf16.mxu0 %v2161
    %2269 = vmatpush1.bf16.msra.mxu0 %v2160
    %2270 = vmatprep.subr.bf16.mxu0 %v2177
    %2271 = vmatpush1.bf16.msra.mxu0 %v2176
    %2272 = vmatprep.subr.bf16.mxu0 0
    %2273 = vmatpush1.bf16.msra.mxu0 0
    %2274 = vmatprep.subr.bf16.mxu0 0
    %2275 = vmatpush1.bf16.msra.mxu0 0
    %2276 = vmatprep.subr.bf16.mxu0 0
    %2277 = vmatpush1.bf16.msra.mxu0 0
    %2278 = vmatprep.subr.bf16.mxu0 0
    %2279 = vmatpush1.bf16.msra.mxu0 0
    %2280 = vmatprep.subr.bf16.mxu0 0
    %2281 = vmatpush1.bf16.msra.mxu0 0
    %2282 = vmatprep.subr.bf16.mxu0 0
    %2283 = vmatpush1.bf16.msra.mxu0 0
    %2284 = vmatprep.subr.bf16.mxu0 0
    %2285 = vmatpush1.bf16.msra.mxu0 0
    %2286 = vmatprep.subr.bf16.mxu0 0
    %2287 = vmatpush1.bf16.msra.mxu0 0
    %2288 = vmatprep.subr.bf16.mxu0 0
    %2289 = vmatpush1.bf16.msra.mxu0 0
    %2290 = vmatprep.subr.bf16.mxu0 0
    %2291 = vmatpush1.bf16.msra.mxu0 0
    %2292 = vmatprep.subr.bf16.mxu0 0
    %2293 = vmatpush1.bf16.msra.mxu0 0
    %2294 = vmatprep.subr.bf16.mxu0 0
    %2295 = vmatpush1.bf16.msra.mxu0 0
    %2296 = vmatprep.subr.bf16.mxu0 0
    %2297 = vmatpush1.bf16.msra.mxu0 0
    %2298 = vmatprep.subr.bf16.mxu0 0
    %2299 = vmatpush1.bf16.msra.mxu0 0
    %2300 = vmatprep.mubr.bf16.mxu0 0
    %2301 = vmatmul.mubr.bf16.gmra.mrb[0].mxu0 %v2223
    %v2302 = vpop.f32.mrb[0].mxu0
    %v2303 = vadd.f32 %v1993, %v2302
    %v2304 = vpop.f32.mrb[0].mxu0
    %v2305 = vadd.f32 %v1997, %v2304
    %v2306 = vpop.f32.mrb[0].mxu0
    %v2307 = vadd.f32 %v1993, %v2306
    %v2308 = vpop.f32.mrb[0].mxu0
    %v2309 = vadd.f32 %v1997, %v2308
    %2310 = vdwg.mxu0
    %2311 = vmatprep.subr.bf16.mxu0 %v2163
    %2312 = vmatpush1.bf16.msra.mxu0 %v2162
    %2313 = vmatprep.subr.bf16.mxu0 %v2179
    %2314 = vmatpush1.bf16.msra.mxu0 %v2178
    %2315 = vmatprep.subr.bf16.mxu0 0
    %2316 = vmatpush1.bf16.msra.mxu0 0
    %2317 = vmatprep.subr.bf16.mxu0 0
    %2318 = vmatpush1.bf16.msra.mxu0 0
    %2319 = vmatprep.subr.bf16.mxu0 0
    %2320 = vmatpush1.bf16.msra.mxu0 0
    %2321 = vmatprep.subr.bf16.mxu0 0
    %2322 = vmatpush1.bf16.msra.mxu0 0
    %2323 = vmatprep.subr.bf16.mxu0 0
    %2324 = vmatpush1.bf16.msra.mxu0 0
    %2325 = vmatprep.subr.bf16.mxu0 0
    %2326 = vmatpush1.bf16.msra.mxu0 0
    %2327 = vmatprep.subr.bf16.mxu0 0
    %2328 = vmatpush1.bf16.msra.mxu0 0
    %2329 = vmatprep.subr.bf16.mxu0 0
    %2330 = vmatpush1.bf16.msra.mxu0 0
    %2331 = vmatprep.subr.bf16.mxu0 0
    %2332 = vmatpush1.bf16.msra.mxu0 0
    %2333 = vmatprep.subr.bf16.mxu0 0
    %2334 = vmatpush1.bf16.msra.mxu0 0
    %2335 = vmatprep.subr.bf16.mxu0 0
    %2336 = vmatpush1.bf16.msra.mxu0 0
    %2337 = vmatprep.subr.bf16.mxu0 0
    %2338 = vmatpush1.bf16.msra.mxu0 0
    %2339 = vmatprep.subr.bf16.mxu0 0
    %2340 = vmatpush1.bf16.msra.mxu0 0
    %2341 = vmatprep.subr.bf16.mxu0 0
    %2342 = vmatpush1.bf16.msra.mxu0 0
    %2343 = vmatprep.mubr.bf16.mxu0 0
    %2344 = vmatmul.mubr.bf16.gmra.mrb[0].mxu0 %v2223
    %v2345 = vpop.f32.mrb[0].mxu0
    %v2346 = vadd.f32 %v2001, %v2345
    %v2347 = vpop.f32.mrb[0].mxu0
    %v2348 = vadd.f32 %v2005, %v2347
    %v2349 = vpop.f32.mrb[0].mxu0
    %v2350 = vadd.f32 %v2001, %v2349
    %v2351 = vpop.f32.mrb[0].mxu0
    %v2352 = vadd.f32 %v2005, %v2351
    %2353 = vdwg.mxu0
    %2354 = vmatprep.subr.bf16.mxu0 %v2165
    %2355 = vmatpush1.bf16.msra.mxu0 %v2164
    %2356 = vmatprep.subr.bf16.mxu0 %v2181
    %2357 = vmatpush1.bf16.msra.mxu0 %v2180
    %2358 = vmatprep.subr.bf16.mxu0 0
    %2359 = vmatpush1.bf16.msra.mxu0 0
    %2360 = vmatprep.subr.bf16.mxu0 0
    %2361 = vmatpush1.bf16.msra.mxu0 0
    %2362 = vmatprep.subr.bf16.mxu0 0
    %2363 = vmatpush1.bf16.msra.mxu0 0
    %2364 = vmatprep.subr.bf16.mxu0 0
    %2365 = vmatpush1.bf16.msra.mxu0 0
    %2366 = vmatprep.subr.bf16.mxu0 0
    %2367 = vmatpush1.bf16.msra.mxu0 0
    %2368 = vmatprep.subr.bf16.mxu0 0
    %2369 = vmatpush1.bf16.msra.mxu0 0
    %2370 = vmatprep.subr.bf16.mxu0 0
    %2371 = vmatpush1.bf16.msra.mxu0 0
    %2372 = vmatprep.subr.bf16.mxu0 0
    %2373 = vmatpush1.bf16.msra.mxu0 0
    %2374 = vmatprep.subr.bf16.mxu0 0
    %2375 = vmatpush1.bf16.msra.mxu0 0
    %2376 = vmatprep.subr.bf16.mxu0 0
    %2377 = vmatpush1.bf16.msra.mxu0 0
    %2378 = vmatprep.subr.bf16.mxu0 0
    %2379 = vmatpush1.bf16.msra.mxu0 0
    %2380 = vmatprep.subr.bf16.mxu0 0
    %2381 = vmatpush1.bf16.msra.mxu0 0
    %2382 = vmatprep.subr.bf16.mxu0 0
    %2383 = vmatpush1.bf16.msra.mxu0 0
    %2384 = vmatprep.subr.bf16.mxu0 0
    %2385 = vmatpush1.bf16.msra.mxu0 0
    %2386 = vmatprep.mubr.bf16.mxu0 0
    %2387 = vmatmul.mubr.bf16.gmra.mrb[0].mxu0 %v2223
    %v2388 = vpop.f32.mrb[0].mxu0
    %v2389 = vadd.f32 %v2009, %v2388
    %v2390 = vpop.f32.mrb[0].mxu0
    %v2391 = vadd.f32 %v2013, %v2390
    %v2392 = vpop.f32.mrb[0].mxu0
    %v2393 = vadd.f32 %v2009, %v2392
    %v2394 = vpop.f32.mrb[0].mxu0
    %v2395 = vadd.f32 %v2013, %v2394
    %2396 = vdwg.mxu0
    %2397 = vmatprep.subr.bf16.mxu0 %v2167
    %2398 = vmatpush1.bf16.msra.mxu0 %v2166
    %2399 = vmatprep.subr.bf16.mxu0 %v2183
    %2400 = vmatpush1.bf16.msra.mxu0 %v2182
    %2401 = vmatprep.subr.bf16.mxu0 0
    %2402 = vmatpush1.bf16.msra.mxu0 0
    %2403 = vmatprep.subr.bf16.mxu0 0
    %2404 = vmatpush1.bf16.msra.mxu0 0
    %2405 = vmatprep.subr.bf16.mxu0 0
    %2406 = vmatpush1.bf16.msra.mxu0 0
    %2407 = vmatprep.subr.bf16.mxu0 0
    %2408 = vmatpush1.bf16.msra.mxu0 0
    %2409 = vmatprep.subr.bf16.mxu0 0
    %2410 = vmatpush1.bf16.msra.mxu0 0
    %2411 = vmatprep.subr.bf16.mxu0 0
    %2412 = vmatpush1.bf16.msra.mxu0 0
    %2413 = vmatprep.subr.bf16.mxu0 0
    %2414 = vmatpush1.bf16.msra.mxu0 0
    %2415 = vmatprep.subr.bf16.mxu0 0
    %2416 = vmatpush1.bf16.msra.mxu0 0
    %2417 = vmatprep.subr.bf16.mxu0 0
    %2418 = vmatpush1.bf16.msra.mxu0 0
    %2419 = vmatprep.subr.bf16.mxu0 0
    %2420 = vmatpush1.bf16.msra.mxu0 0
    %2421 = vmatprep.subr.bf16.mxu0 0
    %2422 = vmatpush1.bf16.msra.mxu0 0
    %2423 = vmatprep.subr.bf16.mxu0 0
    %2424 = vmatpush1.bf16.msra.mxu0 0
    %2425 = vmatprep.subr.bf16.mxu0 0
    %2426 = vmatpush1.bf16.msra.mxu0 0
    %2427 = vmatprep.subr.bf16.mxu0 0
    %2428 = vmatpush1.bf16.msra.mxu0 0
    %2429 = vmatprep.mubr.bf16.mxu0 0
    %2430 = vmatmul.mubr.bf16.gmra.mrb[0].mxu0 %v2223
    %v2431 = vpop.f32.mrb[0].mxu0
    %v2432 = vadd.f32 %v2017, %v2431
    %v2433 = vpop.f32.mrb[0].mxu0
    %v2434 = vadd.f32 %v2021, %v2433
    %v2435 = vpop.f32.mrb[0].mxu0
    %v2436 = vadd.f32 %v2017, %v2435
    %v2437 = vpop.f32.mrb[0].mxu0
    %v2438 = vadd.f32 %v2021, %v2437
    %2439 = vdwg.mxu0
    %2440 = vmatprep.subr.bf16.mxu0 %v2169
    %2441 = vmatpush1.bf16.msra.mxu0 %v2168
    %2442 = vmatprep.subr.bf16.mxu0 %v2185
    %2443 = vmatpush1.bf16.msra.mxu0 %v2184
    %2444 = vmatprep.subr.bf16.mxu0 0
    %2445 = vmatpush1.bf16.msra.mxu0 0
    %2446 = vmatprep.subr.bf16.mxu0 0
    %2447 = vmatpush1.bf16.msra.mxu0 0
    %2448 = vmatprep.subr.bf16.mxu0 0
    %2449 = vmatpush1.bf16.msra.mxu0 0
    %2450 = vmatprep.subr.bf16.mxu0 0
    %2451 = vmatpush1.bf16.msra.mxu0 0
    %2452 = vmatprep.subr.bf16.mxu0 0
    %2453 = vmatpush1.bf16.msra.mxu0 0
    %2454 = vmatprep.subr.bf16.mxu0 0
    %2455 = vmatpush1.bf16.msra.mxu0 0
    %2456 = vmatprep.subr.bf16.mxu0 0
    %2457 = vmatpush1.bf16.msra.mxu0 0
    %2458 = vmatprep.subr.bf16.mxu0 0
    %2459 = vmatpush1.bf16.msra.mxu0 0
    %2460 = vmatprep.subr.bf16.mxu0 0
    %2461 = vmatpush1.bf16.msra.mxu0 0
    %2462 = vmatprep.subr.bf16.mxu0 0
    %2463 = vmatpush1.bf16.msra.mxu0 0
    %2464 = vmatprep.subr.bf16.mxu0 0
    %2465 = vmatpush1.bf16.msra.mxu0 0
    %2466 = vmatprep.subr.bf16.mxu0 0
    %2467 = vmatpush1.bf16.msra.mxu0 0
    %2468 = vmatprep.subr.bf16.mxu0 0
    %2469 = vmatpush1.bf16.msra.mxu0 0
    %2470 = vmatprep.subr.bf16.mxu0 0
    %2471 = vmatpush1.bf16.msra.mxu0 0
    %2472 = vmatprep.mubr.bf16.mxu0 0
    %2473 = vmatmul.mubr.bf16.gmra.mrb[0].mxu0 %v2223
    %v2474 = vpop.f32.mrb[0].mxu0
    %v2475 = vadd.f32 %v2025, %v2474
    %v2476 = vpop.f32.mrb[0].mxu0
    %v2477 = vadd.f32 %v2029, %v2476
    %v2478 = vpop.f32.mrb[0].mxu0
    %v2479 = vadd.f32 %v2025, %v2478
    %v2480 = vpop.f32.mrb[0].mxu0
    %v2481 = vadd.f32 %v2029, %v2480
    %2482 = vdwg.mxu0
    %2483 = vmatprep.subr.bf16.mxu0 %v2171
    %2484 = vmatpush1.bf16.msra.mxu0 %v2170
    %2485 = vmatprep.subr.bf16.mxu0 %v2187
    %2486 = vmatpush1.bf16.msra.mxu0 %v2186
    %2487 = vmatprep.subr.bf16.mxu0 0
    %2488 = vmatpush1.bf16.msra.mxu0 0
    %2489 = vmatprep.subr.bf16.mxu0 0
    %2490 = vmatpush1.bf16.msra.mxu0 0
    %2491 = vmatprep.subr.bf16.mxu0 0
    %2492 = vmatpush1.bf16.msra.mxu0 0
    %2493 = vmatprep.subr.bf16.mxu0 0
    %2494 = vmatpush1.bf16.msra.mxu0 0
    %2495 = vmatprep.subr.bf16.mxu0 0
    %2496 = vmatpush1.bf16.msra.mxu0 0
    %2497 = vmatprep.subr.bf16.mxu0 0
    %2498 = vmatpush1.bf16.msra.mxu0 0
    %2499 = vmatprep.subr.bf16.mxu0 0
    %2500 = vmatpush1.bf16.msra.mxu0 0
    %2501 = vmatprep.subr.bf16.mxu0 0
    %2502 = vmatpush1.bf16.msra.mxu0 0
    %2503 = vmatprep.subr.bf16.mxu0 0
    %2504 = vmatpush1.bf16.msra.mxu0 0
    %2505 = vmatprep.subr.bf16.mxu0 0
    %2506 = vmatpush1.bf16.msra.mxu0 0
    %2507 = vmatprep.subr.bf16.mxu0 0
    %2508 = vmatpush1.bf16.msra.mxu0 0
    %2509 = vmatprep.subr.bf16.mxu0 0
    %2510 = vmatpush1.bf16.msra.mxu0 0
    %2511 = vmatprep.subr.bf16.mxu0 0
    %2512 = vmatpush1.bf16.msra.mxu0 0
    %2513 = vmatprep.subr.bf16.mxu0 0
    %2514 = vmatpush1.bf16.msra.mxu0 0
    %2515 = vmatprep.mubr.bf16.mxu0 0
    %2516 = vmatmul.mubr.bf16.gmra.mrb[0].mxu0 %v2223
    %v2517 = vpop.f32.mrb[0].mxu0
    %v2518 = vadd.f32 %v2033, %v2517
    %v2519 = vpop.f32.mrb[0].mxu0
    %v2520 = vadd.f32 %v2037, %v2519
    %v2521 = vpop.f32.mrb[0].mxu0
    %v2522 = vadd.f32 %v2033, %v2521
    %v2523 = vpop.f32.mrb[0].mxu0
    %v2524 = vadd.f32 %v2037, %v2523
    %2525 = vdwg.mxu0
    %2526 = vmatprep.subr.bf16.mxu0 %v2173
    %2527 = vmatpush1.bf16.msra.mxu0 %v2172
    %2528 = vmatprep.subr.bf16.mxu0 %v2189
    %2529 = vmatpush1.bf16.msra.mxu0 %v2188
    %2530 = vmatprep.subr.bf16.mxu0 0
    %2531 = vmatpush1.bf16.msra.mxu0 0
    %2532 = vmatprep.subr.bf16.mxu0 0
    %2533 = vmatpush1.bf16.msra.mxu0 0
    %2534 = vmatprep.subr.bf16.mxu0 0
    %2535 = vmatpush1.bf16.msra.mxu0 0
    %2536 = vmatprep.subr.bf16.mxu0 0
    %2537 = vmatpush1.bf16.msra.mxu0 0
    %2538 = vmatprep.subr.bf16.mxu0 0
    %2539 = vmatpush1.bf16.msra.mxu0 0
    %2540 = vmatprep.subr.bf16.mxu0 0
    %2541 = vmatpush1.bf16.msra.mxu0 0
    %2542 = vmatprep.subr.bf16.mxu0 0
    %2543 = vmatpush1.bf16.msra.mxu0 0
    %2544 = vmatprep.subr.bf16.mxu0 0
    %2545 = vmatpush1.bf16.msra.mxu0 0
    %2546 = vmatprep.subr.bf16.mxu0 0
    %2547 = vmatpush1.bf16.msra.mxu0 0
    %2548 = vmatprep.subr.bf16.mxu0 0
    %2549 = vmatpush1.bf16.msra.mxu0 0
    %2550 = vmatprep.subr.bf16.mxu0 0
    %2551 = vmatpush1.bf16.msra.mxu0 0
    %2552 = vmatprep.subr.bf16.mxu0 0
    %2553 = vmatpush1.bf16.msra.mxu0 0
    %2554 = vmatprep.subr.bf16.mxu0 0
    %2555 = vmatpush1.bf16.msra.mxu0 0
    %2556 = vmatprep.subr.bf16.mxu0 0
    %2557 = vmatpush1.bf16.msra.mxu0 0
    %2558 = vmatprep.mubr.bf16.mxu0 0
    %2559 = vmatmul.mubr.bf16.gmra.mrb[0].mxu0 %v2223
    %v2560 = vpop.f32.mrb[0].mxu0
    %v2561 = vadd.f32 %v2041, %v2560
    %v2562 = vpop.f32.mrb[0].mxu0
    %v2563 = vadd.f32 %v2045, %v2562
    %v2564 = vpop.f32.mrb[0].mxu0
    %v2565 = vadd.f32 %v2041, %v2564
    %v2566 = vpop.f32.mrb[0].mxu0
    %v2567 = vadd.f32 %v2045, %v2566
    %2568 = vdwg.mxu0
    %v2569 = vmax.f32 %v2260, 0.0
    %v2570 = vmax.f32 %v2262, 0.0
    %v2571 = vmax.f32 %v2303, 0.0
    %v2572 = vmax.f32 %v2305, 0.0
    %v2573 = vmax.f32 %v2346, 0.0
    %v2574 = vmax.f32 %v2348, 0.0
    %v2575 = vmax.f32 %v2389, 0.0
    %v2576 = vmax.f32 %v2391, 0.0
    %v2577 = vmax.f32 %v2432, 0.0
    %v2578 = vmax.f32 %v2434, 0.0
    %v2579 = vmax.f32 %v2475, 0.0
    %v2580 = vmax.f32 %v2477, 0.0
    %v2581 = vmax.f32 %v2518, 0.0
    %v2582 = vmax.f32 %v2520, 0.0
    %v2583 = vmax.f32 %v2561, 0.0
    %v2584 = vmax.f32 %v2563, 0.0
    %v2585 = vmax.f32 %v2264, 0.0
    %v2586 = vmax.f32 %v2266, 0.0
    %v2587 = vmax.f32 %v2307, 0.0
    %v2588 = vmax.f32 %v2309, 0.0
    %v2589 = vmax.f32 %v2350, 0.0
    %v2590 = vmax.f32 %v2352, 0.0
    %v2591 = vmax.f32 %v2393, 0.0
    %v2592 = vmax.f32 %v2395, 0.0
    %v2593 = vmax.f32 %v2436, 0.0
    %v2594 = vmax.f32 %v2438, 0.0
    %v2595 = vmax.f32 %v2479, 0.0
    %v2596 = vmax.f32 %v2481, 0.0
    %v2597 = vmax.f32 %v2522, 0.0
    %v2598 = vmax.f32 %v2524, 0.0
    %v2599 = vmax.f32 %v2565, 0.0
    %v2600 = vmax.f32 %v2567, 0.0
    %v2601 = vld [vmem:[%s11] sm:$0xf]
    %v2602 = vld [vmem:[%s11 + $0x4] sm:$0xf]
    %v2603 = vld [vmem:[%s11 + $0x8] sm:$0xf]
    %v2604 = vld [vmem:[%s11 + $0xc] sm:$0xf]
    %v2605 = vld [vmem:[%s11 + $0x10] sm:$0xf]
    %v2606 = vld [vmem:[%s11 + $0x14] sm:$0xf]
    %v2607 = vld [vmem:[%s11 + $0x18] sm:$0xf]
    %v2608 = vld [vmem:[%s11 + $0x1c] sm:$0xf]
    %v2609 = vld [vmem:[%s11 + $0x20] sm:$0xf]
    %v2610 = vld [vmem:[%s11 + $0x24] sm:$0xf]
    %v2611 = vld [vmem:[%s11 + $0x28] sm:$0xf]
    %v2612 = vld [vmem:[%s11 + $0x2c] sm:$0xf]
    %v2613 = vld [vmem:[%s11 + $0x30] sm:$0xf]
    %v2614 = vld [vmem:[%s11 + $0x34] sm:$0xf]
    %v2615 = vld [vmem:[%s11 + $0x38] sm:$0xf]
    %v2616 = vld [vmem:[%s11 + $0x3c] sm:$0xf]
    %v2617 = vld [vmem:[%s11 + $0x40] sm:$0xf]
    %v2618 = vld [vmem:[%s11 + $0x44] sm:$0xf]
    %v2619 = vld [vmem:[%s11 + $0x48] sm:$0xf]
    %v2620 = vld [vmem:[%s11 + $0x4c] sm:$0xf]
    %v2621 = vld [vmem:[%s11 + $0x50] sm:$0xf]
    %v2622 = vld [vmem:[%s11 + $0x54] sm:$0xf]
    %v2623 = vld [vmem:[%s11 + $0x58] sm:$0xf]
    %v2624 = vld [vmem:[%s11 + $0x5c] sm:$0xf]
    %v2625 = vld [vmem:[%s11 + $0x60] sm:$0xf]
    %v2626 = vld [vmem:[%s11 + $0x64] sm:$0xf]
    %v2627 = vld [vmem:[%s11 + $0x68] sm:$0xf]
    %v2628 = vld [vmem:[%s11 + $0x6c] sm:$0xf]
    %v2629 = vld [vmem:[%s11 + $0x70] sm:$0xf]
    %v2630 = vld [vmem:[%s11 + $0x74] sm:$0xf]
    %v2631 = vld [vmem:[%s11 + $0x78] sm:$0xf]
    %v2632 = vld [vmem:[%s11 + $0x7c] sm:$0xf]
    %v2633 = vld [vmem:[%s11 + $0x80] sm:$0xf]
    %v2634 = vld [vmem:[%s11 + $0x84] sm:$0xf]
    %v2635 = vld [vmem:[%s11 + $0x88] sm:$0xf]
    %v2636 = vld [vmem:[%s11 + $0x8c] sm:$0xf]
    %v2637 = vld [vmem:[%s11 + $0x90] sm:$0xf]
    %v2638 = vld [vmem:[%s11 + $0x94] sm:$0xf]
    %v2639 = vld [vmem:[%s11 + $0x98] sm:$0xf]
    %v2640 = vld [vmem:[%s11 + $0x9c] sm:$0xf]
    %v2641 = vld [vmem:[%s11 + $0xa0] sm:$0xf]
    %v2642 = vld [vmem:[%s11 + $0xa4] sm:$0xf]
    %v2643 = vld [vmem:[%s11 + $0xa8] sm:$0xf]
    %v2644 = vld [vmem:[%s11 + $0xac] sm:$0xf]
    %v2645 = vld [vmem:[%s11 + $0xb0] sm:$0xf]
    %v2646 = vld [vmem:[%s11 + $0xb4] sm:$0xf]
    %v2647 = vld [vmem:[%s11 + $0xb8] sm:$0xf]
    %v2648 = vld [vmem:[%s11 + $0xbc] sm:$0xf]
    %v2649 = vld [vmem:[%s11 + $0xc0] sm:$0xf]
    %v2650 = vld [vmem:[%s11 + $0xc4] sm:$0xf]
    %v2651 = vld [vmem:[%s11 + $0xc8] sm:$0xf]
    %v2652 = vld [vmem:[%s11 + $0xcc] sm:$0xf]
    %v2653 = vld [vmem:[%s11 + $0xd0] sm:$0xf]
    %v2654 = vld [vmem:[%s11 + $0xd4] sm:$0xf]
    %v2655 = vld [vmem:[%s11 + $0xd8] sm:$0xf]
    %v2656 = vld [vmem:[%s11 + $0xdc] sm:$0xf]
    %v2657 = vld [vmem:[%s11 + $0xe0] sm:$0xf]
    %v2658 = vld [vmem:[%s11 + $0xe4] sm:$0xf]
    %v2659 = vld [vmem:[%s11 + $0xe8] sm:$0xf]
    %v2660 = vld [vmem:[%s11 + $0xec] sm:$0xf]
    %v2661 = vld [vmem:[%s11 + $0xf0] sm:$0xf]
    %v2662 = vld [vmem:[%s11 + $0xf4] sm:$0xf]
    %v2663 = vld [vmem:[%s11 + $0xf8] sm:$0xf]
    %v2664 = vld [vmem:[%s11 + $0xfc] sm:$0xf]
    %v2665 = vld [vmem:[%s11 + $0x100] sm:$0xf]
    %v2666 = vld [vmem:[%s11 + $0x104] sm:$0xf]
    %v2667 = vld [vmem:[%s11 + $0x108] sm:$0xf]
    %v2668 = vld [vmem:[%s11 + $0x10c] sm:$0xf]
    %v2669 = vld [vmem:[%s11 + $0x110] sm:$0xf]
    %v2670 = vld [vmem:[%s11 + $0x114] sm:$0xf]
    %v2671 = vld [vmem:[%s11 + $0x118] sm:$0xf]
    %v2672 = vld [vmem:[%s11 + $0x11c] sm:$0xf]
    %v2673 = vld [vmem:[%s11 + $0x120] sm:$0xf]
    %v2674 = vld [vmem:[%s11 + $0x124] sm:$0xf]
    %v2675 = vld [vmem:[%s11 + $0x128] sm:$0xf]
    %v2676 = vld [vmem:[%s11 + $0x12c] sm:$0xf]
    %v2677 = vld [vmem:[%s11 + $0x130] sm:$0xf]
    %v2678 = vld [vmem:[%s11 + $0x134] sm:$0xf]
    %v2679 = vld [vmem:[%s11 + $0x138] sm:$0xf]
    %v2680 = vld [vmem:[%s11 + $0x13c] sm:$0xf]
    %v2681 = vld [vmem:[%s11 + $0x140] sm:$0xf]
    %v2682 = vld [vmem:[%s11 + $0x144] sm:$0xf]
    %v2683 = vld [vmem:[%s11 + $0x148] sm:$0xf]
    %v2684 = vld [vmem:[%s11 + $0x14c] sm:$0xf]
    %v2685 = vld [vmem:[%s11 + $0x150] sm:$0xf]
    %v2686 = vld [vmem:[%s11 + $0x154] sm:$0xf]
    %v2687 = vld [vmem:[%s11 + $0x158] sm:$0xf]
    %v2688 = vld [vmem:[%s11 + $0x15c] sm:$0xf]
    %v2689 = vld [vmem:[%s11 + $0x160] sm:$0xf]
    %v2690 = vld [vmem:[%s11 + $0x164] sm:$0xf]
    %v2691 = vld [vmem:[%s11 + $0x168] sm:$0xf]
    %v2692 = vld [vmem:[%s11 + $0x16c] sm:$0xf]
    %v2693 = vld [vmem:[%s11 + $0x170] sm:$0xf]
    %v2694 = vld [vmem:[%s11 + $0x174] sm:$0xf]
    %v2695 = vld [vmem:[%s11 + $0x178] sm:$0xf]
    %v2696 = vld [vmem:[%s11 + $0x17c] sm:$0xf]
    %v2697 = vld [vmem:[%s11 + $0x180] sm:$0xf]
    %v2698 = vld [vmem:[%s11 + $0x184] sm:$0xf]
    %v2699 = vld [vmem:[%s11 + $0x188] sm:$0xf]
    %v2700 = vld [vmem:[%s11 + $0x18c] sm:$0xf]
    %v2701 = vld [vmem:[%s11 + $0x190] sm:$0xf]
    %v2702 = vld [vmem:[%s11 + $0x194] sm:$0xf]
    %v2703 = vld [vmem:[%s11 + $0x198] sm:$0xf]
    %v2704 = vld [vmem:[%s11 + $0x19c] sm:$0xf]
    %v2705 = vld [vmem:[%s11 + $0x1a0] sm:$0xf]
    %v2706 = vld [vmem:[%s11 + $0x1a4] sm:$0xf]
    %v2707 = vld [vmem:[%s11 + $0x1a8] sm:$0xf]
    %v2708 = vld [vmem:[%s11 + $0x1ac] sm:$0xf]
    %v2709 = vld [vmem:[%s11 + $0x1b0] sm:$0xf]
    %v2710 = vld [vmem:[%s11 + $0x1b4] sm:$0xf]
    %v2711 = vld [vmem:[%s11 + $0x1b8] sm:$0xf]
    %v2712 = vld [vmem:[%s11 + $0x1bc] sm:$0xf]
    %v2713 = vld [vmem:[%s11 + $0x1c0] sm:$0xf]
    %v2714 = vld [vmem:[%s11 + $0x1c4] sm:$0xf]
    %v2715 = vld [vmem:[%s11 + $0x1c8] sm:$0xf]
    %v2716 = vld [vmem:[%s11 + $0x1cc] sm:$0xf]
    %v2717 = vld [vmem:[%s11 + $0x1d0] sm:$0xf]
    %v2718 = vld [vmem:[%s11 + $0x1d4] sm:$0xf]
    %v2719 = vld [vmem:[%s11 + $0x1d8] sm:$0xf]
    %v2720 = vld [vmem:[%s11 + $0x1dc] sm:$0xf]
    %v2721 = vld [vmem:[%s11 + $0x1e0] sm:$0xf]
    %v2722 = vld [vmem:[%s11 + $0x1e4] sm:$0xf]
    %v2723 = vld [vmem:[%s11 + $0x1e8] sm:$0xf]
    %v2724 = vld [vmem:[%s11 + $0x1ec] sm:$0xf]
    %v2725 = vld [vmem:[%s11 + $0x1f0] sm:$0xf]
    %v2726 = vld [vmem:[%s11 + $0x1f4] sm:$0xf]
    %v2727 = vld [vmem:[%s11 + $0x1f8] sm:$0xf]
    %v2728 = vld [vmem:[%s11 + $0x1fc] sm:$0xf]
    %v2729 = vld [vmem:[%s11 + $0x200] sm:$0xf]
    %v2730 = vld [vmem:[%s11 + $0x204] sm:$0xf]
    %v2731 = vld [vmem:[%s11 + $0x208] sm:$0xf]
    %v2732 = vld [vmem:[%s11 + $0x20c] sm:$0xf]
    %v2733 = vld [vmem:[%s11 + $0x210] sm:$0xf]
    %v2734 = vld [vmem:[%s11 + $0x214] sm:$0xf]
    %v2735 = vld [vmem:[%s11 + $0x218] sm:$0xf]
    %v2736 = vld [vmem:[%s11 + $0x21c] sm:$0xf]
    %v2737 = vld [vmem:[%s11 + $0x220] sm:$0xf]
    %v2738 = vld [vmem:[%s11 + $0x224] sm:$0xf]
    %v2739 = vld [vmem:[%s11 + $0x228] sm:$0xf]
    %v2740 = vld [vmem:[%s11 + $0x22c] sm:$0xf]
    %v2741 = vld [vmem:[%s11 + $0x230] sm:$0xf]
    %v2742 = vld [vmem:[%s11 + $0x234] sm:$0xf]
    %v2743 = vld [vmem:[%s11 + $0x238] sm:$0xf]
    %v2744 = vld [vmem:[%s11 + $0x23c] sm:$0xf]
    %v2745 = vld [vmem:[%s11 + $0x240] sm:$0xf]
    %v2746 = vld [vmem:[%s11 + $0x244] sm:$0xf]
    %v2747 = vld [vmem:[%s11 + $0x248] sm:$0xf]
    %v2748 = vld [vmem:[%s11 + $0x24c] sm:$0xf]
    %v2749 = vld [vmem:[%s11 + $0x250] sm:$0xf]
    %v2750 = vld [vmem:[%s11 + $0x254] sm:$0xf]
    %v2751 = vld [vmem:[%s11 + $0x258] sm:$0xf]
    %v2752 = vld [vmem:[%s11 + $0x25c] sm:$0xf]
    %v2753 = vld [vmem:[%s11 + $0x260] sm:$0xf]
    %v2754 = vld [vmem:[%s11 + $0x264] sm:$0xf]
    %v2755 = vld [vmem:[%s11 + $0x268] sm:$0xf]
    %v2756 = vld [vmem:[%s11 + $0x26c] sm:$0xf]
    %v2757 = vld [vmem:[%s11 + $0x270] sm:$0xf]
    %v2758 = vld [vmem:[%s11 + $0x274] sm:$0xf]
    %v2759 = vld [vmem:[%s11 + $0x278] sm:$0xf]
    %v2760 = vld [vmem:[%s11 + $0x27c] sm:$0xf]
    %v2761 = vld [vmem:[%s11 + $0x280] sm:$0xf]
    %v2762 = vld [vmem:[%s11 + $0x284] sm:$0xf]
    %v2763 = vld [vmem:[%s11 + $0x288] sm:$0xf]
    %v2764 = vld [vmem:[%s11 + $0x28c] sm:$0xf]
    %v2765 = vld [vmem:[%s11 + $0x290] sm:$0xf]
    %v2766 = vld [vmem:[%s11 + $0x294] sm:$0xf]
    %v2767 = vld [vmem:[%s11 + $0x298] sm:$0xf]
    %v2768 = vld [vmem:[%s11 + $0x29c] sm:$0xf]
    %v2769 = vld [vmem:[%s11 + $0x2a0] sm:$0xf]
    %v2770 = vld [vmem:[%s11 + $0x2a4] sm:$0xf]
    %v2771 = vld [vmem:[%s11 + $0x2a8] sm:$0xf]
    %v2772 = vld [vmem:[%s11 + $0x2ac] sm:$0xf]
    %v2773 = vld [vmem:[%s11 + $0x2b0] sm:$0xf]
    %v2774 = vld [vmem:[%s11 + $0x2b4] sm:$0xf]
    %v2775 = vld [vmem:[%s11 + $0x2b8] sm:$0xf]
    %v2776 = vld [vmem:[%s11 + $0x2bc] sm:$0xf]
    %v2777 = vld [vmem:[%s11 + $0x2c0] sm:$0xf]
    %v2778 = vld [vmem:[%s11 + $0x2c4] sm:$0xf]
    %v2779 = vld [vmem:[%s11 + $0x2c8] sm:$0xf]
    %v2780 = vld [vmem:[%s11 + $0x2cc] sm:$0xf]
    %v2781 = vld [vmem:[%s11 + $0x2d0] sm:$0xf]
    %v2782 = vld [vmem:[%s11 + $0x2d4] sm:$0xf]
    %v2783 = vld [vmem:[%s11 + $0x2d8] sm:$0xf]
    %v2784 = vld [vmem:[%s11 + $0x2dc] sm:$0xf]
    %v2785 = vld [vmem:[%s11 + $0x2e0] sm:$0xf]
    %v2786 = vld [vmem:[%s11 + $0x2e4] sm:$0xf]
    %v2787 = vld [vmem:[%s11 + $0x2e8] sm:$0xf]
    %v2788 = vld [vmem:[%s11 + $0x2ec] sm:$0xf]
    %v2789 = vld [vmem:[%s11 + $0x2f0] sm:$0xf]
    %v2790 = vld [vmem:[%s11 + $0x2f4] sm:$0xf]
    %v2791 = vld [vmem:[%s11 + $0x2f8] sm:$0xf]
    %v2792 = vld [vmem:[%s11 + $0x2fc] sm:$0xf]
    %v2793 = vld [vmem:[%s11 + $0x300] sm:$0xf]
    %v2794 = vld [vmem:[%s11 + $0x304] sm:$0xf]
    %v2795 = vld [vmem:[%s11 + $0x308] sm:$0xf]
    %v2796 = vld [vmem:[%s11 + $0x30c] sm:$0xf]
    %v2797 = vld [vmem:[%s11 + $0x310] sm:$0xf]
    %v2798 = vld [vmem:[%s11 + $0x314] sm:$0xf]
    %v2799 = vld [vmem:[%s11 + $0x318] sm:$0xf]
    %v2800 = vld [vmem:[%s11 + $0x31c] sm:$0xf]
    %v2801 = vld [vmem:[%s11 + $0x320] sm:$0xf]
    %v2802 = vld [vmem:[%s11 + $0x324] sm:$0xf]
    %v2803 = vld [vmem:[%s11 + $0x328] sm:$0xf]
    %v2804 = vld [vmem:[%s11 + $0x32c] sm:$0xf]
    %v2805 = vld [vmem:[%s11 + $0x330] sm:$0xf]
    %v2806 = vld [vmem:[%s11 + $0x334] sm:$0xf]
    %v2807 = vld [vmem:[%s11 + $0x338] sm:$0xf]
    %v2808 = vld [vmem:[%s11 + $0x33c] sm:$0xf]
    %v2809 = vld [vmem:[%s11 + $0x340] sm:$0xf]
    %v2810 = vld [vmem:[%s11 + $0x344] sm:$0xf]
    %v2811 = vld [vmem:[%s11 + $0x348] sm:$0xf]
    %v2812 = vld [vmem:[%s11 + $0x34c] sm:$0xf]
    %v2813 = vld [vmem:[%s11 + $0x350] sm:$0xf]
    %v2814 = vld [vmem:[%s11 + $0x354] sm:$0xf]
    %v2815 = vld [vmem:[%s11 + $0x358] sm:$0xf]
    %v2816 = vld [vmem:[%s11 + $0x35c] sm:$0xf]
    %v2817 = vld [vmem:[%s11 + $0x360] sm:$0xf]
    %v2818 = vld [vmem:[%s11 + $0x364] sm:$0xf]
    %v2819 = vld [vmem:[%s11 + $0x368] sm:$0xf]
    %v2820 = vld [vmem:[%s11 + $0x36c] sm:$0xf]
    %v2821 = vld [vmem:[%s11 + $0x370] sm:$0xf]
    %v2822 = vld [vmem:[%s11 + $0x374] sm:$0xf]
    %v2823 = vld [vmem:[%s11 + $0x378] sm:$0xf]
    %v2824 = vld [vmem:[%s11 + $0x37c] sm:$0xf]
    %v2825 = vld [vmem:[%s11 + $0x380] sm:$0xf]
    %v2826 = vld [vmem:[%s11 + $0x384] sm:$0xf]
    %v2827 = vld [vmem:[%s11 + $0x388] sm:$0xf]
    %v2828 = vld [vmem:[%s11 + $0x38c] sm:$0xf]
    %v2829 = vld [vmem:[%s11 + $0x390] sm:$0xf]
    %v2830 = vld [vmem:[%s11 + $0x394] sm:$0xf]
    %v2831 = vld [vmem:[%s11 + $0x398] sm:$0xf]
    %v2832 = vld [vmem:[%s11 + $0x39c] sm:$0xf]
    %v2833 = vld [vmem:[%s11 + $0x3a0] sm:$0xf]
    %v2834 = vld [vmem:[%s11 + $0x3a4] sm:$0xf]
    %v2835 = vld [vmem:[%s11 + $0x3a8] sm:$0xf]
    %v2836 = vld [vmem:[%s11 + $0x3ac] sm:$0xf]
    %v2837 = vld [vmem:[%s11 + $0x3b0] sm:$0xf]
    %v2838 = vld [vmem:[%s11 + $0x3b4] sm:$0xf]
    %v2839 = vld [vmem:[%s11 + $0x3b8] sm:$0xf]
    %v2840 = vld [vmem:[%s11 + $0x3bc] sm:$0xf]
    %v2841 = vld [vmem:[%s11 + $0x3c0] sm:$0xf]
    %v2842 = vld [vmem:[%s11 + $0x3c4] sm:$0xf]
    %v2843 = vld [vmem:[%s11 + $0x3c8] sm:$0xf]
    %v2844 = vld [vmem:[%s11 + $0x3cc] sm:$0xf]
    %v2845 = vld [vmem:[%s11 + $0x3d0] sm:$0xf]
    %v2846 = vld [vmem:[%s11 + $0x3d4] sm:$0xf]
    %v2847 = vld [vmem:[%s11 + $0x3d8] sm:$0xf]
    %v2848 = vld [vmem:[%s11 + $0x3dc] sm:$0xf]
    %v2849 = vld [vmem:[%s11 + $0x3e0] sm:$0xf]
    %v2850 = vld [vmem:[%s11 + $0x3e4] sm:$0xf]
    %v2851 = vld [vmem:[%s11 + $0x3e8] sm:$0xf]
    %v2852 = vld [vmem:[%s11 + $0x3ec] sm:$0xf]
    %v2853 = vld [vmem:[%s11 + $0x3f0] sm:$0xf]
    %v2854 = vld [vmem:[%s11 + $0x3f4] sm:$0xf]
    %v2855 = vld [vmem:[%s11 + $0x3f8] sm:$0xf]
    %v2856 = vld [vmem:[%s11 + $0x3fc] sm:$0xf]
    %v2857 = vld [vmem:[%s12] sm:$0x1]
    %v2858 = vpack.c.bf16 %v2585, %v2569
    %v2859 = vpack.c.bf16 %v2586, %v2570
    %v2860 = vpack.c.bf16 %v2587, %v2571
    %v2861 = vpack.c.bf16 %v2588, %v2572
    %v2862 = vpack.c.bf16 %v2589, %v2573
    %v2863 = vpack.c.bf16 %v2590, %v2574
    %v2864 = vpack.c.bf16 %v2591, %v2575
    %v2865 = vpack.c.bf16 %v2592, %v2576
    %v2866 = vpack.c.bf16 %v2593, %v2577
    %v2867 = vpack.c.bf16 %v2594, %v2578
    %v2868 = vpack.c.bf16 %v2595, %v2579
    %v2869 = vpack.c.bf16 %v2596, %v2580
    %v2870 = vpack.c.bf16 %v2597, %v2581
    %v2871 = vpack.c.bf16 %v2598, %v2582
    %v2872 = vpack.c.bf16 %v2599, %v2583
    %v2873 = vpack.c.bf16 %v2600, %v2584
    %v2875 = vlaneseq
    %v2876 = vshrl.u32 %v2875, 7
    %v2877 = vsub.s32 0, %v2876
    %v2878 = vrot.slane %v2857, %v2877
    %v3136 = vunpack.c.l.b16 %v2601
    %v3137 = vunpack.c.l.b16 %v2602
    %v3138 = vunpack.c.l.b16 %v2603
    %v3139 = vunpack.c.l.b16 %v2604
    %v3140 = vunpack.c.l.b16 %v2605
    %v3141 = vunpack.c.l.b16 %v2606
    %v3142 = vunpack.c.l.b16 %v2607
    %v3143 = vunpack.c.l.b16 %v2608
    %v3144 = vunpack.c.l.b16 %v2609
    %v3145 = vunpack.c.l.b16 %v2610
    %v3146 = vunpack.c.l.b16 %v2611
    %v3147 = vunpack.c.l.b16 %v2612
    %v3148 = vunpack.c.l.b16 %v2613
    %v3149 = vunpack.c.l.b16 %v2614
    %v3150 = vunpack.c.l.b16 %v2615
    %v3151 = vunpack.c.l.b16 %v2616
    %v3152 = vunpack.c.l.b16 %v2617
    %v3153 = vunpack.c.l.b16 %v2618
    %v3154 = vunpack.c.l.b16 %v2619
    %v3155 = vunpack.c.l.b16 %v2620
    %v3156 = vunpack.c.l.b16 %v2621
    %v3157 = vunpack.c.l.b16 %v2622
    %v3158 = vunpack.c.l.b16 %v2623
    %v3159 = vunpack.c.l.b16 %v2624
    %v3160 = vunpack.c.l.b16 %v2625
    %v3161 = vunpack.c.l.b16 %v2626
    %v3162 = vunpack.c.l.b16 %v2627
    %v3163 = vunpack.c.l.b16 %v2628
    %v3164 = vunpack.c.l.b16 %v2629
    %v3165 = vunpack.c.l.b16 %v2630
    %v3166 = vunpack.c.l.b16 %v2631
    %v3167 = vunpack.c.l.b16 %v2632
    %v3168 = vunpack.c.l.b16 %v2633
    %v3169 = vunpack.c.l.b16 %v2634
    %v3170 = vunpack.c.l.b16 %v2635
    %v3171 = vunpack.c.l.b16 %v2636
    %v3172 = vunpack.c.l.b16 %v2637
    %v3173 = vunpack.c.l.b16 %v2638
    %v3174 = vunpack.c.l.b16 %v2639
    %v3175 = vunpack.c.l.b16 %v2640
    %v3176 = vunpack.c.l.b16 %v2641
    %v3177 = vunpack.c.l.b16 %v2642
    %v3178 = vunpack.c.l.b16 %v2643
    %v3179 = vunpack.c.l.b16 %v2644
    %v3180 = vunpack.c.l.b16 %v2645
    %v3181 = vunpack.c.l.b16 %v2646
    %v3182 = vunpack.c.l.b16 %v2647
    %v3183 = vunpack.c.l.b16 %v2648
    %v3184 = vunpack.c.l.b16 %v2649
    %v3185 = vunpack.c.l.b16 %v2650
    %v3186 = vunpack.c.l.b16 %v2651
    %v3187 = vunpack.c.l.b16 %v2652
    %v3188 = vunpack.c.l.b16 %v2653
    %v3189 = vunpack.c.l.b16 %v2654
    %v3190 = vunpack.c.l.b16 %v2655
    %v3191 = vunpack.c.l.b16 %v2656
    %v3192 = vunpack.c.l.b16 %v2657
    %v3193 = vunpack.c.l.b16 %v2658
    %v3194 = vunpack.c.l.b16 %v2659
    %v3195 = vunpack.c.l.b16 %v2660
    %v3196 = vunpack.c.l.b16 %v2661
    %v3197 = vunpack.c.l.b16 %v2662
    %v3198 = vunpack.c.l.b16 %v2663
    %v3199 = vunpack.c.l.b16 %v2664
    %v3200 = vunpack.c.l.b16 %v2665
    %v3201 = vunpack.c.l.b16 %v2666
    %v3202 = vunpack.c.l.b16 %v2667
    %v3203 = vunpack.c.l.b16 %v2668
    %v3204 = vunpack.c.l.b16 %v2669
    %v3205 = vunpack.c.l.b16 %v2670
    %v3206 = vunpack.c.l.b16 %v2671
    %v3207 = vunpack.c.l.b16 %v2672
    %v3208 = vunpack.c.l.b16 %v2673
    %v3209 = vunpack.c.l.b16 %v2674
    %v3210 = vunpack.c.l.b16 %v2675
    %v3211 = vunpack.c.l.b16 %v2676
    %v3212 = vunpack.c.l.b16 %v2677
    %v3213 = vunpack.c.l.b16 %v2678
    %v3214 = vunpack.c.l.b16 %v2679
    %v3215 = vunpack.c.l.b16 %v2680
    %v3216 = vunpack.c.l.b16 %v2681
    %v3217 = vunpack.c.l.b16 %v2682
    %v3218 = vunpack.c.l.b16 %v2683
    %v3219 = vunpack.c.l.b16 %v2684
    %v3220 = vunpack.c.l.b16 %v2685
    %v3221 = vunpack.c.l.b16 %v2686
    %v3222 = vunpack.c.l.b16 %v2687
    %v3223 = vunpack.c.l.b16 %v2688
    %v3224 = vunpack.c.l.b16 %v2689
    %v3225 = vunpack.c.l.b16 %v2690
    %v3226 = vunpack.c.l.b16 %v2691
    %v3227 = vunpack.c.l.b16 %v2692
    %v3228 = vunpack.c.l.b16 %v2693
    %v3229 = vunpack.c.l.b16 %v2694
    %v3230 = vunpack.c.l.b16 %v2695
    %v3231 = vunpack.c.l.b16 %v2696
    %v3232 = vunpack.c.l.b16 %v2697
    %v3233 = vunpack.c.l.b16 %v2698
    %v3234 = vunpack.c.l.b16 %v2699
    %v3235 = vunpack.c.l.b16 %v2700
    %v3236 = vunpack.c.l.b16 %v2701
    %v3237 = vunpack.c.l.b16 %v2702
    %v3238 = vunpack.c.l.b16 %v2703
    %v3239 = vunpack.c.l.b16 %v2704
    %v3240 = vunpack.c.l.b16 %v2705
    %v3241 = vunpack.c.l.b16 %v2706
    %v3242 = vunpack.c.l.b16 %v2707
    %v3243 = vunpack.c.l.b16 %v2708
    %v3244 = vunpack.c.l.b16 %v2709
    %v3245 = vunpack.c.l.b16 %v2710
    %v3246 = vunpack.c.l.b16 %v2711
    %v3247 = vunpack.c.l.b16 %v2712
    %v3248 = vunpack.c.l.b16 %v2713
    %v3249 = vunpack.c.l.b16 %v2714
    %v3250 = vunpack.c.l.b16 %v2715
    %v3251 = vunpack.c.l.b16 %v2716
    %v3252 = vunpack.c.l.b16 %v2717
    %v3253 = vunpack.c.l.b16 %v2718
    %v3254 = vunpack.c.l.b16 %v2719
    %v3255 = vunpack.c.l.b16 %v2720
    %v3256 = vunpack.c.l.b16 %v2721
    %v3257 = vunpack.c.l.b16 %v2722
    %v3258 = vunpack.c.l.b16 %v2723
    %v3259 = vunpack.c.l.b16 %v2724
    %v3260 = vunpack.c.l.b16 %v2725
    %v3261 = vunpack.c.l.b16 %v2726
    %v3262 = vunpack.c.l.b16 %v2727
    %v3263 = vunpack.c.l.b16 %v2728
    %v3264 = vunpack.c.l.b16 %v2729
    %v3265 = vunpack.c.l.b16 %v2730
    %v3266 = vunpack.c.l.b16 %v2731
    %v3267 = vunpack.c.l.b16 %v2732
    %v3268 = vunpack.c.l.b16 %v2733
    %v3269 = vunpack.c.l.b16 %v2734
    %v3270 = vunpack.c.l.b16 %v2735
    %v3271 = vunpack.c.l.b16 %v2736
    %v3272 = vunpack.c.l.b16 %v2737
    %v3273 = vunpack.c.l.b16 %v2738
    %v3274 = vunpack.c.l.b16 %v2739
    %v3275 = vunpack.c.l.b16 %v2740
    %v3276 = vunpack.c.l.b16 %v2741
    %v3277 = vunpack.c.l.b16 %v2742
    %v3278 = vunpack.c.l.b16 %v2743
    %v3279 = vunpack.c.l.b16 %v2744
    %v3280 = vunpack.c.l.b16 %v2745
    %v3281 = vunpack.c.l.b16 %v2746
    %v3282 = vunpack.c.l.b16 %v2747
    %v3283 = vunpack.c.l.b16 %v2748
    %v3284 = vunpack.c.l.b16 %v2749
    %v3285 = vunpack.c.l.b16 %v2750
    %v3286 = vunpack.c.l.b16 %v2751
    %v3287 = vunpack.c.l.b16 %v2752
    %v3288 = vunpack.c.l.b16 %v2753
    %v3289 = vunpack.c.l.b16 %v2754
    %v3290 = vunpack.c.l.b16 %v2755
    %v3291 = vunpack.c.l.b16 %v2756
    %v3292 = vunpack.c.l.b16 %v2757
    %v3293 = vunpack.c.l.b16 %v2758
    %v3294 = vunpack.c.l.b16 %v2759
    %v3295 = vunpack.c.l.b16 %v2760
    %v3296 = vunpack.c.l.b16 %v2761
    %v3297 = vunpack.c.l.b16 %v2762
    %v3298 = vunpack.c.l.b16 %v2763
    %v3299 = vunpack.c.l.b16 %v2764
    %v3300 = vunpack.c.l.b16 %v2765
    %v3301 = vunpack.c.l.b16 %v2766
    %v3302 = vunpack.c.l.b16 %v2767
    %v3303 = vunpack.c.l.b16 %v2768
    %v3304 = vunpack.c.l.b16 %v2769
    %v3305 = vunpack.c.l.b16 %v2770
    %v3306 = vunpack.c.l.b16 %v2771
    %v3307 = vunpack.c.l.b16 %v2772
    %v3308 = vunpack.c.l.b16 %v2773
    %v3309 = vunpack.c.l.b16 %v2774
    %v3310 = vunpack.c.l.b16 %v2775
    %v3311 = vunpack.c.l.b16 %v2776
    %v3312 = vunpack.c.l.b16 %v2777
    %v3313 = vunpack.c.l.b16 %v2778
    %v3314 = vunpack.c.l.b16 %v2779
    %v3315 = vunpack.c.l.b16 %v2780
    %v3316 = vunpack.c.l.b16 %v2781
    %v3317 = vunpack.c.l.b16 %v2782
    %v3318 = vunpack.c.l.b16 %v2783
    %v3319 = vunpack.c.l.b16 %v2784
    %v3320 = vunpack.c.l.b16 %v2785
    %v3321 = vunpack.c.l.b16 %v2786
    %v3322 = vunpack.c.l.b16 %v2787
    %v3323 = vunpack.c.l.b16 %v2788
    %v3324 = vunpack.c.l.b16 %v2789
    %v3325 = vunpack.c.l.b16 %v2790
    %v3326 = vunpack.c.l.b16 %v2791
    %v3327 = vunpack.c.l.b16 %v2792
    %v3328 = vunpack.c.l.b16 %v2793
    %v3329 = vunpack.c.l.b16 %v2794
    %v3330 = vunpack.c.l.b16 %v2795
    %v3331 = vunpack.c.l.b16 %v2796
    %v3332 = vunpack.c.l.b16 %v2797
    %v3333 = vunpack.c.l.b16 %v2798
    %v3334 = vunpack.c.l.b16 %v2799
    %v3335 = vunpack.c.l.b16 %v2800
    %v3336 = vunpack.c.l.b16 %v2801
    %v3337 = vunpack.c.l.b16 %v2802
    %v3338 = vunpack.c.l.b16 %v2803
    %v3339 = vunpack.c.l.b16 %v2804
    %v3340 = vunpack.c.l.b16 %v2805
    %v3341 = vunpack.c.l.b16 %v2806
    %v3342 = vunpack.c.l.b16 %v2807
    %v3343 = vunpack.c.l.b16 %v2808
    %v3344 = vunpack.c.l.b16 %v2809
    %v3345 = vunpack.c.l.b16 %v2810
    %v3346 = vunpack.c.l.b16 %v2811
    %v3347 = vunpack.c.l.b16 %v2812
    %v3348 = vunpack.c.l.b16 %v2813
    %v3349 = vunpack.c.l.b16 %v2814
    %v3350 = vunpack.c.l.b16 %v2815
    %v3351 = vunpack.c.l.b16 %v2816
    %v3352 = vunpack.c.l.b16 %v2817
    %v3353 = vunpack.c.l.b16 %v2818
    %v3354 = vunpack.c.l.b16 %v2819
    %v3355 = vunpack.c.l.b16 %v2820
    %v3356 = vunpack.c.l.b16 %v2821
    %v3357 = vunpack.c.l.b16 %v2822
    %v3358 = vunpack.c.l.b16 %v2823
    %v3359 = vunpack.c.l.b16 %v2824
    %v3360 = vunpack.c.l.b16 %v2825
    %v3361 = vunpack.c.l.b16 %v2826
    %v3362 = vunpack.c.l.b16 %v2827
    %v3363 = vunpack.c.l.b16 %v2828
    %v3364 = vunpack.c.l.b16 %v2829
    %v3365 = vunpack.c.l.b16 %v2830
    %v3366 = vunpack.c.l.b16 %v2831
    %v3367 = vunpack.c.l.b16 %v2832
    %v3368 = vunpack.c.l.b16 %v2833
    %v3369 = vunpack.c.l.b16 %v2834
    %v3370 = vunpack.c.l.b16 %v2835
    %v3371 = vunpack.c.l.b16 %v2836
    %v3372 = vunpack.c.l.b16 %v2837
    %v3373 = vunpack.c.l.b16 %v2838
    %v3374 = vunpack.c.l.b16 %v2839
    %v3375 = vunpack.c.l.b16 %v2840
    %v3376 = vunpack.c.l.b16 %v2841
    %v3377 = vunpack.c.l.b16 %v2842
    %v3378 = vunpack.c.l.b16 %v2843
    %v3379 = vunpack.c.l.b16 %v2844
    %v3380 = vunpack.c.l.b16 %v2845
    %v3381 = vunpack.c.l.b16 %v2846
    %v3382 = vunpack.c.l.b16 %v2847
    %v3383 = vunpack.c.l.b16 %v2848
    %v3384 = vunpack.c.l.b16 %v2849
    %v3385 = vunpack.c.l.b16 %v2850
    %v3386 = vunpack.c.l.b16 %v2851
    %v3387 = vunpack.c.l.b16 %v2852
    %v3388 = vunpack.c.l.b16 %v2853
    %v3389 = vunpack.c.l.b16 %v2854
    %v3390 = vunpack.c.l.b16 %v2855
    %v3391 = vunpack.c.l.b16 %v2856
    %v3392 = vpack.c.b16 %v3137, %v3136
    %v3393 = vpack.c.b16 %v3139, %v3138
    %v3394 = vpack.c.b16 %v3141, %v3140
    %v3395 = vpack.c.b16 %v3143, %v3142
    %v3396 = vpack.c.b16 %v3145, %v3144
    %v3397 = vpack.c.b16 %v3147, %v3146
    %v3398 = vpack.c.b16 %v3149, %v3148
    %v3399 = vpack.c.b16 %v3151, %v3150
    %v3400 = vpack.c.b16 %v3153, %v3152
    %v3401 = vpack.c.b16 %v3155, %v3154
    %v3402 = vpack.c.b16 %v3157, %v3156
    %v3403 = vpack.c.b16 %v3159, %v3158
    %v3404 = vpack.c.b16 %v3161, %v3160
    %v3405 = vpack.c.b16 %v3163, %v3162
    %v3406 = vpack.c.b16 %v3165, %v3164
    %v3407 = vpack.c.b16 %v3167, %v3166
    %v3408 = vpack.c.b16 %v3169, %v3168
    %v3409 = vpack.c.b16 %v3171, %v3170
    %v3410 = vpack.c.b16 %v3173, %v3172
    %v3411 = vpack.c.b16 %v3175, %v3174
    %v3412 = vpack.c.b16 %v3177, %v3176
    %v3413 = vpack.c.b16 %v3179, %v3178
    %v3414 = vpack.c.b16 %v3181, %v3180
    %v3415 = vpack.c.b16 %v3183, %v3182
    %v3416 = vpack.c.b16 %v3185, %v3184
    %v3417 = vpack.c.b16 %v3187, %v3186
    %v3418 = vpack.c.b16 %v3189, %v3188
    %v3419 = vpack.c.b16 %v3191, %v3190
    %v3420 = vpack.c.b16 %v3193, %v3192
    %v3421 = vpack.c.b16 %v3195, %v3194
    %v3422 = vpack.c.b16 %v3197, %v3196
    %v3423 = vpack.c.b16 %v3199, %v3198
    %v3424 = vpack.c.b16 %v3201, %v3200
    %v3425 = vpack.c.b16 %v3203, %v3202
    %v3426 = vpack.c.b16 %v3205, %v3204
    %v3427 = vpack.c.b16 %v3207, %v3206
    %v3428 = vpack.c.b16 %v3209, %v3208
    %v3429 = vpack.c.b16 %v3211, %v3210
    %v3430 = vpack.c.b16 %v3213, %v3212
    %v3431 = vpack.c.b16 %v3215, %v3214
    %v3432 = vpack.c.b16 %v3217, %v3216
    %v3433 = vpack.c.b16 %v3219, %v3218
    %v3434 = vpack.c.b16 %v3221, %v3220
    %v3435 = vpack.c.b16 %v3223, %v3222
    %v3436 = vpack.c.b16 %v3225, %v3224
    %v3437 = vpack.c.b16 %v3227, %v3226
    %v3438 = vpack.c.b16 %v3229, %v3228
    %v3439 = vpack.c.b16 %v3231, %v3230
    %v3440 = vpack.c.b16 %v3233, %v3232
    %v3441 = vpack.c.b16 %v3235, %v3234
    %v3442 = vpack.c.b16 %v3237, %v3236
    %v3443 = vpack.c.b16 %v3239, %v3238
    %v3444 = vpack.c.b16 %v3241, %v3240
    %v3445 = vpack.c.b16 %v3243, %v3242
    %v3446 = vpack.c.b16 %v3245, %v3244
    %v3447 = vpack.c.b16 %v3247, %v3246
    %v3448 = vpack.c.b16 %v3249, %v3248
    %v3449 = vpack.c.b16 %v3251, %v3250
    %v3450 = vpack.c.b16 %v3253, %v3252
    %v3451 = vpack.c.b16 %v3255, %v3254
    %v3452 = vpack.c.b16 %v3257, %v3256
    %v3453 = vpack.c.b16 %v3259, %v3258
    %v3454 = vpack.c.b16 %v3261, %v3260
    %v3455 = vpack.c.b16 %v3263, %v3262
    %v3456 = vpack.c.b16 %v3265, %v3264
    %v3457 = vpack.c.b16 %v3267, %v3266
    %v3458 = vpack.c.b16 %v3269, %v3268
    %v3459 = vpack.c.b16 %v3271, %v3270
    %v3460 = vpack.c.b16 %v3273, %v3272
    %v3461 = vpack.c.b16 %v3275, %v3274
    %v3462 = vpack.c.b16 %v3277, %v3276
    %v3463 = vpack.c.b16 %v3279, %v3278
    %v3464 = vpack.c.b16 %v3281, %v3280
    %v3465 = vpack.c.b16 %v3283, %v3282
    %v3466 = vpack.c.b16 %v3285, %v3284
    %v3467 = vpack.c.b16 %v3287, %v3286
    %v3468 = vpack.c.b16 %v3289, %v3288
    %v3469 = vpack.c.b16 %v3291, %v3290
    %v3470 = vpack.c.b16 %v3293, %v3292
    %v3471 = vpack.c.b16 %v3295, %v3294
    %v3472 = vpack.c.b16 %v3297, %v3296
    %v3473 = vpack.c.b16 %v3299, %v3298
    %v3474 = vpack.c.b16 %v3301, %v3300
    %v3475 = vpack.c.b16 %v3303, %v3302
    %v3476 = vpack.c.b16 %v3305, %v3304
    %v3477 = vpack.c.b16 %v3307, %v3306
    %v3478 = vpack.c.b16 %v3309, %v3308
    %v3479 = vpack.c.b16 %v3311, %v3310
    %v3480 = vpack.c.b16 %v3313, %v3312
    %v3481 = vpack.c.b16 %v3315, %v3314
    %v3482 = vpack.c.b16 %v3317, %v3316
    %v3483 = vpack.c.b16 %v3319, %v3318
    %v3484 = vpack.c.b16 %v3321, %v3320
    %v3485 = vpack.c.b16 %v3323, %v3322
    %v3486 = vpack.c.b16 %v3325, %v3324
    %v3487 = vpack.c.b16 %v3327, %v3326
    %v3488 = vpack.c.b16 %v3329, %v3328
    %v3489 = vpack.c.b16 %v3331, %v3330
    %v3490 = vpack.c.b16 %v3333, %v3332
    %v3491 = vpack.c.b16 %v3335, %v3334
    %v3492 = vpack.c.b16 %v3337, %v3336
    %v3493 = vpack.c.b16 %v3339, %v3338
    %v3494 = vpack.c.b16 %v3341, %v3340
    %v3495 = vpack.c.b16 %v3343, %v3342
    %v3496 = vpack.c.b16 %v3345, %v3344
    %v3497 = vpack.c.b16 %v3347, %v3346
    %v3498 = vpack.c.b16 %v3349, %v3348
    %v3499 = vpack.c.b16 %v3351, %v3350
    %v3500 = vpack.c.b16 %v3353, %v3352
    %v3501 = vpack.c.b16 %v3355, %v3354
    %v3502 = vpack.c.b16 %v3357, %v3356
    %v3503 = vpack.c.b16 %v3359, %v3358
    %v3504 = vpack.c.b16 %v3361, %v3360
    %v3505 = vpack.c.b16 %v3363, %v3362
    %v3506 = vpack.c.b16 %v3365, %v3364
    %v3507 = vpack.c.b16 %v3367, %v3366
    %v3508 = vpack.c.b16 %v3369, %v3368
    %v3509 = vpack.c.b16 %v3371, %v3370
    %v3510 = vpack.c.b16 %v3373, %v3372
    %v3511 = vpack.c.b16 %v3375, %v3374
    %v3512 = vpack.c.b16 %v3377, %v3376
    %v3513 = vpack.c.b16 %v3379, %v3378
    %v3514 = vpack.c.b16 %v3381, %v3380
    %v3515 = vpack.c.b16 %v3383, %v3382
    %v3516 = vpack.c.b16 %v3385, %v3384
    %v3517 = vpack.c.b16 %v3387, %v3386
    %v3518 = vpack.c.b16 %v3389, %v3388
    %v3519 = vpack.c.b16 %v3391, %v3390
    %3648 = vmatprep.subr.bf16.mxu0 0
    %3649 = vmatpush1.bf16.msra.mxu0 %v3392
    %3650 = vmatprep.subr.bf16.mxu0 0
    %3651 = vmatpush1.bf16.msra.mxu0 %v3393
    %3652 = vmatprep.subr.bf16.mxu0 0
    %3653 = vmatpush1.bf16.msra.mxu0 %v3394
    %3654 = vmatprep.subr.bf16.mxu0 0
    %3655 = vmatpush1.bf16.msra.mxu0 %v3395
    %3656 = vmatprep.subr.bf16.mxu0 0
    %3657 = vmatpush1.bf16.msra.mxu0 %v3396
    %3658 = vmatprep.subr.bf16.mxu0 0
    %3659 = vmatpush1.bf16.msra.mxu0 %v3397
    %3660 = vmatprep.subr.bf16.mxu0 0
    %3661 = vmatpush1.bf16.msra.mxu0 %v3398
    %3662 = vmatprep.subr.bf16.mxu0 0
    %3663 = vmatpush1.bf16.msra.mxu0 %v3399
    %3664 = vmatprep.subr.bf16.mxu0 0
    %3665 = vmatpush1.bf16.msra.mxu0 %v3400
    %3666 = vmatprep.subr.bf16.mxu0 0
    %3667 = vmatpush1.bf16.msra.mxu0 %v3401
    %3668 = vmatprep.subr.bf16.mxu0 0
    %3669 = vmatpush1.bf16.msra.mxu0 %v3402
    %3670 = vmatprep.subr.bf16.mxu0 0
    %3671 = vmatpush1.bf16.msra.mxu0 %v3403
    %3672 = vmatprep.subr.bf16.mxu0 0
    %3673 = vmatpush1.bf16.msra.mxu0 %v3404
    %3674 = vmatprep.subr.bf16.mxu0 0
    %3675 = vmatpush1.bf16.msra.mxu0 %v3405
    %3676 = vmatprep.subr.bf16.mxu0 0
    %3677 = vmatpush1.bf16.msra.mxu0 %v3406
    %3678 = vmatprep.subr.bf16.mxu0 0
    %3679 = vmatpush1.bf16.msra.mxu0 %v3407
    %3680 = vmatprep.mubr.bf16.mxu0 %v2859
    %3681 = vmatmul.mubr.bf16.gmra.mrb[0].mxu0 %v2858
    %v3682 = vpop.f32.mrb[0].mxu0
    %v3683 = vadd.f32 %v2878, %v3682
    %v3684 = vpop.f32.mrb[0].mxu0
    %v3685 = vpop.f32.mrb[0].mxu0
    %v3686 = vadd.f32 %v2878, %v3685
    %v3687 = vpop.f32.mrb[0].mxu0
    %3688 = vdwg.mxu0
    %3689 = vmatprep.subr.bf16.mxu0 0
    %3690 = vmatpush1.bf16.msra.mxu0 %v3408
    %3691 = vmatprep.subr.bf16.mxu0 0
    %3692 = vmatpush1.bf16.msra.mxu0 %v3409
    %3693 = vmatprep.subr.bf16.mxu0 0
    %3694 = vmatpush1.bf16.msra.mxu0 %v3410
    %3695 = vmatprep.subr.bf16.mxu0 0
    %3696 = vmatpush1.bf16.msra.mxu0 %v3411
    %3697 = vmatprep.subr.bf16.mxu0 0
    %3698 = vmatpush1.bf16.msra.mxu0 %v3412
    %3699 = vmatprep.subr.bf16.mxu0 0
    %3700 = vmatpush1.bf16.msra.mxu0 %v3413
    %3701 = vmatprep.subr.bf16.mxu0 0
    %3702 = vmatpush1.bf16.msra.mxu0 %v3414
    %3703 = vmatprep.subr.bf16.mxu0 0
    %3704 = vmatpush1.bf16.msra.mxu0 %v3415
    %3705 = vmatprep.subr.bf16.mxu0 0
    %3706 = vmatpush1.bf16.msra.mxu0 %v3416
    %3707 = vmatprep.subr.bf16.mxu0 0
    %3708 = vmatpush1.bf16.msra.mxu0 %v3417
    %3709 = vmatprep.subr.bf16.mxu0 0
    %3710 = vmatpush1.bf16.msra.mxu0 %v3418
    %3711 = vmatprep.subr.bf16.mxu0 0
    %3712 = vmatpush1.bf16.msra.mxu0 %v3419
    %3713 = vmatprep.subr.bf16.mxu0 0
    %3714 = vmatpush1.bf16.msra.mxu0 %v3420
    %3715 = vmatprep.subr.bf16.mxu0 0
    %3716 = vmatpush1.bf16.msra.mxu0 %v3421
    %3717 = vmatprep.subr.bf16.mxu0 0
    %3718 = vmatpush1.bf16.msra.mxu0 %v3422
    %3719 = vmatprep.subr.bf16.mxu0 0
    %3720 = vmatpush1.bf16.msra.mxu0 %v3423
    %3721 = vmatprep.mubr.bf16.mxu0 %v2861
    %3722 = vmatmul.mubr.bf16.gmra.mrb[0].mxu0 %v2860
    %v3723 = vpop.f32.mrb[0].mxu0
    %v3724 = vadd.f32 %v3683, %v3723
    %v3725 = vpop.f32.mrb[0].mxu0
    %v3726 = vpop.f32.mrb[0].mxu0
    %v3727 = vadd.f32 %v3686, %v3726
    %v3728 = vpop.f32.mrb[0].mxu0
    %3729 = vdwg.mxu0
    %3730 = vmatprep.subr.bf16.mxu0 0
    %3731 = vmatpush1.bf16.msra.mxu0 %v3424
    %3732 = vmatprep.subr.bf16.mxu0 0
    %3733 = vmatpush1.bf16.msra.mxu0 %v3425
    %3734 = vmatprep.subr.bf16.mxu0 0
    %3735 = vmatpush1.bf16.msra.mxu0 %v3426
    %3736 = vmatprep.subr.bf16.mxu0 0
    %3737 = vmatpush1.bf16.msra.mxu0 %v3427
    %3738 = vmatprep.subr.bf16.mxu0 0
    %3739 = vmatpush1.bf16.msra.mxu0 %v3428
    %3740 = vmatprep.subr.bf16.mxu0 0
    %3741 = vmatpush1.bf16.msra.mxu0 %v3429
    %3742 = vmatprep.subr.bf16.mxu0 0
    %3743 = vmatpush1.bf16.msra.mxu0 %v3430
    %3744 = vmatprep.subr.bf16.mxu0 0
    %3745 = vmatpush1.bf16.msra.mxu0 %v3431
    %3746 = vmatprep.subr.bf16.mxu0 0
    %3747 = vmatpush1.bf16.msra.mxu0 %v3432
    %3748 = vmatprep.subr.bf16.mxu0 0
    %3749 = vmatpush1.bf16.msra.mxu0 %v3433
    %3750 = vmatprep.subr.bf16.mxu0 0
    %3751 = vmatpush1.bf16.msra.mxu0 %v3434
    %3752 = vmatprep.subr.bf16.mxu0 0
    %3753 = vmatpush1.bf16.msra.mxu0 %v3435
    %3754 = vmatprep.subr.bf16.mxu0 0
    %3755 = vmatpush1.bf16.msra.mxu0 %v3436
    %3756 = vmatprep.subr.bf16.mxu0 0
    %3757 = vmatpush1.bf16.msra.mxu0 %v3437
    %3758 = vmatprep.subr.bf16.mxu0 0
    %3759 = vmatpush1.bf16.msra.mxu0 %v3438
    %3760 = vmatprep.subr.bf16.mxu0 0
    %3761 = vmatpush1.bf16.msra.mxu0 %v3439
    %3762 = vmatprep.mubr.bf16.mxu0 %v2863
    %3763 = vmatmul.mubr.bf16.gmra.mrb[0].mxu0 %v2862
    %v3764 = vpop.f32.mrb[0].mxu0
    %v3765 = vadd.f32 %v3724, %v3764
    %v3766 = vpop.f32.mrb[0].mxu0
    %v3767 = vpop.f32.mrb[0].mxu0
    %v3768 = vadd.f32 %v3727, %v3767
    %v3769 = vpop.f32.mrb[0].mxu0
    %3770 = vdwg.mxu0
    %3771 = vmatprep.subr.bf16.mxu0 0
    %3772 = vmatpush1.bf16.msra.mxu0 %v3440
    %3773 = vmatprep.subr.bf16.mxu0 0
    %3774 = vmatpush1.bf16.msra.mxu0 %v3441
    %3775 = vmatprep.subr.bf16.mxu0 0
    %3776 = vmatpush1.bf16.msra.mxu0 %v3442
    %3777 = vmatprep.subr.bf16.mxu0 0
    %3778 = vmatpush1.bf16.msra.mxu0 %v3443
    %3779 = vmatprep.subr.bf16.mxu0 0
    %3780 = vmatpush1.bf16.msra.mxu0 %v3444
    %3781 = vmatprep.subr.bf16.mxu0 0
    %3782 = vmatpush1.bf16.msra.mxu0 %v3445
    %3783 = vmatprep.subr.bf16.mxu0 0
    %3784 = vmatpush1.bf16.msra.mxu0 %v3446
    %3785 = vmatprep.subr.bf16.mxu0 0
    %3786 = vmatpush1.bf16.msra.mxu0 %v3447
    %3787 = vmatprep.subr.bf16.mxu0 0
    %3788 = vmatpush1.bf16.msra.mxu0 %v3448
    %3789 = vmatprep.subr.bf16.mxu0 0
    %3790 = vmatpush1.bf16.msra.mxu0 %v3449
    %3791 = vmatprep.subr.bf16.mxu0 0
    %3792 = vmatpush1.bf16.msra.mxu0 %v3450
    %3793 = vmatprep.subr.bf16.mxu0 0
    %3794 = vmatpush1.bf16.msra.mxu0 %v3451
    %3795 = vmatprep.subr.bf16.mxu0 0
    %3796 = vmatpush1.bf16.msra.mxu0 %v3452
    %3797 = vmatprep.subr.bf16.mxu0 0
    %3798 = vmatpush1.bf16.msra.mxu0 %v3453
    %3799 = vmatprep.subr.bf16.mxu0 0
    %3800 = vmatpush1.bf16.msra.mxu0 %v3454
    %3801 = vmatprep.subr.bf16.mxu0 0
    %3802 = vmatpush1.bf16.msra.mxu0 %v3455
    %3803 = vmatprep.mubr.bf16.mxu0 %v2865
    %3804 = vmatmul.mubr.bf16.gmra.mrb[0].mxu0 %v2864
    %v3805 = vpop.f32.mrb[0].mxu0
    %v3806 = vadd.f32 %v3765, %v3805
    %v3807 = vpop.f32.mrb[0].mxu0
    %v3808 = vpop.f32.mrb[0].mxu0
    %v3809 = vadd.f32 %v3768, %v3808
    %v3810 = vpop.f32.mrb[0].mxu0
    %3811 = vdwg.mxu0
    %3812 = vmatprep.subr.bf16.mxu0 0
    %3813 = vmatpush1.bf16.msra.mxu0 %v3456
    %3814 = vmatprep.subr.bf16.mxu0 0
    %3815 = vmatpush1.bf16.msra.mxu0 %v3457
    %3816 = vmatprep.subr.bf16.mxu0 0
    %3817 = vmatpush1.bf16.msra.mxu0 %v3458
    %3818 = vmatprep.subr.bf16.mxu0 0
    %3819 = vmatpush1.bf16.msra.mxu0 %v3459
    %3820 = vmatprep.subr.bf16.mxu0 0
    %3821 = vmatpush1.bf16.msra.mxu0 %v3460
    %3822 = vmatprep.subr.bf16.mxu0 0
    %3823 = vmatpush1.bf16.msra.mxu0 %v3461
    %3824 = vmatprep.subr.bf16.mxu0 0
    %3825 = vmatpush1.bf16.msra.mxu0 %v3462
    %3826 = vmatprep.subr.bf16.mxu0 0
    %3827 = vmatpush1.bf16.msra.mxu0 %v3463
    %3828 = vmatprep.subr.bf16.mxu0 0
    %3829 = vmatpush1.bf16.msra.mxu0 %v3464
    %3830 = vmatprep.subr.bf16.mxu0 0
    %3831 = vmatpush1.bf16.msra.mxu0 %v3465
    %3832 = vmatprep.subr.bf16.mxu0 0
    %3833 = vmatpush1.bf16.msra.mxu0 %v3466
    %3834 = vmatprep.subr.bf16.mxu0 0
    %3835 = vmatpush1.bf16.msra.mxu0 %v3467
    %3836 = vmatprep.subr.bf16.mxu0 0
    %3837 = vmatpush1.bf16.msra.mxu0 %v3468
    %3838 = vmatprep.subr.bf16.mxu0 0
    %3839 = vmatpush1.bf16.msra.mxu0 %v3469
    %3840 = vmatprep.subr.bf16.mxu0 0
    %3841 = vmatpush1.bf16.msra.mxu0 %v3470
    %3842 = vmatprep.subr.bf16.mxu0 0
    %3843 = vmatpush1.bf16.msra.mxu0 %v3471
    %3844 = vmatprep.mubr.bf16.mxu0 %v2867
    %3845 = vmatmul.mubr.bf16.gmra.mrb[0].mxu0 %v2866
    %v3846 = vpop.f32.mrb[0].mxu0
    %v3847 = vadd.f32 %v3806, %v3846
    %v3848 = vpop.f32.mrb[0].mxu0
    %v3849 = vpop.f32.mrb[0].mxu0
    %v3850 = vadd.f32 %v3809, %v3849
    %v3851 = vpop.f32.mrb[0].mxu0
    %3852 = vdwg.mxu0
    %3853 = vmatprep.subr.bf16.mxu0 0
    %3854 = vmatpush1.bf16.msra.mxu0 %v3472
    %3855 = vmatprep.subr.bf16.mxu0 0
    %3856 = vmatpush1.bf16.msra.mxu0 %v3473
    %3857 = vmatprep.subr.bf16.mxu0 0
    %3858 = vmatpush1.bf16.msra.mxu0 %v3474
    %3859 = vmatprep.subr.bf16.mxu0 0
    %3860 = vmatpush1.bf16.msra.mxu0 %v3475
    %3861 = vmatprep.subr.bf16.mxu0 0
    %3862 = vmatpush1.bf16.msra.mxu0 %v3476
    %3863 = vmatprep.subr.bf16.mxu0 0
    %3864 = vmatpush1.bf16.msra.mxu0 %v3477
    %3865 = vmatprep.subr.bf16.mxu0 0
    %3866 = vmatpush1.bf16.msra.mxu0 %v3478
    %3867 = vmatprep.subr.bf16.mxu0 0
    %3868 = vmatpush1.bf16.msra.mxu0 %v3479
    %3869 = vmatprep.subr.bf16.mxu0 0
    %3870 = vmatpush1.bf16.msra.mxu0 %v3480
    %3871 = vmatprep.subr.bf16.mxu0 0
    %3872 = vmatpush1.bf16.msra.mxu0 %v3481
    %3873 = vmatprep.subr.bf16.mxu0 0
    %3874 = vmatpush1.bf16.msra.mxu0 %v3482
    %3875 = vmatprep.subr.bf16.mxu0 0
    %3876 = vmatpush1.bf16.msra.mxu0 %v3483
    %3877 = vmatprep.subr.bf16.mxu0 0
    %3878 = vmatpush1.bf16.msra.mxu0 %v3484
    %3879 = vmatprep.subr.bf16.mxu0 0
    %3880 = vmatpush1.bf16.msra.mxu0 %v3485
    %3881 = vmatprep.subr.bf16.mxu0 0
    %3882 = vmatpush1.bf16.msra.mxu0 %v3486
    %3883 = vmatprep.subr.bf16.mxu0 0
    %3884 = vmatpush1.bf16.msra.mxu0 %v3487
    %3885 = vmatprep.mubr.bf16.mxu0 %v2869
    %3886 = vmatmul.mubr.bf16.gmra.mrb[0].mxu0 %v2868
    %v3887 = vpop.f32.mrb[0].mxu0
    %v3888 = vadd.f32 %v3847, %v3887
    %v3889 = vpop.f32.mrb[0].mxu0
    %v3890 = vpop.f32.mrb[0].mxu0
    %v3891 = vadd.f32 %v3850, %v3890
    %v3892 = vpop.f32.mrb[0].mxu0
    %3893 = vdwg.mxu0
    %3894 = vmatprep.subr.bf16.mxu0 0
    %3895 = vmatpush1.bf16.msra.mxu0 %v3488
    %3896 = vmatprep.subr.bf16.mxu0 0
    %3897 = vmatpush1.bf16.msra.mxu0 %v3489
    %3898 = vmatprep.subr.bf16.mxu0 0
    %3899 = vmatpush1.bf16.msra.mxu0 %v3490
    %3900 = vmatprep.subr.bf16.mxu0 0
    %3901 = vmatpush1.bf16.msra.mxu0 %v3491
    %3902 = vmatprep.subr.bf16.mxu0 0
    %3903 = vmatpush1.bf16.msra.mxu0 %v3492
    %3904 = vmatprep.subr.bf16.mxu0 0
    %3905 = vmatpush1.bf16.msra.mxu0 %v3493
    %3906 = vmatprep.subr.bf16.mxu0 0
    %3907 = vmatpush1.bf16.msra.mxu0 %v3494
    %3908 = vmatprep.subr.bf16.mxu0 0
    %3909 = vmatpush1.bf16.msra.mxu0 %v3495
    %3910 = vmatprep.subr.bf16.mxu0 0
    %3911 = vmatpush1.bf16.msra.mxu0 %v3496
    %3912 = vmatprep.subr.bf16.mxu0 0
    %3913 = vmatpush1.bf16.msra.mxu0 %v3497
    %3914 = vmatprep.subr.bf16.mxu0 0
    %3915 = vmatpush1.bf16.msra.mxu0 %v3498
    %3916 = vmatprep.subr.bf16.mxu0 0
    %3917 = vmatpush1.bf16.msra.mxu0 %v3499
    %3918 = vmatprep.subr.bf16.mxu0 0
    %3919 = vmatpush1.bf16.msra.mxu0 %v3500
    %3920 = vmatprep.subr.bf16.mxu0 0
    %3921 = vmatpush1.bf16.msra.mxu0 %v3501
    %3922 = vmatprep.subr.bf16.mxu0 0
    %3923 = vmatpush1.bf16.msra.mxu0 %v3502
    %3924 = vmatprep.subr.bf16.mxu0 0
    %3925 = vmatpush1.bf16.msra.mxu0 %v3503
    %3926 = vmatprep.mubr.bf16.mxu0 %v2871
    %3927 = vmatmul.mubr.bf16.gmra.mrb[0].mxu0 %v2870
    %v3928 = vpop.f32.mrb[0].mxu0
    %v3929 = vadd.f32 %v3888, %v3928
    %v3930 = vpop.f32.mrb[0].mxu0
    %v3931 = vpop.f32.mrb[0].mxu0
    %v3932 = vadd.f32 %v3891, %v3931
    %v3933 = vpop.f32.mrb[0].mxu0
    %3934 = vdwg.mxu0
    %3935 = vmatprep.subr.bf16.mxu0 0
    %3936 = vmatpush1.bf16.msra.mxu0 %v3504
    %3937 = vmatprep.subr.bf16.mxu0 0
    %3938 = vmatpush1.bf16.msra.mxu0 %v3505
    %3939 = vmatprep.subr.bf16.mxu0 0
    %3940 = vmatpush1.bf16.msra.mxu0 %v3506
    %3941 = vmatprep.subr.bf16.mxu0 0
    %3942 = vmatpush1.bf16.msra.mxu0 %v3507
    %3943 = vmatprep.subr.bf16.mxu0 0
    %3944 = vmatpush1.bf16.msra.mxu0 %v3508
    %3945 = vmatprep.subr.bf16.mxu0 0
    %3946 = vmatpush1.bf16.msra.mxu0 %v3509
    %3947 = vmatprep.subr.bf16.mxu0 0
    %3948 = vmatpush1.bf16.msra.mxu0 %v3510
    %3949 = vmatprep.subr.bf16.mxu0 0
    %3950 = vmatpush1.bf16.msra.mxu0 %v3511
    %3951 = vmatprep.subr.bf16.mxu0 0
    %3952 = vmatpush1.bf16.msra.mxu0 %v3512
    %3953 = vmatprep.subr.bf16.mxu0 0
    %3954 = vmatpush1.bf16.msra.mxu0 %v3513
    %3955 = vmatprep.subr.bf16.mxu0 0
    %3956 = vmatpush1.bf16.msra.mxu0 %v3514
    %3957 = vmatprep.subr.bf16.mxu0 0
    %3958 = vmatpush1.bf16.msra.mxu0 %v3515
    %3959 = vmatprep.subr.bf16.mxu0 0
    %3960 = vmatpush1.bf16.msra.mxu0 %v3516
    %3961 = vmatprep.subr.bf16.mxu0 0
    %3962 = vmatpush1.bf16.msra.mxu0 %v3517
    %3963 = vmatprep.subr.bf16.mxu0 0
    %3964 = vmatpush1.bf16.msra.mxu0 %v3518
    %3965 = vmatprep.subr.bf16.mxu0 0
    %3966 = vmatpush1.bf16.msra.mxu0 %v3519
    %3967 = vmatprep.mubr.bf16.mxu0 %v2873
    %3968 = vmatmul.mubr.bf16.gmra.mrb[0].mxu0 %v2872
    %v3969 = vpop.f32.mrb[0].mxu0
    %v3970 = vadd.f32 %v3929, %v3969
    %v3971 = vpop.f32.mrb[0].mxu0
    %v3972 = vpop.f32.mrb[0].mxu0
    %v3973 = vadd.f32 %v3932, %v3972
    %v3974 = vpop.f32.mrb[0].mxu0
    %3975 = vdwg.mxu0
    %v3976 = vadd.f32 %v1943, %v3970
    %v3977 = vadd.f32 %v1944, %v3973
    %v3978 = vld [vmem:[%s13] sm:$0x1]
    %v3979 = vld [vmem:[%s14] sm:$0x1]
    %v3980 = vsel %vm148, %v3976, 0.0
    %3981 = vadd.xlane.f32.xlu0 %v3980
    %v3982 = vpop.xlane.xlu0 %3981
    %v3983 = vsel %vm148, %v3977, 0.0
    %3984 = vadd.xlane.f32.xlu0 %v3983
    %v3985 = vpop.xlane.xlu0 %3984
    %v3986 = vmul.f32 %v3982, %v1908
    %v3987 = vmul.f32 %v3985, %v1908
    %v3988 = vsub.f32 %v3976, %v3986
    %v3989 = vsub.f32 %v3977, %v3987
    %v3990 = vmul.f32 %v3988, %v3988
    %v3991 = vmul.f32 %v3989, %v3989
    %v3992 = vsel %vm148, %v3990, 0.0
    %3993 = vadd.xlane.f32.xlu0 %v3992
    %v3994 = vpop.xlane.xlu0 %3993
    %v3995 = vsel %vm148, %v3991, 0.0
    %3996 = vadd.xlane.f32.xlu0 %v3995
    %v3997 = vpop.xlane.xlu0 %3996
    %v3998 = vmul.f32 %v3994, %v1908
    %v3999 = vmul.f32 %v3997, %v1908
    %v4000 = vadd.f32 %v3998, 1e-05
    %v4001 = vadd.f32 %v3999, 1e-05
    %v4002 = vrsqrt.pop %v4000
    %v4003 = vrsqrt.pop %v4001
    %v4004 = vmul.f32 %v3988, %v4002
    %v4005 = vmul.f32 %v3989, %v4003
    %v4007 = vlaneseq
    %v4008 = vshrl.u32 %v4007, 7
    %v4009 = vsub.s32 0, %v4008
    %v4010 = vrot.slane %v3978, %v4009
    %v4012 = vmul.f32 %v4004, %v4010
    %v4013 = vmul.f32 %v4005, %v4010
    %v4015 = vlaneseq
    %v4016 = vshrl.u32 %v4015, 7
    %v4017 = vsub.s32 0, %v4016
    %v4018 = vrot.slane %v3979, %v4017
    %v4020 = vadd.f32 %v4012, %v4018
    %v4021 = vadd.f32 %v4013, %v4018
    %s4022 = scalar_lea.vmem %s3, 16
    %v4023 = vld [vmem:[%s4022] sm:$0xf]
    %v4024 = vld [vmem:[%s4022 + $0x4] sm:$0xf]
    %v4025 = vld [vmem:[%s4022 + $0x8] sm:$0xf]
    %v4026 = vld [vmem:[%s4022 + $0xc] sm:$0xf]
    %s4027 = scalar_lea.vmem %s4, 1
    %v4028 = vld [vmem:[%s4027] sm:$0x1]
    %v4029 = vpack.c.bf16 %v4021, %v4020
    %v4031 = vlaneseq
    %v4032 = vshrl.u32 %v4031, 7
    %v4033 = vsub.s32 0, %v4032
    %v4034 = vrot.slane %v4028, %v4033
    %v4040 = vunpack.c.l.b16 %v4023
    %v4041 = vunpack.c.l.b16 %v4024
    %v4042 = vunpack.c.l.b16 %v4025
    %v4043 = vunpack.c.l.b16 %v4026
    %v4044 = vpack.c.b16 %v4041, %v4040
    %v4045 = vpack.c.b16 %v4043, %v4042
    %v4049 = vsel %vm148, %v4029, 0
    %4051 = vmatprep.subr.bf16.mxu0 0
    %4052 = vmatpush1.bf16.msra.mxu0 %v4044
    %4053 = vmatprep.subr.bf16.mxu0 0
    %4054 = vmatpush1.bf16.msra.mxu0 %v4045
    %4055 = vmatprep.subr.bf16.mxu0 0
    %4056 = vmatpush1.bf16.msra.mxu0 0
    %4057 = vmatprep.subr.bf16.mxu0 0
    %4058 = vmatpush1.bf16.msra.mxu0 0
    %4059 = vmatprep.subr.bf16.mxu0 0
    %4060 = vmatpush1.bf16.msra.mxu0 0
    %4061 = vmatprep.subr.bf16.mxu0 0
    %4062 = vmatpush1.bf16.msra.mxu0 0
    %4063 = vmatprep.subr.bf16.mxu0 0
    %4064 = vmatpush1.bf16.msra.mxu0 0
    %4065 = vmatprep.subr.bf16.mxu0 0
    %4066 = vmatpush1.bf16.msra.mxu0 0
    %4067 = vmatprep.subr.bf16.mxu0 0
    %4068 = vmatpush1.bf16.msra.mxu0 0
    %4069 = vmatprep.subr.bf16.mxu0 0
    %4070 = vmatpush1.bf16.msra.mxu0 0
    %4071 = vmatprep.subr.bf16.mxu0 0
    %4072 = vmatpush1.bf16.msra.mxu0 0
    %4073 = vmatprep.subr.bf16.mxu0 0
    %4074 = vmatpush1.bf16.msra.mxu0 0
    %4075 = vmatprep.subr.bf16.mxu0 0
    %4076 = vmatpush1.bf16.msra.mxu0 0
    %4077 = vmatprep.subr.bf16.mxu0 0
    %4078 = vmatpush1.bf16.msra.mxu0 0
    %4079 = vmatprep.subr.bf16.mxu0 0
    %4080 = vmatpush1.bf16.msra.mxu0 0
    %4081 = vmatprep.subr.bf16.mxu0 0
    %4082 = vmatpush1.bf16.msra.mxu0 0
    %4083 = vmatprep.mubr.bf16.mxu0 0
    %4084 = vmatmul.mubr.bf16.gmra.mrb[0].mxu0 %v4049
    %v4085 = vpop.f32.mrb[0].mxu0
    %v4086 = vadd.f32 %v4034, %v4085
    %v4087 = vpop.f32.mrb[0].mxu0
    %v4088 = vpop.f32.mrb[0].mxu0
    %v4089 = vadd.f32 %v4034, %v4088
    %v4090 = vpop.f32.mrb[0].mxu0
    %4091 = vdwg.mxu0
    %v4092 = vmul.f32 %v4086, 0.35355338
    %v4093 = vmul.f32 %v4089, 0.35355338
    %s4094 = scalar_lea.vmem %s5, 16
    %v4095 = vld [vmem:[%s4094] sm:$0xf]
    %v4096 = vld [vmem:[%s4094 + $0x4] sm:$0xf]
    %v4097 = vld [vmem:[%s4094 + $0x8] sm:$0xf]
    %v4098 = vld [vmem:[%s4094 + $0xc] sm:$0xf]
    %s4099 = scalar_lea.vmem %s6, 1
    %v4100 = vld [vmem:[%s4099] sm:$0x1]
    %4102 = vrot.lane.b32.xlu0 %v4086, 96
    %v4103 = vpop.permute.xlu0 %4102
    %v4105 = vsel %vm203, %v4092, 0
    %v4107 = vsel %vm203, %v4103, 0
    %4109 = vmatprep.subr.mxu0 0.0
    %4110 = vmatpush1.xpose.msra.mxu0 %v4107
    %4111 = vmatprep.subr.mxu0 0.0
    %4112 = vmatpush1.xpose.msra.mxu0 0.0
    %4113 = vmatprep.subr.mxu0 0.0
    %4114 = vmatpush1.xpose.msra.mxu0 0.0
    %4115 = vmatprep.subr.mxu0 0.0
    %4116 = vmatpush1.xpose.msra.mxu0 0.0
    %4117 = vmatprep.subr.mxu0 0.0
    %4118 = vmatpush1.xpose.msra.mxu0 0.0
    %4119 = vmatprep.subr.mxu0 0.0
    %4120 = vmatpush1.xpose.msra.mxu0 0.0
    %4121 = vmatprep.subr.mxu0 0.0
    %4122 = vmatpush1.xpose.msra.mxu0 0.0
    %4123 = vmatprep.subr.mxu0 0.0
    %4124 = vmatpush1.xpose.msra.mxu0 0.0
    %4125 = vmatprep.subr.mxu0 0.0
    %4126 = vmatpush1.xpose.msra.mxu0 0.0
    %4127 = vmatprep.subr.mxu0 0.0
    %4128 = vmatpush1.xpose.msra.mxu0 0.0
    %4129 = vmatprep.subr.mxu0 0.0
    %4130 = vmatpush1.xpose.msra.mxu0 0.0
    %4131 = vmatprep.subr.mxu0 0.0
    %4132 = vmatpush1.xpose.msra.mxu0 0.0
    %4133 = vmatprep.subr.mxu0 0.0
    %4134 = vmatpush1.xpose.msra.mxu0 0.0
    %4135 = vmatprep.subr.mxu0 0.0
    %4136 = vmatpush1.xpose.msra.mxu0 0.0
    %4137 = vmatprep.subr.mxu0 0.0
    %4138 = vmatpush1.xpose.msra.mxu0 0.0
    %4139 = vmatprep.subr.mxu0 0.0
    %4140 = vmatpush1.xpose.msra.mxu0 0.0
    %4141 = vmatprep.subr.mxu0 0.0
    %4142 = vmatpush1.xpose.msra.mxu0 0.0
    %4143 = vmatprep.subr.mxu0 0.0
    %4144 = vmatpush1.xpose.msra.mxu0 0.0
    %4145 = vmatprep.subr.mxu0 0.0
    %4146 = vmatpush1.xpose.msra.mxu0 0.0
    %4147 = vmatprep.subr.mxu0 0.0
    %4148 = vmatpush1.xpose.msra.mxu0 0.0
    %4149 = vmatprep.subr.mxu0 0.0
    %4150 = vmatpush1.xpose.msra.mxu0 0.0
    %4151 = vmatprep.subr.mxu0 0.0
    %4152 = vmatpush1.xpose.msra.mxu0 0.0
    %4153 = vmatprep.subr.mxu0 0.0
    %4154 = vmatpush1.xpose.msra.mxu0 0.0
    %4155 = vmatprep.subr.mxu0 0.0
    %4156 = vmatpush1.xpose.msra.mxu0 0.0
    %4157 = vmatprep.subr.mxu0 0.0
    %4158 = vmatpush1.xpose.msra.mxu0 0.0
    %4159 = vmatprep.subr.mxu0 0.0
    %4160 = vmatpush1.xpose.msra.mxu0 0.0
    %4161 = vmatprep.subr.mxu0 0.0
    %4162 = vmatpush1.xpose.msra.mxu0 0.0
    %4163 = vmatprep.subr.mxu0 0.0
    %4164 = vmatpush1.xpose.msra.mxu0 0.0
    %4165 = vmatprep.subr.mxu0 0.0
    %4166 = vmatpush1.xpose.msra.mxu0 0.0
    %4167 = vmatprep.subr.mxu0 0.0
    %4168 = vmatpush1.xpose.msra.mxu0 0.0
    %4169 = vmatprep.subr.mxu0 0.0
    %4170 = vmatpush1.xpose.msra.mxu0 0.0
    %4171 = vmatprep.subr.mxu0 0.0
    %4172 = vmatpush1.xpose.msra.mxu0 0.0
    %4173 = vmatprep.mubr.f32.mxu0 0.0
    %4174 = vmatmul.mubr.f32.gmra.mrb[0].mxu0 %v4105
    %v4175 = vpop.f32.mrb[0].mxu0
    %v4176 = vadd.f32 0.0, %v4175
    %v4177 = vpop.f32.mrb[0].mxu0
    %4178 = vdwg.mxu0
    %v4179 = vsel %vm203, %v4176, -inf
    %4180 = vmax.xlane.f32.xlu0 %v4179
    %v4181 = vpop.xlane.xlu0 %4180
    %v4182 = vsub.f32 %v4176, %v4181
    %v4183 = vmul.f32 %v4182, 1.442695
    %v4184 = vpow.pop %v4183
    %v4185 = vsel %vm203, %v4184, 0.0
    %4186 = vadd.xlane.f32.xlu0 %v4185
    %v4187 = vpop.xlane.xlu0 %4186
    %v4188 = vrcp.pop %v4187
    %v4189 = vmul.f32 %v4184, %v4188
    %4190 = vrot.lane.b32.xlu0 %v4086, 64
    %v4191 = vpop.permute.xlu0 %4190
    %v4194 = vsel %vm203, %v4189, 0
    %4196 = vmatprep.subr.mxu0 0.0
    %4197 = vmatpush1.msra.mxu0 %v4191
    %4198 = vmatprep.subr.mxu0 0.0
    %4199 = vmatpush1.msra.mxu0 0.0
    %4200 = vmatprep.subr.mxu0 0.0
    %4201 = vmatpush1.msra.mxu0 0.0
    %4202 = vmatprep.subr.mxu0 0.0
    %4203 = vmatpush1.msra.mxu0 0.0
    %4204 = vmatprep.subr.mxu0 0.0
    %4205 = vmatpush1.msra.mxu0 0.0
    %4206 = vmatprep.subr.mxu0 0.0
    %4207 = vmatpush1.msra.mxu0 0.0
    %4208 = vmatprep.subr.mxu0 0.0
    %4209 = vmatpush1.msra.mxu0 0.0
    %4210 = vmatprep.subr.mxu0 0.0
    %4211 = vmatpush1.msra.mxu0 0.0
    %4212 = vmatprep.subr.mxu0 0.0
    %4213 = vmatpush1.msra.mxu0 0.0
    %4214 = vmatprep.subr.mxu0 0.0
    %4215 = vmatpush1.msra.mxu0 0.0
    %4216 = vmatprep.subr.mxu0 0.0
    %4217 = vmatpush1.msra.mxu0 0.0
    %4218 = vmatprep.subr.mxu0 0.0
    %4219 = vmatpush1.msra.mxu0 0.0
    %4220 = vmatprep.subr.mxu0 0.0
    %4221 = vmatpush1.msra.mxu0 0.0
    %4222 = vmatprep.subr.mxu0 0.0
    %4223 = vmatpush1.msra.mxu0 0.0
    %4224 = vmatprep.subr.mxu0 0.0
    %4225 = vmatpush1.msra.mxu0 0.0
    %4226 = vmatprep.subr.mxu0 0.0
    %4227 = vmatpush1.msra.mxu0 0.0
    %4228 = vmatprep.subr.mxu0 0.0
    %4229 = vmatpush1.msra.mxu0 0.0
    %4230 = vmatprep.subr.mxu0 0.0
    %4231 = vmatpush1.msra.mxu0 0.0
    %4232 = vmatprep.subr.mxu0 0.0
    %4233 = vmatpush1.msra.mxu0 0.0
    %4234 = vmatprep.subr.mxu0 0.0
    %4235 = vmatpush1.msra.mxu0 0.0
    %4236 = vmatprep.subr.mxu0 0.0
    %4237 = vmatpush1.msra.mxu0 0.0
    %4238 = vmatprep.subr.mxu0 0.0
    %4239 = vmatpush1.msra.mxu0 0.0
    %4240 = vmatprep.subr.mxu0 0.0
    %4241 = vmatpush1.msra.mxu0 0.0
    %4242 = vmatprep.subr.mxu0 0.0
    %4243 = vmatpush1.msra.mxu0 0.0
    %4244 = vmatprep.subr.mxu0 0.0
    %4245 = vmatpush1.msra.mxu0 0.0
    %4246 = vmatprep.subr.mxu0 0.0
    %4247 = vmatpush1.msra.mxu0 0.0
    %4248 = vmatprep.subr.mxu0 0.0
    %4249 = vmatpush1.msra.mxu0 0.0
    %4250 = vmatprep.subr.mxu0 0.0
    %4251 = vmatpush1.msra.mxu0 0.0
    %4252 = vmatprep.subr.mxu0 0.0
    %4253 = vmatpush1.msra.mxu0 0.0
    %4254 = vmatprep.subr.mxu0 0.0
    %4255 = vmatpush1.msra.mxu0 0.0
    %4256 = vmatprep.subr.mxu0 0.0
    %4257 = vmatpush1.msra.mxu0 0.0
    %4258 = vmatprep.subr.mxu0 0.0
    %4259 = vmatpush1.msra.mxu0 0.0
    %4260 = vmatprep.mubr.f32.mxu0 0.0
    %4261 = vmatmul.mubr.f32.gmra.mrb[0].mxu0 %v4194
    %v4262 = vpop.f32.mrb[0].mxu0
    %v4263 = vadd.f32 0.0, %v4262
    %v4264 = vpop.f32.mrb[0].mxu0
    %4265 = vdwg.mxu0
    %v4266 = vpack.c.bf16 %v4263, %v4263
    %4267 = vrot.lane.b32.xlu0 %v4092, 120
    %v4268 = vpop.permute.xlu0 %4267
    %4269 = vrot.lane.b32.xlu0 %v4086, 88
    %v4270 = vpop.permute.xlu0 %4269
    %v4271 = vsel %vm203, %v4268, 0
    %v4273 = vsel %vm203, %v4270, 0
    %4275 = vmatprep.subr.mxu0 0.0
    %4276 = vmatpush1.xpose.msra.mxu0 %v4273
    %4277 = vmatprep.subr.mxu0 0.0
    %4278 = vmatpush1.xpose.msra.mxu0 0.0
    %4279 = vmatprep.subr.mxu0 0.0
    %4280 = vmatpush1.xpose.msra.mxu0 0.0
    %4281 = vmatprep.subr.mxu0 0.0
    %4282 = vmatpush1.xpose.msra.mxu0 0.0
    %4283 = vmatprep.subr.mxu0 0.0
    %4284 = vmatpush1.xpose.msra.mxu0 0.0
    %4285 = vmatprep.subr.mxu0 0.0
    %4286 = vmatpush1.xpose.msra.mxu0 0.0
    %4287 = vmatprep.subr.mxu0 0.0
    %4288 = vmatpush1.xpose.msra.mxu0 0.0
    %4289 = vmatprep.subr.mxu0 0.0
    %4290 = vmatpush1.xpose.msra.mxu0 0.0
    %4291 = vmatprep.subr.mxu0 0.0
    %4292 = vmatpush1.xpose.msra.mxu0 0.0
    %4293 = vmatprep.subr.mxu0 0.0
    %4294 = vmatpush1.xpose.msra.mxu0 0.0
    %4295 = vmatprep.subr.mxu0 0.0
    %4296 = vmatpush1.xpose.msra.mxu0 0.0
    %4297 = vmatprep.subr.mxu0 0.0
    %4298 = vmatpush1.xpose.msra.mxu0 0.0
    %4299 = vmatprep.subr.mxu0 0.0
    %4300 = vmatpush1.xpose.msra.mxu0 0.0
    %4301 = vmatprep.subr.mxu0 0.0
    %4302 = vmatpush1.xpose.msra.mxu0 0.0
    %4303 = vmatprep.subr.mxu0 0.0
    %4304 = vmatpush1.xpose.msra.mxu0 0.0
    %4305 = vmatprep.subr.mxu0 0.0
    %4306 = vmatpush1.xpose.msra.mxu0 0.0
    %4307 = vmatprep.subr.mxu0 0.0
    %4308 = vmatpush1.xpose.msra.mxu0 0.0
    %4309 = vmatprep.subr.mxu0 0.0
    %4310 = vmatpush1.xpose.msra.mxu0 0.0
    %4311 = vmatprep.subr.mxu0 0.0
    %4312 = vmatpush1.xpose.msra.mxu0 0.0
    %4313 = vmatprep.subr.mxu0 0.0
    %4314 = vmatpush1.xpose.msra.mxu0 0.0
    %4315 = vmatprep.subr.mxu0 0.0
    %4316 = vmatpush1.xpose.msra.mxu0 0.0
    %4317 = vmatprep.subr.mxu0 0.0
    %4318 = vmatpush1.xpose.msra.mxu0 0.0
    %4319 = vmatprep.subr.mxu0 0.0
    %4320 = vmatpush1.xpose.msra.mxu0 0.0
    %4321 = vmatprep.subr.mxu0 0.0
    %4322 = vmatpush1.xpose.msra.mxu0 0.0
    %4323 = vmatprep.subr.mxu0 0.0
    %4324 = vmatpush1.xpose.msra.mxu0 0.0
    %4325 = vmatprep.subr.mxu0 0.0
    %4326 = vmatpush1.xpose.msra.mxu0 0.0
    %4327 = vmatprep.subr.mxu0 0.0
    %4328 = vmatpush1.xpose.msra.mxu0 0.0
    %4329 = vmatprep.subr.mxu0 0.0
    %4330 = vmatpush1.xpose.msra.mxu0 0.0
    %4331 = vmatprep.subr.mxu0 0.0
    %4332 = vmatpush1.xpose.msra.mxu0 0.0
    %4333 = vmatprep.subr.mxu0 0.0
    %4334 = vmatpush1.xpose.msra.mxu0 0.0
    %4335 = vmatprep.subr.mxu0 0.0
    %4336 = vmatpush1.xpose.msra.mxu0 0.0
    %4337 = vmatprep.subr.mxu0 0.0
    %4338 = vmatpush1.xpose.msra.mxu0 0.0
    %4339 = vmatprep.mubr.f32.mxu0 0.0
    %4340 = vmatmul.mubr.f32.gmra.mrb[0].mxu0 %v4271
    %v4341 = vpop.f32.mrb[0].mxu0
    %v4342 = vadd.f32 0.0, %v4341
    %v4343 = vpop.f32.mrb[0].mxu0
    %4344 = vdwg.mxu0
    %v4345 = vsel %vm203, %v4342, -inf
    %4346 = vmax.xlane.f32.xlu0 %v4345
    %v4347 = vpop.xlane.xlu0 %4346
    %v4348 = vsub.f32 %v4342, %v4347
    %v4349 = vmul.f32 %v4348, 1.442695
    %v4350 = vpow.pop %v4349
    %v4351 = vsel %vm203, %v4350, 0.0
    %4352 = vadd.xlane.f32.xlu0 %v4351
    %v4353 = vpop.xlane.xlu0 %4352
    %v4354 = vrcp.pop %v4353
    %v4355 = vmul.f32 %v4350, %v4354
    %4356 = vrot.lane.b32.xlu0 %v4086, 56
    %v4357 = vpop.permute.xlu0 %4356
    %v4360 = vsel %vm203, %v4355, 0
    %4362 = vmatprep.subr.mxu0 0.0
    %4363 = vmatpush1.msra.mxu0 %v4357
    %4364 = vmatprep.subr.mxu0 0.0
    %4365 = vmatpush1.msra.mxu0 0.0
    %4366 = vmatprep.subr.mxu0 0.0
    %4367 = vmatpush1.msra.mxu0 0.0
    %4368 = vmatprep.subr.mxu0 0.0
    %4369 = vmatpush1.msra.mxu0 0.0
    %4370 = vmatprep.subr.mxu0 0.0
    %4371 = vmatpush1.msra.mxu0 0.0
    %4372 = vmatprep.subr.mxu0 0.0
    %4373 = vmatpush1.msra.mxu0 0.0
    %4374 = vmatprep.subr.mxu0 0.0
    %4375 = vmatpush1.msra.mxu0 0.0
    %4376 = vmatprep.subr.mxu0 0.0
    %4377 = vmatpush1.msra.mxu0 0.0
    %4378 = vmatprep.subr.mxu0 0.0
    %4379 = vmatpush1.msra.mxu0 0.0
    %4380 = vmatprep.subr.mxu0 0.0
    %4381 = vmatpush1.msra.mxu0 0.0
    %4382 = vmatprep.subr.mxu0 0.0
    %4383 = vmatpush1.msra.mxu0 0.0
    %4384 = vmatprep.subr.mxu0 0.0
    %4385 = vmatpush1.msra.mxu0 0.0
    %4386 = vmatprep.subr.mxu0 0.0
    %4387 = vmatpush1.msra.mxu0 0.0
    %4388 = vmatprep.subr.mxu0 0.0
    %4389 = vmatpush1.msra.mxu0 0.0
    %4390 = vmatprep.subr.mxu0 0.0
    %4391 = vmatpush1.msra.mxu0 0.0
    %4392 = vmatprep.subr.mxu0 0.0
    %4393 = vmatpush1.msra.mxu0 0.0
    %4394 = vmatprep.subr.mxu0 0.0
    %4395 = vmatpush1.msra.mxu0 0.0
    %4396 = vmatprep.subr.mxu0 0.0
    %4397 = vmatpush1.msra.mxu0 0.0
    %4398 = vmatprep.subr.mxu0 0.0
    %4399 = vmatpush1.msra.mxu0 0.0
    %4400 = vmatprep.subr.mxu0 0.0
    %4401 = vmatpush1.msra.mxu0 0.0
    %4402 = vmatprep.subr.mxu0 0.0
    %4403 = vmatpush1.msra.mxu0 0.0
    %4404 = vmatprep.subr.mxu0 0.0
    %4405 = vmatpush1.msra.mxu0 0.0
    %4406 = vmatprep.subr.mxu0 0.0
    %4407 = vmatpush1.msra.mxu0 0.0
    %4408 = vmatprep.subr.mxu0 0.0
    %4409 = vmatpush1.msra.mxu0 0.0
    %4410 = vmatprep.subr.mxu0 0.0
    %4411 = vmatpush1.msra.mxu0 0.0
    %4412 = vmatprep.subr.mxu0 0.0
    %4413 = vmatpush1.msra.mxu0 0.0
    %4414 = vmatprep.subr.mxu0 0.0
    %4415 = vmatpush1.msra.mxu0 0.0
    %4416 = vmatprep.subr.mxu0 0.0
    %4417 = vmatpush1.msra.mxu0 0.0
    %4418 = vmatprep.subr.mxu0 0.0
    %4419 = vmatpush1.msra.mxu0 0.0
    %4420 = vmatprep.subr.mxu0 0.0
    %4421 = vmatpush1.msra.mxu0 0.0
    %4422 = vmatprep.subr.mxu0 0.0
    %4423 = vmatpush1.msra.mxu0 0.0
    %4424 = vmatprep.subr.mxu0 0.0
    %4425 = vmatpush1.msra.mxu0 0.0
    %4426 = vmatprep.mubr.f32.mxu0 0.0
    %4427 = vmatmul.mubr.f32.gmra.mrb[0].mxu0 %v4360
    %v4428 = vpop.f32.mrb[0].mxu0
    %v4429 = vadd.f32 0.0, %v4428
    %v4430 = vpop.f32.mrb[0].mxu0
    %4431 = vdwg.mxu0
    %v4432 = vpack.c.bf16 %v4429, %v4429
    %v4434 = vsel %vm203, %v4432, 0
    %v4437 = vsel %vm536, %v4096, 0
    %4439 = vmatprep.subr.bf16.mxu0 0
    %4440 = vmatpush1.bf16.msra.mxu0 %v4437
    %4441 = vmatprep.subr.bf16.mxu0 0
    %4442 = vmatpush1.bf16.msra.mxu0 0
    %4443 = vmatprep.subr.bf16.mxu0 0
    %4444 = vmatpush1.bf16.msra.mxu0 0
    %4445 = vmatprep.subr.bf16.mxu0 0
    %4446 = vmatpush1.bf16.msra.mxu0 0
    %4447 = vmatprep.subr.bf16.mxu0 0
    %4448 = vmatpush1.bf16.msra.mxu0 0
    %4449 = vmatprep.subr.bf16.mxu0 0
    %4450 = vmatpush1.bf16.msra.mxu0 0
    %4451 = vmatprep.subr.bf16.mxu0 0
    %4452 = vmatpush1.bf16.msra.mxu0 0
    %4453 = vmatprep.subr.bf16.mxu0 0
    %4454 = vmatpush1.bf16.msra.mxu0 0
    %4455 = vmatprep.subr.bf16.mxu0 0
    %4456 = vmatpush1.bf16.msra.mxu0 0
    %4457 = vmatprep.subr.bf16.mxu0 0
    %4458 = vmatpush1.bf16.msra.mxu0 0
    %4459 = vmatprep.subr.bf16.mxu0 0
    %4460 = vmatpush1.bf16.msra.mxu0 0
    %4461 = vmatprep.subr.bf16.mxu0 0
    %4462 = vmatpush1.bf16.msra.mxu0 0
    %4463 = vmatprep.subr.bf16.mxu0 0
    %4464 = vmatpush1.bf16.msra.mxu0 0
    %4465 = vmatprep.subr.bf16.mxu0 0
    %4466 = vmatpush1.bf16.msra.mxu0 0
    %4467 = vmatprep.subr.bf16.mxu0 0
    %4468 = vmatpush1.bf16.msra.mxu0 0
    %4469 = vmatprep.subr.bf16.mxu0 0
    %4470 = vmatpush1.bf16.msra.mxu0 0
    %4471 = vmatprep.mubr.bf16.mxu0 0
    %4472 = vmatmul.mubr.bf16.gmra.mrb[0].mxu0 %v4434
    %v4473 = vpop.f32.mrb[0].mxu0
    %v4474 = vadd.f32 0.0, %v4473
    %v4475 = vpop.f32.mrb[0].mxu0
    %v4476 = vpop.f32.mrb[0].mxu0
    %v4477 = vpop.f32.mrb[0].mxu0
    %4478 = vdwg.mxu0
    %v4480 = vsel %vm203, %v4266, 0
    %v4483 = vsel %vm536, %v4095, 0
    %4485 = vmatprep.subr.bf16.mxu0 0
    %4486 = vmatpush1.bf16.msra.mxu0 %v4483
    %4487 = vmatprep.subr.bf16.mxu0 0
    %4488 = vmatpush1.bf16.msra.mxu0 0
    %4489 = vmatprep.subr.bf16.mxu0 0
    %4490 = vmatpush1.bf16.msra.mxu0 0
    %4491 = vmatprep.subr.bf16.mxu0 0
    %4492 = vmatpush1.bf16.msra.mxu0 0
    %4493 = vmatprep.subr.bf16.mxu0 0
    %4494 = vmatpush1.bf16.msra.mxu0 0
    %4495 = vmatprep.subr.bf16.mxu0 0
    %4496 = vmatpush1.bf16.msra.mxu0 0
    %4497 = vmatprep.subr.bf16.mxu0 0
    %4498 = vmatpush1.bf16.msra.mxu0 0
    %4499 = vmatprep.subr.bf16.mxu0 0
    %4500 = vmatpush1.bf16.msra.mxu0 0
    %4501 = vmatprep.subr.bf16.mxu0 0
    %4502 = vmatpush1.bf16.msra.mxu0 0
    %4503 = vmatprep.subr.bf16.mxu0 0
    %4504 = vmatpush1.bf16.msra.mxu0 0
    %4505 = vmatprep.subr.bf16.mxu0 0
    %4506 = vmatpush1.bf16.msra.mxu0 0
    %4507 = vmatprep.subr.bf16.mxu0 0
    %4508 = vmatpush1.bf16.msra.mxu0 0
    %4509 = vmatprep.subr.bf16.mxu0 0
    %4510 = vmatpush1.bf16.msra.mxu0 0
    %4511 = vmatprep.subr.bf16.mxu0 0
    %4512 = vmatpush1.bf16.msra.mxu0 0
    %4513 = vmatprep.subr.bf16.mxu0 0
    %4514 = vmatpush1.bf16.msra.mxu0 0
    %4515 = vmatprep.subr.bf16.mxu0 0
    %4516 = vmatpush1.bf16.msra.mxu0 0
    %4517 = vmatprep.mubr.bf16.mxu0 0
    %4518 = vmatmul.mubr.bf16.gmra.mrb[0].mxu0 %v4480
    %v4519 = vpop.f32.mrb[0].mxu0
    %v4520 = vadd.f32 %v4474, %v4519
    %v4521 = vpop.f32.mrb[0].mxu0
    %v4522 = vpop.f32.mrb[0].mxu0
    %v4523 = vpop.f32.mrb[0].mxu0
    %4524 = vdwg.mxu0
    %4525 = vrot.lane.b32.xlu0 %v4092, 112
    %v4526 = vpop.permute.xlu0 %4525
    %4527 = vrot.lane.b32.xlu0 %v4086, 80
    %v4528 = vpop.permute.xlu0 %4527
    %v4529 = vsel %vm203, %v4526, 0
    %v4531 = vsel %vm203, %v4528, 0
    %4533 = vmatprep.subr.mxu0 0.0
    %4534 = vmatpush1.xpose.msra.mxu0 %v4531
    %4535 = vmatprep.subr.mxu0 0.0
    %4536 = vmatpush1.xpose.msra.mxu0 0.0
    %4537 = vmatprep.subr.mxu0 0.0
    %4538 = vmatpush1.xpose.msra.mxu0 0.0
    %4539 = vmatprep.subr.mxu0 0.0
    %4540 = vmatpush1.xpose.msra.mxu0 0.0
    %4541 = vmatprep.subr.mxu0 0.0
    %4542 = vmatpush1.xpose.msra.mxu0 0.0
    %4543 = vmatprep.subr.mxu0 0.0
    %4544 = vmatpush1.xpose.msra.mxu0 0.0
    %4545 = vmatprep.subr.mxu0 0.0
    %4546 = vmatpush1.xpose.msra.mxu0 0.0
    %4547 = vmatprep.subr.mxu0 0.0
    %4548 = vmatpush1.xpose.msra.mxu0 0.0
    %4549 = vmatprep.subr.mxu0 0.0
    %4550 = vmatpush1.xpose.msra.mxu0 0.0
    %4551 = vmatprep.subr.mxu0 0.0
    %4552 = vmatpush1.xpose.msra.mxu0 0.0
    %4553 = vmatprep.subr.mxu0 0.0
    %4554 = vmatpush1.xpose.msra.mxu0 0.0
    %4555 = vmatprep.subr.mxu0 0.0
    %4556 = vmatpush1.xpose.msra.mxu0 0.0
    %4557 = vmatprep.subr.mxu0 0.0
    %4558 = vmatpush1.xpose.msra.mxu0 0.0
    %4559 = vmatprep.subr.mxu0 0.0
    %4560 = vmatpush1.xpose.msra.mxu0 0.0
    %4561 = vmatprep.subr.mxu0 0.0
    %4562 = vmatpush1.xpose.msra.mxu0 0.0
    %4563 = vmatprep.subr.mxu0 0.0
    %4564 = vmatpush1.xpose.msra.mxu0 0.0
    %4565 = vmatprep.subr.mxu0 0.0
    %4566 = vmatpush1.xpose.msra.mxu0 0.0
    %4567 = vmatprep.subr.mxu0 0.0
    %4568 = vmatpush1.xpose.msra.mxu0 0.0
    %4569 = vmatprep.subr.mxu0 0.0
    %4570 = vmatpush1.xpose.msra.mxu0 0.0
    %4571 = vmatprep.subr.mxu0 0.0
    %4572 = vmatpush1.xpose.msra.mxu0 0.0
    %4573 = vmatprep.subr.mxu0 0.0
    %4574 = vmatpush1.xpose.msra.mxu0 0.0
    %4575 = vmatprep.subr.mxu0 0.0
    %4576 = vmatpush1.xpose.msra.mxu0 0.0
    %4577 = vmatprep.subr.mxu0 0.0
    %4578 = vmatpush1.xpose.msra.mxu0 0.0
    %4579 = vmatprep.subr.mxu0 0.0
    %4580 = vmatpush1.xpose.msra.mxu0 0.0
    %4581 = vmatprep.subr.mxu0 0.0
    %4582 = vmatpush1.xpose.msra.mxu0 0.0
    %4583 = vmatprep.subr.mxu0 0.0
    %4584 = vmatpush1.xpose.msra.mxu0 0.0
    %4585 = vmatprep.subr.mxu0 0.0
    %4586 = vmatpush1.xpose.msra.mxu0 0.0
    %4587 = vmatprep.subr.mxu0 0.0
    %4588 = vmatpush1.xpose.msra.mxu0 0.0
    %4589 = vmatprep.subr.mxu0 0.0
    %4590 = vmatpush1.xpose.msra.mxu0 0.0
    %4591 = vmatprep.subr.mxu0 0.0
    %4592 = vmatpush1.xpose.msra.mxu0 0.0
    %4593 = vmatprep.subr.mxu0 0.0
    %4594 = vmatpush1.xpose.msra.mxu0 0.0
    %4595 = vmatprep.subr.mxu0 0.0
    %4596 = vmatpush1.xpose.msra.mxu0 0.0
    %4597 = vmatprep.mubr.f32.mxu0 0.0
    %4598 = vmatmul.mubr.f32.gmra.mrb[0].mxu0 %v4529
    %v4599 = vpop.f32.mrb[0].mxu0
    %v4600 = vadd.f32 0.0, %v4599
    %v4601 = vpop.f32.mrb[0].mxu0
    %4602 = vdwg.mxu0
    %v4603 = vsel %vm203, %v4600, -inf
    %4604 = vmax.xlane.f32.xlu0 %v4603
    %v4605 = vpop.xlane.xlu0 %4604
    %v4606 = vsub.f32 %v4600, %v4605
    %v4607 = vmul.f32 %v4606, 1.442695
    %v4608 = vpow.pop %v4607
    %v4609 = vsel %vm203, %v4608, 0.0
    %4610 = vadd.xlane.f32.xlu0 %v4609
    %v4611 = vpop.xlane.xlu0 %4610
    %v4612 = vrcp.pop %v4611
    %v4613 = vmul.f32 %v4608, %v4612
    %4614 = vrot.lane.b32.xlu0 %v4086, 48
    %v4615 = vpop.permute.xlu0 %4614
    %v4618 = vsel %vm203, %v4613, 0
    %4620 = vmatprep.subr.mxu0 0.0
    %4621 = vmatpush1.msra.mxu0 %v4615
    %4622 = vmatprep.subr.mxu0 0.0
    %4623 = vmatpush1.msra.mxu0 0.0
    %4624 = vmatprep.subr.mxu0 0.0
    %4625 = vmatpush1.msra.mxu0 0.0
    %4626 = vmatprep.subr.mxu0 0.0
    %4627 = vmatpush1.msra.mxu0 0.0
    %4628 = vmatprep.subr.mxu0 0.0
    %4629 = vmatpush1.msra.mxu0 0.0
    %4630 = vmatprep.subr.mxu0 0.0
    %4631 = vmatpush1.msra.mxu0 0.0
    %4632 = vmatprep.subr.mxu0 0.0
    %4633 = vmatpush1.msra.mxu0 0.0
    %4634 = vmatprep.subr.mxu0 0.0
    %4635 = vmatpush1.msra.mxu0 0.0
    %4636 = vmatprep.subr.mxu0 0.0
    %4637 = vmatpush1.msra.mxu0 0.0
    %4638 = vmatprep.subr.mxu0 0.0
    %4639 = vmatpush1.msra.mxu0 0.0
    %4640 = vmatprep.subr.mxu0 0.0
    %4641 = vmatpush1.msra.mxu0 0.0
    %4642 = vmatprep.subr.mxu0 0.0
    %4643 = vmatpush1.msra.mxu0 0.0
    %4644 = vmatprep.subr.mxu0 0.0
    %4645 = vmatpush1.msra.mxu0 0.0
    %4646 = vmatprep.subr.mxu0 0.0
    %4647 = vmatpush1.msra.mxu0 0.0
    %4648 = vmatprep.subr.mxu0 0.0
    %4649 = vmatpush1.msra.mxu0 0.0
    %4650 = vmatprep.subr.mxu0 0.0
    %4651 = vmatpush1.msra.mxu0 0.0
    %4652 = vmatprep.subr.mxu0 0.0
    %4653 = vmatpush1.msra.mxu0 0.0
    %4654 = vmatprep.subr.mxu0 0.0
    %4655 = vmatpush1.msra.mxu0 0.0
    %4656 = vmatprep.subr.mxu0 0.0
    %4657 = vmatpush1.msra.mxu0 0.0
    %4658 = vmatprep.subr.mxu0 0.0
    %4659 = vmatpush1.msra.mxu0 0.0
    %4660 = vmatprep.subr.mxu0 0.0
    %4661 = vmatpush1.msra.mxu0 0.0
    %4662 = vmatprep.subr.mxu0 0.0
    %4663 = vmatpush1.msra.mxu0 0.0
    %4664 = vmatprep.subr.mxu0 0.0
    %4665 = vmatpush1.msra.mxu0 0.0
    %4666 = vmatprep.subr.mxu0 0.0
    %4667 = vmatpush1.msra.mxu0 0.0
    %4668 = vmatprep.subr.mxu0 0.0
    %4669 = vmatpush1.msra.mxu0 0.0
    %4670 = vmatprep.subr.mxu0 0.0
    %4671 = vmatpush1.msra.mxu0 0.0
    %4672 = vmatprep.subr.mxu0 0.0
    %4673 = vmatpush1.msra.mxu0 0.0
    %4674 = vmatprep.subr.mxu0 0.0
    %4675 = vmatpush1.msra.mxu0 0.0
    %4676 = vmatprep.subr.mxu0 0.0
    %4677 = vmatpush1.msra.mxu0 0.0
    %4678 = vmatprep.subr.mxu0 0.0
    %4679 = vmatpush1.msra.mxu0 0.0
    %4680 = vmatprep.subr.mxu0 0.0
    %4681 = vmatpush1.msra.mxu0 0.0
    %4682 = vmatprep.subr.mxu0 0.0
    %4683 = vmatpush1.msra.mxu0 0.0
    %4684 = vmatprep.mubr.f32.mxu0 0.0
    %4685 = vmatmul.mubr.f32.gmra.mrb[0].mxu0 %v4618
    %v4686 = vpop.f32.mrb[0].mxu0
    %v4687 = vadd.f32 0.0, %v4686
    %v4688 = vpop.f32.mrb[0].mxu0
    %4689 = vdwg.mxu0
    %v4690 = vpack.c.bf16 %v4687, %v4687
    %v4692 = vsel %vm203, %v4690, 0
    %v4695 = vsel %vm536, %v4097, 0
    %4697 = vmatprep.subr.bf16.mxu0 0
    %4698 = vmatpush1.bf16.msra.mxu0 %v4695
    %4699 = vmatprep.subr.bf16.mxu0 0
    %4700 = vmatpush1.bf16.msra.mxu0 0
    %4701 = vmatprep.subr.bf16.mxu0 0
    %4702 = vmatpush1.bf16.msra.mxu0 0
    %4703 = vmatprep.subr.bf16.mxu0 0
    %4704 = vmatpush1.bf16.msra.mxu0 0
    %4705 = vmatprep.subr.bf16.mxu0 0
    %4706 = vmatpush1.bf16.msra.mxu0 0
    %4707 = vmatprep.subr.bf16.mxu0 0
    %4708 = vmatpush1.bf16.msra.mxu0 0
    %4709 = vmatprep.subr.bf16.mxu0 0
    %4710 = vmatpush1.bf16.msra.mxu0 0
    %4711 = vmatprep.subr.bf16.mxu0 0
    %4712 = vmatpush1.bf16.msra.mxu0 0
    %4713 = vmatprep.subr.bf16.mxu0 0
    %4714 = vmatpush1.bf16.msra.mxu0 0
    %4715 = vmatprep.subr.bf16.mxu0 0
    %4716 = vmatpush1.bf16.msra.mxu0 0
    %4717 = vmatprep.subr.bf16.mxu0 0
    %4718 = vmatpush1.bf16.msra.mxu0 0
    %4719 = vmatprep.subr.bf16.mxu0 0
    %4720 = vmatpush1.bf16.msra.mxu0 0
    %4721 = vmatprep.subr.bf16.mxu0 0
    %4722 = vmatpush1.bf16.msra.mxu0 0
    %4723 = vmatprep.subr.bf16.mxu0 0
    %4724 = vmatpush1.bf16.msra.mxu0 0
    %4725 = vmatprep.subr.bf16.mxu0 0
    %4726 = vmatpush1.bf16.msra.mxu0 0
    %4727 = vmatprep.subr.bf16.mxu0 0
    %4728 = vmatpush1.bf16.msra.mxu0 0
    %4729 = vmatprep.mubr.bf16.mxu0 0
    %4730 = vmatmul.mubr.bf16.gmra.mrb[0].mxu0 %v4692
    %v4731 = vpop.f32.mrb[0].mxu0
    %v4732 = vadd.f32 0.0, %v4731
    %v4733 = vpop.f32.mrb[0].mxu0
    %v4734 = vpop.f32.mrb[0].mxu0
    %v4735 = vpop.f32.mrb[0].mxu0
    %4736 = vdwg.mxu0
    %v4737 = vadd.f32 %v4520, %v4732
    %4738 = vrot.lane.b32.xlu0 %v4092, 104
    %v4739 = vpop.permute.xlu0 %4738
    %4740 = vrot.lane.b32.xlu0 %v4086, 72
    %v4741 = vpop.permute.xlu0 %4740
    %v4742 = vsel %vm203, %v4739, 0
    %v4744 = vsel %vm203, %v4741, 0
    %4746 = vmatprep.subr.mxu0 0.0
    %4747 = vmatpush1.xpose.msra.mxu0 %v4744
    %4748 = vmatprep.subr.mxu0 0.0
    %4749 = vmatpush1.xpose.msra.mxu0 0.0
    %4750 = vmatprep.subr.mxu0 0.0
    %4751 = vmatpush1.xpose.msra.mxu0 0.0
    %4752 = vmatprep.subr.mxu0 0.0
    %4753 = vmatpush1.xpose.msra.mxu0 0.0
    %4754 = vmatprep.subr.mxu0 0.0
    %4755 = vmatpush1.xpose.msra.mxu0 0.0
    %4756 = vmatprep.subr.mxu0 0.0
    %4757 = vmatpush1.xpose.msra.mxu0 0.0
    %4758 = vmatprep.subr.mxu0 0.0
    %4759 = vmatpush1.xpose.msra.mxu0 0.0
    %4760 = vmatprep.subr.mxu0 0.0
    %4761 = vmatpush1.xpose.msra.mxu0 0.0
    %4762 = vmatprep.subr.mxu0 0.0
    %4763 = vmatpush1.xpose.msra.mxu0 0.0
    %4764 = vmatprep.subr.mxu0 0.0
    %4765 = vmatpush1.xpose.msra.mxu0 0.0
    %4766 = vmatprep.subr.mxu0 0.0
    %4767 = vmatpush1.xpose.msra.mxu0 0.0
    %4768 = vmatprep.subr.mxu0 0.0
    %4769 = vmatpush1.xpose.msra.mxu0 0.0
    %4770 = vmatprep.subr.mxu0 0.0
    %4771 = vmatpush1.xpose.msra.mxu0 0.0
    %4772 = vmatprep.subr.mxu0 0.0
    %4773 = vmatpush1.xpose.msra.mxu0 0.0
    %4774 = vmatprep.subr.mxu0 0.0
    %4775 = vmatpush1.xpose.msra.mxu0 0.0
    %4776 = vmatprep.subr.mxu0 0.0
    %4777 = vmatpush1.xpose.msra.mxu0 0.0
    %4778 = vmatprep.subr.mxu0 0.0
    %4779 = vmatpush1.xpose.msra.mxu0 0.0
    %4780 = vmatprep.subr.mxu0 0.0
    %4781 = vmatpush1.xpose.msra.mxu0 0.0
    %4782 = vmatprep.subr.mxu0 0.0
    %4783 = vmatpush1.xpose.msra.mxu0 0.0
    %4784 = vmatprep.subr.mxu0 0.0
    %4785 = vmatpush1.xpose.msra.mxu0 0.0
    %4786 = vmatprep.subr.mxu0 0.0
    %4787 = vmatpush1.xpose.msra.mxu0 0.0
    %4788 = vmatprep.subr.mxu0 0.0
    %4789 = vmatpush1.xpose.msra.mxu0 0.0
    %4790 = vmatprep.subr.mxu0 0.0
    %4791 = vmatpush1.xpose.msra.mxu0 0.0
    %4792 = vmatprep.subr.mxu0 0.0
    %4793 = vmatpush1.xpose.msra.mxu0 0.0
    %4794 = vmatprep.subr.mxu0 0.0
    %4795 = vmatpush1.xpose.msra.mxu0 0.0
    %4796 = vmatprep.subr.mxu0 0.0
    %4797 = vmatpush1.xpose.msra.mxu0 0.0
    %4798 = vmatprep.subr.mxu0 0.0
    %4799 = vmatpush1.xpose.msra.mxu0 0.0
    %4800 = vmatprep.subr.mxu0 0.0
    %4801 = vmatpush1.xpose.msra.mxu0 0.0
    %4802 = vmatprep.subr.mxu0 0.0
    %4803 = vmatpush1.xpose.msra.mxu0 0.0
    %4804 = vmatprep.subr.mxu0 0.0
    %4805 = vmatpush1.xpose.msra.mxu0 0.0
    %4806 = vmatprep.subr.mxu0 0.0
    %4807 = vmatpush1.xpose.msra.mxu0 0.0
    %4808 = vmatprep.subr.mxu0 0.0
    %4809 = vmatpush1.xpose.msra.mxu0 0.0
    %4810 = vmatprep.mubr.f32.mxu0 0.0
    %4811 = vmatmul.mubr.f32.gmra.mrb[0].mxu0 %v4742
    %v4812 = vpop.f32.mrb[0].mxu0
    %v4813 = vadd.f32 0.0, %v4812
    %v4814 = vpop.f32.mrb[0].mxu0
    %4815 = vdwg.mxu0
    %v4816 = vsel %vm203, %v4813, -inf
    %4817 = vmax.xlane.f32.xlu0 %v4816
    %v4818 = vpop.xlane.xlu0 %4817
    %v4819 = vsub.f32 %v4813, %v4818
    %v4820 = vmul.f32 %v4819, 1.442695
    %v4821 = vpow.pop %v4820
    %v4822 = vsel %vm203, %v4821, 0.0
    %4823 = vadd.xlane.f32.xlu0 %v4822
    %v4824 = vpop.xlane.xlu0 %4823
    %v4825 = vrcp.pop %v4824
    %v4826 = vmul.f32 %v4821, %v4825
    %4827 = vrot.lane.b32.xlu0 %v4086, 40
    %v4828 = vpop.permute.xlu0 %4827
    %v4831 = vsel %vm203, %v4826, 0
    %4833 = vmatprep.subr.mxu0 0.0
    %4834 = vmatpush1.msra.mxu0 %v4828
    %4835 = vmatprep.subr.mxu0 0.0
    %4836 = vmatpush1.msra.mxu0 0.0
    %4837 = vmatprep.subr.mxu0 0.0
    %4838 = vmatpush1.msra.mxu0 0.0
    %4839 = vmatprep.subr.mxu0 0.0
    %4840 = vmatpush1.msra.mxu0 0.0
    %4841 = vmatprep.subr.mxu0 0.0
    %4842 = vmatpush1.msra.mxu0 0.0
    %4843 = vmatprep.subr.mxu0 0.0
    %4844 = vmatpush1.msra.mxu0 0.0
    %4845 = vmatprep.subr.mxu0 0.0
    %4846 = vmatpush1.msra.mxu0 0.0
    %4847 = vmatprep.subr.mxu0 0.0
    %4848 = vmatpush1.msra.mxu0 0.0
    %4849 = vmatprep.subr.mxu0 0.0
    %4850 = vmatpush1.msra.mxu0 0.0
    %4851 = vmatprep.subr.mxu0 0.0
    %4852 = vmatpush1.msra.mxu0 0.0
    %4853 = vmatprep.subr.mxu0 0.0
    %4854 = vmatpush1.msra.mxu0 0.0
    %4855 = vmatprep.subr.mxu0 0.0
    %4856 = vmatpush1.msra.mxu0 0.0
    %4857 = vmatprep.subr.mxu0 0.0
    %4858 = vmatpush1.msra.mxu0 0.0
    %4859 = vmatprep.subr.mxu0 0.0
    %4860 = vmatpush1.msra.mxu0 0.0
    %4861 = vmatprep.subr.mxu0 0.0
    %4862 = vmatpush1.msra.mxu0 0.0
    %4863 = vmatprep.subr.mxu0 0.0
    %4864 = vmatpush1.msra.mxu0 0.0
    %4865 = vmatprep.subr.mxu0 0.0
    %4866 = vmatpush1.msra.mxu0 0.0
    %4867 = vmatprep.subr.mxu0 0.0
    %4868 = vmatpush1.msra.mxu0 0.0
    %4869 = vmatprep.subr.mxu0 0.0
    %4870 = vmatpush1.msra.mxu0 0.0
    %4871 = vmatprep.subr.mxu0 0.0
    %4872 = vmatpush1.msra.mxu0 0.0
    %4873 = vmatprep.subr.mxu0 0.0
    %4874 = vmatpush1.msra.mxu0 0.0
    %4875 = vmatprep.subr.mxu0 0.0
    %4876 = vmatpush1.msra.mxu0 0.0
    %4877 = vmatprep.subr.mxu0 0.0
    %4878 = vmatpush1.msra.mxu0 0.0
    %4879 = vmatprep.subr.mxu0 0.0
    %4880 = vmatpush1.msra.mxu0 0.0
    %4881 = vmatprep.subr.mxu0 0.0
    %4882 = vmatpush1.msra.mxu0 0.0
    %4883 = vmatprep.subr.mxu0 0.0
    %4884 = vmatpush1.msra.mxu0 0.0
    %4885 = vmatprep.subr.mxu0 0.0
    %4886 = vmatpush1.msra.mxu0 0.0
    %4887 = vmatprep.subr.mxu0 0.0
    %4888 = vmatpush1.msra.mxu0 0.0
    %4889 = vmatprep.subr.mxu0 0.0
    %4890 = vmatpush1.msra.mxu0 0.0
    %4891 = vmatprep.subr.mxu0 0.0
    %4892 = vmatpush1.msra.mxu0 0.0
    %4893 = vmatprep.subr.mxu0 0.0
    %4894 = vmatpush1.msra.mxu0 0.0
    %4895 = vmatprep.subr.mxu0 0.0
    %4896 = vmatpush1.msra.mxu0 0.0
    %4897 = vmatprep.mubr.f32.mxu0 0.0
    %4898 = vmatmul.mubr.f32.gmra.mrb[0].mxu0 %v4831
    %v4899 = vpop.f32.mrb[0].mxu0
    %v4900 = vadd.f32 0.0, %v4899
    %v4901 = vpop.f32.mrb[0].mxu0
    %4902 = vdwg.mxu0
    %v4903 = vpack.c.bf16 %v4900, %v4900
    %v4905 = vsel %vm203, %v4903, 0
    %v4908 = vsel %vm536, %v4098, 0
    %4910 = vmatprep.subr.bf16.mxu0 0
    %4911 = vmatpush1.bf16.msra.mxu0 %v4908
    %4912 = vmatprep.subr.bf16.mxu0 0
    %4913 = vmatpush1.bf16.msra.mxu0 0
    %4914 = vmatprep.subr.bf16.mxu0 0
    %4915 = vmatpush1.bf16.msra.mxu0 0
    %4916 = vmatprep.subr.bf16.mxu0 0
    %4917 = vmatpush1.bf16.msra.mxu0 0
    %4918 = vmatprep.subr.bf16.mxu0 0
    %4919 = vmatpush1.bf16.msra.mxu0 0
    %4920 = vmatprep.subr.bf16.mxu0 0
    %4921 = vmatpush1.bf16.msra.mxu0 0
    %4922 = vmatprep.subr.bf16.mxu0 0
    %4923 = vmatpush1.bf16.msra.mxu0 0
    %4924 = vmatprep.subr.bf16.mxu0 0
    %4925 = vmatpush1.bf16.msra.mxu0 0
    %4926 = vmatprep.subr.bf16.mxu0 0
    %4927 = vmatpush1.bf16.msra.mxu0 0
    %4928 = vmatprep.subr.bf16.mxu0 0
    %4929 = vmatpush1.bf16.msra.mxu0 0
    %4930 = vmatprep.subr.bf16.mxu0 0
    %4931 = vmatpush1.bf16.msra.mxu0 0
    %4932 = vmatprep.subr.bf16.mxu0 0
    %4933 = vmatpush1.bf16.msra.mxu0 0
    %4934 = vmatprep.subr.bf16.mxu0 0
    %4935 = vmatpush1.bf16.msra.mxu0 0
    %4936 = vmatprep.subr.bf16.mxu0 0
    %4937 = vmatpush1.bf16.msra.mxu0 0
    %4938 = vmatprep.subr.bf16.mxu0 0
    %4939 = vmatpush1.bf16.msra.mxu0 0
    %4940 = vmatprep.subr.bf16.mxu0 0
    %4941 = vmatpush1.bf16.msra.mxu0 0
    %4942 = vmatprep.mubr.bf16.mxu0 0
    %4943 = vmatmul.mubr.bf16.gmra.mrb[0].mxu0 %v4905
    %v4944 = vpop.f32.mrb[0].mxu0
    %v4945 = vadd.f32 0.0, %v4944
    %v4946 = vpop.f32.mrb[0].mxu0
    %v4947 = vpop.f32.mrb[0].mxu0
    %v4948 = vpop.f32.mrb[0].mxu0
    %4949 = vdwg.mxu0
    %v4950 = vadd.f32 %v4737, %v4945
    %v4952 = vlaneseq
    %v4953 = vshrl.u32 %v4952, 7
    %v4954 = vsub.s32 0, %v4953
    %v4955 = vrot.slane %v4100, %v4954
    %v4957 = vadd.f32 %v4950, %v4955
    %4959 = vrot.lane.b32.xlu0 %v4089, 96
    %v4960 = vpop.permute.xlu0 %4959
    %v4962 = vsel %vm203, %v4093, 0
    %v4964 = vsel %vm203, %v4960, 0
    %4966 = vmatprep.subr.mxu0 0.0
    %4967 = vmatpush1.xpose.msra.mxu0 %v4964
    %4968 = vmatprep.subr.mxu0 0.0
    %4969 = vmatpush1.xpose.msra.mxu0 0.0
    %4970 = vmatprep.subr.mxu0 0.0
    %4971 = vmatpush1.xpose.msra.mxu0 0.0
    %4972 = vmatprep.subr.mxu0 0.0
    %4973 = vmatpush1.xpose.msra.mxu0 0.0
    %4974 = vmatprep.subr.mxu0 0.0
    %4975 = vmatpush1.xpose.msra.mxu0 0.0
    %4976 = vmatprep.subr.mxu0 0.0
    %4977 = vmatpush1.xpose.msra.mxu0 0.0
    %4978 = vmatprep.subr.mxu0 0.0
    %4979 = vmatpush1.xpose.msra.mxu0 0.0
    %4980 = vmatprep.subr.mxu0 0.0
    %4981 = vmatpush1.xpose.msra.mxu0 0.0
    %4982 = vmatprep.subr.mxu0 0.0
    %4983 = vmatpush1.xpose.msra.mxu0 0.0
    %4984 = vmatprep.subr.mxu0 0.0
    %4985 = vmatpush1.xpose.msra.mxu0 0.0
    %4986 = vmatprep.subr.mxu0 0.0
    %4987 = vmatpush1.xpose.msra.mxu0 0.0
    %4988 = vmatprep.subr.mxu0 0.0
    %4989 = vmatpush1.xpose.msra.mxu0 0.0
    %4990 = vmatprep.subr.mxu0 0.0
    %4991 = vmatpush1.xpose.msra.mxu0 0.0
    %4992 = vmatprep.subr.mxu0 0.0
    %4993 = vmatpush1.xpose.msra.mxu0 0.0
    %4994 = vmatprep.subr.mxu0 0.0
    %4995 = vmatpush1.xpose.msra.mxu0 0.0
    %4996 = vmatprep.subr.mxu0 0.0
    %4997 = vmatpush1.xpose.msra.mxu0 0.0
    %4998 = vmatprep.subr.mxu0 0.0
    %4999 = vmatpush1.xpose.msra.mxu0 0.0
    %5000 = vmatprep.subr.mxu0 0.0
    %5001 = vmatpush1.xpose.msra.mxu0 0.0
    %5002 = vmatprep.subr.mxu0 0.0
    %5003 = vmatpush1.xpose.msra.mxu0 0.0
    %5004 = vmatprep.subr.mxu0 0.0
    %5005 = vmatpush1.xpose.msra.mxu0 0.0
    %5006 = vmatprep.subr.mxu0 0.0
    %5007 = vmatpush1.xpose.msra.mxu0 0.0
    %5008 = vmatprep.subr.mxu0 0.0
    %5009 = vmatpush1.xpose.msra.mxu0 0.0
    %5010 = vmatprep.subr.mxu0 0.0
    %5011 = vmatpush1.xpose.msra.mxu0 0.0
    %5012 = vmatprep.subr.mxu0 0.0
    %5013 = vmatpush1.xpose.msra.mxu0 0.0
    %5014 = vmatprep.subr.mxu0 0.0
    %5015 = vmatpush1.xpose.msra.mxu0 0.0
    %5016 = vmatprep.subr.mxu0 0.0
    %5017 = vmatpush1.xpose.msra.mxu0 0.0
    %5018 = vmatprep.subr.mxu0 0.0
    %5019 = vmatpush1.xpose.msra.mxu0 0.0
    %5020 = vmatprep.subr.mxu0 0.0
    %5021 = vmatpush1.xpose.msra.mxu0 0.0
    %5022 = vmatprep.subr.mxu0 0.0
    %5023 = vmatpush1.xpose.msra.mxu0 0.0
    %5024 = vmatprep.subr.mxu0 0.0
    %5025 = vmatpush1.xpose.msra.mxu0 0.0
    %5026 = vmatprep.subr.mxu0 0.0
    %5027 = vmatpush1.xpose.msra.mxu0 0.0
    %5028 = vmatprep.subr.mxu0 0.0
    %5029 = vmatpush1.xpose.msra.mxu0 0.0
    %5030 = vmatprep.mubr.f32.mxu0 0.0
    %5031 = vmatmul.mubr.f32.gmra.mrb[0].mxu0 %v4962
    %v5032 = vpop.f32.mrb[0].mxu0
    %v5033 = vadd.f32 0.0, %v5032
    %v5034 = vpop.f32.mrb[0].mxu0
    %5035 = vdwg.mxu0
    %v5036 = vsel %vm203, %v5033, -inf
    %5037 = vmax.xlane.f32.xlu0 %v5036
    %v5038 = vpop.xlane.xlu0 %5037
    %v5039 = vsub.f32 %v5033, %v5038
    %v5040 = vmul.f32 %v5039, 1.442695
    %v5041 = vpow.pop %v5040
    %v5042 = vsel %vm203, %v5041, 0.0
    %5043 = vadd.xlane.f32.xlu0 %v5042
    %v5044 = vpop.xlane.xlu0 %5043
    %v5045 = vrcp.pop %v5044
    %v5046 = vmul.f32 %v5041, %v5045
    %5047 = vrot.lane.b32.xlu0 %v4089, 64
    %v5048 = vpop.permute.xlu0 %5047
    %v5051 = vsel %vm203, %v5046, 0
    %5053 = vmatprep.subr.mxu0 0.0
    %5054 = vmatpush1.msra.mxu0 %v5048
    %5055 = vmatprep.subr.mxu0 0.0
    %5056 = vmatpush1.msra.mxu0 0.0
    %5057 = vmatprep.subr.mxu0 0.0
    %5058 = vmatpush1.msra.mxu0 0.0
    %5059 = vmatprep.subr.mxu0 0.0
    %5060 = vmatpush1.msra.mxu0 0.0
    %5061 = vmatprep.subr.mxu0 0.0
    %5062 = vmatpush1.msra.mxu0 0.0
    %5063 = vmatprep.subr.mxu0 0.0
    %5064 = vmatpush1.msra.mxu0 0.0
    %5065 = vmatprep.subr.mxu0 0.0
    %5066 = vmatpush1.msra.mxu0 0.0
    %5067 = vmatprep.subr.mxu0 0.0
    %5068 = vmatpush1.msra.mxu0 0.0
    %5069 = vmatprep.subr.mxu0 0.0
    %5070 = vmatpush1.msra.mxu0 0.0
    %5071 = vmatprep.subr.mxu0 0.0
    %5072 = vmatpush1.msra.mxu0 0.0
    %5073 = vmatprep.subr.mxu0 0.0
    %5074 = vmatpush1.msra.mxu0 0.0
    %5075 = vmatprep.subr.mxu0 0.0
    %5076 = vmatpush1.msra.mxu0 0.0
    %5077 = vmatprep.subr.mxu0 0.0
    %5078 = vmatpush1.msra.mxu0 0.0
    %5079 = vmatprep.subr.mxu0 0.0
    %5080 = vmatpush1.msra.mxu0 0.0
    %5081 = vmatprep.subr.mxu0 0.0
    %5082 = vmatpush1.msra.mxu0 0.0
    %5083 = vmatprep.subr.mxu0 0.0
    %5084 = vmatpush1.msra.mxu0 0.0
    %5085 = vmatprep.subr.mxu0 0.0
    %5086 = vmatpush1.msra.mxu0 0.0
    %5087 = vmatprep.subr.mxu0 0.0
    %5088 = vmatpush1.msra.mxu0 0.0
    %5089 = vmatprep.subr.mxu0 0.0
    %5090 = vmatpush1.msra.mxu0 0.0
    %5091 = vmatprep.subr.mxu0 0.0
    %5092 = vmatpush1.msra.mxu0 0.0
    %5093 = vmatprep.subr.mxu0 0.0
    %5094 = vmatpush1.msra.mxu0 0.0
    %5095 = vmatprep.subr.mxu0 0.0
    %5096 = vmatpush1.msra.mxu0 0.0
    %5097 = vmatprep.subr.mxu0 0.0
    %5098 = vmatpush1.msra.mxu0 0.0
    %5099 = vmatprep.subr.mxu0 0.0
    %5100 = vmatpush1.msra.mxu0 0.0
    %5101 = vmatprep.subr.mxu0 0.0
    %5102 = vmatpush1.msra.mxu0 0.0
    %5103 = vmatprep.subr.mxu0 0.0
    %5104 = vmatpush1.msra.mxu0 0.0
    %5105 = vmatprep.subr.mxu0 0.0
    %5106 = vmatpush1.msra.mxu0 0.0
    %5107 = vmatprep.subr.mxu0 0.0
    %5108 = vmatpush1.msra.mxu0 0.0
    %5109 = vmatprep.subr.mxu0 0.0
    %5110 = vmatpush1.msra.mxu0 0.0
    %5111 = vmatprep.subr.mxu0 0.0
    %5112 = vmatpush1.msra.mxu0 0.0
    %5113 = vmatprep.subr.mxu0 0.0
    %5114 = vmatpush1.msra.mxu0 0.0
    %5115 = vmatprep.subr.mxu0 0.0
    %5116 = vmatpush1.msra.mxu0 0.0
    %5117 = vmatprep.mubr.f32.mxu0 0.0
    %5118 = vmatmul.mubr.f32.gmra.mrb[0].mxu0 %v5051
    %v5119 = vpop.f32.mrb[0].mxu0
    %v5120 = vadd.f32 0.0, %v5119
    %v5121 = vpop.f32.mrb[0].mxu0
    %5122 = vdwg.mxu0
    %v5123 = vpack.c.bf16 %v5120, %v5120
    %5124 = vrot.lane.b32.xlu0 %v4093, 120
    %v5125 = vpop.permute.xlu0 %5124
    %5126 = vrot.lane.b32.xlu0 %v4089, 88
    %v5127 = vpop.permute.xlu0 %5126
    %v5128 = vsel %vm203, %v5125, 0
    %v5130 = vsel %vm203, %v5127, 0
    %5132 = vmatprep.subr.mxu0 0.0
    %5133 = vmatpush1.xpose.msra.mxu0 %v5130
    %5134 = vmatprep.subr.mxu0 0.0
    %5135 = vmatpush1.xpose.msra.mxu0 0.0
    %5136 = vmatprep.subr.mxu0 0.0
    %5137 = vmatpush1.xpose.msra.mxu0 0.0
    %5138 = vmatprep.subr.mxu0 0.0
    %5139 = vmatpush1.xpose.msra.mxu0 0.0
    %5140 = vmatprep.subr.mxu0 0.0
    %5141 = vmatpush1.xpose.msra.mxu0 0.0
    %5142 = vmatprep.subr.mxu0 0.0
    %5143 = vmatpush1.xpose.msra.mxu0 0.0
    %5144 = vmatprep.subr.mxu0 0.0
    %5145 = vmatpush1.xpose.msra.mxu0 0.0
    %5146 = vmatprep.subr.mxu0 0.0
    %5147 = vmatpush1.xpose.msra.mxu0 0.0
    %5148 = vmatprep.subr.mxu0 0.0
    %5149 = vmatpush1.xpose.msra.mxu0 0.0
    %5150 = vmatprep.subr.mxu0 0.0
    %5151 = vmatpush1.xpose.msra.mxu0 0.0
    %5152 = vmatprep.subr.mxu0 0.0
    %5153 = vmatpush1.xpose.msra.mxu0 0.0
    %5154 = vmatprep.subr.mxu0 0.0
    %5155 = vmatpush1.xpose.msra.mxu0 0.0
    %5156 = vmatprep.subr.mxu0 0.0
    %5157 = vmatpush1.xpose.msra.mxu0 0.0
    %5158 = vmatprep.subr.mxu0 0.0
    %5159 = vmatpush1.xpose.msra.mxu0 0.0
    %5160 = vmatprep.subr.mxu0 0.0
    %5161 = vmatpush1.xpose.msra.mxu0 0.0
    %5162 = vmatprep.subr.mxu0 0.0
    %5163 = vmatpush1.xpose.msra.mxu0 0.0
    %5164 = vmatprep.subr.mxu0 0.0
    %5165 = vmatpush1.xpose.msra.mxu0 0.0
    %5166 = vmatprep.subr.mxu0 0.0
    %5167 = vmatpush1.xpose.msra.mxu0 0.0
    %5168 = vmatprep.subr.mxu0 0.0
    %5169 = vmatpush1.xpose.msra.mxu0 0.0
    %5170 = vmatprep.subr.mxu0 0.0
    %5171 = vmatpush1.xpose.msra.mxu0 0.0
    %5172 = vmatprep.subr.mxu0 0.0
    %5173 = vmatpush1.xpose.msra.mxu0 0.0
    %5174 = vmatprep.subr.mxu0 0.0
    %5175 = vmatpush1.xpose.msra.mxu0 0.0
    %5176 = vmatprep.subr.mxu0 0.0
    %5177 = vmatpush1.xpose.msra.mxu0 0.0
    %5178 = vmatprep.subr.mxu0 0.0
    %5179 = vmatpush1.xpose.msra.mxu0 0.0
    %5180 = vmatprep.subr.mxu0 0.0
    %5181 = vmatpush1.xpose.msra.mxu0 0.0
    %5182 = vmatprep.subr.mxu0 0.0
    %5183 = vmatpush1.xpose.msra.mxu0 0.0
    %5184 = vmatprep.subr.mxu0 0.0
    %5185 = vmatpush1.xpose.msra.mxu0 0.0
    %5186 = vmatprep.subr.mxu0 0.0
    %5187 = vmatpush1.xpose.msra.mxu0 0.0
    %5188 = vmatprep.subr.mxu0 0.0
    %5189 = vmatpush1.xpose.msra.mxu0 0.0
    %5190 = vmatprep.subr.mxu0 0.0
    %5191 = vmatpush1.xpose.msra.mxu0 0.0
    %5192 = vmatprep.subr.mxu0 0.0
    %5193 = vmatpush1.xpose.msra.mxu0 0.0
    %5194 = vmatprep.subr.mxu0 0.0
    %5195 = vmatpush1.xpose.msra.mxu0 0.0
    %5196 = vmatprep.mubr.f32.mxu0 0.0
    %5197 = vmatmul.mubr.f32.gmra.mrb[0].mxu0 %v5128
    %v5198 = vpop.f32.mrb[0].mxu0
    %v5199 = vadd.f32 0.0, %v5198
    %v5200 = vpop.f32.mrb[0].mxu0
    %5201 = vdwg.mxu0
    %v5202 = vsel %vm203, %v5199, -inf
    %5203 = vmax.xlane.f32.xlu0 %v5202
    %v5204 = vpop.xlane.xlu0 %5203
    %v5205 = vsub.f32 %v5199, %v5204
    %v5206 = vmul.f32 %v5205, 1.442695
    %v5207 = vpow.pop %v5206
    %v5208 = vsel %vm203, %v5207, 0.0
    %5209 = vadd.xlane.f32.xlu0 %v5208
    %v5210 = vpop.xlane.xlu0 %5209
    %v5211 = vrcp.pop %v5210
    %v5212 = vmul.f32 %v5207, %v5211
    %5213 = vrot.lane.b32.xlu0 %v4089, 56
    %v5214 = vpop.permute.xlu0 %5213
    %v5217 = vsel %vm203, %v5212, 0
    %5219 = vmatprep.subr.mxu0 0.0
    %5220 = vmatpush1.msra.mxu0 %v5214
    %5221 = vmatprep.subr.mxu0 0.0
    %5222 = vmatpush1.msra.mxu0 0.0
    %5223 = vmatprep.subr.mxu0 0.0
    %5224 = vmatpush1.msra.mxu0 0.0
    %5225 = vmatprep.subr.mxu0 0.0
    %5226 = vmatpush1.msra.mxu0 0.0
    %5227 = vmatprep.subr.mxu0 0.0
    %5228 = vmatpush1.msra.mxu0 0.0
    %5229 = vmatprep.subr.mxu0 0.0
    %5230 = vmatpush1.msra.mxu0 0.0
    %5231 = vmatprep.subr.mxu0 0.0
    %5232 = vmatpush1.msra.mxu0 0.0
    %5233 = vmatprep.subr.mxu0 0.0
    %5234 = vmatpush1.msra.mxu0 0.0
    %5235 = vmatprep.subr.mxu0 0.0
    %5236 = vmatpush1.msra.mxu0 0.0
    %5237 = vmatprep.subr.mxu0 0.0
    %5238 = vmatpush1.msra.mxu0 0.0
    %5239 = vmatprep.subr.mxu0 0.0
    %5240 = vmatpush1.msra.mxu0 0.0
    %5241 = vmatprep.subr.mxu0 0.0
    %5242 = vmatpush1.msra.mxu0 0.0
    %5243 = vmatprep.subr.mxu0 0.0
    %5244 = vmatpush1.msra.mxu0 0.0
    %5245 = vmatprep.subr.mxu0 0.0
    %5246 = vmatpush1.msra.mxu0 0.0
    %5247 = vmatprep.subr.mxu0 0.0
    %5248 = vmatpush1.msra.mxu0 0.0
    %5249 = vmatprep.subr.mxu0 0.0
    %5250 = vmatpush1.msra.mxu0 0.0
    %5251 = vmatprep.subr.mxu0 0.0
    %5252 = vmatpush1.msra.mxu0 0.0
    %5253 = vmatprep.subr.mxu0 0.0
    %5254 = vmatpush1.msra.mxu0 0.0
    %5255 = vmatprep.subr.mxu0 0.0
    %5256 = vmatpush1.msra.mxu0 0.0
    %5257 = vmatprep.subr.mxu0 0.0
    %5258 = vmatpush1.msra.mxu0 0.0
    %5259 = vmatprep.subr.mxu0 0.0
    %5260 = vmatpush1.msra.mxu0 0.0
    %5261 = vmatprep.subr.mxu0 0.0
    %5262 = vmatpush1.msra.mxu0 0.0
    %5263 = vmatprep.subr.mxu0 0.0
    %5264 = vmatpush1.msra.mxu0 0.0
    %5265 = vmatprep.subr.mxu0 0.0
    %5266 = vmatpush1.msra.mxu0 0.0
    %5267 = vmatprep.subr.mxu0 0.0
    %5268 = vmatpush1.msra.mxu0 0.0
    %5269 = vmatprep.subr.mxu0 0.0
    %5270 = vmatpush1.msra.mxu0 0.0
    %5271 = vmatprep.subr.mxu0 0.0
    %5272 = vmatpush1.msra.mxu0 0.0
    %5273 = vmatprep.subr.mxu0 0.0
    %5274 = vmatpush1.msra.mxu0 0.0
    %5275 = vmatprep.subr.mxu0 0.0
    %5276 = vmatpush1.msra.mxu0 0.0
    %5277 = vmatprep.subr.mxu0 0.0
    %5278 = vmatpush1.msra.mxu0 0.0
    %5279 = vmatprep.subr.mxu0 0.0
    %5280 = vmatpush1.msra.mxu0 0.0
    %5281 = vmatprep.subr.mxu0 0.0
    %5282 = vmatpush1.msra.mxu0 0.0
    %5283 = vmatprep.mubr.f32.mxu0 0.0
    %5284 = vmatmul.mubr.f32.gmra.mrb[0].mxu0 %v5217
    %v5285 = vpop.f32.mrb[0].mxu0
    %v5286 = vadd.f32 0.0, %v5285
    %v5287 = vpop.f32.mrb[0].mxu0
    %5288 = vdwg.mxu0
    %v5289 = vpack.c.bf16 %v5286, %v5286
    %v5291 = vsel %vm203, %v5289, 0
    %5293 = vmatprep.subr.bf16.mxu0 0
    %5294 = vmatpush1.bf16.msra.mxu0 %v4437
    %5295 = vmatprep.subr.bf16.mxu0 0
    %5296 = vmatpush1.bf16.msra.mxu0 0
    %5297 = vmatprep.subr.bf16.mxu0 0
    %5298 = vmatpush1.bf16.msra.mxu0 0
    %5299 = vmatprep.subr.bf16.mxu0 0
    %5300 = vmatpush1.bf16.msra.mxu0 0
    %5301 = vmatprep.subr.bf16.mxu0 0
    %5302 = vmatpush1.bf16.msra.mxu0 0
    %5303 = vmatprep.subr.bf16.mxu0 0
    %5304 = vmatpush1.bf16.msra.mxu0 0
    %5305 = vmatprep.subr.bf16.mxu0 0
    %5306 = vmatpush1.bf16.msra.mxu0 0
    %5307 = vmatprep.subr.bf16.mxu0 0
    %5308 = vmatpush1.bf16.msra.mxu0 0
    %5309 = vmatprep.subr.bf16.mxu0 0
    %5310 = vmatpush1.bf16.msra.mxu0 0
    %5311 = vmatprep.subr.bf16.mxu0 0
    %5312 = vmatpush1.bf16.msra.mxu0 0
    %5313 = vmatprep.subr.bf16.mxu0 0
    %5314 = vmatpush1.bf16.msra.mxu0 0
    %5315 = vmatprep.subr.bf16.mxu0 0
    %5316 = vmatpush1.bf16.msra.mxu0 0
    %5317 = vmatprep.subr.bf16.mxu0 0
    %5318 = vmatpush1.bf16.msra.mxu0 0
    %5319 = vmatprep.subr.bf16.mxu0 0
    %5320 = vmatpush1.bf16.msra.mxu0 0
    %5321 = vmatprep.subr.bf16.mxu0 0
    %5322 = vmatpush1.bf16.msra.mxu0 0
    %5323 = vmatprep.subr.bf16.mxu0 0
    %5324 = vmatpush1.bf16.msra.mxu0 0
    %5325 = vmatprep.mubr.bf16.mxu0 0
    %5326 = vmatmul.mubr.bf16.gmra.mrb[0].mxu0 %v5291
    %v5327 = vpop.f32.mrb[0].mxu0
    %v5328 = vadd.f32 0.0, %v5327
    %v5329 = vpop.f32.mrb[0].mxu0
    %v5330 = vpop.f32.mrb[0].mxu0
    %v5331 = vpop.f32.mrb[0].mxu0
    %5332 = vdwg.mxu0
    %v5334 = vsel %vm203, %v5123, 0
    %5336 = vmatprep.subr.bf16.mxu0 0
    %5337 = vmatpush1.bf16.msra.mxu0 %v4483
    %5338 = vmatprep.subr.bf16.mxu0 0
    %5339 = vmatpush1.bf16.msra.mxu0 0
    %5340 = vmatprep.subr.bf16.mxu0 0
    %5341 = vmatpush1.bf16.msra.mxu0 0
    %5342 = vmatprep.subr.bf16.mxu0 0
    %5343 = vmatpush1.bf16.msra.mxu0 0
    %5344 = vmatprep.subr.bf16.mxu0 0
    %5345 = vmatpush1.bf16.msra.mxu0 0
    %5346 = vmatprep.subr.bf16.mxu0 0
    %5347 = vmatpush1.bf16.msra.mxu0 0
    %5348 = vmatprep.subr.bf16.mxu0 0
    %5349 = vmatpush1.bf16.msra.mxu0 0
    %5350 = vmatprep.subr.bf16.mxu0 0
    %5351 = vmatpush1.bf16.msra.mxu0 0
    %5352 = vmatprep.subr.bf16.mxu0 0
    %5353 = vmatpush1.bf16.msra.mxu0 0
    %5354 = vmatprep.subr.bf16.mxu0 0
    %5355 = vmatpush1.bf16.msra.mxu0 0
    %5356 = vmatprep.subr.bf16.mxu0 0
    %5357 = vmatpush1.bf16.msra.mxu0 0
    %5358 = vmatprep.subr.bf16.mxu0 0
    %5359 = vmatpush1.bf16.msra.mxu0 0
    %5360 = vmatprep.subr.bf16.mxu0 0
    %5361 = vmatpush1.bf16.msra.mxu0 0
    %5362 = vmatprep.subr.bf16.mxu0 0
    %5363 = vmatpush1.bf16.msra.mxu0 0
    %5364 = vmatprep.subr.bf16.mxu0 0
    %5365 = vmatpush1.bf16.msra.mxu0 0
    %5366 = vmatprep.subr.bf16.mxu0 0
    %5367 = vmatpush1.bf16.msra.mxu0 0
    %5368 = vmatprep.mubr.bf16.mxu0 0
    %5369 = vmatmul.mubr.bf16.gmra.mrb[0].mxu0 %v5334
    %v5370 = vpop.f32.mrb[0].mxu0
    %v5371 = vadd.f32 %v5328, %v5370
    %v5372 = vpop.f32.mrb[0].mxu0
    %v5373 = vpop.f32.mrb[0].mxu0
    %v5374 = vpop.f32.mrb[0].mxu0
    %5375 = vdwg.mxu0
    %5376 = vrot.lane.b32.xlu0 %v4093, 112
    %v5377 = vpop.permute.xlu0 %5376
    %5378 = vrot.lane.b32.xlu0 %v4089, 80
    %v5379 = vpop.permute.xlu0 %5378
    %v5380 = vsel %vm203, %v5377, 0
    %v5382 = vsel %vm203, %v5379, 0
    %5384 = vmatprep.subr.mxu0 0.0
    %5385 = vmatpush1.xpose.msra.mxu0 %v5382
    %5386 = vmatprep.subr.mxu0 0.0
    %5387 = vmatpush1.xpose.msra.mxu0 0.0
    %5388 = vmatprep.subr.mxu0 0.0
    %5389 = vmatpush1.xpose.msra.mxu0 0.0
    %5390 = vmatprep.subr.mxu0 0.0
    %5391 = vmatpush1.xpose.msra.mxu0 0.0
    %5392 = vmatprep.subr.mxu0 0.0
    %5393 = vmatpush1.xpose.msra.mxu0 0.0
    %5394 = vmatprep.subr.mxu0 0.0
    %5395 = vmatpush1.xpose.msra.mxu0 0.0
    %5396 = vmatprep.subr.mxu0 0.0
    %5397 = vmatpush1.xpose.msra.mxu0 0.0
    %5398 = vmatprep.subr.mxu0 0.0
    %5399 = vmatpush1.xpose.msra.mxu0 0.0
    %5400 = vmatprep.subr.mxu0 0.0
    %5401 = vmatpush1.xpose.msra.mxu0 0.0
    %5402 = vmatprep.subr.mxu0 0.0
    %5403 = vmatpush1.xpose.msra.mxu0 0.0
    %5404 = vmatprep.subr.mxu0 0.0
    %5405 = vmatpush1.xpose.msra.mxu0 0.0
    %5406 = vmatprep.subr.mxu0 0.0
    %5407 = vmatpush1.xpose.msra.mxu0 0.0
    %5408 = vmatprep.subr.mxu0 0.0
    %5409 = vmatpush1.xpose.msra.mxu0 0.0
    %5410 = vmatprep.subr.mxu0 0.0
    %5411 = vmatpush1.xpose.msra.mxu0 0.0
    %5412 = vmatprep.subr.mxu0 0.0
    %5413 = vmatpush1.xpose.msra.mxu0 0.0
    %5414 = vmatprep.subr.mxu0 0.0
    %5415 = vmatpush1.xpose.msra.mxu0 0.0
    %5416 = vmatprep.subr.mxu0 0.0
    %5417 = vmatpush1.xpose.msra.mxu0 0.0
    %5418 = vmatprep.subr.mxu0 0.0
    %5419 = vmatpush1.xpose.msra.mxu0 0.0
    %5420 = vmatprep.subr.mxu0 0.0
    %5421 = vmatpush1.xpose.msra.mxu0 0.0
    %5422 = vmatprep.subr.mxu0 0.0
    %5423 = vmatpush1.xpose.msra.mxu0 0.0
    %5424 = vmatprep.subr.mxu0 0.0
    %5425 = vmatpush1.xpose.msra.mxu0 0.0
    %5426 = vmatprep.subr.mxu0 0.0
    %5427 = vmatpush1.xpose.msra.mxu0 0.0
    %5428 = vmatprep.subr.mxu0 0.0
    %5429 = vmatpush1.xpose.msra.mxu0 0.0
    %5430 = vmatprep.subr.mxu0 0.0
    %5431 = vmatpush1.xpose.msra.mxu0 0.0
    %5432 = vmatprep.subr.mxu0 0.0
    %5433 = vmatpush1.xpose.msra.mxu0 0.0
    %5434 = vmatprep.subr.mxu0 0.0
    %5435 = vmatpush1.xpose.msra.mxu0 0.0
    %5436 = vmatprep.subr.mxu0 0.0
    %5437 = vmatpush1.xpose.msra.mxu0 0.0
    %5438 = vmatprep.subr.mxu0 0.0
    %5439 = vmatpush1.xpose.msra.mxu0 0.0
    %5440 = vmatprep.subr.mxu0 0.0
    %5441 = vmatpush1.xpose.msra.mxu0 0.0
    %5442 = vmatprep.subr.mxu0 0.0
    %5443 = vmatpush1.xpose.msra.mxu0 0.0
    %5444 = vmatprep.subr.mxu0 0.0
    %5445 = vmatpush1.xpose.msra.mxu0 0.0
    %5446 = vmatprep.subr.mxu0 0.0
    %5447 = vmatpush1.xpose.msra.mxu0 0.0
    %5448 = vmatprep.mubr.f32.mxu0 0.0
    %5449 = vmatmul.mubr.f32.gmra.mrb[0].mxu0 %v5380
    %v5450 = vpop.f32.mrb[0].mxu0
    %v5451 = vadd.f32 0.0, %v5450
    %v5452 = vpop.f32.mrb[0].mxu0
    %5453 = vdwg.mxu0
    %v5454 = vsel %vm203, %v5451, -inf
    %5455 = vmax.xlane.f32.xlu0 %v5454
    %v5456 = vpop.xlane.xlu0 %5455
    %v5457 = vsub.f32 %v5451, %v5456
    %v5458 = vmul.f32 %v5457, 1.442695
    %v5459 = vpow.pop %v5458
    %v5460 = vsel %vm203, %v5459, 0.0
    %5461 = vadd.xlane.f32.xlu0 %v5460
    %v5462 = vpop.xlane.xlu0 %5461
    %v5463 = vrcp.pop %v5462
    %v5464 = vmul.f32 %v5459, %v5463
    %5465 = vrot.lane.b32.xlu0 %v4089, 48
    %v5466 = vpop.permute.xlu0 %5465
    %v5469 = vsel %vm203, %v5464, 0
    %5471 = vmatprep.subr.mxu0 0.0
    %5472 = vmatpush1.msra.mxu0 %v5466
    %5473 = vmatprep.subr.mxu0 0.0
    %5474 = vmatpush1.msra.mxu0 0.0
    %5475 = vmatprep.subr.mxu0 0.0
    %5476 = vmatpush1.msra.mxu0 0.0
    %5477 = vmatprep.subr.mxu0 0.0
    %5478 = vmatpush1.msra.mxu0 0.0
    %5479 = vmatprep.subr.mxu0 0.0
    %5480 = vmatpush1.msra.mxu0 0.0
    %5481 = vmatprep.subr.mxu0 0.0
    %5482 = vmatpush1.msra.mxu0 0.0
    %5483 = vmatprep.subr.mxu0 0.0
    %5484 = vmatpush1.msra.mxu0 0.0
    %5485 = vmatprep.subr.mxu0 0.0
    %5486 = vmatpush1.msra.mxu0 0.0
    %5487 = vmatprep.subr.mxu0 0.0
    %5488 = vmatpush1.msra.mxu0 0.0
    %5489 = vmatprep.subr.mxu0 0.0
    %5490 = vmatpush1.msra.mxu0 0.0
    %5491 = vmatprep.subr.mxu0 0.0
    %5492 = vmatpush1.msra.mxu0 0.0
    %5493 = vmatprep.subr.mxu0 0.0
    %5494 = vmatpush1.msra.mxu0 0.0
    %5495 = vmatprep.subr.mxu0 0.0
    %5496 = vmatpush1.msra.mxu0 0.0
    %5497 = vmatprep.subr.mxu0 0.0
    %5498 = vmatpush1.msra.mxu0 0.0
    %5499 = vmatprep.subr.mxu0 0.0
    %5500 = vmatpush1.msra.mxu0 0.0
    %5501 = vmatprep.subr.mxu0 0.0
    %5502 = vmatpush1.msra.mxu0 0.0
    %5503 = vmatprep.subr.mxu0 0.0
    %5504 = vmatpush1.msra.mxu0 0.0
    %5505 = vmatprep.subr.mxu0 0.0
    %5506 = vmatpush1.msra.mxu0 0.0
    %5507 = vmatprep.subr.mxu0 0.0
    %5508 = vmatpush1.msra.mxu0 0.0
    %5509 = vmatprep.subr.mxu0 0.0
    %5510 = vmatpush1.msra.mxu0 0.0
    %5511 = vmatprep.subr.mxu0 0.0
    %5512 = vmatpush1.msra.mxu0 0.0
    %5513 = vmatprep.subr.mxu0 0.0
    %5514 = vmatpush1.msra.mxu0 0.0
    %5515 = vmatprep.subr.mxu0 0.0
    %5516 = vmatpush1.msra.mxu0 0.0
    %5517 = vmatprep.subr.mxu0 0.0
    %5518 = vmatpush1.msra.mxu0 0.0
    %5519 = vmatprep.subr.mxu0 0.0
    %5520 = vmatpush1.msra.mxu0 0.0
    %5521 = vmatprep.subr.mxu0 0.0
    %5522 = vmatpush1.msra.mxu0 0.0
    %5523 = vmatprep.subr.mxu0 0.0
    %5524 = vmatpush1.msra.mxu0 0.0
    %5525 = vmatprep.subr.mxu0 0.0
    %5526 = vmatpush1.msra.mxu0 0.0
    %5527 = vmatprep.subr.mxu0 0.0
    %5528 = vmatpush1.msra.mxu0 0.0
    %5529 = vmatprep.subr.mxu0 0.0
    %5530 = vmatpush1.msra.mxu0 0.0
    %5531 = vmatprep.subr.mxu0 0.0
    %5532 = vmatpush1.msra.mxu0 0.0
    %5533 = vmatprep.subr.mxu0 0.0
    %5534 = vmatpush1.msra.mxu0 0.0
    %5535 = vmatprep.mubr.f32.mxu0 0.0
    %5536 = vmatmul.mubr.f32.gmra.mrb[0].mxu0 %v5469
    %v5537 = vpop.f32.mrb[0].mxu0
    %v5538 = vadd.f32 0.0, %v5537
    %v5539 = vpop.f32.mrb[0].mxu0
    %5540 = vdwg.mxu0
    %v5541 = vpack.c.bf16 %v5538, %v5538
    %v5543 = vsel %vm203, %v5541, 0
    %5545 = vmatprep.subr.bf16.mxu0 0
    %5546 = vmatpush1.bf16.msra.mxu0 %v4695
    %5547 = vmatprep.subr.bf16.mxu0 0
    %5548 = vmatpush1.bf16.msra.mxu0 0
    %5549 = vmatprep.subr.bf16.mxu0 0
    %5550 = vmatpush1.bf16.msra.mxu0 0
    %5551 = vmatprep.subr.bf16.mxu0 0
    %5552 = vmatpush1.bf16.msra.mxu0 0
    %5553 = vmatprep.subr.bf16.mxu0 0
    %5554 = vmatpush1.bf16.msra.mxu0 0
    %5555 = vmatprep.subr.bf16.mxu0 0
    %5556 = vmatpush1.bf16.msra.mxu0 0
    %5557 = vmatprep.subr.bf16.mxu0 0
    %5558 = vmatpush1.bf16.msra.mxu0 0
    %5559 = vmatprep.subr.bf16.mxu0 0
    %5560 = vmatpush1.bf16.msra.mxu0 0
    %5561 = vmatprep.subr.bf16.mxu0 0
    %5562 = vmatpush1.bf16.msra.mxu0 0
    %5563 = vmatprep.subr.bf16.mxu0 0
    %5564 = vmatpush1.bf16.msra.mxu0 0
    %5565 = vmatprep.subr.bf16.mxu0 0
    %5566 = vmatpush1.bf16.msra.mxu0 0
    %5567 = vmatprep.subr.bf16.mxu0 0
    %5568 = vmatpush1.bf16.msra.mxu0 0
    %5569 = vmatprep.subr.bf16.mxu0 0
    %5570 = vmatpush1.bf16.msra.mxu0 0
    %5571 = vmatprep.subr.bf16.mxu0 0
    %5572 = vmatpush1.bf16.msra.mxu0 0
    %5573 = vmatprep.subr.bf16.mxu0 0
    %5574 = vmatpush1.bf16.msra.mxu0 0
    %5575 = vmatprep.subr.bf16.mxu0 0
    %5576 = vmatpush1.bf16.msra.mxu0 0
    %5577 = vmatprep.mubr.bf16.mxu0 0
    %5578 = vmatmul.mubr.bf16.gmra.mrb[0].mxu0 %v5543
    %v5579 = vpop.f32.mrb[0].mxu0
    %v5580 = vadd.f32 0.0, %v5579
    %v5581 = vpop.f32.mrb[0].mxu0
    %v5582 = vpop.f32.mrb[0].mxu0
    %v5583 = vpop.f32.mrb[0].mxu0
    %5584 = vdwg.mxu0
    %v5585 = vadd.f32 %v5371, %v5580
    %5586 = vrot.lane.b32.xlu0 %v4093, 104
    %v5587 = vpop.permute.xlu0 %5586
    %5588 = vrot.lane.b32.xlu0 %v4089, 72
    %v5589 = vpop.permute.xlu0 %5588
    %v5590 = vsel %vm203, %v5587, 0
    %v5592 = vsel %vm203, %v5589, 0
    %5594 = vmatprep.subr.mxu0 0.0
    %5595 = vmatpush1.xpose.msra.mxu0 %v5592
    %5596 = vmatprep.subr.mxu0 0.0
    %5597 = vmatpush1.xpose.msra.mxu0 0.0
    %5598 = vmatprep.subr.mxu0 0.0
    %5599 = vmatpush1.xpose.msra.mxu0 0.0
    %5600 = vmatprep.subr.mxu0 0.0
    %5601 = vmatpush1.xpose.msra.mxu0 0.0
    %5602 = vmatprep.subr.mxu0 0.0
    %5603 = vmatpush1.xpose.msra.mxu0 0.0
    %5604 = vmatprep.subr.mxu0 0.0
    %5605 = vmatpush1.xpose.msra.mxu0 0.0
    %5606 = vmatprep.subr.mxu0 0.0
    %5607 = vmatpush1.xpose.msra.mxu0 0.0
    %5608 = vmatprep.subr.mxu0 0.0
    %5609 = vmatpush1.xpose.msra.mxu0 0.0
    %5610 = vmatprep.subr.mxu0 0.0
    %5611 = vmatpush1.xpose.msra.mxu0 0.0
    %5612 = vmatprep.subr.mxu0 0.0
    %5613 = vmatpush1.xpose.msra.mxu0 0.0
    %5614 = vmatprep.subr.mxu0 0.0
    %5615 = vmatpush1.xpose.msra.mxu0 0.0
    %5616 = vmatprep.subr.mxu0 0.0
    %5617 = vmatpush1.xpose.msra.mxu0 0.0
    %5618 = vmatprep.subr.mxu0 0.0
    %5619 = vmatpush1.xpose.msra.mxu0 0.0
    %5620 = vmatprep.subr.mxu0 0.0
    %5621 = vmatpush1.xpose.msra.mxu0 0.0
    %5622 = vmatprep.subr.mxu0 0.0
    %5623 = vmatpush1.xpose.msra.mxu0 0.0
    %5624 = vmatprep.subr.mxu0 0.0
    %5625 = vmatpush1.xpose.msra.mxu0 0.0
    %5626 = vmatprep.subr.mxu0 0.0
    %5627 = vmatpush1.xpose.msra.mxu0 0.0
    %5628 = vmatprep.subr.mxu0 0.0
    %5629 = vmatpush1.xpose.msra.mxu0 0.0
    %5630 = vmatprep.subr.mxu0 0.0
    %5631 = vmatpush1.xpose.msra.mxu0 0.0
    %5632 = vmatprep.subr.mxu0 0.0
    %5633 = vmatpush1.xpose.msra.mxu0 0.0
    %5634 = vmatprep.subr.mxu0 0.0
    %5635 = vmatpush1.xpose.msra.mxu0 0.0
    %5636 = vmatprep.subr.mxu0 0.0
    %5637 = vmatpush1.xpose.msra.mxu0 0.0
    %5638 = vmatprep.subr.mxu0 0.0
    %5639 = vmatpush1.xpose.msra.mxu0 0.0
    %5640 = vmatprep.subr.mxu0 0.0
    %5641 = vmatpush1.xpose.msra.mxu0 0.0
    %5642 = vmatprep.subr.mxu0 0.0
    %5643 = vmatpush1.xpose.msra.mxu0 0.0
    %5644 = vmatprep.subr.mxu0 0.0
    %5645 = vmatpush1.xpose.msra.mxu0 0.0
    %5646 = vmatprep.subr.mxu0 0.0
    %5647 = vmatpush1.xpose.msra.mxu0 0.0
    %5648 = vmatprep.subr.mxu0 0.0
    %5649 = vmatpush1.xpose.msra.mxu0 0.0
    %5650 = vmatprep.subr.mxu0 0.0
    %5651 = vmatpush1.xpose.msra.mxu0 0.0
    %5652 = vmatprep.subr.mxu0 0.0
    %5653 = vmatpush1.xpose.msra.mxu0 0.0
    %5654 = vmatprep.subr.mxu0 0.0
    %5655 = vmatpush1.xpose.msra.mxu0 0.0
    %5656 = vmatprep.subr.mxu0 0.0
    %5657 = vmatpush1.xpose.msra.mxu0 0.0
    %5658 = vmatprep.mubr.f32.mxu0 0.0
    %5659 = vmatmul.mubr.f32.gmra.mrb[0].mxu0 %v5590
    %v5660 = vpop.f32.mrb[0].mxu0
    %v5661 = vadd.f32 0.0, %v5660
    %v5662 = vpop.f32.mrb[0].mxu0
    %5663 = vdwg.mxu0
    %v5664 = vsel %vm203, %v5661, -inf
    %5665 = vmax.xlane.f32.xlu0 %v5664
    %v5666 = vpop.xlane.xlu0 %5665
    %v5667 = vsub.f32 %v5661, %v5666
    %v5668 = vmul.f32 %v5667, 1.442695
    %v5669 = vpow.pop %v5668
    %v5670 = vsel %vm203, %v5669, 0.0
    %5671 = vadd.xlane.f32.xlu0 %v5670
    %v5672 = vpop.xlane.xlu0 %5671
    %v5673 = vrcp.pop %v5672
    %v5674 = vmul.f32 %v5669, %v5673
    %5675 = vrot.lane.b32.xlu0 %v4089, 40
    %v5676 = vpop.permute.xlu0 %5675
    %v5679 = vsel %vm203, %v5674, 0
    %5681 = vmatprep.subr.mxu0 0.0
    %5682 = vmatpush1.msra.mxu0 %v5676
    %5683 = vmatprep.subr.mxu0 0.0
    %5684 = vmatpush1.msra.mxu0 0.0
    %5685 = vmatprep.subr.mxu0 0.0
    %5686 = vmatpush1.msra.mxu0 0.0
    %5687 = vmatprep.subr.mxu0 0.0
    %5688 = vmatpush1.msra.mxu0 0.0
    %5689 = vmatprep.subr.mxu0 0.0
    %5690 = vmatpush1.msra.mxu0 0.0
    %5691 = vmatprep.subr.mxu0 0.0
    %5692 = vmatpush1.msra.mxu0 0.0
    %5693 = vmatprep.subr.mxu0 0.0
    %5694 = vmatpush1.msra.mxu0 0.0
    %5695 = vmatprep.subr.mxu0 0.0
    %5696 = vmatpush1.msra.mxu0 0.0
    %5697 = vmatprep.subr.mxu0 0.0
    %5698 = vmatpush1.msra.mxu0 0.0
    %5699 = vmatprep.subr.mxu0 0.0
    %5700 = vmatpush1.msra.mxu0 0.0
    %5701 = vmatprep.subr.mxu0 0.0
    %5702 = vmatpush1.msra.mxu0 0.0
    %5703 = vmatprep.subr.mxu0 0.0
    %5704 = vmatpush1.msra.mxu0 0.0
    %5705 = vmatprep.subr.mxu0 0.0
    %5706 = vmatpush1.msra.mxu0 0.0
    %5707 = vmatprep.subr.mxu0 0.0
    %5708 = vmatpush1.msra.mxu0 0.0
    %5709 = vmatprep.subr.mxu0 0.0
    %5710 = vmatpush1.msra.mxu0 0.0
    %5711 = vmatprep.subr.mxu0 0.0
    %5712 = vmatpush1.msra.mxu0 0.0
    %5713 = vmatprep.subr.mxu0 0.0
    %5714 = vmatpush1.msra.mxu0 0.0
    %5715 = vmatprep.subr.mxu0 0.0
    %5716 = vmatpush1.msra.mxu0 0.0
    %5717 = vmatprep.subr.mxu0 0.0
    %5718 = vmatpush1.msra.mxu0 0.0
    %5719 = vmatprep.subr.mxu0 0.0
    %5720 = vmatpush1.msra.mxu0 0.0
    %5721 = vmatprep.subr.mxu0 0.0
    %5722 = vmatpush1.msra.mxu0 0.0
    %5723 = vmatprep.subr.mxu0 0.0
    %5724 = vmatpush1.msra.mxu0 0.0
    %5725 = vmatprep.subr.mxu0 0.0
    %5726 = vmatpush1.msra.mxu0 0.0
    %5727 = vmatprep.subr.mxu0 0.0
    %5728 = vmatpush1.msra.mxu0 0.0
    %5729 = vmatprep.subr.mxu0 0.0
    %5730 = vmatpush1.msra.mxu0 0.0
    %5731 = vmatprep.subr.mxu0 0.0
    %5732 = vmatpush1.msra.mxu0 0.0
    %5733 = vmatprep.subr.mxu0 0.0
    %5734 = vmatpush1.msra.mxu0 0.0
    %5735 = vmatprep.subr.mxu0 0.0
    %5736 = vmatpush1.msra.mxu0 0.0
    %5737 = vmatprep.subr.mxu0 0.0
    %5738 = vmatpush1.msra.mxu0 0.0
    %5739 = vmatprep.subr.mxu0 0.0
    %5740 = vmatpush1.msra.mxu0 0.0
    %5741 = vmatprep.subr.mxu0 0.0
    %5742 = vmatpush1.msra.mxu0 0.0
    %5743 = vmatprep.subr.mxu0 0.0
    %5744 = vmatpush1.msra.mxu0 0.0
    %5745 = vmatprep.mubr.f32.mxu0 0.0
    %5746 = vmatmul.mubr.f32.gmra.mrb[0].mxu0 %v5679
    %v5747 = vpop.f32.mrb[0].mxu0
    %v5748 = vadd.f32 0.0, %v5747
    %v5749 = vpop.f32.mrb[0].mxu0
    %5750 = vdwg.mxu0
    %v5751 = vpack.c.bf16 %v5748, %v5748
    %v5753 = vsel %vm203, %v5751, 0
    %5755 = vmatprep.subr.bf16.mxu0 0
    %5756 = vmatpush1.bf16.msra.mxu0 %v4908
    %5757 = vmatprep.subr.bf16.mxu0 0
    %5758 = vmatpush1.bf16.msra.mxu0 0
    %5759 = vmatprep.subr.bf16.mxu0 0
    %5760 = vmatpush1.bf16.msra.mxu0 0
    %5761 = vmatprep.subr.bf16.mxu0 0
    %5762 = vmatpush1.bf16.msra.mxu0 0
    %5763 = vmatprep.subr.bf16.mxu0 0
    %5764 = vmatpush1.bf16.msra.mxu0 0
    %5765 = vmatprep.subr.bf16.mxu0 0
    %5766 = vmatpush1.bf16.msra.mxu0 0
    %5767 = vmatprep.subr.bf16.mxu0 0
    %5768 = vmatpush1.bf16.msra.mxu0 0
    %5769 = vmatprep.subr.bf16.mxu0 0
    %5770 = vmatpush1.bf16.msra.mxu0 0
    %5771 = vmatprep.subr.bf16.mxu0 0
    %5772 = vmatpush1.bf16.msra.mxu0 0
    %5773 = vmatprep.subr.bf16.mxu0 0
    %5774 = vmatpush1.bf16.msra.mxu0 0
    %5775 = vmatprep.subr.bf16.mxu0 0
    %5776 = vmatpush1.bf16.msra.mxu0 0
    %5777 = vmatprep.subr.bf16.mxu0 0
    %5778 = vmatpush1.bf16.msra.mxu0 0
    %5779 = vmatprep.subr.bf16.mxu0 0
    %5780 = vmatpush1.bf16.msra.mxu0 0
    %5781 = vmatprep.subr.bf16.mxu0 0
    %5782 = vmatpush1.bf16.msra.mxu0 0
    %5783 = vmatprep.subr.bf16.mxu0 0
    %5784 = vmatpush1.bf16.msra.mxu0 0
    %5785 = vmatprep.subr.bf16.mxu0 0
    %5786 = vmatpush1.bf16.msra.mxu0 0
    %5787 = vmatprep.mubr.bf16.mxu0 0
    %5788 = vmatmul.mubr.bf16.gmra.mrb[0].mxu0 %v5753
    %v5789 = vpop.f32.mrb[0].mxu0
    %v5790 = vadd.f32 0.0, %v5789
    %v5791 = vpop.f32.mrb[0].mxu0
    %v5792 = vpop.f32.mrb[0].mxu0
    %v5793 = vpop.f32.mrb[0].mxu0
    %5794 = vdwg.mxu0
    %v5795 = vadd.f32 %v5585, %v5790
    %v5796 = vadd.f32 %v5795, %v4955
    %v5797 = vadd.f32 %v4020, %v4957
    %v5798 = vadd.f32 %v4021, %v5796
    %s5799 = scalar_lea.vmem %s7, 1
    %v5800 = vld [vmem:[%s5799] sm:$0x1]
    %s5801 = scalar_lea.vmem %s8, 1
    %v5802 = vld [vmem:[%s5801] sm:$0x1]
    %v5803 = vsel %vm148, %v5797, 0.0
    %5804 = vadd.xlane.f32.xlu0 %v5803
    %v5805 = vpop.xlane.xlu0 %5804
    %v5806 = vsel %vm148, %v5798, 0.0
    %5807 = vadd.xlane.f32.xlu0 %v5806
    %v5808 = vpop.xlane.xlu0 %5807
    %v5809 = vmul.f32 %v5805, %v1908
    %v5810 = vmul.f32 %v5808, %v1908
    %v5811 = vsub.f32 %v5797, %v5809
    %v5812 = vsub.f32 %v5798, %v5810
    %v5813 = vmul.f32 %v5811, %v5811
    %v5814 = vmul.f32 %v5812, %v5812
    %v5815 = vsel %vm148, %v5813, 0.0
    %5816 = vadd.xlane.f32.xlu0 %v5815
    %v5817 = vpop.xlane.xlu0 %5816
    %v5818 = vsel %vm148, %v5814, 0.0
    %5819 = vadd.xlane.f32.xlu0 %v5818
    %v5820 = vpop.xlane.xlu0 %5819
    %v5821 = vmul.f32 %v5817, %v1908
    %v5822 = vmul.f32 %v5820, %v1908
    %v5823 = vadd.f32 %v5821, 1e-05
    %v5824 = vadd.f32 %v5822, 1e-05
    %v5825 = vrsqrt.pop %v5823
    %v5826 = vrsqrt.pop %v5824
    %v5827 = vmul.f32 %v5811, %v5825
    %v5828 = vmul.f32 %v5812, %v5826
    %v5830 = vlaneseq
    %v5831 = vshrl.u32 %v5830, 7
    %v5832 = vsub.s32 0, %v5831
    %v5833 = vrot.slane %v5800, %v5832
    %v5835 = vmul.f32 %v5827, %v5833
    %v5836 = vmul.f32 %v5828, %v5833
    %v5838 = vlaneseq
    %v5839 = vshrl.u32 %v5838, 7
    %v5840 = vsub.s32 0, %v5839
    %v5841 = vrot.slane %v5802, %v5840
    %v5843 = vadd.f32 %v5835, %v5841
    %v5844 = vadd.f32 %v5836, %v5841
    %s5845 = scalar_lea.vmem %s9, 256
    %v5846 = vld [vmem:[%s5845] sm:$0xff]
    %v5847 = vld [vmem:[%s5845 + $0x8] sm:$0xff]
    %v5848 = vld [vmem:[%s5845 + $0x10] sm:$0xff]
    %v5849 = vld [vmem:[%s5845 + $0x18] sm:$0xff]
    %v5850 = vld [vmem:[%s5845 + $0x20] sm:$0xff]
    %v5851 = vld [vmem:[%s5845 + $0x28] sm:$0xff]
    %v5852 = vld [vmem:[%s5845 + $0x30] sm:$0xff]
    %v5853 = vld [vmem:[%s5845 + $0x38] sm:$0xff]
    %v5854 = vld [vmem:[%s5845 + $0x40] sm:$0xff]
    %v5855 = vld [vmem:[%s5845 + $0x48] sm:$0xff]
    %v5856 = vld [vmem:[%s5845 + $0x50] sm:$0xff]
    %v5857 = vld [vmem:[%s5845 + $0x58] sm:$0xff]
    %v5858 = vld [vmem:[%s5845 + $0x60] sm:$0xff]
    %v5859 = vld [vmem:[%s5845 + $0x68] sm:$0xff]
    %v5860 = vld [vmem:[%s5845 + $0x70] sm:$0xff]
    %v5861 = vld [vmem:[%s5845 + $0x78] sm:$0xff]
    %v5862 = vld [vmem:[%s5845 + $0x80] sm:$0xff]
    %v5863 = vld [vmem:[%s5845 + $0x88] sm:$0xff]
    %v5864 = vld [vmem:[%s5845 + $0x90] sm:$0xff]
    %v5865 = vld [vmem:[%s5845 + $0x98] sm:$0xff]
    %v5866 = vld [vmem:[%s5845 + $0xa0] sm:$0xff]
    %v5867 = vld [vmem:[%s5845 + $0xa8] sm:$0xff]
    %v5868 = vld [vmem:[%s5845 + $0xb0] sm:$0xff]
    %v5869 = vld [vmem:[%s5845 + $0xb8] sm:$0xff]
    %v5870 = vld [vmem:[%s5845 + $0xc0] sm:$0xff]
    %v5871 = vld [vmem:[%s5845 + $0xc8] sm:$0xff]
    %v5872 = vld [vmem:[%s5845 + $0xd0] sm:$0xff]
    %v5873 = vld [vmem:[%s5845 + $0xd8] sm:$0xff]
    %v5874 = vld [vmem:[%s5845 + $0xe0] sm:$0xff]
    %v5875 = vld [vmem:[%s5845 + $0xe8] sm:$0xff]
    %v5876 = vld [vmem:[%s5845 + $0xf0] sm:$0xff]
    %v5877 = vld [vmem:[%s5845 + $0xf8] sm:$0xff]
    %s5878 = scalar_lea.vmem %s10, 16
    %v5879 = vld [vmem:[%s5878] sm:$0xff]
    %v5880 = vld [vmem:[%s5878 + $0x8] sm:$0xff]
    %v5881 = vpack.c.bf16 %v5844, %v5843
    %v5884 = vlaneseq
    %v5885 = vshrl.u32 %v5884, 7
    %v5886 = vsub.s32 0, %v5885
    %v5887 = vrot.slane %v5879, %v5886
    %v5888 = vlaneseq
    %v5889 = vshrl.u32 %v5888, 7
    %v5890 = vsub.s32 1, %v5889
    %v5891 = vrot.slane %v5879, %v5890
    %v5892 = vlaneseq
    %v5893 = vshrl.u32 %v5892, 7
    %v5894 = vsub.s32 2, %v5893
    %v5895 = vrot.slane %v5879, %v5894
    %v5896 = vlaneseq
    %v5897 = vshrl.u32 %v5896, 7
    %v5898 = vsub.s32 3, %v5897
    %v5899 = vrot.slane %v5879, %v5898
    %v5900 = vlaneseq
    %v5901 = vshrl.u32 %v5900, 7
    %v5902 = vsub.s32 4, %v5901
    %v5903 = vrot.slane %v5879, %v5902
    %v5904 = vlaneseq
    %v5905 = vshrl.u32 %v5904, 7
    %v5906 = vsub.s32 5, %v5905
    %v5907 = vrot.slane %v5879, %v5906
    %v5908 = vlaneseq
    %v5909 = vshrl.u32 %v5908, 7
    %v5910 = vsub.s32 6, %v5909
    %v5911 = vrot.slane %v5879, %v5910
    %v5912 = vlaneseq
    %v5913 = vshrl.u32 %v5912, 7
    %v5914 = vsub.s32 7, %v5913
    %v5915 = vrot.slane %v5879, %v5914
    %v5916 = vlaneseq
    %v5917 = vshrl.u32 %v5916, 7
    %v5918 = vsub.s32 0, %v5917
    %v5919 = vrot.slane %v5880, %v5918
    %v5920 = vlaneseq
    %v5921 = vshrl.u32 %v5920, 7
    %v5922 = vsub.s32 1, %v5921
    %v5923 = vrot.slane %v5880, %v5922
    %v5924 = vlaneseq
    %v5925 = vshrl.u32 %v5924, 7
    %v5926 = vsub.s32 2, %v5925
    %v5927 = vrot.slane %v5880, %v5926
    %v5928 = vlaneseq
    %v5929 = vshrl.u32 %v5928, 7
    %v5930 = vsub.s32 3, %v5929
    %v5931 = vrot.slane %v5880, %v5930
    %v5932 = vlaneseq
    %v5933 = vshrl.u32 %v5932, 7
    %v5934 = vsub.s32 4, %v5933
    %v5935 = vrot.slane %v5880, %v5934
    %v5936 = vlaneseq
    %v5937 = vshrl.u32 %v5936, 7
    %v5938 = vsub.s32 5, %v5937
    %v5939 = vrot.slane %v5880, %v5938
    %v5940 = vlaneseq
    %v5941 = vshrl.u32 %v5940, 7
    %v5942 = vsub.s32 6, %v5941
    %v5943 = vrot.slane %v5880, %v5942
    %v5944 = vlaneseq
    %v5945 = vshrl.u32 %v5944, 7
    %v5946 = vsub.s32 7, %v5945
    %v5947 = vrot.slane %v5880, %v5946
    %v5996 = vunpack.c.l.b16 %v5846
    %v5997 = vunpack.c.h.b16 %v5846
    %v5998 = vunpack.c.l.b16 %v5847
    %v5999 = vunpack.c.h.b16 %v5847
    %v6000 = vunpack.c.l.b16 %v5848
    %v6001 = vunpack.c.h.b16 %v5848
    %v6002 = vunpack.c.l.b16 %v5849
    %v6003 = vunpack.c.h.b16 %v5849
    %v6004 = vunpack.c.l.b16 %v5850
    %v6005 = vunpack.c.h.b16 %v5850
    %v6006 = vunpack.c.l.b16 %v5851
    %v6007 = vunpack.c.h.b16 %v5851
    %v6008 = vunpack.c.l.b16 %v5852
    %v6009 = vunpack.c.h.b16 %v5852
    %v6010 = vunpack.c.l.b16 %v5853
    %v6011 = vunpack.c.h.b16 %v5853
    %v6012 = vunpack.c.l.b16 %v5854
    %v6013 = vunpack.c.h.b16 %v5854
    %v6014 = vunpack.c.l.b16 %v5855
    %v6015 = vunpack.c.h.b16 %v5855
    %v6016 = vunpack.c.l.b16 %v5856
    %v6017 = vunpack.c.h.b16 %v5856
    %v6018 = vunpack.c.l.b16 %v5857
    %v6019 = vunpack.c.h.b16 %v5857
    %v6020 = vunpack.c.l.b16 %v5858
    %v6021 = vunpack.c.h.b16 %v5858
    %v6022 = vunpack.c.l.b16 %v5859
    %v6023 = vunpack.c.h.b16 %v5859
    %v6024 = vunpack.c.l.b16 %v5860
    %v6025 = vunpack.c.h.b16 %v5860
    %v6026 = vunpack.c.l.b16 %v5861
    %v6027 = vunpack.c.h.b16 %v5861
    %v6028 = vunpack.c.l.b16 %v5862
    %v6029 = vunpack.c.h.b16 %v5862
    %v6030 = vunpack.c.l.b16 %v5863
    %v6031 = vunpack.c.h.b16 %v5863
    %v6032 = vunpack.c.l.b16 %v5864
    %v6033 = vunpack.c.h.b16 %v5864
    %v6034 = vunpack.c.l.b16 %v5865
    %v6035 = vunpack.c.h.b16 %v5865
    %v6036 = vunpack.c.l.b16 %v5866
    %v6037 = vunpack.c.h.b16 %v5866
    %v6038 = vunpack.c.l.b16 %v5867
    %v6039 = vunpack.c.h.b16 %v5867
    %v6040 = vunpack.c.l.b16 %v5868
    %v6041 = vunpack.c.h.b16 %v5868
    %v6042 = vunpack.c.l.b16 %v5869
    %v6043 = vunpack.c.h.b16 %v5869
    %v6044 = vunpack.c.l.b16 %v5870
    %v6045 = vunpack.c.h.b16 %v5870
    %v6046 = vunpack.c.l.b16 %v5871
    %v6047 = vunpack.c.h.b16 %v5871
    %v6048 = vunpack.c.l.b16 %v5872
    %v6049 = vunpack.c.h.b16 %v5872
    %v6050 = vunpack.c.l.b16 %v5873
    %v6051 = vunpack.c.h.b16 %v5873
    %v6052 = vunpack.c.l.b16 %v5874
    %v6053 = vunpack.c.h.b16 %v5874
    %v6054 = vunpack.c.l.b16 %v5875
    %v6055 = vunpack.c.h.b16 %v5875
    %v6056 = vunpack.c.l.b16 %v5876
    %v6057 = vunpack.c.h.b16 %v5876
    %v6058 = vunpack.c.l.b16 %v5877
    %v6059 = vunpack.c.h.b16 %v5877
    %v6060 = vpack.c.b16 %v6012, %v5996
    %v6061 = vpack.c.b16 %v6013, %v5997
    %v6062 = vpack.c.b16 %v6014, %v5998
    %v6063 = vpack.c.b16 %v6015, %v5999
    %v6064 = vpack.c.b16 %v6016, %v6000
    %v6065 = vpack.c.b16 %v6017, %v6001
    %v6066 = vpack.c.b16 %v6018, %v6002
    %v6067 = vpack.c.b16 %v6019, %v6003
    %v6068 = vpack.c.b16 %v6020, %v6004
    %v6069 = vpack.c.b16 %v6021, %v6005
    %v6070 = vpack.c.b16 %v6022, %v6006
    %v6071 = vpack.c.b16 %v6023, %v6007
    %v6072 = vpack.c.b16 %v6024, %v6008
    %v6073 = vpack.c.b16 %v6025, %v6009
    %v6074 = vpack.c.b16 %v6026, %v6010
    %v6075 = vpack.c.b16 %v6027, %v6011
    %v6076 = vpack.c.b16 %v6044, %v6028
    %v6077 = vpack.c.b16 %v6045, %v6029
    %v6078 = vpack.c.b16 %v6046, %v6030
    %v6079 = vpack.c.b16 %v6047, %v6031
    %v6080 = vpack.c.b16 %v6048, %v6032
    %v6081 = vpack.c.b16 %v6049, %v6033
    %v6082 = vpack.c.b16 %v6050, %v6034
    %v6083 = vpack.c.b16 %v6051, %v6035
    %v6084 = vpack.c.b16 %v6052, %v6036
    %v6085 = vpack.c.b16 %v6053, %v6037
    %v6086 = vpack.c.b16 %v6054, %v6038
    %v6087 = vpack.c.b16 %v6055, %v6039
    %v6088 = vpack.c.b16 %v6056, %v6040
    %v6089 = vpack.c.b16 %v6057, %v6041
    %v6090 = vpack.c.b16 %v6058, %v6042
    %v6091 = vpack.c.b16 %v6059, %v6043
    %v6125 = vsel %vm148, %v5881, 0
    %6127 = vmatprep.subr.bf16.mxu0 %v6061
    %6128 = vmatpush1.bf16.msra.mxu0 %v6060
    %6129 = vmatprep.subr.bf16.mxu0 %v6077
    %6130 = vmatpush1.bf16.msra.mxu0 %v6076
    %6131 = vmatprep.subr.bf16.mxu0 0
    %6132 = vmatpush1.bf16.msra.mxu0 0
    %6133 = vmatprep.subr.bf16.mxu0 0
    %6134 = vmatpush1.bf16.msra.mxu0 0
    %6135 = vmatprep.subr.bf16.mxu0 0
    %6136 = vmatpush1.bf16.msra.mxu0 0
    %6137 = vmatprep.subr.bf16.mxu0 0
    %6138 = vmatpush1.bf16.msra.mxu0 0
    %6139 = vmatprep.subr.bf16.mxu0 0
    %6140 = vmatpush1.bf16.msra.mxu0 0
    %6141 = vmatprep.subr.bf16.mxu0 0
    %6142 = vmatpush1.bf16.msra.mxu0 0
    %6143 = vmatprep.subr.bf16.mxu0 0
    %6144 = vmatpush1.bf16.msra.mxu0 0
    %6145 = vmatprep.subr.bf16.mxu0 0
    %6146 = vmatpush1.bf16.msra.mxu0 0
    %6147 = vmatprep.subr.bf16.mxu0 0
    %6148 = vmatpush1.bf16.msra.mxu0 0
    %6149 = vmatprep.subr.bf16.mxu0 0
    %6150 = vmatpush1.bf16.msra.mxu0 0
    %6151 = vmatprep.subr.bf16.mxu0 0
    %6152 = vmatpush1.bf16.msra.mxu0 0
    %6153 = vmatprep.subr.bf16.mxu0 0
    %6154 = vmatpush1.bf16.msra.mxu0 0
    %6155 = vmatprep.subr.bf16.mxu0 0
    %6156 = vmatpush1.bf16.msra.mxu0 0
    %6157 = vmatprep.subr.bf16.mxu0 0
    %6158 = vmatpush1.bf16.msra.mxu0 0
    %6159 = vmatprep.mubr.bf16.mxu0 0
    %6160 = vmatmul.mubr.bf16.gmra.mrb[0].mxu0 %v6125
    %v6161 = vpop.f32.mrb[0].mxu0
    %v6162 = vadd.f32 %v5887, %v6161
    %v6163 = vpop.f32.mrb[0].mxu0
    %v6164 = vadd.f32 %v5891, %v6163
    %v6165 = vpop.f32.mrb[0].mxu0
    %v6166 = vadd.f32 %v5887, %v6165
    %v6167 = vpop.f32.mrb[0].mxu0
    %v6168 = vadd.f32 %v5891, %v6167
    %6169 = vdwg.mxu0
    %6170 = vmatprep.subr.bf16.mxu0 %v6063
    %6171 = vmatpush1.bf16.msra.mxu0 %v6062
    %6172 = vmatprep.subr.bf16.mxu0 %v6079
    %6173 = vmatpush1.bf16.msra.mxu0 %v6078
    %6174 = vmatprep.subr.bf16.mxu0 0
    %6175 = vmatpush1.bf16.msra.mxu0 0
    %6176 = vmatprep.subr.bf16.mxu0 0
    %6177 = vmatpush1.bf16.msra.mxu0 0
    %6178 = vmatprep.subr.bf16.mxu0 0
    %6179 = vmatpush1.bf16.msra.mxu0 0
    %6180 = vmatprep.subr.bf16.mxu0 0
    %6181 = vmatpush1.bf16.msra.mxu0 0
    %6182 = vmatprep.subr.bf16.mxu0 0
    %6183 = vmatpush1.bf16.msra.mxu0 0
    %6184 = vmatprep.subr.bf16.mxu0 0
    %6185 = vmatpush1.bf16.msra.mxu0 0
    %6186 = vmatprep.subr.bf16.mxu0 0
    %6187 = vmatpush1.bf16.msra.mxu0 0
    %6188 = vmatprep.subr.bf16.mxu0 0
    %6189 = vmatpush1.bf16.msra.mxu0 0
    %6190 = vmatprep.subr.bf16.mxu0 0
    %6191 = vmatpush1.bf16.msra.mxu0 0
    %6192 = vmatprep.subr.bf16.mxu0 0
    %6193 = vmatpush1.bf16.msra.mxu0 0
    %6194 = vmatprep.subr.bf16.mxu0 0
    %6195 = vmatpush1.bf16.msra.mxu0 0
    %6196 = vmatprep.subr.bf16.mxu0 0
    %6197 = vmatpush1.bf16.msra.mxu0 0
    %6198 = vmatprep.subr.bf16.mxu0 0
    %6199 = vmatpush1.bf16.msra.mxu0 0
    %6200 = vmatprep.subr.bf16.mxu0 0
    %6201 = vmatpush1.bf16.msra.mxu0 0
    %6202 = vmatprep.mubr.bf16.mxu0 0
    %6203 = vmatmul.mubr.bf16.gmra.mrb[0].mxu0 %v6125
    %v6204 = vpop.f32.mrb[0].mxu0
    %v6205 = vadd.f32 %v5895, %v6204
    %v6206 = vpop.f32.mrb[0].mxu0
    %v6207 = vadd.f32 %v5899, %v6206
    %v6208 = vpop.f32.mrb[0].mxu0
    %v6209 = vadd.f32 %v5895, %v6208
    %v6210 = vpop.f32.mrb[0].mxu0
    %v6211 = vadd.f32 %v5899, %v6210
    %6212 = vdwg.mxu0
    %6213 = vmatprep.subr.bf16.mxu0 %v6065
    %6214 = vmatpush1.bf16.msra.mxu0 %v6064
    %6215 = vmatprep.subr.bf16.mxu0 %v6081
    %6216 = vmatpush1.bf16.msra.mxu0 %v6080
    %6217 = vmatprep.subr.bf16.mxu0 0
    %6218 = vmatpush1.bf16.msra.mxu0 0
    %6219 = vmatprep.subr.bf16.mxu0 0
    %6220 = vmatpush1.bf16.msra.mxu0 0
    %6221 = vmatprep.subr.bf16.mxu0 0
    %6222 = vmatpush1.bf16.msra.mxu0 0
    %6223 = vmatprep.subr.bf16.mxu0 0
    %6224 = vmatpush1.bf16.msra.mxu0 0
    %6225 = vmatprep.subr.bf16.mxu0 0
    %6226 = vmatpush1.bf16.msra.mxu0 0
    %6227 = vmatprep.subr.bf16.mxu0 0
    %6228 = vmatpush1.bf16.msra.mxu0 0
    %6229 = vmatprep.subr.bf16.mxu0 0
    %6230 = vmatpush1.bf16.msra.mxu0 0
    %6231 = vmatprep.subr.bf16.mxu0 0
    %6232 = vmatpush1.bf16.msra.mxu0 0
    %6233 = vmatprep.subr.bf16.mxu0 0
    %6234 = vmatpush1.bf16.msra.mxu0 0
    %6235 = vmatprep.subr.bf16.mxu0 0
    %6236 = vmatpush1.bf16.msra.mxu0 0
    %6237 = vmatprep.subr.bf16.mxu0 0
    %6238 = vmatpush1.bf16.msra.mxu0 0
    %6239 = vmatprep.subr.bf16.mxu0 0
    %6240 = vmatpush1.bf16.msra.mxu0 0
    %6241 = vmatprep.subr.bf16.mxu0 0
    %6242 = vmatpush1.bf16.msra.mxu0 0
    %6243 = vmatprep.subr.bf16.mxu0 0
    %6244 = vmatpush1.bf16.msra.mxu0 0
    %6245 = vmatprep.mubr.bf16.mxu0 0
    %6246 = vmatmul.mubr.bf16.gmra.mrb[0].mxu0 %v6125
    %v6247 = vpop.f32.mrb[0].mxu0
    %v6248 = vadd.f32 %v5903, %v6247
    %v6249 = vpop.f32.mrb[0].mxu0
    %v6250 = vadd.f32 %v5907, %v6249
    %v6251 = vpop.f32.mrb[0].mxu0
    %v6252 = vadd.f32 %v5903, %v6251
    %v6253 = vpop.f32.mrb[0].mxu0
    %v6254 = vadd.f32 %v5907, %v6253
    %6255 = vdwg.mxu0
    %6256 = vmatprep.subr.bf16.mxu0 %v6067
    %6257 = vmatpush1.bf16.msra.mxu0 %v6066
    %6258 = vmatprep.subr.bf16.mxu0 %v6083
    %6259 = vmatpush1.bf16.msra.mxu0 %v6082
    %6260 = vmatprep.subr.bf16.mxu0 0
    %6261 = vmatpush1.bf16.msra.mxu0 0
    %6262 = vmatprep.subr.bf16.mxu0 0
    %6263 = vmatpush1.bf16.msra.mxu0 0
    %6264 = vmatprep.subr.bf16.mxu0 0
    %6265 = vmatpush1.bf16.msra.mxu0 0
    %6266 = vmatprep.subr.bf16.mxu0 0
    %6267 = vmatpush1.bf16.msra.mxu0 0
    %6268 = vmatprep.subr.bf16.mxu0 0
    %6269 = vmatpush1.bf16.msra.mxu0 0
    %6270 = vmatprep.subr.bf16.mxu0 0
    %6271 = vmatpush1.bf16.msra.mxu0 0
    %6272 = vmatprep.subr.bf16.mxu0 0
    %6273 = vmatpush1.bf16.msra.mxu0 0
    %6274 = vmatprep.subr.bf16.mxu0 0
    %6275 = vmatpush1.bf16.msra.mxu0 0
    %6276 = vmatprep.subr.bf16.mxu0 0
    %6277 = vmatpush1.bf16.msra.mxu0 0
    %6278 = vmatprep.subr.bf16.mxu0 0
    %6279 = vmatpush1.bf16.msra.mxu0 0
    %6280 = vmatprep.subr.bf16.mxu0 0
    %6281 = vmatpush1.bf16.msra.mxu0 0
    %6282 = vmatprep.subr.bf16.mxu0 0
    %6283 = vmatpush1.bf16.msra.mxu0 0
    %6284 = vmatprep.subr.bf16.mxu0 0
    %6285 = vmatpush1.bf16.msra.mxu0 0
    %6286 = vmatprep.subr.bf16.mxu0 0
    %6287 = vmatpush1.bf16.msra.mxu0 0
    %6288 = vmatprep.mubr.bf16.mxu0 0
    %6289 = vmatmul.mubr.bf16.gmra.mrb[0].mxu0 %v6125
    %v6290 = vpop.f32.mrb[0].mxu0
    %v6291 = vadd.f32 %v5911, %v6290
    %v6292 = vpop.f32.mrb[0].mxu0
    %v6293 = vadd.f32 %v5915, %v6292
    %v6294 = vpop.f32.mrb[0].mxu0
    %v6295 = vadd.f32 %v5911, %v6294
    %v6296 = vpop.f32.mrb[0].mxu0
    %v6297 = vadd.f32 %v5915, %v6296
    %6298 = vdwg.mxu0
    %6299 = vmatprep.subr.bf16.mxu0 %v6069
    %6300 = vmatpush1.bf16.msra.mxu0 %v6068
    %6301 = vmatprep.subr.bf16.mxu0 %v6085
    %6302 = vmatpush1.bf16.msra.mxu0 %v6084
    %6303 = vmatprep.subr.bf16.mxu0 0
    %6304 = vmatpush1.bf16.msra.mxu0 0
    %6305 = vmatprep.subr.bf16.mxu0 0
    %6306 = vmatpush1.bf16.msra.mxu0 0
    %6307 = vmatprep.subr.bf16.mxu0 0
    %6308 = vmatpush1.bf16.msra.mxu0 0
    %6309 = vmatprep.subr.bf16.mxu0 0
    %6310 = vmatpush1.bf16.msra.mxu0 0
    %6311 = vmatprep.subr.bf16.mxu0 0
    %6312 = vmatpush1.bf16.msra.mxu0 0
    %6313 = vmatprep.subr.bf16.mxu0 0
    %6314 = vmatpush1.bf16.msra.mxu0 0
    %6315 = vmatprep.subr.bf16.mxu0 0
    %6316 = vmatpush1.bf16.msra.mxu0 0
    %6317 = vmatprep.subr.bf16.mxu0 0
    %6318 = vmatpush1.bf16.msra.mxu0 0
    %6319 = vmatprep.subr.bf16.mxu0 0
    %6320 = vmatpush1.bf16.msra.mxu0 0
    %6321 = vmatprep.subr.bf16.mxu0 0
    %6322 = vmatpush1.bf16.msra.mxu0 0
    %6323 = vmatprep.subr.bf16.mxu0 0
    %6324 = vmatpush1.bf16.msra.mxu0 0
    %6325 = vmatprep.subr.bf16.mxu0 0
    %6326 = vmatpush1.bf16.msra.mxu0 0
    %6327 = vmatprep.subr.bf16.mxu0 0
    %6328 = vmatpush1.bf16.msra.mxu0 0
    %6329 = vmatprep.subr.bf16.mxu0 0
    %6330 = vmatpush1.bf16.msra.mxu0 0
    %6331 = vmatprep.mubr.bf16.mxu0 0
    %6332 = vmatmul.mubr.bf16.gmra.mrb[0].mxu0 %v6125
    %v6333 = vpop.f32.mrb[0].mxu0
    %v6334 = vadd.f32 %v5919, %v6333
    %v6335 = vpop.f32.mrb[0].mxu0
    %v6336 = vadd.f32 %v5923, %v6335
    %v6337 = vpop.f32.mrb[0].mxu0
    %v6338 = vadd.f32 %v5919, %v6337
    %v6339 = vpop.f32.mrb[0].mxu0
    %v6340 = vadd.f32 %v5923, %v6339
    %6341 = vdwg.mxu0
    %6342 = vmatprep.subr.bf16.mxu0 %v6071
    %6343 = vmatpush1.bf16.msra.mxu0 %v6070
    %6344 = vmatprep.subr.bf16.mxu0 %v6087
    %6345 = vmatpush1.bf16.msra.mxu0 %v6086
    %6346 = vmatprep.subr.bf16.mxu0 0
    %6347 = vmatpush1.bf16.msra.mxu0 0
    %6348 = vmatprep.subr.bf16.mxu0 0
    %6349 = vmatpush1.bf16.msra.mxu0 0
    %6350 = vmatprep.subr.bf16.mxu0 0
    %6351 = vmatpush1.bf16.msra.mxu0 0
    %6352 = vmatprep.subr.bf16.mxu0 0
    %6353 = vmatpush1.bf16.msra.mxu0 0
    %6354 = vmatprep.subr.bf16.mxu0 0
    %6355 = vmatpush1.bf16.msra.mxu0 0
    %6356 = vmatprep.subr.bf16.mxu0 0
    %6357 = vmatpush1.bf16.msra.mxu0 0
    %6358 = vmatprep.subr.bf16.mxu0 0
    %6359 = vmatpush1.bf16.msra.mxu0 0
    %6360 = vmatprep.subr.bf16.mxu0 0
    %6361 = vmatpush1.bf16.msra.mxu0 0
    %6362 = vmatprep.subr.bf16.mxu0 0
    %6363 = vmatpush1.bf16.msra.mxu0 0
    %6364 = vmatprep.subr.bf16.mxu0 0
    %6365 = vmatpush1.bf16.msra.mxu0 0
    %6366 = vmatprep.subr.bf16.mxu0 0
    %6367 = vmatpush1.bf16.msra.mxu0 0
    %6368 = vmatprep.subr.bf16.mxu0 0
    %6369 = vmatpush1.bf16.msra.mxu0 0
    %6370 = vmatprep.subr.bf16.mxu0 0
    %6371 = vmatpush1.bf16.msra.mxu0 0
    %6372 = vmatprep.subr.bf16.mxu0 0
    %6373 = vmatpush1.bf16.msra.mxu0 0
    %6374 = vmatprep.mubr.bf16.mxu0 0
    %6375 = vmatmul.mubr.bf16.gmra.mrb[0].mxu0 %v6125
    %v6376 = vpop.f32.mrb[0].mxu0
    %v6377 = vadd.f32 %v5927, %v6376
    %v6378 = vpop.f32.mrb[0].mxu0
    %v6379 = vadd.f32 %v5931, %v6378
    %v6380 = vpop.f32.mrb[0].mxu0
    %v6381 = vadd.f32 %v5927, %v6380
    %v6382 = vpop.f32.mrb[0].mxu0
    %v6383 = vadd.f32 %v5931, %v6382
    %6384 = vdwg.mxu0
    %6385 = vmatprep.subr.bf16.mxu0 %v6073
    %6386 = vmatpush1.bf16.msra.mxu0 %v6072
    %6387 = vmatprep.subr.bf16.mxu0 %v6089
    %6388 = vmatpush1.bf16.msra.mxu0 %v6088
    %6389 = vmatprep.subr.bf16.mxu0 0
    %6390 = vmatpush1.bf16.msra.mxu0 0
    %6391 = vmatprep.subr.bf16.mxu0 0
    %6392 = vmatpush1.bf16.msra.mxu0 0
    %6393 = vmatprep.subr.bf16.mxu0 0
    %6394 = vmatpush1.bf16.msra.mxu0 0
    %6395 = vmatprep.subr.bf16.mxu0 0
    %6396 = vmatpush1.bf16.msra.mxu0 0
    %6397 = vmatprep.subr.bf16.mxu0 0
    %6398 = vmatpush1.bf16.msra.mxu0 0
    %6399 = vmatprep.subr.bf16.mxu0 0
    %6400 = vmatpush1.bf16.msra.mxu0 0
    %6401 = vmatprep.subr.bf16.mxu0 0
    %6402 = vmatpush1.bf16.msra.mxu0 0
    %6403 = vmatprep.subr.bf16.mxu0 0
    %6404 = vmatpush1.bf16.msra.mxu0 0
    %6405 = vmatprep.subr.bf16.mxu0 0
    %6406 = vmatpush1.bf16.msra.mxu0 0
    %6407 = vmatprep.subr.bf16.mxu0 0
    %6408 = vmatpush1.bf16.msra.mxu0 0
    %6409 = vmatprep.subr.bf16.mxu0 0
    %6410 = vmatpush1.bf16.msra.mxu0 0
    %6411 = vmatprep.subr.bf16.mxu0 0
    %6412 = vmatpush1.bf16.msra.mxu0 0
    %6413 = vmatprep.subr.bf16.mxu0 0
    %6414 = vmatpush1.bf16.msra.mxu0 0
    %6415 = vmatprep.subr.bf16.mxu0 0
    %6416 = vmatpush1.bf16.msra.mxu0 0
    %6417 = vmatprep.mubr.bf16.mxu0 0
    %6418 = vmatmul.mubr.bf16.gmra.mrb[0].mxu0 %v6125
    %v6419 = vpop.f32.mrb[0].mxu0
    %v6420 = vadd.f32 %v5935, %v6419
    %v6421 = vpop.f32.mrb[0].mxu0
    %v6422 = vadd.f32 %v5939, %v6421
    %v6423 = vpop.f32.mrb[0].mxu0
    %v6424 = vadd.f32 %v5935, %v6423
    %v6425 = vpop.f32.mrb[0].mxu0
    %v6426 = vadd.f32 %v5939, %v6425
    %6427 = vdwg.mxu0
    %6428 = vmatprep.subr.bf16.mxu0 %v6075
    %6429 = vmatpush1.bf16.msra.mxu0 %v6074
    %6430 = vmatprep.subr.bf16.mxu0 %v6091
    %6431 = vmatpush1.bf16.msra.mxu0 %v6090
    %6432 = vmatprep.subr.bf16.mxu0 0
    %6433 = vmatpush1.bf16.msra.mxu0 0
    %6434 = vmatprep.subr.bf16.mxu0 0
    %6435 = vmatpush1.bf16.msra.mxu0 0
    %6436 = vmatprep.subr.bf16.mxu0 0
    %6437 = vmatpush1.bf16.msra.mxu0 0
    %6438 = vmatprep.subr.bf16.mxu0 0
    %6439 = vmatpush1.bf16.msra.mxu0 0
    %6440 = vmatprep.subr.bf16.mxu0 0
    %6441 = vmatpush1.bf16.msra.mxu0 0
    %6442 = vmatprep.subr.bf16.mxu0 0
    %6443 = vmatpush1.bf16.msra.mxu0 0
    %6444 = vmatprep.subr.bf16.mxu0 0
    %6445 = vmatpush1.bf16.msra.mxu0 0
    %6446 = vmatprep.subr.bf16.mxu0 0
    %6447 = vmatpush1.bf16.msra.mxu0 0
    %6448 = vmatprep.subr.bf16.mxu0 0
    %6449 = vmatpush1.bf16.msra.mxu0 0
    %6450 = vmatprep.subr.bf16.mxu0 0
    %6451 = vmatpush1.bf16.msra.mxu0 0
    %6452 = vmatprep.subr.bf16.mxu0 0
    %6453 = vmatpush1.bf16.msra.mxu0 0
    %6454 = vmatprep.subr.bf16.mxu0 0
    %6455 = vmatpush1.bf16.msra.mxu0 0
    %6456 = vmatprep.subr.bf16.mxu0 0
    %6457 = vmatpush1.bf16.msra.mxu0 0
    %6458 = vmatprep.subr.bf16.mxu0 0
    %6459 = vmatpush1.bf16.msra.mxu0 0
    %6460 = vmatprep.mubr.bf16.mxu0 0
    %6461 = vmatmul.mubr.bf16.gmra.mrb[0].mxu0 %v6125
    %v6462 = vpop.f32.mrb[0].mxu0
    %v6463 = vadd.f32 %v5943, %v6462
    %v6464 = vpop.f32.mrb[0].mxu0
    %v6465 = vadd.f32 %v5947, %v6464
    %v6466 = vpop.f32.mrb[0].mxu0
    %v6467 = vadd.f32 %v5943, %v6466
    %v6468 = vpop.f32.mrb[0].mxu0
    %v6469 = vadd.f32 %v5947, %v6468
    %6470 = vdwg.mxu0
    %v6471 = vmax.f32 %v6162, 0.0
    %v6472 = vmax.f32 %v6164, 0.0
    %v6473 = vmax.f32 %v6205, 0.0
    %v6474 = vmax.f32 %v6207, 0.0
    %v6475 = vmax.f32 %v6248, 0.0
    %v6476 = vmax.f32 %v6250, 0.0
    %v6477 = vmax.f32 %v6291, 0.0
    %v6478 = vmax.f32 %v6293, 0.0
    %v6479 = vmax.f32 %v6334, 0.0
    %v6480 = vmax.f32 %v6336, 0.0
    %v6481 = vmax.f32 %v6377, 0.0
    %v6482 = vmax.f32 %v6379, 0.0
    %v6483 = vmax.f32 %v6420, 0.0
    %v6484 = vmax.f32 %v6422, 0.0
    %v6485 = vmax.f32 %v6463, 0.0
    %v6486 = vmax.f32 %v6465, 0.0
    %v6487 = vmax.f32 %v6166, 0.0
    %v6488 = vmax.f32 %v6168, 0.0
    %v6489 = vmax.f32 %v6209, 0.0
    %v6490 = vmax.f32 %v6211, 0.0
    %v6491 = vmax.f32 %v6252, 0.0
    %v6492 = vmax.f32 %v6254, 0.0
    %v6493 = vmax.f32 %v6295, 0.0
    %v6494 = vmax.f32 %v6297, 0.0
    %v6495 = vmax.f32 %v6338, 0.0
    %v6496 = vmax.f32 %v6340, 0.0
    %v6497 = vmax.f32 %v6381, 0.0
    %v6498 = vmax.f32 %v6383, 0.0
    %v6499 = vmax.f32 %v6424, 0.0
    %v6500 = vmax.f32 %v6426, 0.0
    %v6501 = vmax.f32 %v6467, 0.0
    %v6502 = vmax.f32 %v6469, 0.0
    %s6503 = scalar_lea.vmem %s11, 1024
    %v6504 = vld [vmem:[%s6503] sm:$0xf]
    %v6505 = vld [vmem:[%s6503 + $0x4] sm:$0xf]
    %v6506 = vld [vmem:[%s6503 + $0x8] sm:$0xf]
    %v6507 = vld [vmem:[%s6503 + $0xc] sm:$0xf]
    %v6508 = vld [vmem:[%s6503 + $0x10] sm:$0xf]
    %v6509 = vld [vmem:[%s6503 + $0x14] sm:$0xf]
    %v6510 = vld [vmem:[%s6503 + $0x18] sm:$0xf]
    %v6511 = vld [vmem:[%s6503 + $0x1c] sm:$0xf]
    %v6512 = vld [vmem:[%s6503 + $0x20] sm:$0xf]
    %v6513 = vld [vmem:[%s6503 + $0x24] sm:$0xf]
    %v6514 = vld [vmem:[%s6503 + $0x28] sm:$0xf]
    %v6515 = vld [vmem:[%s6503 + $0x2c] sm:$0xf]
    %v6516 = vld [vmem:[%s6503 + $0x30] sm:$0xf]
    %v6517 = vld [vmem:[%s6503 + $0x34] sm:$0xf]
    %v6518 = vld [vmem:[%s6503 + $0x38] sm:$0xf]
    %v6519 = vld [vmem:[%s6503 + $0x3c] sm:$0xf]
    %v6520 = vld [vmem:[%s6503 + $0x40] sm:$0xf]
    %v6521 = vld [vmem:[%s6503 + $0x44] sm:$0xf]
    %v6522 = vld [vmem:[%s6503 + $0x48] sm:$0xf]
    %v6523 = vld [vmem:[%s6503 + $0x4c] sm:$0xf]
    %v6524 = vld [vmem:[%s6503 + $0x50] sm:$0xf]
    %v6525 = vld [vmem:[%s6503 + $0x54] sm:$0xf]
    %v6526 = vld [vmem:[%s6503 + $0x58] sm:$0xf]
    %v6527 = vld [vmem:[%s6503 + $0x5c] sm:$0xf]
    %v6528 = vld [vmem:[%s6503 + $0x60] sm:$0xf]
    %v6529 = vld [vmem:[%s6503 + $0x64] sm:$0xf]
    %v6530 = vld [vmem:[%s6503 + $0x68] sm:$0xf]
    %v6531 = vld [vmem:[%s6503 + $0x6c] sm:$0xf]
    %v6532 = vld [vmem:[%s6503 + $0x70] sm:$0xf]
    %v6533 = vld [vmem:[%s6503 + $0x74] sm:$0xf]
    %v6534 = vld [vmem:[%s6503 + $0x78] sm:$0xf]
    %v6535 = vld [vmem:[%s6503 + $0x7c] sm:$0xf]
    %v6536 = vld [vmem:[%s6503 + $0x80] sm:$0xf]
    %v6537 = vld [vmem:[%s6503 + $0x84] sm:$0xf]
    %v6538 = vld [vmem:[%s6503 + $0x88] sm:$0xf]
    %v6539 = vld [vmem:[%s6503 + $0x8c] sm:$0xf]
    %v6540 = vld [vmem:[%s6503 + $0x90] sm:$0xf]
    %v6541 = vld [vmem:[%s6503 + $0x94] sm:$0xf]
    %v6542 = vld [vmem:[%s6503 + $0x98] sm:$0xf]
    %v6543 = vld [vmem:[%s6503 + $0x9c] sm:$0xf]
    %v6544 = vld [vmem:[%s6503 + $0xa0] sm:$0xf]
    %v6545 = vld [vmem:[%s6503 + $0xa4] sm:$0xf]
    %v6546 = vld [vmem:[%s6503 + $0xa8] sm:$0xf]
    %v6547 = vld [vmem:[%s6503 + $0xac] sm:$0xf]
    %v6548 = vld [vmem:[%s6503 + $0xb0] sm:$0xf]
    %v6549 = vld [vmem:[%s6503 + $0xb4] sm:$0xf]
    %v6550 = vld [vmem:[%s6503 + $0xb8] sm:$0xf]
    %v6551 = vld [vmem:[%s6503 + $0xbc] sm:$0xf]
    %v6552 = vld [vmem:[%s6503 + $0xc0] sm:$0xf]
    %v6553 = vld [vmem:[%s6503 + $0xc4] sm:$0xf]
    %v6554 = vld [vmem:[%s6503 + $0xc8] sm:$0xf]
    %v6555 = vld [vmem:[%s6503 + $0xcc] sm:$0xf]
    %v6556 = vld [vmem:[%s6503 + $0xd0] sm:$0xf]
    %v6557 = vld [vmem:[%s6503 + $0xd4] sm:$0xf]
    %v6558 = vld [vmem:[%s6503 + $0xd8] sm:$0xf]
    %v6559 = vld [vmem:[%s6503 + $0xdc] sm:$0xf]
    %v6560 = vld [vmem:[%s6503 + $0xe0] sm:$0xf]
    %v6561 = vld [vmem:[%s6503 + $0xe4] sm:$0xf]
    %v6562 = vld [vmem:[%s6503 + $0xe8] sm:$0xf]
    %v6563 = vld [vmem:[%s6503 + $0xec] sm:$0xf]
    %v6564 = vld [vmem:[%s6503 + $0xf0] sm:$0xf]
    %v6565 = vld [vmem:[%s6503 + $0xf4] sm:$0xf]
    %v6566 = vld [vmem:[%s6503 + $0xf8] sm:$0xf]
    %v6567 = vld [vmem:[%s6503 + $0xfc] sm:$0xf]
    %v6568 = vld [vmem:[%s6503 + $0x100] sm:$0xf]
    %v6569 = vld [vmem:[%s6503 + $0x104] sm:$0xf]
    %v6570 = vld [vmem:[%s6503 + $0x108] sm:$0xf]
    %v6571 = vld [vmem:[%s6503 + $0x10c] sm:$0xf]
    %v6572 = vld [vmem:[%s6503 + $0x110] sm:$0xf]
    %v6573 = vld [vmem:[%s6503 + $0x114] sm:$0xf]
    %v6574 = vld [vmem:[%s6503 + $0x118] sm:$0xf]
    %v6575 = vld [vmem:[%s6503 + $0x11c] sm:$0xf]
    %v6576 = vld [vmem:[%s6503 + $0x120] sm:$0xf]
    %v6577 = vld [vmem:[%s6503 + $0x124] sm:$0xf]
    %v6578 = vld [vmem:[%s6503 + $0x128] sm:$0xf]
    %v6579 = vld [vmem:[%s6503 + $0x12c] sm:$0xf]
    %v6580 = vld [vmem:[%s6503 + $0x130] sm:$0xf]
    %v6581 = vld [vmem:[%s6503 + $0x134] sm:$0xf]
    %v6582 = vld [vmem:[%s6503 + $0x138] sm:$0xf]
    %v6583 = vld [vmem:[%s6503 + $0x13c] sm:$0xf]
    %v6584 = vld [vmem:[%s6503 + $0x140] sm:$0xf]
    %v6585 = vld [vmem:[%s6503 + $0x144] sm:$0xf]
    %v6586 = vld [vmem:[%s6503 + $0x148] sm:$0xf]
    %v6587 = vld [vmem:[%s6503 + $0x14c] sm:$0xf]
    %v6588 = vld [vmem:[%s6503 + $0x150] sm:$0xf]
    %v6589 = vld [vmem:[%s6503 + $0x154] sm:$0xf]
    %v6590 = vld [vmem:[%s6503 + $0x158] sm:$0xf]
    %v6591 = vld [vmem:[%s6503 + $0x15c] sm:$0xf]
    %v6592 = vld [vmem:[%s6503 + $0x160] sm:$0xf]
    %v6593 = vld [vmem:[%s6503 + $0x164] sm:$0xf]
    %v6594 = vld [vmem:[%s6503 + $0x168] sm:$0xf]
    %v6595 = vld [vmem:[%s6503 + $0x16c] sm:$0xf]
    %v6596 = vld [vmem:[%s6503 + $0x170] sm:$0xf]
    %v6597 = vld [vmem:[%s6503 + $0x174] sm:$0xf]
    %v6598 = vld [vmem:[%s6503 + $0x178] sm:$0xf]
    %v6599 = vld [vmem:[%s6503 + $0x17c] sm:$0xf]
    %v6600 = vld [vmem:[%s6503 + $0x180] sm:$0xf]
    %v6601 = vld [vmem:[%s6503 + $0x184] sm:$0xf]
    %v6602 = vld [vmem:[%s6503 + $0x188] sm:$0xf]
    %v6603 = vld [vmem:[%s6503 + $0x18c] sm:$0xf]
    %v6604 = vld [vmem:[%s6503 + $0x190] sm:$0xf]
    %v6605 = vld [vmem:[%s6503 + $0x194] sm:$0xf]
    %v6606 = vld [vmem:[%s6503 + $0x198] sm:$0xf]
    %v6607 = vld [vmem:[%s6503 + $0x19c] sm:$0xf]
    %v6608 = vld [vmem:[%s6503 + $0x1a0] sm:$0xf]
    %v6609 = vld [vmem:[%s6503 + $0x1a4] sm:$0xf]
    %v6610 = vld [vmem:[%s6503 + $0x1a8] sm:$0xf]
    %v6611 = vld [vmem:[%s6503 + $0x1ac] sm:$0xf]
    %v6612 = vld [vmem:[%s6503 + $0x1b0] sm:$0xf]
    %v6613 = vld [vmem:[%s6503 + $0x1b4] sm:$0xf]
    %v6614 = vld [vmem:[%s6503 + $0x1b8] sm:$0xf]
    %v6615 = vld [vmem:[%s6503 + $0x1bc] sm:$0xf]
    %v6616 = vld [vmem:[%s6503 + $0x1c0] sm:$0xf]
    %v6617 = vld [vmem:[%s6503 + $0x1c4] sm:$0xf]
    %v6618 = vld [vmem:[%s6503 + $0x1c8] sm:$0xf]
    %v6619 = vld [vmem:[%s6503 + $0x1cc] sm:$0xf]
    %v6620 = vld [vmem:[%s6503 + $0x1d0] sm:$0xf]
    %v6621 = vld [vmem:[%s6503 + $0x1d4] sm:$0xf]
    %v6622 = vld [vmem:[%s6503 + $0x1d8] sm:$0xf]
    %v6623 = vld [vmem:[%s6503 + $0x1dc] sm:$0xf]
    %v6624 = vld [vmem:[%s6503 + $0x1e0] sm:$0xf]
    %v6625 = vld [vmem:[%s6503 + $0x1e4] sm:$0xf]
    %v6626 = vld [vmem:[%s6503 + $0x1e8] sm:$0xf]
    %v6627 = vld [vmem:[%s6503 + $0x1ec] sm:$0xf]
    %v6628 = vld [vmem:[%s6503 + $0x1f0] sm:$0xf]
    %v6629 = vld [vmem:[%s6503 + $0x1f4] sm:$0xf]
    %v6630 = vld [vmem:[%s6503 + $0x1f8] sm:$0xf]
    %v6631 = vld [vmem:[%s6503 + $0x1fc] sm:$0xf]
    %v6632 = vld [vmem:[%s6503 + $0x200] sm:$0xf]
    %v6633 = vld [vmem:[%s6503 + $0x204] sm:$0xf]
    %v6634 = vld [vmem:[%s6503 + $0x208] sm:$0xf]
    %v6635 = vld [vmem:[%s6503 + $0x20c] sm:$0xf]
    %v6636 = vld [vmem:[%s6503 + $0x210] sm:$0xf]
    %v6637 = vld [vmem:[%s6503 + $0x214] sm:$0xf]
    %v6638 = vld [vmem:[%s6503 + $0x218] sm:$0xf]
    %v6639 = vld [vmem:[%s6503 + $0x21c] sm:$0xf]
    %v6640 = vld [vmem:[%s6503 + $0x220] sm:$0xf]
    %v6641 = vld [vmem:[%s6503 + $0x224] sm:$0xf]
    %v6642 = vld [vmem:[%s6503 + $0x228] sm:$0xf]
    %v6643 = vld [vmem:[%s6503 + $0x22c] sm:$0xf]
    %v6644 = vld [vmem:[%s6503 + $0x230] sm:$0xf]
    %v6645 = vld [vmem:[%s6503 + $0x234] sm:$0xf]
    %v6646 = vld [vmem:[%s6503 + $0x238] sm:$0xf]
    %v6647 = vld [vmem:[%s6503 + $0x23c] sm:$0xf]
    %v6648 = vld [vmem:[%s6503 + $0x240] sm:$0xf]
    %v6649 = vld [vmem:[%s6503 + $0x244] sm:$0xf]
    %v6650 = vld [vmem:[%s6503 + $0x248] sm:$0xf]
    %v6651 = vld [vmem:[%s6503 + $0x24c] sm:$0xf]
    %v6652 = vld [vmem:[%s6503 + $0x250] sm:$0xf]
    %v6653 = vld [vmem:[%s6503 + $0x254] sm:$0xf]
    %v6654 = vld [vmem:[%s6503 + $0x258] sm:$0xf]
    %v6655 = vld [vmem:[%s6503 + $0x25c] sm:$0xf]
    %v6656 = vld [vmem:[%s6503 + $0x260] sm:$0xf]
    %v6657 = vld [vmem:[%s6503 + $0x264] sm:$0xf]
    %v6658 = vld [vmem:[%s6503 + $0x268] sm:$0xf]
    %v6659 = vld [vmem:[%s6503 + $0x26c] sm:$0xf]
    %v6660 = vld [vmem:[%s6503 + $0x270] sm:$0xf]
    %v6661 = vld [vmem:[%s6503 + $0x274] sm:$0xf]
    %v6662 = vld [vmem:[%s6503 + $0x278] sm:$0xf]
    %v6663 = vld [vmem:[%s6503 + $0x27c] sm:$0xf]
    %v6664 = vld [vmem:[%s6503 + $0x280] sm:$0xf]
    %v6665 = vld [vmem:[%s6503 + $0x284] sm:$0xf]
    %v6666 = vld [vmem:[%s6503 + $0x288] sm:$0xf]
    %v6667 = vld [vmem:[%s6503 + $0x28c] sm:$0xf]
    %v6668 = vld [vmem:[%s6503 + $0x290] sm:$0xf]
    %v6669 = vld [vmem:[%s6503 + $0x294] sm:$0xf]
    %v6670 = vld [vmem:[%s6503 + $0x298] sm:$0xf]
    %v6671 = vld [vmem:[%s6503 + $0x29c] sm:$0xf]
    %v6672 = vld [vmem:[%s6503 + $0x2a0] sm:$0xf]
    %v6673 = vld [vmem:[%s6503 + $0x2a4] sm:$0xf]
    %v6674 = vld [vmem:[%s6503 + $0x2a8] sm:$0xf]
    %v6675 = vld [vmem:[%s6503 + $0x2ac] sm:$0xf]
    %v6676 = vld [vmem:[%s6503 + $0x2b0] sm:$0xf]
    %v6677 = vld [vmem:[%s6503 + $0x2b4] sm:$0xf]
    %v6678 = vld [vmem:[%s6503 + $0x2b8] sm:$0xf]
    %v6679 = vld [vmem:[%s6503 + $0x2bc] sm:$0xf]
    %v6680 = vld [vmem:[%s6503 + $0x2c0] sm:$0xf]
    %v6681 = vld [vmem:[%s6503 + $0x2c4] sm:$0xf]
    %v6682 = vld [vmem:[%s6503 + $0x2c8] sm:$0xf]
    %v6683 = vld [vmem:[%s6503 + $0x2cc] sm:$0xf]
    %v6684 = vld [vmem:[%s6503 + $0x2d0] sm:$0xf]
    %v6685 = vld [vmem:[%s6503 + $0x2d4] sm:$0xf]
    %v6686 = vld [vmem:[%s6503 + $0x2d8] sm:$0xf]
    %v6687 = vld [vmem:[%s6503 + $0x2dc] sm:$0xf]
    %v6688 = vld [vmem:[%s6503 + $0x2e0] sm:$0xf]
    %v6689 = vld [vmem:[%s6503 + $0x2e4] sm:$0xf]
    %v6690 = vld [vmem:[%s6503 + $0x2e8] sm:$0xf]
    %v6691 = vld [vmem:[%s6503 + $0x2ec] sm:$0xf]
    %v6692 = vld [vmem:[%s6503 + $0x2f0] sm:$0xf]
    %v6693 = vld [vmem:[%s6503 + $0x2f4] sm:$0xf]
    %v6694 = vld [vmem:[%s6503 + $0x2f8] sm:$0xf]
    %v6695 = vld [vmem:[%s6503 + $0x2fc] sm:$0xf]
    %v6696 = vld [vmem:[%s6503 + $0x300] sm:$0xf]
    %v6697 = vld [vmem:[%s6503 + $0x304] sm:$0xf]
    %v6698 = vld [vmem:[%s6503 + $0x308] sm:$0xf]
    %v6699 = vld [vmem:[%s6503 + $0x30c] sm:$0xf]
    %v6700 = vld [vmem:[%s6503 + $0x310] sm:$0xf]
    %v6701 = vld [vmem:[%s6503 + $0x314] sm:$0xf]
    %v6702 = vld [vmem:[%s6503 + $0x318] sm:$0xf]
    %v6703 = vld [vmem:[%s6503 + $0x31c] sm:$0xf]
    %v6704 = vld [vmem:[%s6503 + $0x320] sm:$0xf]
    %v6705 = vld [vmem:[%s6503 + $0x324] sm:$0xf]
    %v6706 = vld [vmem:[%s6503 + $0x328] sm:$0xf]
    %v6707 = vld [vmem:[%s6503 + $0x32c] sm:$0xf]
    %v6708 = vld [vmem:[%s6503 + $0x330] sm:$0xf]
    %v6709 = vld [vmem:[%s6503 + $0x334] sm:$0xf]
    %v6710 = vld [vmem:[%s6503 + $0x338] sm:$0xf]
    %v6711 = vld [vmem:[%s6503 + $0x33c] sm:$0xf]
    %v6712 = vld [vmem:[%s6503 + $0x340] sm:$0xf]
    %v6713 = vld [vmem:[%s6503 + $0x344] sm:$0xf]
    %v6714 = vld [vmem:[%s6503 + $0x348] sm:$0xf]
    %v6715 = vld [vmem:[%s6503 + $0x34c] sm:$0xf]
    %v6716 = vld [vmem:[%s6503 + $0x350] sm:$0xf]
    %v6717 = vld [vmem:[%s6503 + $0x354] sm:$0xf]
    %v6718 = vld [vmem:[%s6503 + $0x358] sm:$0xf]
    %v6719 = vld [vmem:[%s6503 + $0x35c] sm:$0xf]
    %v6720 = vld [vmem:[%s6503 + $0x360] sm:$0xf]
    %v6721 = vld [vmem:[%s6503 + $0x364] sm:$0xf]
    %v6722 = vld [vmem:[%s6503 + $0x368] sm:$0xf]
    %v6723 = vld [vmem:[%s6503 + $0x36c] sm:$0xf]
    %v6724 = vld [vmem:[%s6503 + $0x370] sm:$0xf]
    %v6725 = vld [vmem:[%s6503 + $0x374] sm:$0xf]
    %v6726 = vld [vmem:[%s6503 + $0x378] sm:$0xf]
    %v6727 = vld [vmem:[%s6503 + $0x37c] sm:$0xf]
    %v6728 = vld [vmem:[%s6503 + $0x380] sm:$0xf]
    %v6729 = vld [vmem:[%s6503 + $0x384] sm:$0xf]
    %v6730 = vld [vmem:[%s6503 + $0x388] sm:$0xf]
    %v6731 = vld [vmem:[%s6503 + $0x38c] sm:$0xf]
    %v6732 = vld [vmem:[%s6503 + $0x390] sm:$0xf]
    %v6733 = vld [vmem:[%s6503 + $0x394] sm:$0xf]
    %v6734 = vld [vmem:[%s6503 + $0x398] sm:$0xf]
    %v6735 = vld [vmem:[%s6503 + $0x39c] sm:$0xf]
    %v6736 = vld [vmem:[%s6503 + $0x3a0] sm:$0xf]
    %v6737 = vld [vmem:[%s6503 + $0x3a4] sm:$0xf]
    %v6738 = vld [vmem:[%s6503 + $0x3a8] sm:$0xf]
    %v6739 = vld [vmem:[%s6503 + $0x3ac] sm:$0xf]
    %v6740 = vld [vmem:[%s6503 + $0x3b0] sm:$0xf]
    %v6741 = vld [vmem:[%s6503 + $0x3b4] sm:$0xf]
    %v6742 = vld [vmem:[%s6503 + $0x3b8] sm:$0xf]
    %v6743 = vld [vmem:[%s6503 + $0x3bc] sm:$0xf]
    %v6744 = vld [vmem:[%s6503 + $0x3c0] sm:$0xf]
    %v6745 = vld [vmem:[%s6503 + $0x3c4] sm:$0xf]
    %v6746 = vld [vmem:[%s6503 + $0x3c8] sm:$0xf]
    %v6747 = vld [vmem:[%s6503 + $0x3cc] sm:$0xf]
    %v6748 = vld [vmem:[%s6503 + $0x3d0] sm:$0xf]
    %v6749 = vld [vmem:[%s6503 + $0x3d4] sm:$0xf]
    %v6750 = vld [vmem:[%s6503 + $0x3d8] sm:$0xf]
    %v6751 = vld [vmem:[%s6503 + $0x3dc] sm:$0xf]
    %v6752 = vld [vmem:[%s6503 + $0x3e0] sm:$0xf]
    %v6753 = vld [vmem:[%s6503 + $0x3e4] sm:$0xf]
    %v6754 = vld [vmem:[%s6503 + $0x3e8] sm:$0xf]
    %v6755 = vld [vmem:[%s6503 + $0x3ec] sm:$0xf]
    %v6756 = vld [vmem:[%s6503 + $0x3f0] sm:$0xf]
    %v6757 = vld [vmem:[%s6503 + $0x3f4] sm:$0xf]
    %v6758 = vld [vmem:[%s6503 + $0x3f8] sm:$0xf]
    %v6759 = vld [vmem:[%s6503 + $0x3fc] sm:$0xf]
    %s6760 = scalar_lea.vmem %s12, 1
    %v6761 = vld [vmem:[%s6760] sm:$0x1]
    %v6762 = vpack.c.bf16 %v6487, %v6471
    %v6763 = vpack.c.bf16 %v6488, %v6472
    %v6764 = vpack.c.bf16 %v6489, %v6473
    %v6765 = vpack.c.bf16 %v6490, %v6474
    %v6766 = vpack.c.bf16 %v6491, %v6475
    %v6767 = vpack.c.bf16 %v6492, %v6476
    %v6768 = vpack.c.bf16 %v6493, %v6477
    %v6769 = vpack.c.bf16 %v6494, %v6478
    %v6770 = vpack.c.bf16 %v6495, %v6479
    %v6771 = vpack.c.bf16 %v6496, %v6480
    %v6772 = vpack.c.bf16 %v6497, %v6481
    %v6773 = vpack.c.bf16 %v6498, %v6482
    %v6774 = vpack.c.bf16 %v6499, %v6483
    %v6775 = vpack.c.bf16 %v6500, %v6484
    %v6776 = vpack.c.bf16 %v6501, %v6485
    %v6777 = vpack.c.bf16 %v6502, %v6486
    %v6779 = vlaneseq
    %v6780 = vshrl.u32 %v6779, 7
    %v6781 = vsub.s32 0, %v6780
    %v6782 = vrot.slane %v6761, %v6781
    %v7040 = vunpack.c.l.b16 %v6504
    %v7041 = vunpack.c.l.b16 %v6505
    %v7042 = vunpack.c.l.b16 %v6506
    %v7043 = vunpack.c.l.b16 %v6507
    %v7044 = vunpack.c.l.b16 %v6508
    %v7045 = vunpack.c.l.b16 %v6509
    %v7046 = vunpack.c.l.b16 %v6510
    %v7047 = vunpack.c.l.b16 %v6511
    %v7048 = vunpack.c.l.b16 %v6512
    %v7049 = vunpack.c.l.b16 %v6513
    %v7050 = vunpack.c.l.b16 %v6514
    %v7051 = vunpack.c.l.b16 %v6515
    %v7052 = vunpack.c.l.b16 %v6516
    %v7053 = vunpack.c.l.b16 %v6517
    %v7054 = vunpack.c.l.b16 %v6518
    %v7055 = vunpack.c.l.b16 %v6519
    %v7056 = vunpack.c.l.b16 %v6520
    %v7057 = vunpack.c.l.b16 %v6521
    %v7058 = vunpack.c.l.b16 %v6522
    %v7059 = vunpack.c.l.b16 %v6523
    %v7060 = vunpack.c.l.b16 %v6524
    %v7061 = vunpack.c.l.b16 %v6525
    %v7062 = vunpack.c.l.b16 %v6526
    %v7063 = vunpack.c.l.b16 %v6527
    %v7064 = vunpack.c.l.b16 %v6528
    %v7065 = vunpack.c.l.b16 %v6529
    %v7066 = vunpack.c.l.b16 %v6530
    %v7067 = vunpack.c.l.b16 %v6531
    %v7068 = vunpack.c.l.b16 %v6532
    %v7069 = vunpack.c.l.b16 %v6533
    %v7070 = vunpack.c.l.b16 %v6534
    %v7071 = vunpack.c.l.b16 %v6535
    %v7072 = vunpack.c.l.b16 %v6536
    %v7073 = vunpack.c.l.b16 %v6537
    %v7074 = vunpack.c.l.b16 %v6538
    %v7075 = vunpack.c.l.b16 %v6539
    %v7076 = vunpack.c.l.b16 %v6540
    %v7077 = vunpack.c.l.b16 %v6541
    %v7078 = vunpack.c.l.b16 %v6542
    %v7079 = vunpack.c.l.b16 %v6543
    %v7080 = vunpack.c.l.b16 %v6544
    %v7081 = vunpack.c.l.b16 %v6545
    %v7082 = vunpack.c.l.b16 %v6546
    %v7083 = vunpack.c.l.b16 %v6547
    %v7084 = vunpack.c.l.b16 %v6548
    %v7085 = vunpack.c.l.b16 %v6549
    %v7086 = vunpack.c.l.b16 %v6550
    %v7087 = vunpack.c.l.b16 %v6551
    %v7088 = vunpack.c.l.b16 %v6552
    %v7089 = vunpack.c.l.b16 %v6553
    %v7090 = vunpack.c.l.b16 %v6554
    %v7091 = vunpack.c.l.b16 %v6555
    %v7092 = vunpack.c.l.b16 %v6556
    %v7093 = vunpack.c.l.b16 %v6557
    %v7094 = vunpack.c.l.b16 %v6558
    %v7095 = vunpack.c.l.b16 %v6559
    %v7096 = vunpack.c.l.b16 %v6560
    %v7097 = vunpack.c.l.b16 %v6561
    %v7098 = vunpack.c.l.b16 %v6562
    %v7099 = vunpack.c.l.b16 %v6563
    %v7100 = vunpack.c.l.b16 %v6564
    %v7101 = vunpack.c.l.b16 %v6565
    %v7102 = vunpack.c.l.b16 %v6566
    %v7103 = vunpack.c.l.b16 %v6567
    %v7104 = vunpack.c.l.b16 %v6568
    %v7105 = vunpack.c.l.b16 %v6569
    %v7106 = vunpack.c.l.b16 %v6570
    %v7107 = vunpack.c.l.b16 %v6571
    %v7108 = vunpack.c.l.b16 %v6572
    %v7109 = vunpack.c.l.b16 %v6573
    %v7110 = vunpack.c.l.b16 %v6574
    %v7111 = vunpack.c.l.b16 %v6575
    %v7112 = vunpack.c.l.b16 %v6576
    %v7113 = vunpack.c.l.b16 %v6577
    %v7114 = vunpack.c.l.b16 %v6578
    %v7115 = vunpack.c.l.b16 %v6579
    %v7116 = vunpack.c.l.b16 %v6580
    %v7117 = vunpack.c.l.b16 %v6581
    %v7118 = vunpack.c.l.b16 %v6582
    %v7119 = vunpack.c.l.b16 %v6583
    %v7120 = vunpack.c.l.b16 %v6584
    %v7121 = vunpack.c.l.b16 %v6585
    %v7122 = vunpack.c.l.b16 %v6586
    %v7123 = vunpack.c.l.b16 %v6587
    %v7124 = vunpack.c.l.b16 %v6588
    %v7125 = vunpack.c.l.b16 %v6589
    %v7126 = vunpack.c.l.b16 %v6590
    %v7127 = vunpack.c.l.b16 %v6591
    %v7128 = vunpack.c.l.b16 %v6592
    %v7129 = vunpack.c.l.b16 %v6593
    %v7130 = vunpack.c.l.b16 %v6594
    %v7131 = vunpack.c.l.b16 %v6595
    %v7132 = vunpack.c.l.b16 %v6596
    %v7133 = vunpack.c.l.b16 %v6597
    %v7134 = vunpack.c.l.b16 %v6598
    %v7135 = vunpack.c.l.b16 %v6599
    %v7136 = vunpack.c.l.b16 %v6600
    %v7137 = vunpack.c.l.b16 %v6601
    %v7138 = vunpack.c.l.b16 %v6602
    %v7139 = vunpack.c.l.b16 %v6603
    %v7140 = vunpack.c.l.b16 %v6604
    %v7141 = vunpack.c.l.b16 %v6605
    %v7142 = vunpack.c.l.b16 %v6606
    %v7143 = vunpack.c.l.b16 %v6607
    %v7144 = vunpack.c.l.b16 %v6608
    %v7145 = vunpack.c.l.b16 %v6609
    %v7146 = vunpack.c.l.b16 %v6610
    %v7147 = vunpack.c.l.b16 %v6611
    %v7148 = vunpack.c.l.b16 %v6612
    %v7149 = vunpack.c.l.b16 %v6613
    %v7150 = vunpack.c.l.b16 %v6614
    %v7151 = vunpack.c.l.b16 %v6615
    %v7152 = vunpack.c.l.b16 %v6616
    %v7153 = vunpack.c.l.b16 %v6617
    %v7154 = vunpack.c.l.b16 %v6618
    %v7155 = vunpack.c.l.b16 %v6619
    %v7156 = vunpack.c.l.b16 %v6620
    %v7157 = vunpack.c.l.b16 %v6621
    %v7158 = vunpack.c.l.b16 %v6622
    %v7159 = vunpack.c.l.b16 %v6623
    %v7160 = vunpack.c.l.b16 %v6624
    %v7161 = vunpack.c.l.b16 %v6625
    %v7162 = vunpack.c.l.b16 %v6626
    %v7163 = vunpack.c.l.b16 %v6627
    %v7164 = vunpack.c.l.b16 %v6628
    %v7165 = vunpack.c.l.b16 %v6629
    %v7166 = vunpack.c.l.b16 %v6630
    %v7167 = vunpack.c.l.b16 %v6631
    %v7168 = vunpack.c.l.b16 %v6632
    %v7169 = vunpack.c.l.b16 %v6633
    %v7170 = vunpack.c.l.b16 %v6634
    %v7171 = vunpack.c.l.b16 %v6635
    %v7172 = vunpack.c.l.b16 %v6636
    %v7173 = vunpack.c.l.b16 %v6637
    %v7174 = vunpack.c.l.b16 %v6638
    %v7175 = vunpack.c.l.b16 %v6639
    %v7176 = vunpack.c.l.b16 %v6640
    %v7177 = vunpack.c.l.b16 %v6641
    %v7178 = vunpack.c.l.b16 %v6642
    %v7179 = vunpack.c.l.b16 %v6643
    %v7180 = vunpack.c.l.b16 %v6644
    %v7181 = vunpack.c.l.b16 %v6645
    %v7182 = vunpack.c.l.b16 %v6646
    %v7183 = vunpack.c.l.b16 %v6647
    %v7184 = vunpack.c.l.b16 %v6648
    %v7185 = vunpack.c.l.b16 %v6649
    %v7186 = vunpack.c.l.b16 %v6650
    %v7187 = vunpack.c.l.b16 %v6651
    %v7188 = vunpack.c.l.b16 %v6652
    %v7189 = vunpack.c.l.b16 %v6653
    %v7190 = vunpack.c.l.b16 %v6654
    %v7191 = vunpack.c.l.b16 %v6655
    %v7192 = vunpack.c.l.b16 %v6656
    %v7193 = vunpack.c.l.b16 %v6657
    %v7194 = vunpack.c.l.b16 %v6658
    %v7195 = vunpack.c.l.b16 %v6659
    %v7196 = vunpack.c.l.b16 %v6660
    %v7197 = vunpack.c.l.b16 %v6661
    %v7198 = vunpack.c.l.b16 %v6662
    %v7199 = vunpack.c.l.b16 %v6663
    %v7200 = vunpack.c.l.b16 %v6664
    %v7201 = vunpack.c.l.b16 %v6665
    %v7202 = vunpack.c.l.b16 %v6666
    %v7203 = vunpack.c.l.b16 %v6667
    %v7204 = vunpack.c.l.b16 %v6668
    %v7205 = vunpack.c.l.b16 %v6669
    %v7206 = vunpack.c.l.b16 %v6670
    %v7207 = vunpack.c.l.b16 %v6671
    %v7208 = vunpack.c.l.b16 %v6672
    %v7209 = vunpack.c.l.b16 %v6673
    %v7210 = vunpack.c.l.b16 %v6674
    %v7211 = vunpack.c.l.b16 %v6675
    %v7212 = vunpack.c.l.b16 %v6676
    %v7213 = vunpack.c.l.b16 %v6677
    %v7214 = vunpack.c.l.b16 %v6678
    %v7215 = vunpack.c.l.b16 %v6679
    %v7216 = vunpack.c.l.b16 %v6680
    %v7217 = vunpack.c.l.b16 %v6681
    %v7218 = vunpack.c.l.b16 %v6682
    %v7219 = vunpack.c.l.b16 %v6683
    %v7220 = vunpack.c.l.b16 %v6684
    %v7221 = vunpack.c.l.b16 %v6685
    %v7222 = vunpack.c.l.b16 %v6686
    %v7223 = vunpack.c.l.b16 %v6687
    %v7224 = vunpack.c.l.b16 %v6688
    %v7225 = vunpack.c.l.b16 %v6689
    %v7226 = vunpack.c.l.b16 %v6690
    %v7227 = vunpack.c.l.b16 %v6691
    %v7228 = vunpack.c.l.b16 %v6692
    %v7229 = vunpack.c.l.b16 %v6693
    %v7230 = vunpack.c.l.b16 %v6694
    %v7231 = vunpack.c.l.b16 %v6695
    %v7232 = vunpack.c.l.b16 %v6696
    %v7233 = vunpack.c.l.b16 %v6697
    %v7234 = vunpack.c.l.b16 %v6698
    %v7235 = vunpack.c.l.b16 %v6699
    %v7236 = vunpack.c.l.b16 %v6700
    %v7237 = vunpack.c.l.b16 %v6701
    %v7238 = vunpack.c.l.b16 %v6702
    %v7239 = vunpack.c.l.b16 %v6703
    %v7240 = vunpack.c.l.b16 %v6704
    %v7241 = vunpack.c.l.b16 %v6705
    %v7242 = vunpack.c.l.b16 %v6706
    %v7243 = vunpack.c.l.b16 %v6707
    %v7244 = vunpack.c.l.b16 %v6708
    %v7245 = vunpack.c.l.b16 %v6709
    %v7246 = vunpack.c.l.b16 %v6710
    %v7247 = vunpack.c.l.b16 %v6711
    %v7248 = vunpack.c.l.b16 %v6712
    %v7249 = vunpack.c.l.b16 %v6713
    %v7250 = vunpack.c.l.b16 %v6714
    %v7251 = vunpack.c.l.b16 %v6715
    %v7252 = vunpack.c.l.b16 %v6716
    %v7253 = vunpack.c.l.b16 %v6717
    %v7254 = vunpack.c.l.b16 %v6718
    %v7255 = vunpack.c.l.b16 %v6719
    %v7256 = vunpack.c.l.b16 %v6720
    %v7257 = vunpack.c.l.b16 %v6721
    %v7258 = vunpack.c.l.b16 %v6722
    %v7259 = vunpack.c.l.b16 %v6723
    %v7260 = vunpack.c.l.b16 %v6724
    %v7261 = vunpack.c.l.b16 %v6725
    %v7262 = vunpack.c.l.b16 %v6726
    %v7263 = vunpack.c.l.b16 %v6727
    %v7264 = vunpack.c.l.b16 %v6728
    %v7265 = vunpack.c.l.b16 %v6729
    %v7266 = vunpack.c.l.b16 %v6730
    %v7267 = vunpack.c.l.b16 %v6731
    %v7268 = vunpack.c.l.b16 %v6732
    %v7269 = vunpack.c.l.b16 %v6733
    %v7270 = vunpack.c.l.b16 %v6734
    %v7271 = vunpack.c.l.b16 %v6735
    %v7272 = vunpack.c.l.b16 %v6736
    %v7273 = vunpack.c.l.b16 %v6737
    %v7274 = vunpack.c.l.b16 %v6738
    %v7275 = vunpack.c.l.b16 %v6739
    %v7276 = vunpack.c.l.b16 %v6740
    %v7277 = vunpack.c.l.b16 %v6741
    %v7278 = vunpack.c.l.b16 %v6742
    %v7279 = vunpack.c.l.b16 %v6743
    %v7280 = vunpack.c.l.b16 %v6744
    %v7281 = vunpack.c.l.b16 %v6745
    %v7282 = vunpack.c.l.b16 %v6746
    %v7283 = vunpack.c.l.b16 %v6747
    %v7284 = vunpack.c.l.b16 %v6748
    %v7285 = vunpack.c.l.b16 %v6749
    %v7286 = vunpack.c.l.b16 %v6750
    %v7287 = vunpack.c.l.b16 %v6751
    %v7288 = vunpack.c.l.b16 %v6752
    %v7289 = vunpack.c.l.b16 %v6753
    %v7290 = vunpack.c.l.b16 %v6754
    %v7291 = vunpack.c.l.b16 %v6755
    %v7292 = vunpack.c.l.b16 %v6756
    %v7293 = vunpack.c.l.b16 %v6757
    %v7294 = vunpack.c.l.b16 %v6758
    %v7295 = vunpack.c.l.b16 %v6759
    %v7296 = vpack.c.b16 %v7041, %v7040
    %v7297 = vpack.c.b16 %v7043, %v7042
    %v7298 = vpack.c.b16 %v7045, %v7044
    %v7299 = vpack.c.b16 %v7047, %v7046
    %v7300 = vpack.c.b16 %v7049, %v7048
    %v7301 = vpack.c.b16 %v7051, %v7050
    %v7302 = vpack.c.b16 %v7053, %v7052
    %v7303 = vpack.c.b16 %v7055, %v7054
    %v7304 = vpack.c.b16 %v7057, %v7056
    %v7305 = vpack.c.b16 %v7059, %v7058
    %v7306 = vpack.c.b16 %v7061, %v7060
    %v7307 = vpack.c.b16 %v7063, %v7062
    %v7308 = vpack.c.b16 %v7065, %v7064
    %v7309 = vpack.c.b16 %v7067, %v7066
    %v7310 = vpack.c.b16 %v7069, %v7068
    %v7311 = vpack.c.b16 %v7071, %v7070
    %v7312 = vpack.c.b16 %v7073, %v7072
    %v7313 = vpack.c.b16 %v7075, %v7074
    %v7314 = vpack.c.b16 %v7077, %v7076
    %v7315 = vpack.c.b16 %v7079, %v7078
    %v7316 = vpack.c.b16 %v7081, %v7080
    %v7317 = vpack.c.b16 %v7083, %v7082
    %v7318 = vpack.c.b16 %v7085, %v7084
    %v7319 = vpack.c.b16 %v7087, %v7086
    %v7320 = vpack.c.b16 %v7089, %v7088
    %v7321 = vpack.c.b16 %v7091, %v7090
    %v7322 = vpack.c.b16 %v7093, %v7092
    %v7323 = vpack.c.b16 %v7095, %v7094
    %v7324 = vpack.c.b16 %v7097, %v7096
    %v7325 = vpack.c.b16 %v7099, %v7098
    %v7326 = vpack.c.b16 %v7101, %v7100
    %v7327 = vpack.c.b16 %v7103, %v7102
    %v7328 = vpack.c.b16 %v7105, %v7104
    %v7329 = vpack.c.b16 %v7107, %v7106
    %v7330 = vpack.c.b16 %v7109, %v7108
    %v7331 = vpack.c.b16 %v7111, %v7110
    %v7332 = vpack.c.b16 %v7113, %v7112
    %v7333 = vpack.c.b16 %v7115, %v7114
    %v7334 = vpack.c.b16 %v7117, %v7116
    %v7335 = vpack.c.b16 %v7119, %v7118
    %v7336 = vpack.c.b16 %v7121, %v7120
    %v7337 = vpack.c.b16 %v7123, %v7122
    %v7338 = vpack.c.b16 %v7125, %v7124
    %v7339 = vpack.c.b16 %v7127, %v7126
    %v7340 = vpack.c.b16 %v7129, %v7128
    %v7341 = vpack.c.b16 %v7131, %v7130
    %v7342 = vpack.c.b16 %v7133, %v7132
    %v7343 = vpack.c.b16 %v7135, %v7134
    %v7344 = vpack.c.b16 %v7137, %v7136
    %v7345 = vpack.c.b16 %v7139, %v7138
    %v7346 = vpack.c.b16 %v7141, %v7140
    %v7347 = vpack.c.b16 %v7143, %v7142
    %v7348 = vpack.c.b16 %v7145, %v7144
    %v7349 = vpack.c.b16 %v7147, %v7146
    %v7350 = vpack.c.b16 %v7149, %v7148
    %v7351 = vpack.c.b16 %v7151, %v7150
    %v7352 = vpack.c.b16 %v7153, %v7152
    %v7353 = vpack.c.b16 %v7155, %v7154
    %v7354 = vpack.c.b16 %v7157, %v7156
    %v7355 = vpack.c.b16 %v7159, %v7158
    %v7356 = vpack.c.b16 %v7161, %v7160
    %v7357 = vpack.c.b16 %v7163, %v7162
    %v7358 = vpack.c.b16 %v7165, %v7164
    %v7359 = vpack.c.b16 %v7167, %v7166
    %v7360 = vpack.c.b16 %v7169, %v7168
    %v7361 = vpack.c.b16 %v7171, %v7170
    %v7362 = vpack.c.b16 %v7173, %v7172
    %v7363 = vpack.c.b16 %v7175, %v7174
    %v7364 = vpack.c.b16 %v7177, %v7176
    %v7365 = vpack.c.b16 %v7179, %v7178
    %v7366 = vpack.c.b16 %v7181, %v7180
    %v7367 = vpack.c.b16 %v7183, %v7182
    %v7368 = vpack.c.b16 %v7185, %v7184
    %v7369 = vpack.c.b16 %v7187, %v7186
    %v7370 = vpack.c.b16 %v7189, %v7188
    %v7371 = vpack.c.b16 %v7191, %v7190
    %v7372 = vpack.c.b16 %v7193, %v7192
    %v7373 = vpack.c.b16 %v7195, %v7194
    %v7374 = vpack.c.b16 %v7197, %v7196
    %v7375 = vpack.c.b16 %v7199, %v7198
    %v7376 = vpack.c.b16 %v7201, %v7200
    %v7377 = vpack.c.b16 %v7203, %v7202
    %v7378 = vpack.c.b16 %v7205, %v7204
    %v7379 = vpack.c.b16 %v7207, %v7206
    %v7380 = vpack.c.b16 %v7209, %v7208
    %v7381 = vpack.c.b16 %v7211, %v7210
    %v7382 = vpack.c.b16 %v7213, %v7212
    %v7383 = vpack.c.b16 %v7215, %v7214
    %v7384 = vpack.c.b16 %v7217, %v7216
    %v7385 = vpack.c.b16 %v7219, %v7218
    %v7386 = vpack.c.b16 %v7221, %v7220
    %v7387 = vpack.c.b16 %v7223, %v7222
    %v7388 = vpack.c.b16 %v7225, %v7224
    %v7389 = vpack.c.b16 %v7227, %v7226
    %v7390 = vpack.c.b16 %v7229, %v7228
    %v7391 = vpack.c.b16 %v7231, %v7230
    %v7392 = vpack.c.b16 %v7233, %v7232
    %v7393 = vpack.c.b16 %v7235, %v7234
    %v7394 = vpack.c.b16 %v7237, %v7236
    %v7395 = vpack.c.b16 %v7239, %v7238
    %v7396 = vpack.c.b16 %v7241, %v7240
    %v7397 = vpack.c.b16 %v7243, %v7242
    %v7398 = vpack.c.b16 %v7245, %v7244
    %v7399 = vpack.c.b16 %v7247, %v7246
    %v7400 = vpack.c.b16 %v7249, %v7248
    %v7401 = vpack.c.b16 %v7251, %v7250
    %v7402 = vpack.c.b16 %v7253, %v7252
    %v7403 = vpack.c.b16 %v7255, %v7254
    %v7404 = vpack.c.b16 %v7257, %v7256
    %v7405 = vpack.c.b16 %v7259, %v7258
    %v7406 = vpack.c.b16 %v7261, %v7260
    %v7407 = vpack.c.b16 %v7263, %v7262
    %v7408 = vpack.c.b16 %v7265, %v7264
    %v7409 = vpack.c.b16 %v7267, %v7266
    %v7410 = vpack.c.b16 %v7269, %v7268
    %v7411 = vpack.c.b16 %v7271, %v7270
    %v7412 = vpack.c.b16 %v7273, %v7272
    %v7413 = vpack.c.b16 %v7275, %v7274
    %v7414 = vpack.c.b16 %v7277, %v7276
    %v7415 = vpack.c.b16 %v7279, %v7278
    %v7416 = vpack.c.b16 %v7281, %v7280
    %v7417 = vpack.c.b16 %v7283, %v7282
    %v7418 = vpack.c.b16 %v7285, %v7284
    %v7419 = vpack.c.b16 %v7287, %v7286
    %v7420 = vpack.c.b16 %v7289, %v7288
    %v7421 = vpack.c.b16 %v7291, %v7290
    %v7422 = vpack.c.b16 %v7293, %v7292
    %v7423 = vpack.c.b16 %v7295, %v7294
    %7552 = vmatprep.subr.bf16.mxu0 0
    %7553 = vmatpush1.bf16.msra.mxu0 %v7296
    %7554 = vmatprep.subr.bf16.mxu0 0
    %7555 = vmatpush1.bf16.msra.mxu0 %v7297
    %7556 = vmatprep.subr.bf16.mxu0 0
    %7557 = vmatpush1.bf16.msra.mxu0 %v7298
    %7558 = vmatprep.subr.bf16.mxu0 0
    %7559 = vmatpush1.bf16.msra.mxu0 %v7299
    %7560 = vmatprep.subr.bf16.mxu0 0
    %7561 = vmatpush1.bf16.msra.mxu0 %v7300
    %7562 = vmatprep.subr.bf16.mxu0 0
    %7563 = vmatpush1.bf16.msra.mxu0 %v7301
    %7564 = vmatprep.subr.bf16.mxu0 0
    %7565 = vmatpush1.bf16.msra.mxu0 %v7302
    %7566 = vmatprep.subr.bf16.mxu0 0
    %7567 = vmatpush1.bf16.msra.mxu0 %v7303
    %7568 = vmatprep.subr.bf16.mxu0 0
    %7569 = vmatpush1.bf16.msra.mxu0 %v7304
    %7570 = vmatprep.subr.bf16.mxu0 0
    %7571 = vmatpush1.bf16.msra.mxu0 %v7305
    %7572 = vmatprep.subr.bf16.mxu0 0
    %7573 = vmatpush1.bf16.msra.mxu0 %v7306
    %7574 = vmatprep.subr.bf16.mxu0 0
    %7575 = vmatpush1.bf16.msra.mxu0 %v7307
    %7576 = vmatprep.subr.bf16.mxu0 0
    %7577 = vmatpush1.bf16.msra.mxu0 %v7308
    %7578 = vmatprep.subr.bf16.mxu0 0
    %7579 = vmatpush1.bf16.msra.mxu0 %v7309
    %7580 = vmatprep.subr.bf16.mxu0 0
    %7581 = vmatpush1.bf16.msra.mxu0 %v7310
    %7582 = vmatprep.subr.bf16.mxu0 0
    %7583 = vmatpush1.bf16.msra.mxu0 %v7311
    %7584 = vmatprep.mubr.bf16.mxu0 %v6763
    %7585 = vmatmul.mubr.bf16.gmra.mrb[0].mxu0 %v6762
    %v7586 = vpop.f32.mrb[0].mxu0
    %v7587 = vadd.f32 %v6782, %v7586
    %v7588 = vpop.f32.mrb[0].mxu0
    %v7589 = vpop.f32.mrb[0].mxu0
    %v7590 = vadd.f32 %v6782, %v7589
    %v7591 = vpop.f32.mrb[0].mxu0
    %7592 = vdwg.mxu0
    %7593 = vmatprep.subr.bf16.mxu0 0
    %7594 = vmatpush1.bf16.msra.mxu0 %v7312
    %7595 = vmatprep.subr.bf16.mxu0 0
    %7596 = vmatpush1.bf16.msra.mxu0 %v7313
    %7597 = vmatprep.subr.bf16.mxu0 0
    %7598 = vmatpush1.bf16.msra.mxu0 %v7314
    %7599 = vmatprep.subr.bf16.mxu0 0
    %7600 = vmatpush1.bf16.msra.mxu0 %v7315
    %7601 = vmatprep.subr.bf16.mxu0 0
    %7602 = vmatpush1.bf16.msra.mxu0 %v7316
    %7603 = vmatprep.subr.bf16.mxu0 0
    %7604 = vmatpush1.bf16.msra.mxu0 %v7317
    %7605 = vmatprep.subr.bf16.mxu0 0
    %7606 = vmatpush1.bf16.msra.mxu0 %v7318
    %7607 = vmatprep.subr.bf16.mxu0 0
    %7608 = vmatpush1.bf16.msra.mxu0 %v7319
    %7609 = vmatprep.subr.bf16.mxu0 0
    %7610 = vmatpush1.bf16.msra.mxu0 %v7320
    %7611 = vmatprep.subr.bf16.mxu0 0
    %7612 = vmatpush1.bf16.msra.mxu0 %v7321
    %7613 = vmatprep.subr.bf16.mxu0 0
    %7614 = vmatpush1.bf16.msra.mxu0 %v7322
    %7615 = vmatprep.subr.bf16.mxu0 0
    %7616 = vmatpush1.bf16.msra.mxu0 %v7323
    %7617 = vmatprep.subr.bf16.mxu0 0
    %7618 = vmatpush1.bf16.msra.mxu0 %v7324
    %7619 = vmatprep.subr.bf16.mxu0 0
    %7620 = vmatpush1.bf16.msra.mxu0 %v7325
    %7621 = vmatprep.subr.bf16.mxu0 0
    %7622 = vmatpush1.bf16.msra.mxu0 %v7326
    %7623 = vmatprep.subr.bf16.mxu0 0
    %7624 = vmatpush1.bf16.msra.mxu0 %v7327
    %7625 = vmatprep.mubr.bf16.mxu0 %v6765
    %7626 = vmatmul.mubr.bf16.gmra.mrb[0].mxu0 %v6764
    %v7627 = vpop.f32.mrb[0].mxu0
    %v7628 = vadd.f32 %v7587, %v7627
    %v7629 = vpop.f32.mrb[0].mxu0
    %v7630 = vpop.f32.mrb[0].mxu0
    %v7631 = vadd.f32 %v7590, %v7630
    %v7632 = vpop.f32.mrb[0].mxu0
    %7633 = vdwg.mxu0
    %7634 = vmatprep.subr.bf16.mxu0 0
    %7635 = vmatpush1.bf16.msra.mxu0 %v7328
    %7636 = vmatprep.subr.bf16.mxu0 0
    %7637 = vmatpush1.bf16.msra.mxu0 %v7329
    %7638 = vmatprep.subr.bf16.mxu0 0
    %7639 = vmatpush1.bf16.msra.mxu0 %v7330
    %7640 = vmatprep.subr.bf16.mxu0 0
    %7641 = vmatpush1.bf16.msra.mxu0 %v7331
    %7642 = vmatprep.subr.bf16.mxu0 0
    %7643 = vmatpush1.bf16.msra.mxu0 %v7332
    %7644 = vmatprep.subr.bf16.mxu0 0
    %7645 = vmatpush1.bf16.msra.mxu0 %v7333
    %7646 = vmatprep.subr.bf16.mxu0 0
    %7647 = vmatpush1.bf16.msra.mxu0 %v7334
    %7648 = vmatprep.subr.bf16.mxu0 0
    %7649 = vmatpush1.bf16.msra.mxu0 %v7335
    %7650 = vmatprep.subr.bf16.mxu0 0
    %7651 = vmatpush1.bf16.msra.mxu0 %v7336
    %7652 = vmatprep.subr.bf16.mxu0 0
    %7653 = vmatpush1.bf16.msra.mxu0 %v7337
    %7654 = vmatprep.subr.bf16.mxu0 0
    %7655 = vmatpush1.bf16.msra.mxu0 %v7338
    %7656 = vmatprep.subr.bf16.mxu0 0
    %7657 = vmatpush1.bf16.msra.mxu0 %v7339
    %7658 = vmatprep.subr.bf16.mxu0 0
    %7659 = vmatpush1.bf16.msra.mxu0 %v7340
    %7660 = vmatprep.subr.bf16.mxu0 0
    %7661 = vmatpush1.bf16.msra.mxu0 %v7341
    %7662 = vmatprep.subr.bf16.mxu0 0
    %7663 = vmatpush1.bf16.msra.mxu0 %v7342
    %7664 = vmatprep.subr.bf16.mxu0 0
    %7665 = vmatpush1.bf16.msra.mxu0 %v7343
    %7666 = vmatprep.mubr.bf16.mxu0 %v6767
    %7667 = vmatmul.mubr.bf16.gmra.mrb[0].mxu0 %v6766
    %v7668 = vpop.f32.mrb[0].mxu0
    %v7669 = vadd.f32 %v7628, %v7668
    %v7670 = vpop.f32.mrb[0].mxu0
    %v7671 = vpop.f32.mrb[0].mxu0
    %v7672 = vadd.f32 %v7631, %v7671
    %v7673 = vpop.f32.mrb[0].mxu0
    %7674 = vdwg.mxu0
    %7675 = vmatprep.subr.bf16.mxu0 0
    %7676 = vmatpush1.bf16.msra.mxu0 %v7344
    %7677 = vmatprep.subr.bf16.mxu0 0
    %7678 = vmatpush1.bf16.msra.mxu0 %v7345
    %7679 = vmatprep.subr.bf16.mxu0 0
    %7680 = vmatpush1.bf16.msra.mxu0 %v7346
    %7681 = vmatprep.subr.bf16.mxu0 0
    %7682 = vmatpush1.bf16.msra.mxu0 %v7347
    %7683 = vmatprep.subr.bf16.mxu0 0
    %7684 = vmatpush1.bf16.msra.mxu0 %v7348
    %7685 = vmatprep.subr.bf16.mxu0 0
    %7686 = vmatpush1.bf16.msra.mxu0 %v7349
    %7687 = vmatprep.subr.bf16.mxu0 0
    %7688 = vmatpush1.bf16.msra.mxu0 %v7350
    %7689 = vmatprep.subr.bf16.mxu0 0
    %7690 = vmatpush1.bf16.msra.mxu0 %v7351
    %7691 = vmatprep.subr.bf16.mxu0 0
    %7692 = vmatpush1.bf16.msra.mxu0 %v7352
    %7693 = vmatprep.subr.bf16.mxu0 0
    %7694 = vmatpush1.bf16.msra.mxu0 %v7353
    %7695 = vmatprep.subr.bf16.mxu0 0
    %7696 = vmatpush1.bf16.msra.mxu0 %v7354
    %7697 = vmatprep.subr.bf16.mxu0 0
    %7698 = vmatpush1.bf16.msra.mxu0 %v7355
    %7699 = vmatprep.subr.bf16.mxu0 0
    %7700 = vmatpush1.bf16.msra.mxu0 %v7356
    %7701 = vmatprep.subr.bf16.mxu0 0
    %7702 = vmatpush1.bf16.msra.mxu0 %v7357
    %7703 = vmatprep.subr.bf16.mxu0 0
    %7704 = vmatpush1.bf16.msra.mxu0 %v7358
    %7705 = vmatprep.subr.bf16.mxu0 0
    %7706 = vmatpush1.bf16.msra.mxu0 %v7359
    %7707 = vmatprep.mubr.bf16.mxu0 %v6769
    %7708 = vmatmul.mubr.bf16.gmra.mrb[0].mxu0 %v6768
    %v7709 = vpop.f32.mrb[0].mxu0
    %v7710 = vadd.f32 %v7669, %v7709
    %v7711 = vpop.f32.mrb[0].mxu0
    %v7712 = vpop.f32.mrb[0].mxu0
    %v7713 = vadd.f32 %v7672, %v7712
    %v7714 = vpop.f32.mrb[0].mxu0
    %7715 = vdwg.mxu0
    %7716 = vmatprep.subr.bf16.mxu0 0
    %7717 = vmatpush1.bf16.msra.mxu0 %v7360
    %7718 = vmatprep.subr.bf16.mxu0 0
    %7719 = vmatpush1.bf16.msra.mxu0 %v7361
    %7720 = vmatprep.subr.bf16.mxu0 0
    %7721 = vmatpush1.bf16.msra.mxu0 %v7362
    %7722 = vmatprep.subr.bf16.mxu0 0
    %7723 = vmatpush1.bf16.msra.mxu0 %v7363
    %7724 = vmatprep.subr.bf16.mxu0 0
    %7725 = vmatpush1.bf16.msra.mxu0 %v7364
    %7726 = vmatprep.subr.bf16.mxu0 0
    %7727 = vmatpush1.bf16.msra.mxu0 %v7365
    %7728 = vmatprep.subr.bf16.mxu0 0
    %7729 = vmatpush1.bf16.msra.mxu0 %v7366
    %7730 = vmatprep.subr.bf16.mxu0 0
    %7731 = vmatpush1.bf16.msra.mxu0 %v7367
    %7732 = vmatprep.subr.bf16.mxu0 0
    %7733 = vmatpush1.bf16.msra.mxu0 %v7368
    %7734 = vmatprep.subr.bf16.mxu0 0
    %7735 = vmatpush1.bf16.msra.mxu0 %v7369
    %7736 = vmatprep.subr.bf16.mxu0 0
    %7737 = vmatpush1.bf16.msra.mxu0 %v7370
    %7738 = vmatprep.subr.bf16.mxu0 0
    %7739 = vmatpush1.bf16.msra.mxu0 %v7371
    %7740 = vmatprep.subr.bf16.mxu0 0
    %7741 = vmatpush1.bf16.msra.mxu0 %v7372
    %7742 = vmatprep.subr.bf16.mxu0 0
    %7743 = vmatpush1.bf16.msra.mxu0 %v7373
    %7744 = vmatprep.subr.bf16.mxu0 0
    %7745 = vmatpush1.bf16.msra.mxu0 %v7374
    %7746 = vmatprep.subr.bf16.mxu0 0
    %7747 = vmatpush1.bf16.msra.mxu0 %v7375
    %7748 = vmatprep.mubr.bf16.mxu0 %v6771
    %7749 = vmatmul.mubr.bf16.gmra.mrb[0].mxu0 %v6770
    %v7750 = vpop.f32.mrb[0].mxu0
    %v7751 = vadd.f32 %v7710, %v7750
    %v7752 = vpop.f32.mrb[0].mxu0
    %v7753 = vpop.f32.mrb[0].mxu0
    %v7754 = vadd.f32 %v7713, %v7753
    %v7755 = vpop.f32.mrb[0].mxu0
    %7756 = vdwg.mxu0
    %7757 = vmatprep.subr.bf16.mxu0 0
    %7758 = vmatpush1.bf16.msra.mxu0 %v7376
    %7759 = vmatprep.subr.bf16.mxu0 0
    %7760 = vmatpush1.bf16.msra.mxu0 %v7377
    %7761 = vmatprep.subr.bf16.mxu0 0
    %7762 = vmatpush1.bf16.msra.mxu0 %v7378
    %7763 = vmatprep.subr.bf16.mxu0 0
    %7764 = vmatpush1.bf16.msra.mxu0 %v7379
    %7765 = vmatprep.subr.bf16.mxu0 0
    %7766 = vmatpush1.bf16.msra.mxu0 %v7380
    %7767 = vmatprep.subr.bf16.mxu0 0
    %7768 = vmatpush1.bf16.msra.mxu0 %v7381
    %7769 = vmatprep.subr.bf16.mxu0 0
    %7770 = vmatpush1.bf16.msra.mxu0 %v7382
    %7771 = vmatprep.subr.bf16.mxu0 0
    %7772 = vmatpush1.bf16.msra.mxu0 %v7383
    %7773 = vmatprep.subr.bf16.mxu0 0
    %7774 = vmatpush1.bf16.msra.mxu0 %v7384
    %7775 = vmatprep.subr.bf16.mxu0 0
    %7776 = vmatpush1.bf16.msra.mxu0 %v7385
    %7777 = vmatprep.subr.bf16.mxu0 0
    %7778 = vmatpush1.bf16.msra.mxu0 %v7386
    %7779 = vmatprep.subr.bf16.mxu0 0
    %7780 = vmatpush1.bf16.msra.mxu0 %v7387
    %7781 = vmatprep.subr.bf16.mxu0 0
    %7782 = vmatpush1.bf16.msra.mxu0 %v7388
    %7783 = vmatprep.subr.bf16.mxu0 0
    %7784 = vmatpush1.bf16.msra.mxu0 %v7389
    %7785 = vmatprep.subr.bf16.mxu0 0
    %7786 = vmatpush1.bf16.msra.mxu0 %v7390
    %7787 = vmatprep.subr.bf16.mxu0 0
    %7788 = vmatpush1.bf16.msra.mxu0 %v7391
    %7789 = vmatprep.mubr.bf16.mxu0 %v6773
    %7790 = vmatmul.mubr.bf16.gmra.mrb[0].mxu0 %v6772
    %v7791 = vpop.f32.mrb[0].mxu0
    %v7792 = vadd.f32 %v7751, %v7791
    %v7793 = vpop.f32.mrb[0].mxu0
    %v7794 = vpop.f32.mrb[0].mxu0
    %v7795 = vadd.f32 %v7754, %v7794
    %v7796 = vpop.f32.mrb[0].mxu0
    %7797 = vdwg.mxu0
    %7798 = vmatprep.subr.bf16.mxu0 0
    %7799 = vmatpush1.bf16.msra.mxu0 %v7392
    %7800 = vmatprep.subr.bf16.mxu0 0
    %7801 = vmatpush1.bf16.msra.mxu0 %v7393
    %7802 = vmatprep.subr.bf16.mxu0 0
    %7803 = vmatpush1.bf16.msra.mxu0 %v7394
    %7804 = vmatprep.subr.bf16.mxu0 0
    %7805 = vmatpush1.bf16.msra.mxu0 %v7395
    %7806 = vmatprep.subr.bf16.mxu0 0
    %7807 = vmatpush1.bf16.msra.mxu0 %v7396
    %7808 = vmatprep.subr.bf16.mxu0 0
    %7809 = vmatpush1.bf16.msra.mxu0 %v7397
    %7810 = vmatprep.subr.bf16.mxu0 0
    %7811 = vmatpush1.bf16.msra.mxu0 %v7398
    %7812 = vmatprep.subr.bf16.mxu0 0
    %7813 = vmatpush1.bf16.msra.mxu0 %v7399
    %7814 = vmatprep.subr.bf16.mxu0 0
    %7815 = vmatpush1.bf16.msra.mxu0 %v7400
    %7816 = vmatprep.subr.bf16.mxu0 0
    %7817 = vmatpush1.bf16.msra.mxu0 %v7401
    %7818 = vmatprep.subr.bf16.mxu0 0
    %7819 = vmatpush1.bf16.msra.mxu0 %v7402
    %7820 = vmatprep.subr.bf16.mxu0 0
    %7821 = vmatpush1.bf16.msra.mxu0 %v7403
    %7822 = vmatprep.subr.bf16.mxu0 0
    %7823 = vmatpush1.bf16.msra.mxu0 %v7404
    %7824 = vmatprep.subr.bf16.mxu0 0
    %7825 = vmatpush1.bf16.msra.mxu0 %v7405
    %7826 = vmatprep.subr.bf16.mxu0 0
    %7827 = vmatpush1.bf16.msra.mxu0 %v7406
    %7828 = vmatprep.subr.bf16.mxu0 0
    %7829 = vmatpush1.bf16.msra.mxu0 %v7407
    %7830 = vmatprep.mubr.bf16.mxu0 %v6775
    %7831 = vmatmul.mubr.bf16.gmra.mrb[0].mxu0 %v6774
    %v7832 = vpop.f32.mrb[0].mxu0
    %v7833 = vadd.f32 %v7792, %v7832
    %v7834 = vpop.f32.mrb[0].mxu0
    %v7835 = vpop.f32.mrb[0].mxu0
    %v7836 = vadd.f32 %v7795, %v7835
    %v7837 = vpop.f32.mrb[0].mxu0
    %7838 = vdwg.mxu0
    %7839 = vmatprep.subr.bf16.mxu0 0
    %7840 = vmatpush1.bf16.msra.mxu0 %v7408
    %7841 = vmatprep.subr.bf16.mxu0 0
    %7842 = vmatpush1.bf16.msra.mxu0 %v7409
    %7843 = vmatprep.subr.bf16.mxu0 0
    %7844 = vmatpush1.bf16.msra.mxu0 %v7410
    %7845 = vmatprep.subr.bf16.mxu0 0
    %7846 = vmatpush1.bf16.msra.mxu0 %v7411
    %7847 = vmatprep.subr.bf16.mxu0 0
    %7848 = vmatpush1.bf16.msra.mxu0 %v7412
    %7849 = vmatprep.subr.bf16.mxu0 0
    %7850 = vmatpush1.bf16.msra.mxu0 %v7413
    %7851 = vmatprep.subr.bf16.mxu0 0
    %7852 = vmatpush1.bf16.msra.mxu0 %v7414
    %7853 = vmatprep.subr.bf16.mxu0 0
    %7854 = vmatpush1.bf16.msra.mxu0 %v7415
    %7855 = vmatprep.subr.bf16.mxu0 0
    %7856 = vmatpush1.bf16.msra.mxu0 %v7416
    %7857 = vmatprep.subr.bf16.mxu0 0
    %7858 = vmatpush1.bf16.msra.mxu0 %v7417
    %7859 = vmatprep.subr.bf16.mxu0 0
    %7860 = vmatpush1.bf16.msra.mxu0 %v7418
    %7861 = vmatprep.subr.bf16.mxu0 0
    %7862 = vmatpush1.bf16.msra.mxu0 %v7419
    %7863 = vmatprep.subr.bf16.mxu0 0
    %7864 = vmatpush1.bf16.msra.mxu0 %v7420
    %7865 = vmatprep.subr.bf16.mxu0 0
    %7866 = vmatpush1.bf16.msra.mxu0 %v7421
    %7867 = vmatprep.subr.bf16.mxu0 0
    %7868 = vmatpush1.bf16.msra.mxu0 %v7422
    %7869 = vmatprep.subr.bf16.mxu0 0
    %7870 = vmatpush1.bf16.msra.mxu0 %v7423
    %7871 = vmatprep.mubr.bf16.mxu0 %v6777
    %7872 = vmatmul.mubr.bf16.gmra.mrb[0].mxu0 %v6776
    %v7873 = vpop.f32.mrb[0].mxu0
    %v7874 = vadd.f32 %v7833, %v7873
    %v7875 = vpop.f32.mrb[0].mxu0
    %v7876 = vpop.f32.mrb[0].mxu0
    %v7877 = vadd.f32 %v7836, %v7876
    %v7878 = vpop.f32.mrb[0].mxu0
    %7879 = vdwg.mxu0
    %v7880 = vadd.f32 %v5843, %v7874
    %v7881 = vadd.f32 %v5844, %v7877
    %s7882 = scalar_lea.vmem %s13, 1
    %v7883 = vld [vmem:[%s7882] sm:$0x1]
    %s7884 = scalar_lea.vmem %s14, 1
    %v7885 = vld [vmem:[%s7884] sm:$0x1]
    %v7886 = vsel %vm148, %v7880, 0.0
    %7887 = vadd.xlane.f32.xlu0 %v7886
    %v7888 = vpop.xlane.xlu0 %7887
    %v7889 = vsel %vm148, %v7881, 0.0
    %7890 = vadd.xlane.f32.xlu0 %v7889
    %v7891 = vpop.xlane.xlu0 %7890
    %v7892 = vmul.f32 %v7888, %v1908
    %v7893 = vmul.f32 %v7891, %v1908
    %v7894 = vsub.f32 %v7880, %v7892
    %v7895 = vsub.f32 %v7881, %v7893
    %v7896 = vmul.f32 %v7894, %v7894
    %v7897 = vmul.f32 %v7895, %v7895
    %v7898 = vsel %vm148, %v7896, 0.0
    %7899 = vadd.xlane.f32.xlu0 %v7898
    %v7900 = vpop.xlane.xlu0 %7899
    %v7901 = vsel %vm148, %v7897, 0.0
    %7902 = vadd.xlane.f32.xlu0 %v7901
    %v7903 = vpop.xlane.xlu0 %7902
    %v7904 = vmul.f32 %v7900, %v1908
    %v7905 = vmul.f32 %v7903, %v1908
    %v7906 = vadd.f32 %v7904, 1e-05
    %v7907 = vadd.f32 %v7905, 1e-05
    %v7908 = vrsqrt.pop %v7906
    %v7909 = vrsqrt.pop %v7907
    %v7910 = vmul.f32 %v7894, %v7908
    %v7911 = vmul.f32 %v7895, %v7909
    %v7913 = vlaneseq
    %v7914 = vshrl.u32 %v7913, 7
    %v7915 = vsub.s32 0, %v7914
    %v7916 = vrot.slane %v7883, %v7915
    %v7918 = vmul.f32 %v7910, %v7916
    %v7919 = vmul.f32 %v7911, %v7916
    %v7921 = vlaneseq
    %v7922 = vshrl.u32 %v7921, 7
    %v7923 = vsub.s32 0, %v7922
    %v7924 = vrot.slane %v7885, %v7923
    %v7926 = vadd.f32 %v7918, %v7924
    %v7927 = vadd.f32 %v7919, %v7924
    %v7928 = vld [vmem:[%s15] sm:$0xf]
    %v7929 = vld [vmem:[%s15 + $0x4] sm:$0xf]
    %v7930 = vld [vmem:[%s15 + $0x8] sm:$0xf]
    %v7931 = vld [vmem:[%s15 + $0xc] sm:$0xf]
    %v7932 = vld [vmem:[%s16] sm:$0x1]
    %v7933 = vpack.c.bf16 %v7927, %v7926
    %v7935 = vlaneseq
    %v7936 = vshrl.u32 %v7935, 7
    %v7937 = vsub.s32 0, %v7936
    %v7938 = vrot.slane %v7932, %v7937
    %v7944 = vunpack.c.l.b16 %v7928
    %v7945 = vunpack.c.l.b16 %v7929
    %v7946 = vunpack.c.l.b16 %v7930
    %v7947 = vunpack.c.l.b16 %v7931
    %v7948 = vpack.c.b16 %v7945, %v7944
    %v7949 = vpack.c.b16 %v7947, %v7946
    %v7953 = vsel %vm148, %v7933, 0
    %7955 = vmatprep.subr.bf16.mxu0 0
    %7956 = vmatpush1.bf16.msra.mxu0 %v7948
    %7957 = vmatprep.subr.bf16.mxu0 0
    %7958 = vmatpush1.bf16.msra.mxu0 %v7949
    %7959 = vmatprep.subr.bf16.mxu0 0
    %7960 = vmatpush1.bf16.msra.mxu0 0
    %7961 = vmatprep.subr.bf16.mxu0 0
    %7962 = vmatpush1.bf16.msra.mxu0 0
    %7963 = vmatprep.subr.bf16.mxu0 0
    %7964 = vmatpush1.bf16.msra.mxu0 0
    %7965 = vmatprep.subr.bf16.mxu0 0
    %7966 = vmatpush1.bf16.msra.mxu0 0
    %7967 = vmatprep.subr.bf16.mxu0 0
    %7968 = vmatpush1.bf16.msra.mxu0 0
    %7969 = vmatprep.subr.bf16.mxu0 0
    %7970 = vmatpush1.bf16.msra.mxu0 0
    %7971 = vmatprep.subr.bf16.mxu0 0
    %7972 = vmatpush1.bf16.msra.mxu0 0
    %7973 = vmatprep.subr.bf16.mxu0 0
    %7974 = vmatpush1.bf16.msra.mxu0 0
    %7975 = vmatprep.subr.bf16.mxu0 0
    %7976 = vmatpush1.bf16.msra.mxu0 0
    %7977 = vmatprep.subr.bf16.mxu0 0
    %7978 = vmatpush1.bf16.msra.mxu0 0
    %7979 = vmatprep.subr.bf16.mxu0 0
    %7980 = vmatpush1.bf16.msra.mxu0 0
    %7981 = vmatprep.subr.bf16.mxu0 0
    %7982 = vmatpush1.bf16.msra.mxu0 0
    %7983 = vmatprep.subr.bf16.mxu0 0
    %7984 = vmatpush1.bf16.msra.mxu0 0
    %7985 = vmatprep.subr.bf16.mxu0 0
    %7986 = vmatpush1.bf16.msra.mxu0 0
    %7987 = vmatprep.mubr.bf16.mxu0 0
    %7988 = vmatmul.mubr.bf16.gmra.mrb[0].mxu0 %v7953
    %v7989 = vpop.f32.mrb[0].mxu0
    %v7990 = vadd.f32 %v7938, %v7989
    %v7991 = vpop.f32.mrb[0].mxu0
    %v7992 = vpop.f32.mrb[0].mxu0
    %v7993 = vadd.f32 %v7938, %v7992
    %v7994 = vpop.f32.mrb[0].mxu0
    %7995 = vdwg.mxu0
    %7996 = vst.msk [vmem:[#allocation2] sm:$0xff] %vm75, %v7990
    %7997 = vst.msk [vmem:[#allocation2 + $0x8] sm:$0xff] %vm75, %v7993
    // Predicated region
    $region70: #{_lambda_.1} parent=1 // pred_check
      _
    $region71: #{_lambda_.1} parent=1 // pred_check_branch
      %7999 = sbr.rel (0) target = $region73
    $region72: #{_lambda_.1} parent=1 // pred_region
      %s8001 = ssub.s32 256, 256
      %8002 = vsyncadd [#allocation3], %s8001
      %s8003 = sshll.u32 [#allocation2], 4
      %s8004 = int_to_ptr.vmem [resolvable:$true] %s8003
      %8009 = dma.vmem_to_hbm [thread:$0]  %s8004, 256, %s17, [#allocation3], 128, 128, 8
    $region73: #{_lambda_.1} parent=1 // pred_fallthru
      _
    // Predicated region
    $region74: #{_lambda_.1} parent=1 // pred_check
      _
    $region75: #{_lambda_.1} parent=1 // pred_check_branch
      %8011 = sbr.rel (0) target = $region77
    $region76: #{_lambda_.1} parent=1 // pred_region
      %8012 = dma.done [#allocation3], 256
    $region77: #{_lambda_.1} parent=1 // pred_fallthru
      _
    %8013 = vsyncpa [#allocation3], 1

</llo_original>
